<compile_context>
chip_gen: v7x
topology: tpu7x:2x2x1
jax: 0.10.0
libtpu: 0.0.40
codegen_flags: <defaults>
</compile_context>

<pallas_src>
import functools

import jax
import jax.numpy as jnp
from jax import lax
from jax.experimental import pallas as pl
from jax.experimental.pallas import tpu as pltpu


# ----------------------------------------------------------------------------
# Fused C2f kernel.  One grid step == Nb batch elements, layout (C, Nb*H*W).
# ----------------------------------------------------------------------------
def _c2f_fused_kernel(x_ref, w1_ref, b1_ref, wm_ref, bm_ref, w2_ref, b2_ref,
                      o_ref, *, H, W, c, n, nb, shortcut):
    f32 = jnp.float32
    M = H * W
    L = nb * M
    cdt = wm_ref.dtype                        # compute dtype (f32 or bf16)
    c2 = w2_ref.shape[1]

    # Fold the Nb batch elements of this step onto the lane axis:
    # (Nb, c1, M) -> (c1, Nb*M).  M is a multiple of 128 -> aligned copies.
    x = jnp.concatenate([x_ref[i] for i in range(nb)], axis=-1)

    # 3x3 boundary masks from iota (per-image row / per-row column validity).
    pos = lax.broadcasted_iota(jnp.int32, (1, L), 1)
    pm = pos % M                               # position within one image
    px = pos % W                               # column within the row
    row_ok = {-1: pm >= W, 0: None, 1: pm < (M - W)}
    col_ok = {-1: px > 0, 0: None, 1: px < (W - 1)}
    zero = jnp.zeros((), cdt)

    def silu(v):                               # f32 epilogue (exp on the EUP)
        return v * jax.nn.sigmoid(v)

    def conv3x3(t_f32, layer):
        # 3x3 'same' conv + folded BN + SiLU as 9 accumulated per-tap
        # matmuls; no (9c, L) im2col buffer.
        t = t_f32.astype(cdt)                  # cast before tap construction
        acc = jnp.zeros((c, L), f32)
        for dy in (-1, 0, 1):
            slab = t if dy == 0 else pltpu.roll(t, (-dy * W) % L, axis=1)
            if row_ok[dy] is not None:
                slab = jnp.where(row_ok[dy], slab, zero)
            for dx in (-1, 0, 1):
                tap = slab if dx == 0 else pltpu.roll(slab, (-dx) % L, axis=1)
                if col_ok[dx] is not None:
                    tap = jnp.where(col_ok[dx], tap, zero)
                k = 3 * (dy + 1) + (dx + 1)
                acc = acc + jnp.dot(wm_ref[layer, k], tap,
                                    preferred_element_type=f32)
        return silu(acc + bm_ref[layer])

    def cv2_add(z, chunk_f32, j):
        # Accumulated cv2 partial matmul (replaces the big channel concat).
        return z + jnp.dot(w2_ref[j], chunk_f32.astype(cdt),
                           preferred_element_type=f32)

    # --- cv1 (1x1, BN folded) + SiLU, pre-split into its two chunks ---------
    y0 = silu(jnp.dot(w1_ref[0], x, preferred_element_type=f32) + b1_ref[0])
    y1 = silu(jnp.dot(w1_ref[1], x, preferred_element_type=f32) + b1_ref[1])

    z = jnp.zeros((c2, L), f32)
    z = cv2_add(z, y0, 0)
    z = cv2_add(z, y1, 1)

    # --- n Bottlenecks, each output folded into cv2 as it is produced -------
    cur = y1
    for i in range(n):
        t = conv3x3(cur, 2 * i)
        t = conv3x3(t, 2 * i + 1)
        if shortcut:                           # Bottleneck.add (c == c)
            t = cur + t
        z = cv2_add(z, t, 2 + i)
        cur = t

    z = silu(z + b2_ref[...])                  # cv2 bias + SiLU, f32

    # Un-fold the batch: lane-aligned, dense stores (M multiple of 128).
    for bi in range(nb):
        o_ref[bi] = z[:, bi * M:(bi + 1) * M].astype(o_ref.dtype)


# ----------------------------------------------------------------------------
# Wrapper: weight packing (BN fold + kernel-friendly layouts) + pallas_call
# ----------------------------------------------------------------------------
def _fold_1x1(p, compute_dtype):
    # HWIO (1,1,cin,cout) -> (cout, cin) with BN scale folded into the rows.
    w = p["w"][0, 0].T * p["scale"][:, None]
    b = p["bias"].reshape(-1, 1).astype(jnp.float32)
    return w.astype(compute_dtype), b


def _fold_3x3_taps(p, compute_dtype):
    # HWIO (3,3,cin,cout) -> per-tap (9, cout, cin), BN scale folded.
    # Tap k = 3*(dy+1) + (dx+1) matches the kernel's tap loop order, and a
    # static leading index avoids unaligned lane slices of a packed weight.
    kh, kw, cin, cout = p["w"].shape
    w = p["w"] * p["scale"][None, None, None, :]
    w = jnp.transpose(w, (0, 1, 3, 2)).reshape(kh * kw, cout, cin)
    b = p["bias"].reshape(-1, 1).astype(jnp.float32)
    return w.astype(compute_dtype), b


def _pick_vmem_limit_bytes():
    # ~75% of physical VMEM: ~96 MiB on v5e/v6e (128 MiB), ~48 MiB on v7x.
    fallback = 64 * 1024 * 1024
    try:
        cap = int(pltpu.get_tpu_info().vmem_capacity_bytes)
    except Exception:
        return fallback
    return max(32 * 1024 * 1024, min(cap * 3 // 4, 112 * 1024 * 1024))


def _largest_divisor_leq(n, cap):
    for d in range(min(n, cap), 0, -1):
        if n % d == 0:
            return d
    return 1


def c2f_forward(params, x_nchw, shortcut=False, compute_dtype=jnp.float32,
                out_dtype=jnp.float32, max_batch_block=8):
    """C2f forward pass. Input/output in NCHW (PyTorch convention).

    compute_dtype: bf16 on v6e/v7x for the fast path; keep f32 on v5e
    (no bf16 VPU).  out_dtype=bf16 halves the HBM writeback if the consumer
    accepts it.
    """
    N, c1, H, W = x_nchw.shape
    M = H * W
    c = params["c"]
    n = len(params["m"])
    assert n >= 1, "C2f with n >= 1 Bottlenecks"

    # Weight packing (eval-mode BN fold + layouts the kernel indexes statically)
    w1, b1 = _fold_1x1(params["cv1"], compute_dtype)      # (2c,c1), (2c,1)
    w1p = w1.reshape(2, c, c1)                             # chunked cv1 weight
    b1p = b1.reshape(2, c, 1)
    w2, b2 = _fold_1x1(params["cv2"], compute_dtype)       # (c2,(2+n)c), (c2,1)
    c2_out = w2.shape[0]
    w2p = jnp.transpose(w2.reshape(c2_out, 2 + n, c), (1, 0, 2))  # (2+n,c2,c)
    wm_list, bm_list = [], []
    for m in params["m"]:
        for conv in (m["cv1"], m["cv2"]):
            wi, bi = _fold_3x3_taps(conv, compute_dtype)
            wm_list.append(wi)
            bm_list.append(bi)
    wm = jnp.stack(wm_list, 0)                             # (2n, 9, c, c)
    bm = jnp.stack(bm_list, 0)                             # (2n, c, 1)

    nb = _largest_divisor_leq(N, max_batch_block)          # batch block / step
    x_cm = x_nchw.reshape(N, c1, M).astype(compute_dtype)  # pure reshape

    kernel = functools.partial(_c2f_fused_kernel, H=H, W=W, c=c, n=n, nb=nb,
                               shortcut=shortcut)
    out = pl.pallas_call(
        kernel,
        out_shape=jax.ShapeDtypeStruct((N, c2_out, M), out_dtype),
        grid=(N // nb,),
        in_specs=[
            pl.BlockSpec((nb, c1, M), lambda b: (b, 0, 0)),
            pl.BlockSpec(w1p.shape, lambda b: (0, 0, 0)),
            pl.BlockSpec(b1p.shape, lambda b: (0, 0, 0)),
            pl.BlockSpec(wm.shape, lambda b: (0, 0, 0, 0)),
            pl.BlockSpec(bm.shape, lambda b: (0, 0, 0)),
            pl.BlockSpec(w2p.shape, lambda b: (0, 0, 0)),
            pl.BlockSpec(b2.shape, lambda b: (0, 0)),
        ],
        out_specs=pl.BlockSpec((nb, c2_out, M), lambda b: (b, 0, 0)),
        compiler_params=pltpu.CompilerParams(
            dimension_semantics=("parallel",),
            vmem_limit_bytes=_pick_vmem_limit_bytes()),
    )(x_cm, w1p, b1p, wm, bm, w2p, b2)
    return out.reshape(N, c2_out, H, W)


# ----------------------------------------------------------------------------
# Parameter init (deterministic, synthetic) with eval-mode BN fold
# ----------------------------------------------------------------------------
def _init_conv_bn(key, cin, cout, k):
    kw, kg, kb, km, kv = jax.random.split(key, 5)
    w = jax.random.normal(kw, (k, k, cin, cout), jnp.float32) * 0.1  # HWIO
    gamma = 1.0 + 0.1 * jax.random.normal(kg, (cout,), jnp.float32)
    beta = 0.1 * jax.random.normal(kb, (cout,), jnp.float32)
    mean = 0.1 * jax.random.normal(km, (cout,), jnp.float32)
    var = 1.0 + 0.1 * jnp.abs(jax.random.normal(kv, (cout,), jnp.float32))
    eps = 1e-5
    scale = gamma / jnp.sqrt(var + eps)        # eval-mode BN folded
    bias = beta - mean * scale
    return {"w": w, "scale": scale, "bias": bias}


def init_c2f_params(key, c1, c2, n=1, e=0.5):
    c = int(c2 * e)
    keys = jax.random.split(key, 2 + 2 * n)
    params = {
        "c": c,
        "cv1": _init_conv_bn(keys[0], c1, 2 * c, 1),
        "cv2": _init_conv_bn(keys[1], (2 + n) * c, c2, 1),
        "m": [],
    }
    for i in range(n):
        params["m"].append({
            "cv1": _init_conv_bn(keys[2 + 2 * i], c, c, 3),
            "cv2": _init_conv_bn(keys[3 + 2 * i], c, c, 3),
        })
    return params


# ----------------------------------------------------------------------------
# Pure-JAX reference (NCHW, high-precision convs) for the correctness check
# ----------------------------------------------------------------------------
def _ref_conv_bn_silu(x, w, scale, bias, pad):
    y = lax.conv_general_dilated(
        x, w, window_strides=(1, 1), padding=[(pad, pad), (pad, pad)],
        dimension_numbers=("NCHW", "HWIO", "NCHW"),
        precision=lax.Precision.HIGHEST)
    y = y * scale[None, :, None, None] + bias[None, :, None, None]
    return y * jax.nn.sigmoid(y)


def c2f_reference(params, x_nchw, shortcut=False):
    c = params["c"]
    cv1 = params["cv1"]
    y = _ref_conv_bn_silu(x_nchw, cv1["w"], cv1["scale"], cv1["bias"], 0)
    ys = [y[:, :c], y[:, c:]]
    cur = ys[-1]
    for m in params["m"]:
        t = _ref_conv_bn_silu(cur, m["cv1"]["w"], m["cv1"]["scale"],
                              m["cv1"]["bias"], 1)
        t = _ref_conv_bn_silu(t, m["cv2"]["w"], m["cv2"]["scale"],
                              m["cv2"]["bias"], 1)
        if shortcut:
            t = cur + t
        ys.append(t)
        cur = t
    cat = jnp.concatenate(ys, axis=1)
    cv2 = params["cv2"]
    return _ref_conv_bn_silu(cat, cv2["w"], cv2["scale"], cv2["bias"], 0)


# ----------------------------------------------------------------------------
if __name__ == "__main__":
    key = jax.random.PRNGKey(0)
    kx, kp = jax.random.split(key)

    # C2f(c1=4, c2=8, n=2, shortcut=False) -> hidden c = 4
    c1, c2, n = 4, 8, 2
    x = jax.random.normal(kx, (2, c1, 16, 16), jnp.float32)   # NCHW input
    params = init_c2f_params(kp, c1, c2, n=n, e=0.5)

    ref = jax.block_until_ready(c2f_reference(params, x, shortcut=False))

    # f32 path, both batch elements folded into one grid step (Nb=2).
    # Tolerance is set by the MXU's default f32 precision mode, not by the
    # algorithm: structural errors would be orders of magnitude larger.
    out = jax.block_until_ready(c2f_forward(params, x, shortcut=False))
    assert out.shape == (2, c2, 16, 16), out.shape
    assert jnp.allclose(out, ref, rtol=2e-2, atol=2e-2), (
        float(jnp.max(jnp.abs(out - ref))))

    # shortcut=True branch, Nb forced to 1 to exercise the multi-step grid.
    out_s = jax.block_until_ready(
        c2f_forward(params, x, shortcut=True, max_batch_block=1))
    ref_s = c2f_reference(params, x, shortcut=True)
    assert jnp.allclose(out_s, ref_s, rtol=2e-2, atol=2e-2), (
        float(jnp.max(jnp.abs(out_s - ref_s))))

    # bf16 compute + bf16 output path (v6e/v7x fast path; f32 accumulation).
    out_bf = jax.block_until_ready(
        c2f_forward(params, x, shortcut=False,
                    compute_dtype=jnp.bfloat16, out_dtype=jnp.bfloat16))
    err = jnp.abs(out_bf.astype(jnp.float32) - ref)
    assert jnp.allclose(out_bf.astype(jnp.float32), ref, rtol=8e-2, atol=8e-2), (
        float(jnp.max(err)))

    print("KERNEL_OK")
</pallas_src>

<mosaic_0001>
module attributes {stable_mosaic.version = 11 : i64} {
  func.func @_c2f_fused_kernel(%arg0: i32, %arg1: memref<2x4x256xf32, #tpu.memory_space<vmem>>, %arg2: memref<2x4x4xf32, #tpu.memory_space<vmem>>, %arg3: memref<2x4x1xf32, #tpu.memory_space<vmem>>, %arg4: memref<4x9x4x4xf32, #tpu.memory_space<vmem>>, %arg5: memref<4x4x1xf32, #tpu.memory_space<vmem>>, %arg6: memref<4x8x4xf32, #tpu.memory_space<vmem>>, %arg7: memref<8x1xf32, #tpu.memory_space<vmem>>, %arg8: memref<2x8x256xf32, #tpu.memory_space<vmem>>) attributes {dimension_semantics = [#tpu.dimension_semantics<parallel>], iteration_bounds = array<i64: 1>, scalar_prefetch = 0 : i64, scratch_operands = 0 : i64, tpu.core_type = #tpu.core_type<tc>, window_params = [{transform_indices = @transform_0, window_bounds = array<i64: 2, 4, 256>}, {pipeline_mode = #tpu.pipeline_mode<synchronous>, transform_indices = @transform_1, window_bounds = array<i64: 2, 4, 4>}, {pipeline_mode = #tpu.pipeline_mode<synchronous>, transform_indices = @transform_2, window_bounds = array<i64: 2, 4, 1>}, {pipeline_mode = #tpu.pipeline_mode<synchronous>, transform_indices = @transform_3, window_bounds = array<i64: 4, 9, 4, 4>}, {pipeline_mode = #tpu.pipeline_mode<synchronous>, transform_indices = @transform_4, window_bounds = array<i64: 4, 4, 1>}, {pipeline_mode = #tpu.pipeline_mode<synchronous>, transform_indices = @transform_5, window_bounds = array<i64: 4, 8, 4>}, {pipeline_mode = #tpu.pipeline_mode<synchronous>, transform_indices = @transform_6, window_bounds = array<i64: 8, 1>}, {transform_indices = @transform_7, window_bounds = array<i64: 2, 8, 256>}]} {
    %c0 = arith.constant 0 : index
    %c0_0 = arith.constant 0 : index
    %c0_1 = arith.constant 0 : index
    %0 = vector.load %arg1[%c0, %c0_0, %c0_1] : memref<2x4x256xf32, #tpu.memory_space<vmem>>, vector<1x4x256xf32>
    %1 = vector.shape_cast %0 : vector<1x4x256xf32> to vector<4x256xf32>
    %c1 = arith.constant 1 : index
    %c0_2 = arith.constant 0 : index
    %c0_3 = arith.constant 0 : index
    %2 = vector.load %arg1[%c1, %c0_2, %c0_3] : memref<2x4x256xf32, #tpu.memory_space<vmem>>, vector<1x4x256xf32>
    %3 = vector.shape_cast %2 : vector<1x4x256xf32> to vector<4x256xf32>
    %4 = tpu.concatenate %1, %3 in 1 : vector<4x256xf32>, vector<4x256xf32> -> vector<4x512xf32>
    %5 = tpu.iota {dimensions = array<i32: 1>} : vector<1x512xi32>
    %c256_i32 = arith.constant 256 : i32
    %c0_i32 = arith.constant 0 : i32
    %6 = arith.cmpi eq, %c256_i32, %c0_i32 : i32
    %c1_i32 = arith.constant 1 : i32
    %7 = arith.select %6, %c1_i32, %c256_i32 : i32
    %8 = vector.broadcast %7 : i32 to vector<1x512xi32>
    %9 = arith.remsi %5, %8 : vector<1x512xi32>
    %c0_i32_4 = arith.constant 0 : i32
    %10 = vector.broadcast %c0_i32_4 : i32 to vector<1x512xi32>
    %11 = arith.cmpi ne, %9, %10 : vector<1x512xi32>
    %c0_i32_5 = arith.constant 0 : i32
    %12 = vector.broadcast %c0_i32_5 : i32 to vector<1x512xi32>
    %13 = arith.cmpi slt, %9, %12 : vector<1x512xi32>
    %c0_i32_6 = arith.constant 0 : i32
    %14 = arith.cmpi slt, %7, %c0_i32_6 : i32
    %15 = vector.broadcast %14 : i1 to vector<1x512xi1>
    %16 = vector.broadcast %15 : vector<1x512xi1> to vector<1x512xi1>
    %17 = arith.xori %13, %16 : vector<1x512xi1>
    %18 = arith.andi %17, %11 : vector<1x512xi1>
    %19 = vector.broadcast %7 : i32 to vector<1x512xi32>
    %20 = arith.addi %9, %19 : vector<1x512xi32>
    %21 = arith.select %18, %20, %9 : vector<1x512xi1>, vector<1x512xi32>
    %c16_i32 = arith.constant 16 : i32
    %c0_i32_7 = arith.constant 0 : i32
    %22 = arith.cmpi eq, %c16_i32, %c0_i32_7 : i32
    %c1_i32_8 = arith.constant 1 : i32
    %23 = arith.select %22, %c1_i32_8, %c16_i32 : i32
    %24 = vector.broadcast %23 : i32 to vector<1x512xi32>
    %25 = arith.remsi %5, %24 : vector<1x512xi32>
    %c0_i32_9 = arith.constant 0 : i32
    %26 = vector.broadcast %c0_i32_9 : i32 to vector<1x512xi32>
    %27 = arith.cmpi ne, %25, %26 : vector<1x512xi32>
    %c0_i32_10 = arith.constant 0 : i32
    %28 = vector.broadcast %c0_i32_10 : i32 to vector<1x512xi32>
    %29 = arith.cmpi slt, %25, %28 : vector<1x512xi32>
    %c0_i32_11 = arith.constant 0 : i32
    %30 = arith.cmpi slt, %23, %c0_i32_11 : i32
    %31 = vector.broadcast %30 : i1 to vector<1x512xi1>
    %32 = vector.broadcast %31 : vector<1x512xi1> to vector<1x512xi1>
    %33 = arith.xori %29, %32 : vector<1x512xi1>
    %34 = arith.andi %33, %27 : vector<1x512xi1>
    %35 = vector.broadcast %23 : i32 to vector<1x512xi32>
    %36 = arith.addi %25, %35 : vector<1x512xi32>
    %37 = arith.select %34, %36, %25 : vector<1x512xi1>, vector<1x512xi32>
    %c16_i32_12 = arith.constant 16 : i32
    %38 = vector.broadcast %c16_i32_12 : i32 to vector<1x512xi32>
    %39 = arith.cmpi sge, %21, %38 : vector<1x512xi32>
    %c240_i32 = arith.constant 240 : i32
    %40 = vector.broadcast %c240_i32 : i32 to vector<1x512xi32>
    %41 = arith.cmpi slt, %21, %40 : vector<1x512xi32>
    %c0_i32_13 = arith.constant 0 : i32
    %42 = vector.broadcast %c0_i32_13 : i32 to vector<1x512xi32>
    %43 = arith.cmpi sgt, %37, %42 : vector<1x512xi32>
    %c15_i32 = arith.constant 15 : i32
    %44 = vector.broadcast %c15_i32 : i32 to vector<1x512xi32>
    %45 = arith.cmpi slt, %37, %44 : vector<1x512xi32>
    %c0_14 = arith.constant 0 : index
    %c0_15 = arith.constant 0 : index
    %c0_16 = arith.constant 0 : index
    %46 = vector.load %arg2[%c0_14, %c0_15, %c0_16] : memref<2x4x4xf32, #tpu.memory_space<vmem>>, vector<1x4x4xf32>
    %47 = vector.shape_cast %46 : vector<1x4x4xf32> to vector<4x4xf32>
    %cst = arith.constant dense<0.000000e+00> : vector<4x512xf32>
    %48 = tpu.matmul %47, %4, %cst {dimension_numbers = #tpu.dot_dimension_numbers<[1], [0], [0], [1], [0, 0, 1, 1], [], []>} : vector<4x4xf32>, vector<4x512xf32>, vector<4x512xf32> -> vector<4x512xf32>
    %c0_17 = arith.constant 0 : index
    %c0_18 = arith.constant 0 : index
    %c0_19 = arith.constant 0 : index
    %49 = vector.load %arg3[%c0_17, %c0_18, %c0_19] : memref<2x4x1xf32, #tpu.memory_space<vmem>>, vector<1x4x1xf32>
    %50 = vector.shape_cast %49 : vector<1x4x1xf32> to vector<4x1xf32>
    %51 = vector.broadcast %50 : vector<4x1xf32> to vector<4x512xf32>
    %52 = arith.addf %48, %51 : vector<4x512xf32>
    %53 = arith.negf %52 : vector<4x512xf32>
    %54 = math.exp %53 : vector<4x512xf32>
    %cst_20 = arith.constant 1.000000e+00 : f32
    %55 = vector.broadcast %cst_20 : f32 to vector<4x512xf32>
    %56 = arith.addf %55, %54 : vector<4x512xf32>
    %57 = arith.divf %55, %56 : vector<4x512xf32>
    %58 = arith.mulf %52, %57 : vector<4x512xf32>
    %c1_21 = arith.constant 1 : index
    %c0_22 = arith.constant 0 : index
    %c0_23 = arith.constant 0 : index
    %59 = vector.load %arg2[%c1_21, %c0_22, %c0_23] : memref<2x4x4xf32, #tpu.memory_space<vmem>>, vector<1x4x4xf32>
    %60 = vector.shape_cast %59 : vector<1x4x4xf32> to vector<4x4xf32>
    %cst_24 = arith.constant dense<0.000000e+00> : vector<4x512xf32>
    %61 = tpu.matmul %60, %4, %cst_24 {dimension_numbers = #tpu.dot_dimension_numbers<[1], [0], [0], [1], [0, 0, 1, 1], [], []>} : vector<4x4xf32>, vector<4x512xf32>, vector<4x512xf32> -> vector<4x512xf32>
    %c1_25 = arith.constant 1 : index
    %c0_26 = arith.constant 0 : index
    %c0_27 = arith.constant 0 : index
    %62 = vector.load %arg3[%c1_25, %c0_26, %c0_27] : memref<2x4x1xf32, #tpu.memory_space<vmem>>, vector<1x4x1xf32>
    %63 = vector.shape_cast %62 : vector<1x4x1xf32> to vector<4x1xf32>
    %64 = vector.broadcast %63 : vector<4x1xf32> to vector<4x512xf32>
    %65 = arith.addf %61, %64 : vector<4x512xf32>
    %66 = arith.negf %65 : vector<4x512xf32>
    %67 = math.exp %66 : vector<4x512xf32>
    %cst_28 = arith.constant 1.000000e+00 : f32
    %68 = vector.broadcast %cst_28 : f32 to vector<4x512xf32>
    %69 = arith.addf %68, %67 : vector<4x512xf32>
    %70 = arith.divf %68, %69 : vector<4x512xf32>
    %71 = arith.mulf %65, %70 : vector<4x512xf32>
    %cst_29 = arith.constant 0.000000e+00 : f32
    %72 = vector.broadcast %cst_29 : f32 to vector<8x512xf32>
    %c0_30 = arith.constant 0 : index
    %c0_31 = arith.constant 0 : index
    %c0_32 = arith.constant 0 : index
    %73 = vector.load %arg6[%c0_30, %c0_31, %c0_32] : memref<4x8x4xf32, #tpu.memory_space<vmem>>, vector<1x8x4xf32>
    %74 = vector.shape_cast %73 : vector<1x8x4xf32> to vector<8x4xf32>
    %cst_33 = arith.constant dense<0.000000e+00> : vector<8x512xf32>
    %75 = tpu.matmul %74, %58, %cst_33 {dimension_numbers = #tpu.dot_dimension_numbers<[1], [0], [0], [1], [0, 0, 1, 1], [], []>} : vector<8x4xf32>, vector<4x512xf32>, vector<8x512xf32> -> vector<8x512xf32>
    %76 = arith.addf %72, %75 : vector<8x512xf32>
    %c1_34 = arith.constant 1 : index
    %c0_35 = arith.constant 0 : index
    %c0_36 = arith.constant 0 : index
    %77 = vector.load %arg6[%c1_34, %c0_35, %c0_36] : memref<4x8x4xf32, #tpu.memory_space<vmem>>, vector<1x8x4xf32>
    %78 = vector.shape_cast %77 : vector<1x8x4xf32> to vector<8x4xf32>
    %cst_37 = arith.constant dense<0.000000e+00> : vector<8x512xf32>
    %79 = tpu.matmul %78, %71, %cst_37 {dimension_numbers = #tpu.dot_dimension_numbers<[1], [0], [0], [1], [0, 0, 1, 1], [], []>} : vector<8x4xf32>, vector<4x512xf32>, vector<8x512xf32> -> vector<8x512xf32>
    %80 = arith.addf %76, %79 : vector<8x512xf32>
    %cst_38 = arith.constant 0.000000e+00 : f32
    %81 = vector.broadcast %cst_38 : f32 to vector<4x512xf32>
    %c16_i32_39 = arith.constant 16 : i32
    %82 = tpu.dynamic_rotate %71 by %c16_i32_39 dim 1 : vector<4x512xf32>, i32 -> vector<4x512xf32>
    %cst_40 = arith.constant 0.000000e+00 : f32
    %83 = vector.shape_cast %39 : vector<1x512xi1> to vector<1x512xi1>
    %84 = vector.broadcast %83 : vector<1x512xi1> to vector<4x512xi1>
    %85 = vector.broadcast %cst_40 : f32 to vector<4x512xf32>
    %86 = arith.select %84, %82, %85 : vector<4x512xi1>, vector<4x512xf32>
    %c1_i32_41 = arith.constant 1 : i32
    %87 = tpu.dynamic_rotate %86 by %c1_i32_41 dim 1 : vector<4x512xf32>, i32 -> vector<4x512xf32>
    %cst_42 = arith.constant 0.000000e+00 : f32
    %88 = vector.shape_cast %43 : vector<1x512xi1> to vector<1x512xi1>
    %89 = vector.broadcast %88 : vector<1x512xi1> to vector<4x512xi1>
    %90 = vector.broadcast %cst_42 : f32 to vector<4x512xf32>
    %91 = arith.select %89, %87, %90 : vector<4x512xi1>, vector<4x512xf32>
    %c0_43 = arith.constant 0 : index
    %c0_44 = arith.constant 0 : index
    %c0_45 = arith.constant 0 : index
    %c0_46 = arith.constant 0 : index
    %92 = vector.load %arg4[%c0_43, %c0_44, %c0_45, %c0_46] : memref<4x9x4x4xf32, #tpu.memory_space<vmem>>, vector<1x1x4x4xf32>
    %93 = vector.shape_cast %92 : vector<1x1x4x4xf32> to vector<4x4xf32>
    %cst_47 = arith.constant dense<0.000000e+00> : vector<4x512xf32>
    %94 = tpu.matmul %93, %91, %cst_47 {dimension_numbers = #tpu.dot_dimension_numbers<[1], [0], [0], [1], [0, 0, 1, 1], [], []>} : vector<4x4xf32>, vector<4x512xf32>, vector<4x512xf32> -> vector<4x512xf32>
    %95 = arith.addf %81, %94 : vector<4x512xf32>
    %c0_48 = arith.constant 0 : index
    %c1_49 = arith.constant 1 : index
    %c0_50 = arith.constant 0 : index
    %c0_51 = arith.constant 0 : index
    %96 = vector.load %arg4[%c0_48, %c1_49, %c0_50, %c0_51] : memref<4x9x4x4xf32, #tpu.memory_space<vmem>>, vector<1x1x4x4xf32>
    %97 = vector.shape_cast %96 : vector<1x1x4x4xf32> to vector<4x4xf32>
    %cst_52 = arith.constant dense<0.000000e+00> : vector<4x512xf32>
    %98 = tpu.matmul %97, %86, %cst_52 {dimension_numbers = #tpu.dot_dimension_numbers<[1], [0], [0], [1], [0, 0, 1, 1], [], []>} : vector<4x4xf32>, vector<4x512xf32>, vector<4x512xf32> -> vector<4x512xf32>
    %99 = arith.addf %95, %98 : vector<4x512xf32>
    %c511_i32 = arith.constant 511 : i32
    %100 = tpu.dynamic_rotate %86 by %c511_i32 dim 1 : vector<4x512xf32>, i32 -> vector<4x512xf32>
    %cst_53 = arith.constant 0.000000e+00 : f32
    %101 = vector.shape_cast %45 : vector<1x512xi1> to vector<1x512xi1>
    %102 = vector.broadcast %101 : vector<1x512xi1> to vector<4x512xi1>
    %103 = vector.broadcast %cst_53 : f32 to vector<4x512xf32>
    %104 = arith.select %102, %100, %103 : vector<4x512xi1>, vector<4x512xf32>
    %c0_54 = arith.constant 0 : index
    %c2 = arith.constant 2 : index
    %c0_55 = arith.constant 0 : index
    %c0_56 = arith.constant 0 : index
    %105 = vector.load %arg4[%c0_54, %c2, %c0_55, %c0_56] : memref<4x9x4x4xf32, #tpu.memory_space<vmem>>, vector<1x1x4x4xf32>
    %106 = vector.shape_cast %105 : vector<1x1x4x4xf32> to vector<4x4xf32>
    %cst_57 = arith.constant dense<0.000000e+00> : vector<4x512xf32>
    %107 = tpu.matmul %106, %104, %cst_57 {dimension_numbers = #tpu.dot_dimension_numbers<[1], [0], [0], [1], [0, 0, 1, 1], [], []>} : vector<4x4xf32>, vector<4x512xf32>, vector<4x512xf32> -> vector<4x512xf32>
    %108 = arith.addf %99, %107 : vector<4x512xf32>
    %c1_i32_58 = arith.constant 1 : i32
    %109 = tpu.dynamic_rotate %71 by %c1_i32_58 dim 1 : vector<4x512xf32>, i32 -> vector<4x512xf32>
    %cst_59 = arith.constant 0.000000e+00 : f32
    %110 = vector.shape_cast %43 : vector<1x512xi1> to vector<1x512xi1>
    %111 = vector.broadcast %110 : vector<1x512xi1> to vector<4x512xi1>
    %112 = vector.broadcast %cst_59 : f32 to vector<4x512xf32>
    %113 = arith.select %111, %109, %112 : vector<4x512xi1>, vector<4x512xf32>
    %c0_60 = arith.constant 0 : index
    %c3 = arith.constant 3 : index
    %c0_61 = arith.constant 0 : index
    %c0_62 = arith.constant 0 : index
    %114 = vector.load %arg4[%c0_60, %c3, %c0_61, %c0_62] : memref<4x9x4x4xf32, #tpu.memory_space<vmem>>, vector<1x1x4x4xf32>
    %115 = vector.shape_cast %114 : vector<1x1x4x4xf32> to vector<4x4xf32>
    %cst_63 = arith.constant dense<0.000000e+00> : vector<4x512xf32>
    %116 = tpu.matmul %115, %113, %cst_63 {dimension_numbers = #tpu.dot_dimension_numbers<[1], [0], [0], [1], [0, 0, 1, 1], [], []>} : vector<4x4xf32>, vector<4x512xf32>, vector<4x512xf32> -> vector<4x512xf32>
    %117 = arith.addf %108, %116 : vector<4x512xf32>
    %c0_64 = arith.constant 0 : index
    %c4 = arith.constant 4 : index
    %c0_65 = arith.constant 0 : index
    %c0_66 = arith.constant 0 : index
    %118 = vector.load %arg4[%c0_64, %c4, %c0_65, %c0_66] : memref<4x9x4x4xf32, #tpu.memory_space<vmem>>, vector<1x1x4x4xf32>
    %119 = vector.shape_cast %118 : vector<1x1x4x4xf32> to vector<4x4xf32>
    %cst_67 = arith.constant dense<0.000000e+00> : vector<4x512xf32>
    %120 = tpu.matmul %119, %71, %cst_67 {dimension_numbers = #tpu.dot_dimension_numbers<[1], [0], [0], [1], [0, 0, 1, 1], [], []>} : vector<4x4xf32>, vector<4x512xf32>, vector<4x512xf32> -> vector<4x512xf32>
    %121 = arith.addf %117, %120 : vector<4x512xf32>
    %c511_i32_68 = arith.constant 511 : i32
    %122 = tpu.dynamic_rotate %71 by %c511_i32_68 dim 1 : vector<4x512xf32>, i32 -> vector<4x512xf32>
    %cst_69 = arith.constant 0.000000e+00 : f32
    %123 = vector.shape_cast %45 : vector<1x512xi1> to vector<1x512xi1>
    %124 = vector.broadcast %123 : vector<1x512xi1> to vector<4x512xi1>
    %125 = vector.broadcast %cst_69 : f32 to vector<4x512xf32>
    %126 = arith.select %124, %122, %125 : vector<4x512xi1>, vector<4x512xf32>
    %c0_70 = arith.constant 0 : index
    %c5 = arith.constant 5 : index
    %c0_71 = arith.constant 0 : index
    %c0_72 = arith.constant 0 : index
    %127 = vector.load %arg4[%c0_70, %c5, %c0_71, %c0_72] : memref<4x9x4x4xf32, #tpu.memory_space<vmem>>, vector<1x1x4x4xf32>
    %128 = vector.shape_cast %127 : vector<1x1x4x4xf32> to vector<4x4xf32>
    %cst_73 = arith.constant dense<0.000000e+00> : vector<4x512xf32>
    %129 = tpu.matmul %128, %126, %cst_73 {dimension_numbers = #tpu.dot_dimension_numbers<[1], [0], [0], [1], [0, 0, 1, 1], [], []>} : vector<4x4xf32>, vector<4x512xf32>, vector<4x512xf32> -> vector<4x512xf32>
    %130 = arith.addf %121, %129 : vector<4x512xf32>
    %c496_i32 = arith.constant 496 : i32
    %131 = tpu.dynamic_rotate %71 by %c496_i32 dim 1 : vector<4x512xf32>, i32 -> vector<4x512xf32>
    %cst_74 = arith.constant 0.000000e+00 : f32
    %132 = vector.shape_cast %41 : vector<1x512xi1> to vector<1x512xi1>
    %133 = vector.broadcast %132 : vector<1x512xi1> to vector<4x512xi1>
    %134 = vector.broadcast %cst_74 : f32 to vector<4x512xf32>
    %135 = arith.select %133, %131, %134 : vector<4x512xi1>, vector<4x512xf32>
    %c1_i32_75 = arith.constant 1 : i32
    %136 = tpu.dynamic_rotate %135 by %c1_i32_75 dim 1 : vector<4x512xf32>, i32 -> vector<4x512xf32>
    %cst_76 = arith.constant 0.000000e+00 : f32
    %137 = vector.shape_cast %43 : vector<1x512xi1> to vector<1x512xi1>
    %138 = vector.broadcast %137 : vector<1x512xi1> to vector<4x512xi1>
    %139 = vector.broadcast %cst_76 : f32 to vector<4x512xf32>
    %140 = arith.select %138, %136, %139 : vector<4x512xi1>, vector<4x512xf32>
    %c0_77 = arith.constant 0 : index
    %c6 = arith.constant 6 : index
    %c0_78 = arith.constant 0 : index
    %c0_79 = arith.constant 0 : index
    %141 = vector.load %arg4[%c0_77, %c6, %c0_78, %c0_79] : memref<4x9x4x4xf32, #tpu.memory_space<vmem>>, vector<1x1x4x4xf32>
    %142 = vector.shape_cast %141 : vector<1x1x4x4xf32> to vector<4x4xf32>
    %cst_80 = arith.constant dense<0.000000e+00> : vector<4x512xf32>
    %143 = tpu.matmul %142, %140, %cst_80 {dimension_numbers = #tpu.dot_dimension_numbers<[1], [0], [0], [1], [0, 0, 1, 1], [], []>} : vector<4x4xf32>, vector<4x512xf32>, vector<4x512xf32> -> vector<4x512xf32>
    %144 = arith.addf %130, %143 : vector<4x512xf32>
    %c0_81 = arith.constant 0 : index
    %c7 = arith.constant 7 : index
    %c0_82 = arith.constant 0 : index
    %c0_83 = arith.constant 0 : index
    %145 = vector.load %arg4[%c0_81, %c7, %c0_82, %c0_83] : memref<4x9x4x4xf32, #tpu.memory_space<vmem>>, vector<1x1x4x4xf32>
    %146 = vector.shape_cast %145 : vector<1x1x4x4xf32> to vector<4x4xf32>
    %cst_84 = arith.constant dense<0.000000e+00> : vector<4x512xf32>
    %147 = tpu.matmul %146, %135, %cst_84 {dimension_numbers = #tpu.dot_dimension_numbers<[1], [0], [0], [1], [0, 0, 1, 1], [], []>} : vector<4x4xf32>, vector<4x512xf32>, vector<4x512xf32> -> vector<4x512xf32>
    %148 = arith.addf %144, %147 : vector<4x512xf32>
    %c511_i32_85 = arith.constant 511 : i32
    %149 = tpu.dynamic_rotate %135 by %c511_i32_85 dim 1 : vector<4x512xf32>, i32 -> vector<4x512xf32>
    %cst_86 = arith.constant 0.000000e+00 : f32
    %150 = vector.shape_cast %45 : vector<1x512xi1> to vector<1x512xi1>
    %151 = vector.broadcast %150 : vector<1x512xi1> to vector<4x512xi1>
    %152 = vector.broadcast %cst_86 : f32 to vector<4x512xf32>
    %153 = arith.select %151, %149, %152 : vector<4x512xi1>, vector<4x512xf32>
    %c0_87 = arith.constant 0 : index
    %c8 = arith.constant 8 : index
    %c0_88 = arith.constant 0 : index
    %c0_89 = arith.constant 0 : index
    %154 = vector.load %arg4[%c0_87, %c8, %c0_88, %c0_89] : memref<4x9x4x4xf32, #tpu.memory_space<vmem>>, vector<1x1x4x4xf32>
    %155 = vector.shape_cast %154 : vector<1x1x4x4xf32> to vector<4x4xf32>
    %cst_90 = arith.constant dense<0.000000e+00> : vector<4x512xf32>
    %156 = tpu.matmul %155, %153, %cst_90 {dimension_numbers = #tpu.dot_dimension_numbers<[1], [0], [0], [1], [0, 0, 1, 1], [], []>} : vector<4x4xf32>, vector<4x512xf32>, vector<4x512xf32> -> vector<4x512xf32>
    %157 = arith.addf %148, %156 : vector<4x512xf32>
    %c0_91 = arith.constant 0 : index
    %c0_92 = arith.constant 0 : index
    %c0_93 = arith.constant 0 : index
    %158 = vector.load %arg5[%c0_91, %c0_92, %c0_93] : memref<4x4x1xf32, #tpu.memory_space<vmem>>, vector<1x4x1xf32>
    %159 = vector.shape_cast %158 : vector<1x4x1xf32> to vector<4x1xf32>
    %160 = vector.broadcast %159 : vector<4x1xf32> to vector<4x512xf32>
    %161 = arith.addf %157, %160 : vector<4x512xf32>
    %162 = arith.negf %161 : vector<4x512xf32>
    %163 = math.exp %162 : vector<4x512xf32>
    %cst_94 = arith.constant 1.000000e+00 : f32
    %164 = vector.broadcast %cst_94 : f32 to vector<4x512xf32>
    %165 = arith.addf %164, %163 : vector<4x512xf32>
    %166 = arith.divf %164, %165 : vector<4x512xf32>
    %167 = arith.mulf %161, %166 : vector<4x512xf32>
    %cst_95 = arith.constant 0.000000e+00 : f32
    %168 = vector.broadcast %cst_95 : f32 to vector<4x512xf32>
    %c16_i32_96 = arith.constant 16 : i32
    %169 = tpu.dynamic_rotate %167 by %c16_i32_96 dim 1 : vector<4x512xf32>, i32 -> vector<4x512xf32>
    %cst_97 = arith.constant 0.000000e+00 : f32
    %170 = vector.shape_cast %39 : vector<1x512xi1> to vector<1x512xi1>
    %171 = vector.broadcast %170 : vector<1x512xi1> to vector<4x512xi1>
    %172 = vector.broadcast %cst_97 : f32 to vector<4x512xf32>
    %173 = arith.select %171, %169, %172 : vector<4x512xi1>, vector<4x512xf32>
    %c1_i32_98 = arith.constant 1 : i32
    %174 = tpu.dynamic_rotate %173 by %c1_i32_98 dim 1 : vector<4x512xf32>, i32 -> vector<4x512xf32>
    %cst_99 = arith.constant 0.000000e+00 : f32
    %175 = vector.shape_cast %43 : vector<1x512xi1> to vector<1x512xi1>
    %176 = vector.broadcast %175 : vector<1x512xi1> to vector<4x512xi1>
    %177 = vector.broadcast %cst_99 : f32 to vector<4x512xf32>
    %178 = arith.select %176, %174, %177 : vector<4x512xi1>, vector<4x512xf32>
    %c1_100 = arith.constant 1 : index
    %c0_101 = arith.constant 0 : index
    %c0_102 = arith.constant 0 : index
    %c0_103 = arith.constant 0 : index
    %179 = vector.load %arg4[%c1_100, %c0_101, %c0_102, %c0_103] : memref<4x9x4x4xf32, #tpu.memory_space<vmem>>, vector<1x1x4x4xf32>
    %180 = vector.shape_cast %179 : vector<1x1x4x4xf32> to vector<4x4xf32>
    %cst_104 = arith.constant dense<0.000000e+00> : vector<4x512xf32>
    %181 = tpu.matmul %180, %178, %cst_104 {dimension_numbers = #tpu.dot_dimension_numbers<[1], [0], [0], [1], [0, 0, 1, 1], [], []>} : vector<4x4xf32>, vector<4x512xf32>, vector<4x512xf32> -> vector<4x512xf32>
    %182 = arith.addf %168, %181 : vector<4x512xf32>
    %c1_105 = arith.constant 1 : index
    %c1_106 = arith.constant 1 : index
    %c0_107 = arith.constant 0 : index
    %c0_108 = arith.constant 0 : index
    %183 = vector.load %arg4[%c1_105, %c1_106, %c0_107, %c0_108] : memref<4x9x4x4xf32, #tpu.memory_space<vmem>>, vector<1x1x4x4xf32>
    %184 = vector.shape_cast %183 : vector<1x1x4x4xf32> to vector<4x4xf32>
    %cst_109 = arith.constant dense<0.000000e+00> : vector<4x512xf32>
    %185 = tpu.matmul %184, %173, %cst_109 {dimension_numbers = #tpu.dot_dimension_numbers<[1], [0], [0], [1], [0, 0, 1, 1], [], []>} : vector<4x4xf32>, vector<4x512xf32>, vector<4x512xf32> -> vector<4x512xf32>
    %186 = arith.addf %182, %185 : vector<4x512xf32>
    %c511_i32_110 = arith.constant 511 : i32
    %187 = tpu.dynamic_rotate %173 by %c511_i32_110 dim 1 : vector<4x512xf32>, i32 -> vector<4x512xf32>
    %cst_111 = arith.constant 0.000000e+00 : f32
    %188 = vector.shape_cast %45 : vector<1x512xi1> to vector<1x512xi1>
    %189 = vector.broadcast %188 : vector<1x512xi1> to vector<4x512xi1>
    %190 = vector.broadcast %cst_111 : f32 to vector<4x512xf32>
    %191 = arith.select %189, %187, %190 : vector<4x512xi1>, vector<4x512xf32>
    %c1_112 = arith.constant 1 : index
    %c2_113 = arith.constant 2 : index
    %c0_114 = arith.constant 0 : index
    %c0_115 = arith.constant 0 : index
    %192 = vector.load %arg4[%c1_112, %c2_113, %c0_114, %c0_115] : memref<4x9x4x4xf32, #tpu.memory_space<vmem>>, vector<1x1x4x4xf32>
    %193 = vector.shape_cast %192 : vector<1x1x4x4xf32> to vector<4x4xf32>
    %cst_116 = arith.constant dense<0.000000e+00> : vector<4x512xf32>
    %194 = tpu.matmul %193, %191, %cst_116 {dimension_numbers = #tpu.dot_dimension_numbers<[1], [0], [0], [1], [0, 0, 1, 1], [], []>} : vector<4x4xf32>, vector<4x512xf32>, vector<4x512xf32> -> vector<4x512xf32>
    %195 = arith.addf %186, %194 : vector<4x512xf32>
    %c1_i32_117 = arith.constant 1 : i32
    %196 = tpu.dynamic_rotate %167 by %c1_i32_117 dim 1 : vector<4x512xf32>, i32 -> vector<4x512xf32>
    %cst_118 = arith.constant 0.000000e+00 : f32
    %197 = vector.shape_cast %43 : vector<1x512xi1> to vector<1x512xi1>
    %198 = vector.broadcast %197 : vector<1x512xi1> to vector<4x512xi1>
    %199 = vector.broadcast %cst_118 : f32 to vector<4x512xf32>
    %200 = arith.select %198, %196, %199 : vector<4x512xi1>, vector<4x512xf32>
    %c1_119 = arith.constant 1 : index
    %c3_120 = arith.constant 3 : index
    %c0_121 = arith.constant 0 : index
    %c0_122 = arith.constant 0 : index
    %201 = vector.load %arg4[%c1_119, %c3_120, %c0_121, %c0_122] : memref<4x9x4x4xf32, #tpu.memory_space<vmem>>, vector<1x1x4x4xf32>
    %202 = vector.shape_cast %201 : vector<1x1x4x4xf32> to vector<4x4xf32>
    %cst_123 = arith.constant dense<0.000000e+00> : vector<4x512xf32>
    %203 = tpu.matmul %202, %200, %cst_123 {dimension_numbers = #tpu.dot_dimension_numbers<[1], [0], [0], [1], [0, 0, 1, 1], [], []>} : vector<4x4xf32>, vector<4x512xf32>, vector<4x512xf32> -> vector<4x512xf32>
    %204 = arith.addf %195, %203 : vector<4x512xf32>
    %c1_124 = arith.constant 1 : index
    %c4_125 = arith.constant 4 : index
    %c0_126 = arith.constant 0 : index
    %c0_127 = arith.constant 0 : index
    %205 = vector.load %arg4[%c1_124, %c4_125, %c0_126, %c0_127] : memref<4x9x4x4xf32, #tpu.memory_space<vmem>>, vector<1x1x4x4xf32>
    %206 = vector.shape_cast %205 : vector<1x1x4x4xf32> to vector<4x4xf32>
    %cst_128 = arith.constant dense<0.000000e+00> : vector<4x512xf32>
    %207 = tpu.matmul %206, %167, %cst_128 {dimension_numbers = #tpu.dot_dimension_numbers<[1], [0], [0], [1], [0, 0, 1, 1], [], []>} : vector<4x4xf32>, vector<4x512xf32>, vector<4x512xf32> -> vector<4x512xf32>
    %208 = arith.addf %204, %207 : vector<4x512xf32>
    %c511_i32_129 = arith.constant 511 : i32
    %209 = tpu.dynamic_rotate %167 by %c511_i32_129 dim 1 : vector<4x512xf32>, i32 -> vector<4x512xf32>
    %cst_130 = arith.constant 0.000000e+00 : f32
    %210 = vector.shape_cast %45 : vector<1x512xi1> to vector<1x512xi1>
    %211 = vector.broadcast %210 : vector<1x512xi1> to vector<4x512xi1>
    %212 = vector.broadcast %cst_130 : f32 to vector<4x512xf32>
    %213 = arith.select %211, %209, %212 : vector<4x512xi1>, vector<4x512xf32>
    %c1_131 = arith.constant 1 : index
    %c5_132 = arith.constant 5 : index
    %c0_133 = arith.constant 0 : index
    %c0_134 = arith.constant 0 : index
    %214 = vector.load %arg4[%c1_131, %c5_132, %c0_133, %c0_134] : memref<4x9x4x4xf32, #tpu.memory_space<vmem>>, vector<1x1x4x4xf32>
    %215 = vector.shape_cast %214 : vector<1x1x4x4xf32> to vector<4x4xf32>
    %cst_135 = arith.constant dense<0.000000e+00> : vector<4x512xf32>
    %216 = tpu.matmul %215, %213, %cst_135 {dimension_numbers = #tpu.dot_dimension_numbers<[1], [0], [0], [1], [0, 0, 1, 1], [], []>} : vector<4x4xf32>, vector<4x512xf32>, vector<4x512xf32> -> vector<4x512xf32>
    %217 = arith.addf %208, %216 : vector<4x512xf32>
    %c496_i32_136 = arith.constant 496 : i32
    %218 = tpu.dynamic_rotate %167 by %c496_i32_136 dim 1 : vector<4x512xf32>, i32 -> vector<4x512xf32>
    %cst_137 = arith.constant 0.000000e+00 : f32
    %219 = vector.shape_cast %41 : vector<1x512xi1> to vector<1x512xi1>
    %220 = vector.broadcast %219 : vector<1x512xi1> to vector<4x512xi1>
    %221 = vector.broadcast %cst_137 : f32 to vector<4x512xf32>
    %222 = arith.select %220, %218, %221 : vector<4x512xi1>, vector<4x512xf32>
    %c1_i32_138 = arith.constant 1 : i32
    %223 = tpu.dynamic_rotate %222 by %c1_i32_138 dim 1 : vector<4x512xf32>, i32 -> vector<4x512xf32>
    %cst_139 = arith.constant 0.000000e+00 : f32
    %224 = vector.shape_cast %43 : vector<1x512xi1> to vector<1x512xi1>
    %225 = vector.broadcast %224 : vector<1x512xi1> to vector<4x512xi1>
    %226 = vector.broadcast %cst_139 : f32 to vector<4x512xf32>
    %227 = arith.select %225, %223, %226 : vector<4x512xi1>, vector<4x512xf32>
    %c1_140 = arith.constant 1 : index
    %c6_141 = arith.constant 6 : index
    %c0_142 = arith.constant 0 : index
    %c0_143 = arith.constant 0 : index
    %228 = vector.load %arg4[%c1_140, %c6_141, %c0_142, %c0_143] : memref<4x9x4x4xf32, #tpu.memory_space<vmem>>, vector<1x1x4x4xf32>
    %229 = vector.shape_cast %228 : vector<1x1x4x4xf32> to vector<4x4xf32>
    %cst_144 = arith.constant dense<0.000000e+00> : vector<4x512xf32>
    %230 = tpu.matmul %229, %227, %cst_144 {dimension_numbers = #tpu.dot_dimension_numbers<[1], [0], [0], [1], [0, 0, 1, 1], [], []>} : vector<4x4xf32>, vector<4x512xf32>, vector<4x512xf32> -> vector<4x512xf32>
    %231 = arith.addf %217, %230 : vector<4x512xf32>
    %c1_145 = arith.constant 1 : index
    %c7_146 = arith.constant 7 : index
    %c0_147 = arith.constant 0 : index
    %c0_148 = arith.constant 0 : index
    %232 = vector.load %arg4[%c1_145, %c7_146, %c0_147, %c0_148] : memref<4x9x4x4xf32, #tpu.memory_space<vmem>>, vector<1x1x4x4xf32>
    %233 = vector.shape_cast %232 : vector<1x1x4x4xf32> to vector<4x4xf32>
    %cst_149 = arith.constant dense<0.000000e+00> : vector<4x512xf32>
    %234 = tpu.matmul %233, %222, %cst_149 {dimension_numbers = #tpu.dot_dimension_numbers<[1], [0], [0], [1], [0, 0, 1, 1], [], []>} : vector<4x4xf32>, vector<4x512xf32>, vector<4x512xf32> -> vector<4x512xf32>
    %235 = arith.addf %231, %234 : vector<4x512xf32>
    %c511_i32_150 = arith.constant 511 : i32
    %236 = tpu.dynamic_rotate %222 by %c511_i32_150 dim 1 : vector<4x512xf32>, i32 -> vector<4x512xf32>
    %cst_151 = arith.constant 0.000000e+00 : f32
    %237 = vector.shape_cast %45 : vector<1x512xi1> to vector<1x512xi1>
    %238 = vector.broadcast %237 : vector<1x512xi1> to vector<4x512xi1>
    %239 = vector.broadcast %cst_151 : f32 to vector<4x512xf32>
    %240 = arith.select %238, %236, %239 : vector<4x512xi1>, vector<4x512xf32>
    %c1_152 = arith.constant 1 : index
    %c8_153 = arith.constant 8 : index
    %c0_154 = arith.constant 0 : index
    %c0_155 = arith.constant 0 : index
    %241 = vector.load %arg4[%c1_152, %c8_153, %c0_154, %c0_155] : memref<4x9x4x4xf32, #tpu.memory_space<vmem>>, vector<1x1x4x4xf32>
    %242 = vector.shape_cast %241 : vector<1x1x4x4xf32> to vector<4x4xf32>
    %cst_156 = arith.constant dense<0.000000e+00> : vector<4x512xf32>
    %243 = tpu.matmul %242, %240, %cst_156 {dimension_numbers = #tpu.dot_dimension_numbers<[1], [0], [0], [1], [0, 0, 1, 1], [], []>} : vector<4x4xf32>, vector<4x512xf32>, vector<4x512xf32> -> vector<4x512xf32>
    %244 = arith.addf %235, %243 : vector<4x512xf32>
    %c1_157 = arith.constant 1 : index
    %c0_158 = arith.constant 0 : index
    %c0_159 = arith.constant 0 : index
    %245 = vector.load %arg5[%c1_157, %c0_158, %c0_159] : memref<4x4x1xf32, #tpu.memory_space<vmem>>, vector<1x4x1xf32>
    %246 = vector.shape_cast %245 : vector<1x4x1xf32> to vector<4x1xf32>
    %247 = vector.broadcast %246 : vector<4x1xf32> to vector<4x512xf32>
    %248 = arith.addf %244, %247 : vector<4x512xf32>
    %249 = arith.negf %248 : vector<4x512xf32>
    %250 = math.exp %249 : vector<4x512xf32>
    %cst_160 = arith.constant 1.000000e+00 : f32
    %251 = vector.broadcast %cst_160 : f32 to vector<4x512xf32>
    %252 = arith.addf %251, %250 : vector<4x512xf32>
    %253 = arith.divf %251, %252 : vector<4x512xf32>
    %254 = arith.mulf %248, %253 : vector<4x512xf32>
    %c2_161 = arith.constant 2 : index
    %c0_162 = arith.constant 0 : index
    %c0_163 = arith.constant 0 : index
    %255 = vector.load %arg6[%c2_161, %c0_162, %c0_163] : memref<4x8x4xf32, #tpu.memory_space<vmem>>, vector<1x8x4xf32>
    %256 = vector.shape_cast %255 : vector<1x8x4xf32> to vector<8x4xf32>
    %cst_164 = arith.constant dense<0.000000e+00> : vector<8x512xf32>
    %257 = tpu.matmul %256, %254, %cst_164 {dimension_numbers = #tpu.dot_dimension_numbers<[1], [0], [0], [1], [0, 0, 1, 1], [], []>} : vector<8x4xf32>, vector<4x512xf32>, vector<8x512xf32> -> vector<8x512xf32>
    %258 = arith.addf %80, %257 : vector<8x512xf32>
    %cst_165 = arith.constant 0.000000e+00 : f32
    %259 = vector.broadcast %cst_165 : f32 to vector<4x512xf32>
    %c16_i32_166 = arith.constant 16 : i32
    %260 = tpu.dynamic_rotate %254 by %c16_i32_166 dim 1 : vector<4x512xf32>, i32 -> vector<4x512xf32>
    %cst_167 = arith.constant 0.000000e+00 : f32
    %261 = vector.shape_cast %39 : vector<1x512xi1> to vector<1x512xi1>
    %262 = vector.broadcast %261 : vector<1x512xi1> to vector<4x512xi1>
    %263 = vector.broadcast %cst_167 : f32 to vector<4x512xf32>
    %264 = arith.select %262, %260, %263 : vector<4x512xi1>, vector<4x512xf32>
    %c1_i32_168 = arith.constant 1 : i32
    %265 = tpu.dynamic_rotate %264 by %c1_i32_168 dim 1 : vector<4x512xf32>, i32 -> vector<4x512xf32>
    %cst_169 = arith.constant 0.000000e+00 : f32
    %266 = vector.shape_cast %43 : vector<1x512xi1> to vector<1x512xi1>
    %267 = vector.broadcast %266 : vector<1x512xi1> to vector<4x512xi1>
    %268 = vector.broadcast %cst_169 : f32 to vector<4x512xf32>
    %269 = arith.select %267, %265, %268 : vector<4x512xi1>, vector<4x512xf32>
    %c2_170 = arith.constant 2 : index
    %c0_171 = arith.constant 0 : index
    %c0_172 = arith.constant 0 : index
    %c0_173 = arith.constant 0 : index
    %270 = vector.load %arg4[%c2_170, %c0_171, %c0_172, %c0_173] : memref<4x9x4x4xf32, #tpu.memory_space<vmem>>, vector<1x1x4x4xf32>
    %271 = vector.shape_cast %270 : vector<1x1x4x4xf32> to vector<4x4xf32>
    %cst_174 = arith.constant dense<0.000000e+00> : vector<4x512xf32>
    %272 = tpu.matmul %271, %269, %cst_174 {dimension_numbers = #tpu.dot_dimension_numbers<[1], [0], [0], [1], [0, 0, 1, 1], [], []>} : vector<4x4xf32>, vector<4x512xf32>, vector<4x512xf32> -> vector<4x512xf32>
    %273 = arith.addf %259, %272 : vector<4x512xf32>
    %c2_175 = arith.constant 2 : index
    %c1_176 = arith.constant 1 : index
    %c0_177 = arith.constant 0 : index
    %c0_178 = arith.constant 0 : index
    %274 = vector.load %arg4[%c2_175, %c1_176, %c0_177, %c0_178] : memref<4x9x4x4xf32, #tpu.memory_space<vmem>>, vector<1x1x4x4xf32>
    %275 = vector.shape_cast %274 : vector<1x1x4x4xf32> to vector<4x4xf32>
    %cst_179 = arith.constant dense<0.000000e+00> : vector<4x512xf32>
    %276 = tpu.matmul %275, %264, %cst_179 {dimension_numbers = #tpu.dot_dimension_numbers<[1], [0], [0], [1], [0, 0, 1, 1], [], []>} : vector<4x4xf32>, vector<4x512xf32>, vector<4x512xf32> -> vector<4x512xf32>
    %277 = arith.addf %273, %276 : vector<4x512xf32>
    %c511_i32_180 = arith.constant 511 : i32
    %278 = tpu.dynamic_rotate %264 by %c511_i32_180 dim 1 : vector<4x512xf32>, i32 -> vector<4x512xf32>
    %cst_181 = arith.constant 0.000000e+00 : f32
    %279 = vector.shape_cast %45 : vector<1x512xi1> to vector<1x512xi1>
    %280 = vector.broadcast %279 : vector<1x512xi1> to vector<4x512xi1>
    %281 = vector.broadcast %cst_181 : f32 to vector<4x512xf32>
    %282 = arith.select %280, %278, %281 : vector<4x512xi1>, vector<4x512xf32>
    %c2_182 = arith.constant 2 : index
    %c2_183 = arith.constant 2 : index
    %c0_184 = arith.constant 0 : index
    %c0_185 = arith.constant 0 : index
    %283 = vector.load %arg4[%c2_182, %c2_183, %c0_184, %c0_185] : memref<4x9x4x4xf32, #tpu.memory_space<vmem>>, vector<1x1x4x4xf32>
    %284 = vector.shape_cast %283 : vector<1x1x4x4xf32> to vector<4x4xf32>
    %cst_186 = arith.constant dense<0.000000e+00> : vector<4x512xf32>
    %285 = tpu.matmul %284, %282, %cst_186 {dimension_numbers = #tpu.dot_dimension_numbers<[1], [0], [0], [1], [0, 0, 1, 1], [], []>} : vector<4x4xf32>, vector<4x512xf32>, vector<4x512xf32> -> vector<4x512xf32>
    %286 = arith.addf %277, %285 : vector<4x512xf32>
    %c1_i32_187 = arith.constant 1 : i32
    %287 = tpu.dynamic_rotate %254 by %c1_i32_187 dim 1 : vector<4x512xf32>, i32 -> vector<4x512xf32>
    %cst_188 = arith.constant 0.000000e+00 : f32
    %288 = vector.shape_cast %43 : vector<1x512xi1> to vector<1x512xi1>
    %289 = vector.broadcast %288 : vector<1x512xi1> to vector<4x512xi1>
    %290 = vector.broadcast %cst_188 : f32 to vector<4x512xf32>
    %291 = arith.select %289, %287, %290 : vector<4x512xi1>, vector<4x512xf32>
    %c2_189 = arith.constant 2 : index
    %c3_190 = arith.constant 3 : index
    %c0_191 = arith.constant 0 : index
    %c0_192 = arith.constant 0 : index
    %292 = vector.load %arg4[%c2_189, %c3_190, %c0_191, %c0_192] : memref<4x9x4x4xf32, #tpu.memory_space<vmem>>, vector<1x1x4x4xf32>
    %293 = vector.shape_cast %292 : vector<1x1x4x4xf32> to vector<4x4xf32>
    %cst_193 = arith.constant dense<0.000000e+00> : vector<4x512xf32>
    %294 = tpu.matmul %293, %291, %cst_193 {dimension_numbers = #tpu.dot_dimension_numbers<[1], [0], [0], [1], [0, 0, 1, 1], [], []>} : vector<4x4xf32>, vector<4x512xf32>, vector<4x512xf32> -> vector<4x512xf32>
    %295 = arith.addf %286, %294 : vector<4x512xf32>
    %c2_194 = arith.constant 2 : index
    %c4_195 = arith.constant 4 : index
    %c0_196 = arith.constant 0 : index
    %c0_197 = arith.constant 0 : index
    %296 = vector.load %arg4[%c2_194, %c4_195, %c0_196, %c0_197] : memref<4x9x4x4xf32, #tpu.memory_space<vmem>>, vector<1x1x4x4xf32>
    %297 = vector.shape_cast %296 : vector<1x1x4x4xf32> to vector<4x4xf32>
    %cst_198 = arith.constant dense<0.000000e+00> : vector<4x512xf32>
    %298 = tpu.matmul %297, %254, %cst_198 {dimension_numbers = #tpu.dot_dimension_numbers<[1], [0], [0], [1], [0, 0, 1, 1], [], []>} : vector<4x4xf32>, vector<4x512xf32>, vector<4x512xf32> -> vector<4x512xf32>
    %299 = arith.addf %295, %298 : vector<4x512xf32>
    %c511_i32_199 = arith.constant 511 : i32
    %300 = tpu.dynamic_rotate %254 by %c511_i32_199 dim 1 : vector<4x512xf32>, i32 -> vector<4x512xf32>
    %cst_200 = arith.constant 0.000000e+00 : f32
    %301 = vector.shape_cast %45 : vector<1x512xi1> to vector<1x512xi1>
    %302 = vector.broadcast %301 : vector<1x512xi1> to vector<4x512xi1>
    %303 = vector.broadcast %cst_200 : f32 to vector<4x512xf32>
    %304 = arith.select %302, %300, %303 : vector<4x512xi1>, vector<4x512xf32>
    %c2_201 = arith.constant 2 : index
    %c5_202 = arith.constant 5 : index
    %c0_203 = arith.constant 0 : index
    %c0_204 = arith.constant 0 : index
    %305 = vector.load %arg4[%c2_201, %c5_202, %c0_203, %c0_204] : memref<4x9x4x4xf32, #tpu.memory_space<vmem>>, vector<1x1x4x4xf32>
    %306 = vector.shape_cast %305 : vector<1x1x4x4xf32> to vector<4x4xf32>
    %cst_205 = arith.constant dense<0.000000e+00> : vector<4x512xf32>
    %307 = tpu.matmul %306, %304, %cst_205 {dimension_numbers = #tpu.dot_dimension_numbers<[1], [0], [0], [1], [0, 0, 1, 1], [], []>} : vector<4x4xf32>, vector<4x512xf32>, vector<4x512xf32> -> vector<4x512xf32>
    %308 = arith.addf %299, %307 : vector<4x512xf32>
    %c496_i32_206 = arith.constant 496 : i32
    %309 = tpu.dynamic_rotate %254 by %c496_i32_206 dim 1 : vector<4x512xf32>, i32 -> vector<4x512xf32>
    %cst_207 = arith.constant 0.000000e+00 : f32
    %310 = vector.shape_cast %41 : vector<1x512xi1> to vector<1x512xi1>
    %311 = vector.broadcast %310 : vector<1x512xi1> to vector<4x512xi1>
    %312 = vector.broadcast %cst_207 : f32 to vector<4x512xf32>
    %313 = arith.select %311, %309, %312 : vector<4x512xi1>, vector<4x512xf32>
    %c1_i32_208 = arith.constant 1 : i32
    %314 = tpu.dynamic_rotate %313 by %c1_i32_208 dim 1 : vector<4x512xf32>, i32 -> vector<4x512xf32>
    %cst_209 = arith.constant 0.000000e+00 : f32
    %315 = vector.shape_cast %43 : vector<1x512xi1> to vector<1x512xi1>
    %316 = vector.broadcast %315 : vector<1x512xi1> to vector<4x512xi1>
    %317 = vector.broadcast %cst_209 : f32 to vector<4x512xf32>
    %318 = arith.select %316, %314, %317 : vector<4x512xi1>, vector<4x512xf32>
    %c2_210 = arith.constant 2 : index
    %c6_211 = arith.constant 6 : index
    %c0_212 = arith.constant 0 : index
    %c0_213 = arith.constant 0 : index
    %319 = vector.load %arg4[%c2_210, %c6_211, %c0_212, %c0_213] : memref<4x9x4x4xf32, #tpu.memory_space<vmem>>, vector<1x1x4x4xf32>
    %320 = vector.shape_cast %319 : vector<1x1x4x4xf32> to vector<4x4xf32>
    %cst_214 = arith.constant dense<0.000000e+00> : vector<4x512xf32>
    %321 = tpu.matmul %320, %318, %cst_214 {dimension_numbers = #tpu.dot_dimension_numbers<[1], [0], [0], [1], [0, 0, 1, 1], [], []>} : vector<4x4xf32>, vector<4x512xf32>, vector<4x512xf32> -> vector<4x512xf32>
    %322 = arith.addf %308, %321 : vector<4x512xf32>
    %c2_215 = arith.constant 2 : index
    %c7_216 = arith.constant 7 : index
    %c0_217 = arith.constant 0 : index
    %c0_218 = arith.constant 0 : index
    %323 = vector.load %arg4[%c2_215, %c7_216, %c0_217, %c0_218] : memref<4x9x4x4xf32, #tpu.memory_space<vmem>>, vector<1x1x4x4xf32>
    %324 = vector.shape_cast %323 : vector<1x1x4x4xf32> to vector<4x4xf32>
    %cst_219 = arith.constant dense<0.000000e+00> : vector<4x512xf32>
    %325 = tpu.matmul %324, %313, %cst_219 {dimension_numbers = #tpu.dot_dimension_numbers<[1], [0], [0], [1], [0, 0, 1, 1], [], []>} : vector<4x4xf32>, vector<4x512xf32>, vector<4x512xf32> -> vector<4x512xf32>
    %326 = arith.addf %322, %325 : vector<4x512xf32>
    %c511_i32_220 = arith.constant 511 : i32
    %327 = tpu.dynamic_rotate %313 by %c511_i32_220 dim 1 : vector<4x512xf32>, i32 -> vector<4x512xf32>
    %cst_221 = arith.constant 0.000000e+00 : f32
    %328 = vector.shape_cast %45 : vector<1x512xi1> to vector<1x512xi1>
    %329 = vector.broadcast %328 : vector<1x512xi1> to vector<4x512xi1>
    %330 = vector.broadcast %cst_221 : f32 to vector<4x512xf32>
    %331 = arith.select %329, %327, %330 : vector<4x512xi1>, vector<4x512xf32>
    %c2_222 = arith.constant 2 : index
    %c8_223 = arith.constant 8 : index
    %c0_224 = arith.constant 0 : index
    %c0_225 = arith.constant 0 : index
    %332 = vector.load %arg4[%c2_222, %c8_223, %c0_224, %c0_225] : memref<4x9x4x4xf32, #tpu.memory_space<vmem>>, vector<1x1x4x4xf32>
    %333 = vector.shape_cast %332 : vector<1x1x4x4xf32> to vector<4x4xf32>
    %cst_226 = arith.constant dense<0.000000e+00> : vector<4x512xf32>
    %334 = tpu.matmul %333, %331, %cst_226 {dimension_numbers = #tpu.dot_dimension_numbers<[1], [0], [0], [1], [0, 0, 1, 1], [], []>} : vector<4x4xf32>, vector<4x512xf32>, vector<4x512xf32> -> vector<4x512xf32>
    %335 = arith.addf %326, %334 : vector<4x512xf32>
    %c2_227 = arith.constant 2 : index
    %c0_228 = arith.constant 0 : index
    %c0_229 = arith.constant 0 : index
    %336 = vector.load %arg5[%c2_227, %c0_228, %c0_229] : memref<4x4x1xf32, #tpu.memory_space<vmem>>, vector<1x4x1xf32>
    %337 = vector.shape_cast %336 : vector<1x4x1xf32> to vector<4x1xf32>
    %338 = vector.broadcast %337 : vector<4x1xf32> to vector<4x512xf32>
    %339 = arith.addf %335, %338 : vector<4x512xf32>
    %340 = arith.negf %339 : vector<4x512xf32>
    %341 = math.exp %340 : vector<4x512xf32>
    %cst_230 = arith.constant 1.000000e+00 : f32
    %342 = vector.broadcast %cst_230 : f32 to vector<4x512xf32>
    %343 = arith.addf %342, %341 : vector<4x512xf32>
    %344 = arith.divf %342, %343 : vector<4x512xf32>
    %345 = arith.mulf %339, %344 : vector<4x512xf32>
    %cst_231 = arith.constant 0.000000e+00 : f32
    %346 = vector.broadcast %cst_231 : f32 to vector<4x512xf32>
    %c16_i32_232 = arith.constant 16 : i32
    %347 = tpu.dynamic_rotate %345 by %c16_i32_232 dim 1 : vector<4x512xf32>, i32 -> vector<4x512xf32>
    %cst_233 = arith.constant 0.000000e+00 : f32
    %348 = vector.shape_cast %39 : vector<1x512xi1> to vector<1x512xi1>
    %349 = vector.broadcast %348 : vector<1x512xi1> to vector<4x512xi1>
    %350 = vector.broadcast %cst_233 : f32 to vector<4x512xf32>
    %351 = arith.select %349, %347, %350 : vector<4x512xi1>, vector<4x512xf32>
    %c1_i32_234 = arith.constant 1 : i32
    %352 = tpu.dynamic_rotate %351 by %c1_i32_234 dim 1 : vector<4x512xf32>, i32 -> vector<4x512xf32>
    %cst_235 = arith.constant 0.000000e+00 : f32
    %353 = vector.shape_cast %43 : vector<1x512xi1> to vector<1x512xi1>
    %354 = vector.broadcast %353 : vector<1x512xi1> to vector<4x512xi1>
    %355 = vector.broadcast %cst_235 : f32 to vector<4x512xf32>
    %356 = arith.select %354, %352, %355 : vector<4x512xi1>, vector<4x512xf32>
    %c3_236 = arith.constant 3 : index
    %c0_237 = arith.constant 0 : index
    %c0_238 = arith.constant 0 : index
    %c0_239 = arith.constant 0 : index
    %357 = vector.load %arg4[%c3_236, %c0_237, %c0_238, %c0_239] : memref<4x9x4x4xf32, #tpu.memory_space<vmem>>, vector<1x1x4x4xf32>
    %358 = vector.shape_cast %357 : vector<1x1x4x4xf32> to vector<4x4xf32>
    %cst_240 = arith.constant dense<0.000000e+00> : vector<4x512xf32>
    %359 = tpu.matmul %358, %356, %cst_240 {dimension_numbers = #tpu.dot_dimension_numbers<[1], [0], [0], [1], [0, 0, 1, 1], [], []>} : vector<4x4xf32>, vector<4x512xf32>, vector<4x512xf32> -> vector<4x512xf32>
    %360 = arith.addf %346, %359 : vector<4x512xf32>
    %c3_241 = arith.constant 3 : index
    %c1_242 = arith.constant 1 : index
    %c0_243 = arith.constant 0 : index
    %c0_244 = arith.constant 0 : index
    %361 = vector.load %arg4[%c3_241, %c1_242, %c0_243, %c0_244] : memref<4x9x4x4xf32, #tpu.memory_space<vmem>>, vector<1x1x4x4xf32>
    %362 = vector.shape_cast %361 : vector<1x1x4x4xf32> to vector<4x4xf32>
    %cst_245 = arith.constant dense<0.000000e+00> : vector<4x512xf32>
    %363 = tpu.matmul %362, %351, %cst_245 {dimension_numbers = #tpu.dot_dimension_numbers<[1], [0], [0], [1], [0, 0, 1, 1], [], []>} : vector<4x4xf32>, vector<4x512xf32>, vector<4x512xf32> -> vector<4x512xf32>
    %364 = arith.addf %360, %363 : vector<4x512xf32>
    %c511_i32_246 = arith.constant 511 : i32
    %365 = tpu.dynamic_rotate %351 by %c511_i32_246 dim 1 : vector<4x512xf32>, i32 -> vector<4x512xf32>
    %cst_247 = arith.constant 0.000000e+00 : f32
    %366 = vector.shape_cast %45 : vector<1x512xi1> to vector<1x512xi1>
    %367 = vector.broadcast %366 : vector<1x512xi1> to vector<4x512xi1>
    %368 = vector.broadcast %cst_247 : f32 to vector<4x512xf32>
    %369 = arith.select %367, %365, %368 : vector<4x512xi1>, vector<4x512xf32>
    %c3_248 = arith.constant 3 : index
    %c2_249 = arith.constant 2 : index
    %c0_250 = arith.constant 0 : index
    %c0_251 = arith.constant 0 : index
    %370 = vector.load %arg4[%c3_248, %c2_249, %c0_250, %c0_251] : memref<4x9x4x4xf32, #tpu.memory_space<vmem>>, vector<1x1x4x4xf32>
    %371 = vector.shape_cast %370 : vector<1x1x4x4xf32> to vector<4x4xf32>
    %cst_252 = arith.constant dense<0.000000e+00> : vector<4x512xf32>
    %372 = tpu.matmul %371, %369, %cst_252 {dimension_numbers = #tpu.dot_dimension_numbers<[1], [0], [0], [1], [0, 0, 1, 1], [], []>} : vector<4x4xf32>, vector<4x512xf32>, vector<4x512xf32> -> vector<4x512xf32>
    %373 = arith.addf %364, %372 : vector<4x512xf32>
    %c1_i32_253 = arith.constant 1 : i32
    %374 = tpu.dynamic_rotate %345 by %c1_i32_253 dim 1 : vector<4x512xf32>, i32 -> vector<4x512xf32>
    %cst_254 = arith.constant 0.000000e+00 : f32
    %375 = vector.shape_cast %43 : vector<1x512xi1> to vector<1x512xi1>
    %376 = vector.broadcast %375 : vector<1x512xi1> to vector<4x512xi1>
    %377 = vector.broadcast %cst_254 : f32 to vector<4x512xf32>
    %378 = arith.select %376, %374, %377 : vector<4x512xi1>, vector<4x512xf32>
    %c3_255 = arith.constant 3 : index
    %c3_256 = arith.constant 3 : index
    %c0_257 = arith.constant 0 : index
    %c0_258 = arith.constant 0 : index
    %379 = vector.load %arg4[%c3_255, %c3_256, %c0_257, %c0_258] : memref<4x9x4x4xf32, #tpu.memory_space<vmem>>, vector<1x1x4x4xf32>
    %380 = vector.shape_cast %379 : vector<1x1x4x4xf32> to vector<4x4xf32>
    %cst_259 = arith.constant dense<0.000000e+00> : vector<4x512xf32>
    %381 = tpu.matmul %380, %378, %cst_259 {dimension_numbers = #tpu.dot_dimension_numbers<[1], [0], [0], [1], [0, 0, 1, 1], [], []>} : vector<4x4xf32>, vector<4x512xf32>, vector<4x512xf32> -> vector<4x512xf32>
    %382 = arith.addf %373, %381 : vector<4x512xf32>
    %c3_260 = arith.constant 3 : index
    %c4_261 = arith.constant 4 : index
    %c0_262 = arith.constant 0 : index
    %c0_263 = arith.constant 0 : index
    %383 = vector.load %arg4[%c3_260, %c4_261, %c0_262, %c0_263] : memref<4x9x4x4xf32, #tpu.memory_space<vmem>>, vector<1x1x4x4xf32>
    %384 = vector.shape_cast %383 : vector<1x1x4x4xf32> to vector<4x4xf32>
    %cst_264 = arith.constant dense<0.000000e+00> : vector<4x512xf32>
    %385 = tpu.matmul %384, %345, %cst_264 {dimension_numbers = #tpu.dot_dimension_numbers<[1], [0], [0], [1], [0, 0, 1, 1], [], []>} : vector<4x4xf32>, vector<4x512xf32>, vector<4x512xf32> -> vector<4x512xf32>
    %386 = arith.addf %382, %385 : vector<4x512xf32>
    %c511_i32_265 = arith.constant 511 : i32
    %387 = tpu.dynamic_rotate %345 by %c511_i32_265 dim 1 : vector<4x512xf32>, i32 -> vector<4x512xf32>
    %cst_266 = arith.constant 0.000000e+00 : f32
    %388 = vector.shape_cast %45 : vector<1x512xi1> to vector<1x512xi1>
    %389 = vector.broadcast %388 : vector<1x512xi1> to vector<4x512xi1>
    %390 = vector.broadcast %cst_266 : f32 to vector<4x512xf32>
    %391 = arith.select %389, %387, %390 : vector<4x512xi1>, vector<4x512xf32>
    %c3_267 = arith.constant 3 : index
    %c5_268 = arith.constant 5 : index
    %c0_269 = arith.constant 0 : index
    %c0_270 = arith.constant 0 : index
    %392 = vector.load %arg4[%c3_267, %c5_268, %c0_269, %c0_270] : memref<4x9x4x4xf32, #tpu.memory_space<vmem>>, vector<1x1x4x4xf32>
    %393 = vector.shape_cast %392 : vector<1x1x4x4xf32> to vector<4x4xf32>
    %cst_271 = arith.constant dense<0.000000e+00> : vector<4x512xf32>
    %394 = tpu.matmul %393, %391, %cst_271 {dimension_numbers = #tpu.dot_dimension_numbers<[1], [0], [0], [1], [0, 0, 1, 1], [], []>} : vector<4x4xf32>, vector<4x512xf32>, vector<4x512xf32> -> vector<4x512xf32>
    %395 = arith.addf %386, %394 : vector<4x512xf32>
    %c496_i32_272 = arith.constant 496 : i32
    %396 = tpu.dynamic_rotate %345 by %c496_i32_272 dim 1 : vector<4x512xf32>, i32 -> vector<4x512xf32>
    %cst_273 = arith.constant 0.000000e+00 : f32
    %397 = vector.shape_cast %41 : vector<1x512xi1> to vector<1x512xi1>
    %398 = vector.broadcast %397 : vector<1x512xi1> to vector<4x512xi1>
    %399 = vector.broadcast %cst_273 : f32 to vector<4x512xf32>
    %400 = arith.select %398, %396, %399 : vector<4x512xi1>, vector<4x512xf32>
    %c1_i32_274 = arith.constant 1 : i32
    %401 = tpu.dynamic_rotate %400 by %c1_i32_274 dim 1 : vector<4x512xf32>, i32 -> vector<4x512xf32>
    %cst_275 = arith.constant 0.000000e+00 : f32
    %402 = vector.shape_cast %43 : vector<1x512xi1> to vector<1x512xi1>
    %403 = vector.broadcast %402 : vector<1x512xi1> to vector<4x512xi1>
    %404 = vector.broadcast %cst_275 : f32 to vector<4x512xf32>
    %405 = arith.select %403, %401, %404 : vector<4x512xi1>, vector<4x512xf32>
    %c3_276 = arith.constant 3 : index
    %c6_277 = arith.constant 6 : index
    %c0_278 = arith.constant 0 : index
    %c0_279 = arith.constant 0 : index
    %406 = vector.load %arg4[%c3_276, %c6_277, %c0_278, %c0_279] : memref<4x9x4x4xf32, #tpu.memory_space<vmem>>, vector<1x1x4x4xf32>
    %407 = vector.shape_cast %406 : vector<1x1x4x4xf32> to vector<4x4xf32>
    %cst_280 = arith.constant dense<0.000000e+00> : vector<4x512xf32>
    %408 = tpu.matmul %407, %405, %cst_280 {dimension_numbers = #tpu.dot_dimension_numbers<[1], [0], [0], [1], [0, 0, 1, 1], [], []>} : vector<4x4xf32>, vector<4x512xf32>, vector<4x512xf32> -> vector<4x512xf32>
    %409 = arith.addf %395, %408 : vector<4x512xf32>
    %c3_281 = arith.constant 3 : index
    %c7_282 = arith.constant 7 : index
    %c0_283 = arith.constant 0 : index
    %c0_284 = arith.constant 0 : index
    %410 = vector.load %arg4[%c3_281, %c7_282, %c0_283, %c0_284] : memref<4x9x4x4xf32, #tpu.memory_space<vmem>>, vector<1x1x4x4xf32>
    %411 = vector.shape_cast %410 : vector<1x1x4x4xf32> to vector<4x4xf32>
    %cst_285 = arith.constant dense<0.000000e+00> : vector<4x512xf32>
    %412 = tpu.matmul %411, %400, %cst_285 {dimension_numbers = #tpu.dot_dimension_numbers<[1], [0], [0], [1], [0, 0, 1, 1], [], []>} : vector<4x4xf32>, vector<4x512xf32>, vector<4x512xf32> -> vector<4x512xf32>
    %413 = arith.addf %409, %412 : vector<4x512xf32>
    %c511_i32_286 = arith.constant 511 : i32
    %414 = tpu.dynamic_rotate %400 by %c511_i32_286 dim 1 : vector<4x512xf32>, i32 -> vector<4x512xf32>
    %cst_287 = arith.constant 0.000000e+00 : f32
    %415 = vector.shape_cast %45 : vector<1x512xi1> to vector<1x512xi1>
    %416 = vector.broadcast %415 : vector<1x512xi1> to vector<4x512xi1>
    %417 = vector.broadcast %cst_287 : f32 to vector<4x512xf32>
    %418 = arith.select %416, %414, %417 : vector<4x512xi1>, vector<4x512xf32>
    %c3_288 = arith.constant 3 : index
    %c8_289 = arith.constant 8 : index
    %c0_290 = arith.constant 0 : index
    %c0_291 = arith.constant 0 : index
    %419 = vector.load %arg4[%c3_288, %c8_289, %c0_290, %c0_291] : memref<4x9x4x4xf32, #tpu.memory_space<vmem>>, vector<1x1x4x4xf32>
    %420 = vector.shape_cast %419 : vector<1x1x4x4xf32> to vector<4x4xf32>
    %cst_292 = arith.constant dense<0.000000e+00> : vector<4x512xf32>
    %421 = tpu.matmul %420, %418, %cst_292 {dimension_numbers = #tpu.dot_dimension_numbers<[1], [0], [0], [1], [0, 0, 1, 1], [], []>} : vector<4x4xf32>, vector<4x512xf32>, vector<4x512xf32> -> vector<4x512xf32>
    %422 = arith.addf %413, %421 : vector<4x512xf32>
    %c3_293 = arith.constant 3 : index
    %c0_294 = arith.constant 0 : index
    %c0_295 = arith.constant 0 : index
    %423 = vector.load %arg5[%c3_293, %c0_294, %c0_295] : memref<4x4x1xf32, #tpu.memory_space<vmem>>, vector<1x4x1xf32>
    %424 = vector.shape_cast %423 : vector<1x4x1xf32> to vector<4x1xf32>
    %425 = vector.broadcast %424 : vector<4x1xf32> to vector<4x512xf32>
    %426 = arith.addf %422, %425 : vector<4x512xf32>
    %427 = arith.negf %426 : vector<4x512xf32>
    %428 = math.exp %427 : vector<4x512xf32>
    %cst_296 = arith.constant 1.000000e+00 : f32
    %429 = vector.broadcast %cst_296 : f32 to vector<4x512xf32>
    %430 = arith.addf %429, %428 : vector<4x512xf32>
    %431 = arith.divf %429, %430 : vector<4x512xf32>
    %432 = arith.mulf %426, %431 : vector<4x512xf32>
    %c3_297 = arith.constant 3 : index
    %c0_298 = arith.constant 0 : index
    %c0_299 = arith.constant 0 : index
    %433 = vector.load %arg6[%c3_297, %c0_298, %c0_299] : memref<4x8x4xf32, #tpu.memory_space<vmem>>, vector<1x8x4xf32>
    %434 = vector.shape_cast %433 : vector<1x8x4xf32> to vector<8x4xf32>
    %cst_300 = arith.constant dense<0.000000e+00> : vector<8x512xf32>
    %435 = tpu.matmul %434, %432, %cst_300 {dimension_numbers = #tpu.dot_dimension_numbers<[1], [0], [0], [1], [0, 0, 1, 1], [], []>} : vector<8x4xf32>, vector<4x512xf32>, vector<8x512xf32> -> vector<8x512xf32>
    %436 = arith.addf %258, %435 : vector<8x512xf32>
    %c0_301 = arith.constant 0 : index
    %c0_302 = arith.constant 0 : index
    %437 = vector.load %arg7[%c0_301, %c0_302] : memref<8x1xf32, #tpu.memory_space<vmem>>, vector<8x1xf32>
    %438 = vector.broadcast %437 : vector<8x1xf32> to vector<8x512xf32>
    %439 = arith.addf %436, %438 : vector<8x512xf32>
    %440 = arith.negf %439 : vector<8x512xf32>
    %441 = math.exp %440 : vector<8x512xf32>
    %cst_303 = arith.constant 1.000000e+00 : f32
    %442 = vector.broadcast %cst_303 : f32 to vector<8x512xf32>
    %443 = arith.addf %442, %441 : vector<8x512xf32>
    %444 = arith.divf %442, %443 : vector<8x512xf32>
    %445 = arith.mulf %439, %444 : vector<8x512xf32>
    %446 = vector.extract_strided_slice %445 {offsets = [0, 0], sizes = [8, 256], strides = [1, 1]} : vector<8x512xf32> to vector<8x256xf32>
    %c0_304 = arith.constant 0 : index
    %c0_305 = arith.constant 0 : index
    %c0_306 = arith.constant 0 : index
    %447 = vector.load %arg8[%c0_304, %c0_305, %c0_306] : memref<2x8x256xf32, #tpu.memory_space<vmem>>, vector<1x8x256xf32>
    %448 = vector.shape_cast %447 : vector<1x8x256xf32> to vector<8x256xf32>
    %449 = vector.shape_cast %446 : vector<8x256xf32> to vector<1x8x256xf32>
    tpu.vector_store %arg8[%c0_304, %c0_305, %c0_306], %449 {strides = array<i32>} : memref<2x8x256xf32, #tpu.memory_space<vmem>>, vector<1x8x256xf32>,
    %450 = vector.extract_strided_slice %445 {offsets = [0, 256], sizes = [8, 256], strides = [1, 1]} : vector<8x512xf32> to vector<8x256xf32>
    %c1_307 = arith.constant 1 : index
    %c0_308 = arith.constant 0 : index
    %c0_309 = arith.constant 0 : index
    %451 = vector.load %arg8[%c1_307, %c0_308, %c0_309] : memref<2x8x256xf32, #tpu.memory_space<vmem>>, vector<1x8x256xf32>
    %452 = vector.shape_cast %451 : vector<1x8x256xf32> to vector<8x256xf32>
    %453 = vector.shape_cast %450 : vector<8x256xf32> to vector<1x8x256xf32>
    tpu.vector_store %arg8[%c1_307, %c0_308, %c0_309], %453 {strides = array<i32>} : memref<2x8x256xf32, #tpu.memory_space<vmem>>, vector<1x8x256xf32>,
    return
  }
  func.func @transform_0(%arg0: i32) -> (i32, i32, i32) {
    %c0_i32 = arith.constant 0 : i32
    %c0_i32_0 = arith.constant 0 : i32
    %c0_i32_1 = arith.constant 0 : i32
    return %arg0, %c0_i32, %c0_i32_0 : i32, i32, i32
  }
  func.func @transform_1(%arg0: i32) -> (i32, i32, i32) {
    %c0_i32 = arith.constant 0 : i32
    %c0_i32_0 = arith.constant 0 : i32
    %c0_i32_1 = arith.constant 0 : i32
    %c0_i32_2 = arith.constant 0 : i32
    return %c0_i32, %c0_i32_0, %c0_i32_1 : i32, i32, i32
  }
  func.func @transform_2(%arg0: i32) -> (i32, i32, i32) {
    %c0_i32 = arith.constant 0 : i32
    %c0_i32_0 = arith.constant 0 : i32
    %c0_i32_1 = arith.constant 0 : i32
    %c0_i32_2 = arith.constant 0 : i32
    return %c0_i32, %c0_i32_0, %c0_i32_1 : i32, i32, i32
  }
  func.func @transform_3(%arg0: i32) -> (i32, i32, i32, i32) {
    %c0_i32 = arith.constant 0 : i32
    %c0_i32_0 = arith.constant 0 : i32
    %c0_i32_1 = arith.constant 0 : i32
    %c0_i32_2 = arith.constant 0 : i32
    %c0_i32_3 = arith.constant 0 : i32
    return %c0_i32, %c0_i32_0, %c0_i32_1, %c0_i32_2 : i32, i32, i32, i32
  }
  func.func @transform_4(%arg0: i32) -> (i32, i32, i32) {
    %c0_i32 = arith.constant 0 : i32
    %c0_i32_0 = arith.constant 0 : i32
    %c0_i32_1 = arith.constant 0 : i32
    %c0_i32_2 = arith.constant 0 : i32
    return %c0_i32, %c0_i32_0, %c0_i32_1 : i32, i32, i32
  }
  func.func @transform_5(%arg0: i32) -> (i32, i32, i32) {
    %c0_i32 = arith.constant 0 : i32
    %c0_i32_0 = arith.constant 0 : i32
    %c0_i32_1 = arith.constant 0 : i32
    %c0_i32_2 = arith.constant 0 : i32
    return %c0_i32, %c0_i32_0, %c0_i32_1 : i32, i32, i32
  }
  func.func @transform_6(%arg0: i32) -> (i32, i32) {
    %c0_i32 = arith.constant 0 : i32
    %c0_i32_0 = arith.constant 0 : i32
    %c0_i32_1 = arith.constant 0 : i32
    return %c0_i32, %c0_i32_0 : i32, i32
  }
  func.func @transform_7(%arg0: i32) -> (i32, i32, i32) {
    %c0_i32 = arith.constant 0 : i32
    %c0_i32_0 = arith.constant 0 : i32
    %c0_i32_1 = arith.constant 0 : i32
    return %arg0, %c0_i32, %c0_i32_0 : i32, i32, i32
  }
}

</mosaic_0001>

<llo_original>
// kernel: tpu_custom_call.1
$region0: #{tpu_custom_call.1}
  #allocation0 [shape = 'u32[]', space=smem, size = 0x4, offset = 0x4, fixed_abs, tag = 'smem constant byte address 0x4 - core index']
  #allocation1 [shape = 'u32[144,128]{1,0:T(1,128)}', space=vmem, size = 0x12000, scoped, tag = 'internal scratch']
  %s0 = inlined_call_operand.hbm [shape: f32[2,4,256], index: 0, kind: input, shape index: {}]
  %s1 = inlined_call_operand.hbm [shape: f32[2,4,4], index: 1, kind: input, shape index: {}]
  %s2 = inlined_call_operand.hbm [shape: f32[2,4,1], index: 2, kind: input, shape index: {}]
  %s3 = inlined_call_operand.hbm [shape: f32[4,9,4,4], index: 3, kind: input, shape index: {}]
  %s4 = inlined_call_operand.hbm [shape: f32[4,4,1], index: 4, kind: input, shape index: {}]
  %s5 = inlined_call_operand.hbm [shape: f32[4,8,4], index: 5, kind: input, shape index: {}]
  %s6 = inlined_call_operand.hbm [shape: f32[8,1], index: 6, kind: input, shape index: {}]
  %s7 = inlined_call_operand.hbm [shape: f32[2,8,256], index: 7, kind: output, shape index: {}]
  %s8 = sld [smem:[#allocation0]]
  $region66: #{tpu_custom_call.1} parent=0
    _
  %s10 = ssub.s32 1, %s8
  %s11 = scalar_select 0, %s10, %s8
  $region1: #{tpu_custom_call.1} parent=0
    #allocation2 [shape = 'u8[8192]{0}', space=vmem, size = 0x2000, scoped, tag = 'input window, operand 0, single buffered']
    #allocation3 [shape = 's32[1]{0}', space=sflag, size = 0x4, scoped, tag = 'scoped memory for tpu_custom_call.1']
    #allocation4 [shape = 's32[1]{0}', space=sflag, size = 0x4, scoped, tag = 'scoped memory for tpu_custom_call.1']
    #allocation5 [shape = 'u8[4096]{0}', space=vmem, size = 0x1000, scoped, tag = 'input window, operand 1, single buffered']
    #allocation6 [shape = 's32[1]{0}', space=sflag, size = 0x4, scoped, tag = 'scoped memory for tpu_custom_call.1']
    #allocation7 [shape = 'u8[4096]{0}', space=vmem, size = 0x1000, scoped, tag = 'input window, operand 2, single buffered']
    #allocation8 [shape = 'u8[73728]{0}', space=vmem, size = 0x12000, scoped, tag = 'input window, operand 3, single buffered']
    #allocation9 [shape = 's32[1]{0}', space=sflag, size = 0x4, scoped, tag = 'scoped memory for tpu_custom_call.1']
    #allocation10 [shape = 'u8[8192]{0}', space=vmem, size = 0x2000, scoped, tag = 'input window, operand 4, single buffered']
    #allocation11 [shape = 'u8[16384]{0}', space=vmem, size = 0x4000, scoped, tag = 'input window, operand 5, single buffered']
    #allocation12 [shape = 's32[1]{0}', space=sflag, size = 0x4, scoped, tag = 'scoped memory for tpu_custom_call.1']
    #allocation13 [shape = 'u8[4096]{0}', space=vmem, size = 0x1000, scoped, tag = 'input window, operand 6, single buffered']
    #allocation14 [shape = 'u8[16384]{0}', space=vmem, size = 0x4000, scoped, tag = 'output window, operand 0, single buffered']
    %12 = vsyncpa [#allocation3], 0
    %13 = vsyncpa [#allocation6], 0
    %14 = vsyncpa [#allocation9], 0
    %15 = vsyncpa [#allocation12], 0
    %16 = vsyncpa [#allocation4], 0
    // Predicated region
    $region2: #{tpu_custom_call.1} parent=1 // pred_check
      _
    $region3: #{tpu_custom_call.1} parent=1 // pred_check_branch
      %18 = sbr.rel (0) target = $region5
    $region4: #{tpu_custom_call.1} parent=1 // pred_region
      %s20 = ssub.s32 256, 256
      %21 = vsyncadd [#allocation3], %s20
      %s22 = sshll.u32 [#allocation2], 4
      %s23 = int_to_ptr.vmem [resolvable:$true] %s22
      %28 = dma.hbm_to_vmem [thread:$0]  %s0, 256, %s23, [#allocation3], 128, 128, 8
    $region5: #{tpu_custom_call.1} parent=1 // pred_fallthru
      _
    // Predicated region
    $region6: #{tpu_custom_call.1} parent=1 // pred_check
      _
    $region7: #{tpu_custom_call.1} parent=1 // pred_check_branch
      %30 = sbr.rel (0) target = $region9
    $region8: #{tpu_custom_call.1} parent=1 // pred_region
      %s32 = ssub.s32 128, 128
      %33 = vsyncadd [#allocation6], %s32
      %s34 = sshll.u32 [#allocation5], 4
      %s35 = int_to_ptr.vmem [resolvable:$true] %s34
      %40 = dma.hbm_to_vmem [thread:$0]  %s1, 128, %s35, [#allocation6], 64, 64, 4
    $region9: #{tpu_custom_call.1} parent=1 // pred_fallthru
      _
    // Predicated region
    $region10: #{tpu_custom_call.1} parent=1 // pred_check
      _
    $region11: #{tpu_custom_call.1} parent=1 // pred_check_branch
      %42 = sbr.rel (0) target = $region13
    $region12: #{tpu_custom_call.1} parent=1 // pred_region
      %s44 = ssub.s32 128, 128
      %45 = vsyncadd [#allocation6], %s44
      %s46 = sshll.u32 [#allocation7], 4
      %s47 = int_to_ptr.vmem [resolvable:$true] %s46
      %52 = dma.hbm_to_vmem [thread:$0]  %s2, 128, %s47, [#allocation6], 64, 64, 4
    $region13: #{tpu_custom_call.1} parent=1 // pred_fallthru
      _
    // Predicated region
    $region14: #{tpu_custom_call.1} parent=1 // pred_check
      _
    $region15: #{tpu_custom_call.1} parent=1 // pred_check_branch
      %54 = sbr.rel (0) target = $region17
    $region16: #{tpu_custom_call.1} parent=1 // pred_region
      %s56 = ssub.s32 2304, 2304
      %57 = vsyncadd [#allocation9], %s56
      %s58 = sshll.u32 [#allocation8], 4
      %s59 = int_to_ptr.vmem [resolvable:$true] %s58
      %64 = dma.hbm_to_vmem [thread:$0]  %s3, 2304, %s59, [#allocation9], 64, 64, 4
    $region17: #{tpu_custom_call.1} parent=1 // pred_fallthru
      _
    // Predicated region
    $region18: #{tpu_custom_call.1} parent=1 // pred_check
      _
    $region19: #{tpu_custom_call.1} parent=1 // pred_check_branch
      %66 = sbr.rel (0) target = $region21
    $region20: #{tpu_custom_call.1} parent=1 // pred_region
      %s68 = ssub.s32 256, 256
      %69 = vsyncadd [#allocation9], %s68
      %s70 = sshll.u32 [#allocation10], 4
      %s71 = int_to_ptr.vmem [resolvable:$true] %s70
      %76 = dma.hbm_to_vmem [thread:$0]  %s4, 256, %s71, [#allocation9], 64, 64, 4
    $region21: #{tpu_custom_call.1} parent=1 // pred_fallthru
      _
    // Predicated region
    $region22: #{tpu_custom_call.1} parent=1 // pred_check
      _
    $region23: #{tpu_custom_call.1} parent=1 // pred_check_branch
      %78 = sbr.rel (0) target = $region25
    $region24: #{tpu_custom_call.1} parent=1 // pred_region
      %s80 = ssub.s32 512, 512
      %81 = vsyncadd [#allocation12], %s80
      %s82 = sshll.u32 [#allocation11], 4
      %s83 = int_to_ptr.vmem [resolvable:$true] %s82
      %88 = dma.hbm_to_vmem [thread:$0]  %s5, 512, %s83, [#allocation12], 128, 128, 8
    $region25: #{tpu_custom_call.1} parent=1 // pred_fallthru
      _
    // Predicated region
    $region26: #{tpu_custom_call.1} parent=1 // pred_check
      _
    $region27: #{tpu_custom_call.1} parent=1 // pred_check_branch
      %90 = sbr.rel (0) target = $region29
    $region28: #{tpu_custom_call.1} parent=1 // pred_region
      %s92 = ssub.s32 128, 128
      %93 = vsyncadd [#allocation12], %s92
      %s95 = sshll.u32 [#allocation13], 4
      %s96 = int_to_ptr.vmem [resolvable:$true] %s95
      %98 = dma.hbm_to_vmem [thread:$0]  %s6, 128, %s96, [#allocation12]
    $region29: #{tpu_custom_call.1} parent=1 // pred_fallthru
      _
    // Predicated region
    $region30: #{tpu_custom_call.1} parent=1 // pred_check
      _
    $region31: #{tpu_custom_call.1} parent=1 // pred_check_branch
      %100 = sbr.rel (0) target = $region33
    $region32: #{tpu_custom_call.1} parent=1 // pred_region
      %101 = dma.done [#allocation3], 256
    $region33: #{tpu_custom_call.1} parent=1 // pred_fallthru
      _
    // Predicated region
    $region34: #{tpu_custom_call.1} parent=1 // pred_check
      _
    $region35: #{tpu_custom_call.1} parent=1 // pred_check_branch
      %103 = sbr.rel (0) target = $region37
    $region36: #{tpu_custom_call.1} parent=1 // pred_region
      %104 = dma.done [#allocation6], 128
    $region37: #{tpu_custom_call.1} parent=1 // pred_fallthru
      _
    // Predicated region
    $region38: #{tpu_custom_call.1} parent=1 // pred_check
      _
    $region39: #{tpu_custom_call.1} parent=1 // pred_check_branch
      %106 = sbr.rel (0) target = $region41
    $region40: #{tpu_custom_call.1} parent=1 // pred_region
      %107 = dma.done [#allocation6], 128
    $region41: #{tpu_custom_call.1} parent=1 // pred_fallthru
      _
    // Predicated region
    $region42: #{tpu_custom_call.1} parent=1 // pred_check
      _
    $region43: #{tpu_custom_call.1} parent=1 // pred_check_branch
      %109 = sbr.rel (0) target = $region45
    $region44: #{tpu_custom_call.1} parent=1 // pred_region
      %110 = dma.done [#allocation9], 2304
    $region45: #{tpu_custom_call.1} parent=1 // pred_fallthru
      _
    // Predicated region
    $region46: #{tpu_custom_call.1} parent=1 // pred_check
      _
    $region47: #{tpu_custom_call.1} parent=1 // pred_check_branch
      %112 = sbr.rel (0) target = $region49
    $region48: #{tpu_custom_call.1} parent=1 // pred_region
      %113 = dma.done [#allocation9], 256
    $region49: #{tpu_custom_call.1} parent=1 // pred_fallthru
      _
    // Predicated region
    $region50: #{tpu_custom_call.1} parent=1 // pred_check
      _
    $region51: #{tpu_custom_call.1} parent=1 // pred_check_branch
      %115 = sbr.rel (0) target = $region53
    $region52: #{tpu_custom_call.1} parent=1 // pred_region
      %116 = dma.done [#allocation12], 512
    $region53: #{tpu_custom_call.1} parent=1 // pred_fallthru
      _
    // Predicated region
    $region54: #{tpu_custom_call.1} parent=1 // pred_check
      _
    $region55: #{tpu_custom_call.1} parent=1 // pred_check_branch
      %118 = sbr.rel (0) target = $region57
    $region56: #{tpu_custom_call.1} parent=1 // pred_region
      %119 = dma.done [#allocation12], 128
    $region57: #{tpu_custom_call.1} parent=1 // pred_fallthru
      _
    %v120 = vld [vmem:[#allocation2] sm:$0xff]
    %s121 = scalar_lea.vmem [#allocation2], 8
    %v122 = vld [vmem:[%s121] sm:$0xff]
    %v124 = vcombine.high %v120, %v120
    %v126 = vcombine.high %v122, %v122
    %v127 = vlaneseq
    %v128 = vand.u32 %v127, 127
    %v129 = vadd.s32 %v128, 128
    %v130 = vadd.s32 %v128, 256
    %v131 = vadd.s32 %v128, 384
    %vm132 = vcmp.lt.s32.totalorder %v128, 0
    %v133 = vsub.s32 0, %v128
    %v134 = vsel %vm132, %v133, %v128
    %v135 = vshrl.u32 %v134, 8
    %v136 = vand.u32 %v134, 255
    %v137 = vsub.s32 0, %v136
    %v138 = vsel %vm132, %v137, %v136
    %vm139 = vcmp.lt.s32.totalorder %v129, 0
    %v140 = vsub.s32 0, %v129
    %v141 = vsel %vm139, %v140, %v129
    %v142 = vshrl.u32 %v141, 8
    %v143 = vand.u32 %v141, 255
    %v144 = vsub.s32 0, %v143
    %v145 = vsel %vm139, %v144, %v143
    %vm146 = vcmp.lt.s32.totalorder %v130, 0
    %v147 = vsub.s32 0, %v130
    %v148 = vsel %vm146, %v147, %v130
    %v149 = vshrl.u32 %v148, 8
    %v150 = vand.u32 %v148, 255
    %v151 = vsub.s32 0, %v150
    %v152 = vsel %vm146, %v151, %v150
    %vm153 = vcmp.lt.s32.totalorder %v131, 0
    %v154 = vsub.s32 0, %v131
    %v155 = vsel %vm153, %v154, %v131
    %v156 = vshrl.u32 %v155, 8
    %v157 = vand.u32 %v155, 255
    %v158 = vsub.s32 0, %v157
    %v159 = vsel %vm153, %v158, %v157
    %vm160 = vcmp.ne.s32.totalorder %v138, 0
    %vm161 = vcmp.ne.s32.totalorder %v145, 0
    %vm162 = vcmp.ne.s32.totalorder %v152, 0
    %vm163 = vcmp.ne.s32.totalorder %v159, 0
    %vm164 = vcmp.lt.s32.totalorder %v138, 0
    %vm165 = vcmp.lt.s32.totalorder %v145, 0
    %vm166 = vcmp.lt.s32.totalorder %v152, 0
    %vm167 = vcmp.lt.s32.totalorder %v159, 0
    %vm168 = vmand %vm164, %vm160
    %vm169 = vmand %vm165, %vm161
    %vm170 = vmand %vm166, %vm162
    %vm171 = vmand %vm167, %vm163
    %v172 = vadd.s32 %v138, 256
    %v173 = vadd.s32 %v145, 256
    %v174 = vadd.s32 %v152, 256
    %v175 = vadd.s32 %v159, 256
    %v176 = vsel %vm168, %v172, %v138
    %v177 = vsel %vm169, %v173, %v145
    %v178 = vsel %vm170, %v174, %v152
    %v179 = vsel %vm171, %v175, %v159
    %vm180 = vcmp.lt.s32.totalorder %v128, 0
    %v181 = vsub.s32 0, %v128
    %v182 = vsel %vm180, %v181, %v128
    %v183 = vshrl.u32 %v182, 4
    %v184 = vand.u32 %v182, 15
    %v185 = vsub.s32 0, %v184
    %v186 = vsel %vm180, %v185, %v184
    %vm187 = vcmp.lt.s32.totalorder %v129, 0
    %v188 = vsub.s32 0, %v129
    %v189 = vsel %vm187, %v188, %v129
    %v190 = vshrl.u32 %v189, 4
    %v191 = vand.u32 %v189, 15
    %v192 = vsub.s32 0, %v191
    %v193 = vsel %vm187, %v192, %v191
    %vm194 = vcmp.lt.s32.totalorder %v130, 0
    %v195 = vsub.s32 0, %v130
    %v196 = vsel %vm194, %v195, %v130
    %v197 = vshrl.u32 %v196, 4
    %v198 = vand.u32 %v196, 15
    %v199 = vsub.s32 0, %v198
    %v200 = vsel %vm194, %v199, %v198
    %vm201 = vcmp.lt.s32.totalorder %v131, 0
    %v202 = vsub.s32 0, %v131
    %v203 = vsel %vm201, %v202, %v131
    %v204 = vshrl.u32 %v203, 4
    %v205 = vand.u32 %v203, 15
    %v206 = vsub.s32 0, %v205
    %v207 = vsel %vm201, %v206, %v205
    %vm208 = vcmp.ne.s32.totalorder %v186, 0
    %vm209 = vcmp.ne.s32.totalorder %v193, 0
    %vm210 = vcmp.ne.s32.totalorder %v200, 0
    %vm211 = vcmp.ne.s32.totalorder %v207, 0
    %vm212 = vcmp.lt.s32.totalorder %v186, 0
    %vm213 = vcmp.lt.s32.totalorder %v193, 0
    %vm214 = vcmp.lt.s32.totalorder %v200, 0
    %vm215 = vcmp.lt.s32.totalorder %v207, 0
    %vm216 = vmand %vm212, %vm208
    %vm217 = vmand %vm213, %vm209
    %vm218 = vmand %vm214, %vm210
    %vm219 = vmand %vm215, %vm211
    %v220 = vadd.s32 %v186, 16
    %v221 = vadd.s32 %v193, 16
    %v222 = vadd.s32 %v200, 16
    %v223 = vadd.s32 %v207, 16
    %v224 = vsel %vm216, %v220, %v186
    %v225 = vsel %vm217, %v221, %v193
    %v226 = vsel %vm218, %v222, %v200
    %v227 = vsel %vm219, %v223, %v207
    %vm228 = vcmp.ge.s32.totalorder %v176, 16
    %vm229 = vcmp.ge.s32.totalorder %v177, 16
    %vm230 = vcmp.ge.s32.totalorder %v178, 16
    %vm231 = vcmp.ge.s32.totalorder %v179, 16
    %vm232 = vcmp.lt.s32.totalorder %v176, 240
    %vm233 = vcmp.lt.s32.totalorder %v177, 240
    %vm234 = vcmp.lt.s32.totalorder %v178, 240
    %vm235 = vcmp.lt.s32.totalorder %v179, 240
    %vm236 = vcmp.gt.s32.totalorder %v224, 0
    %vm237 = vcmp.gt.s32.totalorder %v225, 0
    %vm238 = vcmp.gt.s32.totalorder %v226, 0
    %vm239 = vcmp.gt.s32.totalorder %v227, 0
    %vm240 = vcmp.lt.s32.totalorder %v224, 15
    %vm241 = vcmp.lt.s32.totalorder %v225, 15
    %vm242 = vcmp.lt.s32.totalorder %v226, 15
    %vm243 = vcmp.lt.s32.totalorder %v227, 15
    %v244 = vld [vmem:[#allocation5] sm:$0xf]
    %v245 = vld [vmem:[#allocation7] sm:$0xf]
    %247 = vset.pattern.permute.xlu0 0
    %248 = vperm.xlu0 %247, %v245
    %v249 = vpop.permute.xlu0 %248
    %vm251 = vcmask 31744
    %v253 = vsel %vm251, %v244, 0
    %vm255 = vcmask 1043456
    %v256 = vsel %vm255, %v120, 0
    %v258 = vsel %vm255, %v124, 0
    %v260 = vsel %vm255, %v122, 0
    %v262 = vsel %vm255, %v126, 0
    %264 = vmatprep.subr.mxu0 %v258
    %265 = vmatpush1.msra.mxu0 %v256
    %266 = vmatprep.subr.mxu0 0.0
    %267 = vmatpush1.msra.mxu0 0.0
    %268 = vmatprep.subr.mxu0 0.0
    %269 = vmatpush1.msra.mxu0 0.0
    %270 = vmatprep.subr.mxu0 0.0
    %271 = vmatpush1.msra.mxu0 0.0
    %272 = vmatprep.subr.mxu0 0.0
    %273 = vmatpush1.msra.mxu0 0.0
    %274 = vmatprep.subr.mxu0 0.0
    %275 = vmatpush1.msra.mxu0 0.0
    %276 = vmatprep.subr.mxu0 0.0
    %277 = vmatpush1.msra.mxu0 0.0
    %278 = vmatprep.subr.mxu0 0.0
    %279 = vmatpush1.msra.mxu0 0.0
    %280 = vmatprep.subr.mxu0 0.0
    %281 = vmatpush1.msra.mxu0 0.0
    %282 = vmatprep.subr.mxu0 0.0
    %283 = vmatpush1.msra.mxu0 0.0
    %284 = vmatprep.subr.mxu0 0.0
    %285 = vmatpush1.msra.mxu0 0.0
    %286 = vmatprep.subr.mxu0 0.0
    %287 = vmatpush1.msra.mxu0 0.0
    %288 = vmatprep.subr.mxu0 0.0
    %289 = vmatpush1.msra.mxu0 0.0
    %290 = vmatprep.subr.mxu0 0.0
    %291 = vmatpush1.msra.mxu0 0.0
    %292 = vmatprep.subr.mxu0 0.0
    %293 = vmatpush1.msra.mxu0 0.0
    %294 = vmatprep.subr.mxu0 0.0
    %295 = vmatpush1.msra.mxu0 0.0
    %296 = vmatprep.subr.mxu0 0.0
    %297 = vmatpush1.msra.mxu0 0.0
    %298 = vmatprep.subr.mxu0 0.0
    %299 = vmatpush1.msra.mxu0 0.0
    %300 = vmatprep.subr.mxu0 0.0
    %301 = vmatpush1.msra.mxu0 0.0
    %302 = vmatprep.subr.mxu0 0.0
    %303 = vmatpush1.msra.mxu0 0.0
    %304 = vmatprep.subr.mxu0 0.0
    %305 = vmatpush1.msra.mxu0 0.0
    %306 = vmatprep.subr.mxu0 0.0
    %307 = vmatpush1.msra.mxu0 0.0
    %308 = vmatprep.subr.mxu0 0.0
    %309 = vmatpush1.msra.mxu0 0.0
    %310 = vmatprep.subr.mxu0 0.0
    %311 = vmatpush1.msra.mxu0 0.0
    %312 = vmatprep.subr.mxu0 0.0
    %313 = vmatpush1.msra.mxu0 0.0
    %314 = vmatprep.subr.mxu0 0.0
    %315 = vmatpush1.msra.mxu0 0.0
    %316 = vmatprep.subr.mxu0 0.0
    %317 = vmatpush1.msra.mxu0 0.0
    %318 = vmatprep.subr.mxu0 0.0
    %319 = vmatpush1.msra.mxu0 0.0
    %320 = vmatprep.subr.mxu0 0.0
    %321 = vmatpush1.msra.mxu0 0.0
    %322 = vmatprep.subr.mxu0 0.0
    %323 = vmatpush1.msra.mxu0 0.0
    %324 = vmatprep.subr.mxu0 0.0
    %325 = vmatpush1.msra.mxu0 0.0
    %326 = vmatprep.subr.mxu0 0.0
    %327 = vmatpush1.msra.mxu0 0.0
    %328 = vmatprep.mubr.f32.mxu0 0.0
    %329 = vmatmul.mubr.f32.gmra.mrb[0].mxu0 %v253
    %v330 = vpop.f32.mrb[0].mxu0
    %v331 = vadd.f32 %v249, %v330
    %v332 = vpop.f32.mrb[0].mxu0
    %v333 = vadd.f32 %v249, %v332
    %334 = vdwg.mxu0
    %335 = vmatprep.subr.mxu0 %v262
    %336 = vmatpush1.msra.mxu0 %v260
    %337 = vmatprep.subr.mxu0 0.0
    %338 = vmatpush1.msra.mxu0 0.0
    %339 = vmatprep.subr.mxu0 0.0
    %340 = vmatpush1.msra.mxu0 0.0
    %341 = vmatprep.subr.mxu0 0.0
    %342 = vmatpush1.msra.mxu0 0.0
    %343 = vmatprep.subr.mxu0 0.0
    %344 = vmatpush1.msra.mxu0 0.0
    %345 = vmatprep.subr.mxu0 0.0
    %346 = vmatpush1.msra.mxu0 0.0
    %347 = vmatprep.subr.mxu0 0.0
    %348 = vmatpush1.msra.mxu0 0.0
    %349 = vmatprep.subr.mxu0 0.0
    %350 = vmatpush1.msra.mxu0 0.0
    %351 = vmatprep.subr.mxu0 0.0
    %352 = vmatpush1.msra.mxu0 0.0
    %353 = vmatprep.subr.mxu0 0.0
    %354 = vmatpush1.msra.mxu0 0.0
    %355 = vmatprep.subr.mxu0 0.0
    %356 = vmatpush1.msra.mxu0 0.0
    %357 = vmatprep.subr.mxu0 0.0
    %358 = vmatpush1.msra.mxu0 0.0
    %359 = vmatprep.subr.mxu0 0.0
    %360 = vmatpush1.msra.mxu0 0.0
    %361 = vmatprep.subr.mxu0 0.0
    %362 = vmatpush1.msra.mxu0 0.0
    %363 = vmatprep.subr.mxu0 0.0
    %364 = vmatpush1.msra.mxu0 0.0
    %365 = vmatprep.subr.mxu0 0.0
    %366 = vmatpush1.msra.mxu0 0.0
    %367 = vmatprep.subr.mxu0 0.0
    %368 = vmatpush1.msra.mxu0 0.0
    %369 = vmatprep.subr.mxu0 0.0
    %370 = vmatpush1.msra.mxu0 0.0
    %371 = vmatprep.subr.mxu0 0.0
    %372 = vmatpush1.msra.mxu0 0.0
    %373 = vmatprep.subr.mxu0 0.0
    %374 = vmatpush1.msra.mxu0 0.0
    %375 = vmatprep.subr.mxu0 0.0
    %376 = vmatpush1.msra.mxu0 0.0
    %377 = vmatprep.subr.mxu0 0.0
    %378 = vmatpush1.msra.mxu0 0.0
    %379 = vmatprep.subr.mxu0 0.0
    %380 = vmatpush1.msra.mxu0 0.0
    %381 = vmatprep.subr.mxu0 0.0
    %382 = vmatpush1.msra.mxu0 0.0
    %383 = vmatprep.subr.mxu0 0.0
    %384 = vmatpush1.msra.mxu0 0.0
    %385 = vmatprep.subr.mxu0 0.0
    %386 = vmatpush1.msra.mxu0 0.0
    %387 = vmatprep.subr.mxu0 0.0
    %388 = vmatpush1.msra.mxu0 0.0
    %389 = vmatprep.subr.mxu0 0.0
    %390 = vmatpush1.msra.mxu0 0.0
    %391 = vmatprep.subr.mxu0 0.0
    %392 = vmatpush1.msra.mxu0 0.0
    %393 = vmatprep.subr.mxu0 0.0
    %394 = vmatpush1.msra.mxu0 0.0
    %395 = vmatprep.subr.mxu0 0.0
    %396 = vmatpush1.msra.mxu0 0.0
    %397 = vmatprep.subr.mxu0 0.0
    %398 = vmatpush1.msra.mxu0 0.0
    %399 = vmatprep.mubr.f32.mxu0 0.0
    %400 = vmatmul.mubr.f32.gmra.mrb[0].mxu0 %v253
    %v401 = vpop.f32.mrb[0].mxu0
    %v402 = vadd.f32 %v249, %v401
    %v403 = vpop.f32.mrb[0].mxu0
    %v404 = vadd.f32 %v249, %v403
    %405 = vdwg.mxu0
    %v406 = vxor.u32 %v331, 2147483648
    %v407 = vxor.u32 %v333, 2147483648
    %v408 = vxor.u32 %v402, 2147483648
    %v409 = vxor.u32 %v404, 2147483648
    %v410 = vmul.f32 %v406, 1.442695
    %v411 = vpow.pop %v410
    %v412 = vmul.f32 %v407, 1.442695
    %v413 = vpow.pop %v412
    %v414 = vmul.f32 %v408, 1.442695
    %v415 = vpow.pop %v414
    %v416 = vmul.f32 %v409, 1.442695
    %v417 = vpow.pop %v416
    %v418 = vadd.f32 %v411, 1.0
    %v419 = vadd.f32 %v413, 1.0
    %v420 = vadd.f32 %v415, 1.0
    %v421 = vadd.f32 %v417, 1.0
    %v422 = vrcp.pop %v418
    %v423 = vmul.f32 1.0, %v422
    %v424 = vrcp.pop %v419
    %v425 = vmul.f32 1.0, %v424
    %v426 = vrcp.pop %v420
    %v427 = vmul.f32 1.0, %v426
    %v428 = vrcp.pop %v421
    %v429 = vmul.f32 1.0, %v428
    %v430 = vmul.f32 %v331, %v423
    %v431 = vmul.f32 %v333, %v425
    %v432 = vmul.f32 %v402, %v427
    %v433 = vmul.f32 %v404, %v429
    %s434 = scalar_lea.vmem [#allocation5], 4
    %v435 = vld [vmem:[%s434] sm:$0xf]
    %s436 = scalar_lea.vmem [#allocation7], 4
    %v437 = vld [vmem:[%s436] sm:$0xf]
    %439 = vset.pattern.permute.xlu0 0
    %440 = vperm.xlu0 %439, %v437
    %v441 = vpop.permute.xlu0 %440
    %v444 = vsel %vm251, %v435, 0
    %446 = vmatprep.subr.mxu0 %v258
    %447 = vmatpush1.msra.mxu0 %v256
    %448 = vmatprep.subr.mxu0 0.0
    %449 = vmatpush1.msra.mxu0 0.0
    %450 = vmatprep.subr.mxu0 0.0
    %451 = vmatpush1.msra.mxu0 0.0
    %452 = vmatprep.subr.mxu0 0.0
    %453 = vmatpush1.msra.mxu0 0.0
    %454 = vmatprep.subr.mxu0 0.0
    %455 = vmatpush1.msra.mxu0 0.0
    %456 = vmatprep.subr.mxu0 0.0
    %457 = vmatpush1.msra.mxu0 0.0
    %458 = vmatprep.subr.mxu0 0.0
    %459 = vmatpush1.msra.mxu0 0.0
    %460 = vmatprep.subr.mxu0 0.0
    %461 = vmatpush1.msra.mxu0 0.0
    %462 = vmatprep.subr.mxu0 0.0
    %463 = vmatpush1.msra.mxu0 0.0
    %464 = vmatprep.subr.mxu0 0.0
    %465 = vmatpush1.msra.mxu0 0.0
    %466 = vmatprep.subr.mxu0 0.0
    %467 = vmatpush1.msra.mxu0 0.0
    %468 = vmatprep.subr.mxu0 0.0
    %469 = vmatpush1.msra.mxu0 0.0
    %470 = vmatprep.subr.mxu0 0.0
    %471 = vmatpush1.msra.mxu0 0.0
    %472 = vmatprep.subr.mxu0 0.0
    %473 = vmatpush1.msra.mxu0 0.0
    %474 = vmatprep.subr.mxu0 0.0
    %475 = vmatpush1.msra.mxu0 0.0
    %476 = vmatprep.subr.mxu0 0.0
    %477 = vmatpush1.msra.mxu0 0.0
    %478 = vmatprep.subr.mxu0 0.0
    %479 = vmatpush1.msra.mxu0 0.0
    %480 = vmatprep.subr.mxu0 0.0
    %481 = vmatpush1.msra.mxu0 0.0
    %482 = vmatprep.subr.mxu0 0.0
    %483 = vmatpush1.msra.mxu0 0.0
    %484 = vmatprep.subr.mxu0 0.0
    %485 = vmatpush1.msra.mxu0 0.0
    %486 = vmatprep.subr.mxu0 0.0
    %487 = vmatpush1.msra.mxu0 0.0
    %488 = vmatprep.subr.mxu0 0.0
    %489 = vmatpush1.msra.mxu0 0.0
    %490 = vmatprep.subr.mxu0 0.0
    %491 = vmatpush1.msra.mxu0 0.0
    %492 = vmatprep.subr.mxu0 0.0
    %493 = vmatpush1.msra.mxu0 0.0
    %494 = vmatprep.subr.mxu0 0.0
    %495 = vmatpush1.msra.mxu0 0.0
    %496 = vmatprep.subr.mxu0 0.0
    %497 = vmatpush1.msra.mxu0 0.0
    %498 = vmatprep.subr.mxu0 0.0
    %499 = vmatpush1.msra.mxu0 0.0
    %500 = vmatprep.subr.mxu0 0.0
    %501 = vmatpush1.msra.mxu0 0.0
    %502 = vmatprep.subr.mxu0 0.0
    %503 = vmatpush1.msra.mxu0 0.0
    %504 = vmatprep.subr.mxu0 0.0
    %505 = vmatpush1.msra.mxu0 0.0
    %506 = vmatprep.subr.mxu0 0.0
    %507 = vmatpush1.msra.mxu0 0.0
    %508 = vmatprep.subr.mxu0 0.0
    %509 = vmatpush1.msra.mxu0 0.0
    %510 = vmatprep.mubr.f32.mxu0 0.0
    %511 = vmatmul.mubr.f32.gmra.mrb[0].mxu0 %v444
    %v512 = vpop.f32.mrb[0].mxu0
    %v513 = vadd.f32 %v441, %v512
    %v514 = vpop.f32.mrb[0].mxu0
    %v515 = vadd.f32 %v441, %v514
    %516 = vdwg.mxu0
    %517 = vmatprep.subr.mxu0 %v262
    %518 = vmatpush1.msra.mxu0 %v260
    %519 = vmatprep.subr.mxu0 0.0
    %520 = vmatpush1.msra.mxu0 0.0
    %521 = vmatprep.subr.mxu0 0.0
    %522 = vmatpush1.msra.mxu0 0.0
    %523 = vmatprep.subr.mxu0 0.0
    %524 = vmatpush1.msra.mxu0 0.0
    %525 = vmatprep.subr.mxu0 0.0
    %526 = vmatpush1.msra.mxu0 0.0
    %527 = vmatprep.subr.mxu0 0.0
    %528 = vmatpush1.msra.mxu0 0.0
    %529 = vmatprep.subr.mxu0 0.0
    %530 = vmatpush1.msra.mxu0 0.0
    %531 = vmatprep.subr.mxu0 0.0
    %532 = vmatpush1.msra.mxu0 0.0
    %533 = vmatprep.subr.mxu0 0.0
    %534 = vmatpush1.msra.mxu0 0.0
    %535 = vmatprep.subr.mxu0 0.0
    %536 = vmatpush1.msra.mxu0 0.0
    %537 = vmatprep.subr.mxu0 0.0
    %538 = vmatpush1.msra.mxu0 0.0
    %539 = vmatprep.subr.mxu0 0.0
    %540 = vmatpush1.msra.mxu0 0.0
    %541 = vmatprep.subr.mxu0 0.0
    %542 = vmatpush1.msra.mxu0 0.0
    %543 = vmatprep.subr.mxu0 0.0
    %544 = vmatpush1.msra.mxu0 0.0
    %545 = vmatprep.subr.mxu0 0.0
    %546 = vmatpush1.msra.mxu0 0.0
    %547 = vmatprep.subr.mxu0 0.0
    %548 = vmatpush1.msra.mxu0 0.0
    %549 = vmatprep.subr.mxu0 0.0
    %550 = vmatpush1.msra.mxu0 0.0
    %551 = vmatprep.subr.mxu0 0.0
    %552 = vmatpush1.msra.mxu0 0.0
    %553 = vmatprep.subr.mxu0 0.0
    %554 = vmatpush1.msra.mxu0 0.0
    %555 = vmatprep.subr.mxu0 0.0
    %556 = vmatpush1.msra.mxu0 0.0
    %557 = vmatprep.subr.mxu0 0.0
    %558 = vmatpush1.msra.mxu0 0.0
    %559 = vmatprep.subr.mxu0 0.0
    %560 = vmatpush1.msra.mxu0 0.0
    %561 = vmatprep.subr.mxu0 0.0
    %562 = vmatpush1.msra.mxu0 0.0
    %563 = vmatprep.subr.mxu0 0.0
    %564 = vmatpush1.msra.mxu0 0.0
    %565 = vmatprep.subr.mxu0 0.0
    %566 = vmatpush1.msra.mxu0 0.0
    %567 = vmatprep.subr.mxu0 0.0
    %568 = vmatpush1.msra.mxu0 0.0
    %569 = vmatprep.subr.mxu0 0.0
    %570 = vmatpush1.msra.mxu0 0.0
    %571 = vmatprep.subr.mxu0 0.0
    %572 = vmatpush1.msra.mxu0 0.0
    %573 = vmatprep.subr.mxu0 0.0
    %574 = vmatpush1.msra.mxu0 0.0
    %575 = vmatprep.subr.mxu0 0.0
    %576 = vmatpush1.msra.mxu0 0.0
    %577 = vmatprep.subr.mxu0 0.0
    %578 = vmatpush1.msra.mxu0 0.0
    %579 = vmatprep.subr.mxu0 0.0
    %580 = vmatpush1.msra.mxu0 0.0
    %581 = vmatprep.mubr.f32.mxu0 0.0
    %582 = vmatmul.mubr.f32.gmra.mrb[0].mxu0 %v444
    %v583 = vpop.f32.mrb[0].mxu0
    %v584 = vadd.f32 %v441, %v583
    %v585 = vpop.f32.mrb[0].mxu0
    %v586 = vadd.f32 %v441, %v585
    %587 = vdwg.mxu0
    %v588 = vxor.u32 %v513, 2147483648
    %v589 = vxor.u32 %v515, 2147483648
    %v590 = vxor.u32 %v584, 2147483648
    %v591 = vxor.u32 %v586, 2147483648
    %v592 = vmul.f32 %v588, 1.442695
    %v593 = vpow.pop %v592
    %v594 = vmul.f32 %v589, 1.442695
    %v595 = vpow.pop %v594
    %v596 = vmul.f32 %v590, 1.442695
    %v597 = vpow.pop %v596
    %v598 = vmul.f32 %v591, 1.442695
    %v599 = vpow.pop %v598
    %v600 = vadd.f32 %v593, 1.0
    %v601 = vadd.f32 %v595, 1.0
    %v602 = vadd.f32 %v597, 1.0
    %v603 = vadd.f32 %v599, 1.0
    %v604 = vrcp.pop %v600
    %v605 = vmul.f32 1.0, %v604
    %v606 = vrcp.pop %v601
    %v607 = vmul.f32 1.0, %v606
    %v608 = vrcp.pop %v602
    %v609 = vmul.f32 1.0, %v608
    %v610 = vrcp.pop %v603
    %v611 = vmul.f32 1.0, %v610
    %v612 = vmul.f32 %v513, %v605
    %v613 = vmul.f32 %v515, %v607
    %v614 = vmul.f32 %v584, %v609
    %v615 = vmul.f32 %v586, %v611
    %v616 = vld [vmem:[#allocation11] sm:$0xff]
    %s617 = scalar_lea.vmem [#allocation11], 8
    %v618 = vld [vmem:[%s617] sm:$0xff]
    %v620 = vsel %vm251, %v618, 0
    %v623 = vsel %vm255, %v612, 0
    %v626 = vsel %vm255, %v613, 0
    %v629 = vsel %vm255, %v614, 0
    %v632 = vsel %vm255, %v615, 0
    %634 = vmatprep.subr.mxu0 %v626
    %635 = vmatpush1.msra.mxu0 %v623
    %636 = vmatprep.subr.mxu0 0.0
    %637 = vmatpush1.msra.mxu0 0.0
    %638 = vmatprep.subr.mxu0 0.0
    %639 = vmatpush1.msra.mxu0 0.0
    %640 = vmatprep.subr.mxu0 0.0
    %641 = vmatpush1.msra.mxu0 0.0
    %642 = vmatprep.subr.mxu0 0.0
    %643 = vmatpush1.msra.mxu0 0.0
    %644 = vmatprep.subr.mxu0 0.0
    %645 = vmatpush1.msra.mxu0 0.0
    %646 = vmatprep.subr.mxu0 0.0
    %647 = vmatpush1.msra.mxu0 0.0
    %648 = vmatprep.subr.mxu0 0.0
    %649 = vmatpush1.msra.mxu0 0.0
    %650 = vmatprep.subr.mxu0 0.0
    %651 = vmatpush1.msra.mxu0 0.0
    %652 = vmatprep.subr.mxu0 0.0
    %653 = vmatpush1.msra.mxu0 0.0
    %654 = vmatprep.subr.mxu0 0.0
    %655 = vmatpush1.msra.mxu0 0.0
    %656 = vmatprep.subr.mxu0 0.0
    %657 = vmatpush1.msra.mxu0 0.0
    %658 = vmatprep.subr.mxu0 0.0
    %659 = vmatpush1.msra.mxu0 0.0
    %660 = vmatprep.subr.mxu0 0.0
    %661 = vmatpush1.msra.mxu0 0.0
    %662 = vmatprep.subr.mxu0 0.0
    %663 = vmatpush1.msra.mxu0 0.0
    %664 = vmatprep.subr.mxu0 0.0
    %665 = vmatpush1.msra.mxu0 0.0
    %666 = vmatprep.subr.mxu0 0.0
    %667 = vmatpush1.msra.mxu0 0.0
    %668 = vmatprep.subr.mxu0 0.0
    %669 = vmatpush1.msra.mxu0 0.0
    %670 = vmatprep.subr.mxu0 0.0
    %671 = vmatpush1.msra.mxu0 0.0
    %672 = vmatprep.subr.mxu0 0.0
    %673 = vmatpush1.msra.mxu0 0.0
    %674 = vmatprep.subr.mxu0 0.0
    %675 = vmatpush1.msra.mxu0 0.0
    %676 = vmatprep.subr.mxu0 0.0
    %677 = vmatpush1.msra.mxu0 0.0
    %678 = vmatprep.subr.mxu0 0.0
    %679 = vmatpush1.msra.mxu0 0.0
    %680 = vmatprep.subr.mxu0 0.0
    %681 = vmatpush1.msra.mxu0 0.0
    %682 = vmatprep.subr.mxu0 0.0
    %683 = vmatpush1.msra.mxu0 0.0
    %684 = vmatprep.subr.mxu0 0.0
    %685 = vmatpush1.msra.mxu0 0.0
    %686 = vmatprep.subr.mxu0 0.0
    %687 = vmatpush1.msra.mxu0 0.0
    %688 = vmatprep.subr.mxu0 0.0
    %689 = vmatpush1.msra.mxu0 0.0
    %690 = vmatprep.subr.mxu0 0.0
    %691 = vmatpush1.msra.mxu0 0.0
    %692 = vmatprep.subr.mxu0 0.0
    %693 = vmatpush1.msra.mxu0 0.0
    %694 = vmatprep.subr.mxu0 0.0
    %695 = vmatpush1.msra.mxu0 0.0
    %696 = vmatprep.subr.mxu0 0.0
    %697 = vmatpush1.msra.mxu0 0.0
    %698 = vmatprep.mubr.f32.mxu0 0.0
    %699 = vmatmul.mubr.f32.gmra.mrb[0].mxu0 %v620
    %v700 = vpop.f32.mrb[0].mxu0
    %v701 = vadd.f32 0.0, %v700
    %v702 = vpop.f32.mrb[0].mxu0
    %v703 = vadd.f32 0.0, %v702
    %704 = vdwg.mxu0
    %705 = vmatprep.subr.mxu0 %v632
    %706 = vmatpush1.msra.mxu0 %v629
    %707 = vmatprep.subr.mxu0 0.0
    %708 = vmatpush1.msra.mxu0 0.0
    %709 = vmatprep.subr.mxu0 0.0
    %710 = vmatpush1.msra.mxu0 0.0
    %711 = vmatprep.subr.mxu0 0.0
    %712 = vmatpush1.msra.mxu0 0.0
    %713 = vmatprep.subr.mxu0 0.0
    %714 = vmatpush1.msra.mxu0 0.0
    %715 = vmatprep.subr.mxu0 0.0
    %716 = vmatpush1.msra.mxu0 0.0
    %717 = vmatprep.subr.mxu0 0.0
    %718 = vmatpush1.msra.mxu0 0.0
    %719 = vmatprep.subr.mxu0 0.0
    %720 = vmatpush1.msra.mxu0 0.0
    %721 = vmatprep.subr.mxu0 0.0
    %722 = vmatpush1.msra.mxu0 0.0
    %723 = vmatprep.subr.mxu0 0.0
    %724 = vmatpush1.msra.mxu0 0.0
    %725 = vmatprep.subr.mxu0 0.0
    %726 = vmatpush1.msra.mxu0 0.0
    %727 = vmatprep.subr.mxu0 0.0
    %728 = vmatpush1.msra.mxu0 0.0
    %729 = vmatprep.subr.mxu0 0.0
    %730 = vmatpush1.msra.mxu0 0.0
    %731 = vmatprep.subr.mxu0 0.0
    %732 = vmatpush1.msra.mxu0 0.0
    %733 = vmatprep.subr.mxu0 0.0
    %734 = vmatpush1.msra.mxu0 0.0
    %735 = vmatprep.subr.mxu0 0.0
    %736 = vmatpush1.msra.mxu0 0.0
    %737 = vmatprep.subr.mxu0 0.0
    %738 = vmatpush1.msra.mxu0 0.0
    %739 = vmatprep.subr.mxu0 0.0
    %740 = vmatpush1.msra.mxu0 0.0
    %741 = vmatprep.subr.mxu0 0.0
    %742 = vmatpush1.msra.mxu0 0.0
    %743 = vmatprep.subr.mxu0 0.0
    %744 = vmatpush1.msra.mxu0 0.0
    %745 = vmatprep.subr.mxu0 0.0
    %746 = vmatpush1.msra.mxu0 0.0
    %747 = vmatprep.subr.mxu0 0.0
    %748 = vmatpush1.msra.mxu0 0.0
    %749 = vmatprep.subr.mxu0 0.0
    %750 = vmatpush1.msra.mxu0 0.0
    %751 = vmatprep.subr.mxu0 0.0
    %752 = vmatpush1.msra.mxu0 0.0
    %753 = vmatprep.subr.mxu0 0.0
    %754 = vmatpush1.msra.mxu0 0.0
    %755 = vmatprep.subr.mxu0 0.0
    %756 = vmatpush1.msra.mxu0 0.0
    %757 = vmatprep.subr.mxu0 0.0
    %758 = vmatpush1.msra.mxu0 0.0
    %759 = vmatprep.subr.mxu0 0.0
    %760 = vmatpush1.msra.mxu0 0.0
    %761 = vmatprep.subr.mxu0 0.0
    %762 = vmatpush1.msra.mxu0 0.0
    %763 = vmatprep.subr.mxu0 0.0
    %764 = vmatpush1.msra.mxu0 0.0
    %765 = vmatprep.subr.mxu0 0.0
    %766 = vmatpush1.msra.mxu0 0.0
    %767 = vmatprep.subr.mxu0 0.0
    %768 = vmatpush1.msra.mxu0 0.0
    %769 = vmatprep.mubr.f32.mxu0 0.0
    %770 = vmatmul.mubr.f32.gmra.mrb[0].mxu0 %v620
    %v771 = vpop.f32.mrb[0].mxu0
    %v772 = vadd.f32 0.0, %v771
    %v773 = vpop.f32.mrb[0].mxu0
    %v774 = vadd.f32 0.0, %v773
    %775 = vdwg.mxu0
    %v777 = vsel %vm251, %v616, 0
    %v780 = vsel %vm255, %v430, 0
    %v783 = vsel %vm255, %v431, 0
    %v786 = vsel %vm255, %v432, 0
    %v789 = vsel %vm255, %v433, 0
    %791 = vmatprep.subr.mxu0 %v783
    %792 = vmatpush1.msra.mxu0 %v780
    %793 = vmatprep.subr.mxu0 0.0
    %794 = vmatpush1.msra.mxu0 0.0
    %795 = vmatprep.subr.mxu0 0.0
    %796 = vmatpush1.msra.mxu0 0.0
    %797 = vmatprep.subr.mxu0 0.0
    %798 = vmatpush1.msra.mxu0 0.0
    %799 = vmatprep.subr.mxu0 0.0
    %800 = vmatpush1.msra.mxu0 0.0
    %801 = vmatprep.subr.mxu0 0.0
    %802 = vmatpush1.msra.mxu0 0.0
    %803 = vmatprep.subr.mxu0 0.0
    %804 = vmatpush1.msra.mxu0 0.0
    %805 = vmatprep.subr.mxu0 0.0
    %806 = vmatpush1.msra.mxu0 0.0
    %807 = vmatprep.subr.mxu0 0.0
    %808 = vmatpush1.msra.mxu0 0.0
    %809 = vmatprep.subr.mxu0 0.0
    %810 = vmatpush1.msra.mxu0 0.0
    %811 = vmatprep.subr.mxu0 0.0
    %812 = vmatpush1.msra.mxu0 0.0
    %813 = vmatprep.subr.mxu0 0.0
    %814 = vmatpush1.msra.mxu0 0.0
    %815 = vmatprep.subr.mxu0 0.0
    %816 = vmatpush1.msra.mxu0 0.0
    %817 = vmatprep.subr.mxu0 0.0
    %818 = vmatpush1.msra.mxu0 0.0
    %819 = vmatprep.subr.mxu0 0.0
    %820 = vmatpush1.msra.mxu0 0.0
    %821 = vmatprep.subr.mxu0 0.0
    %822 = vmatpush1.msra.mxu0 0.0
    %823 = vmatprep.subr.mxu0 0.0
    %824 = vmatpush1.msra.mxu0 0.0
    %825 = vmatprep.subr.mxu0 0.0
    %826 = vmatpush1.msra.mxu0 0.0
    %827 = vmatprep.subr.mxu0 0.0
    %828 = vmatpush1.msra.mxu0 0.0
    %829 = vmatprep.subr.mxu0 0.0
    %830 = vmatpush1.msra.mxu0 0.0
    %831 = vmatprep.subr.mxu0 0.0
    %832 = vmatpush1.msra.mxu0 0.0
    %833 = vmatprep.subr.mxu0 0.0
    %834 = vmatpush1.msra.mxu0 0.0
    %835 = vmatprep.subr.mxu0 0.0
    %836 = vmatpush1.msra.mxu0 0.0
    %837 = vmatprep.subr.mxu0 0.0
    %838 = vmatpush1.msra.mxu0 0.0
    %839 = vmatprep.subr.mxu0 0.0
    %840 = vmatpush1.msra.mxu0 0.0
    %841 = vmatprep.subr.mxu0 0.0
    %842 = vmatpush1.msra.mxu0 0.0
    %843 = vmatprep.subr.mxu0 0.0
    %844 = vmatpush1.msra.mxu0 0.0
    %845 = vmatprep.subr.mxu0 0.0
    %846 = vmatpush1.msra.mxu0 0.0
    %847 = vmatprep.subr.mxu0 0.0
    %848 = vmatpush1.msra.mxu0 0.0
    %849 = vmatprep.subr.mxu0 0.0
    %850 = vmatpush1.msra.mxu0 0.0
    %851 = vmatprep.subr.mxu0 0.0
    %852 = vmatpush1.msra.mxu0 0.0
    %853 = vmatprep.subr.mxu0 0.0
    %854 = vmatpush1.msra.mxu0 0.0
    %855 = vmatprep.mubr.f32.mxu0 0.0
    %856 = vmatmul.mubr.f32.gmra.mrb[0].mxu0 %v777
    %v857 = vpop.f32.mrb[0].mxu0
    %v858 = vadd.f32 %v701, %v857
    %v859 = vpop.f32.mrb[0].mxu0
    %v860 = vadd.f32 %v703, %v859
    %861 = vdwg.mxu0
    %862 = vmatprep.subr.mxu0 %v789
    %863 = vmatpush1.msra.mxu0 %v786
    %864 = vmatprep.subr.mxu0 0.0
    %865 = vmatpush1.msra.mxu0 0.0
    %866 = vmatprep.subr.mxu0 0.0
    %867 = vmatpush1.msra.mxu0 0.0
    %868 = vmatprep.subr.mxu0 0.0
    %869 = vmatpush1.msra.mxu0 0.0
    %870 = vmatprep.subr.mxu0 0.0
    %871 = vmatpush1.msra.mxu0 0.0
    %872 = vmatprep.subr.mxu0 0.0
    %873 = vmatpush1.msra.mxu0 0.0
    %874 = vmatprep.subr.mxu0 0.0
    %875 = vmatpush1.msra.mxu0 0.0
    %876 = vmatprep.subr.mxu0 0.0
    %877 = vmatpush1.msra.mxu0 0.0
    %878 = vmatprep.subr.mxu0 0.0
    %879 = vmatpush1.msra.mxu0 0.0
    %880 = vmatprep.subr.mxu0 0.0
    %881 = vmatpush1.msra.mxu0 0.0
    %882 = vmatprep.subr.mxu0 0.0
    %883 = vmatpush1.msra.mxu0 0.0
    %884 = vmatprep.subr.mxu0 0.0
    %885 = vmatpush1.msra.mxu0 0.0
    %886 = vmatprep.subr.mxu0 0.0
    %887 = vmatpush1.msra.mxu0 0.0
    %888 = vmatprep.subr.mxu0 0.0
    %889 = vmatpush1.msra.mxu0 0.0
    %890 = vmatprep.subr.mxu0 0.0
    %891 = vmatpush1.msra.mxu0 0.0
    %892 = vmatprep.subr.mxu0 0.0
    %893 = vmatpush1.msra.mxu0 0.0
    %894 = vmatprep.subr.mxu0 0.0
    %895 = vmatpush1.msra.mxu0 0.0
    %896 = vmatprep.subr.mxu0 0.0
    %897 = vmatpush1.msra.mxu0 0.0
    %898 = vmatprep.subr.mxu0 0.0
    %899 = vmatpush1.msra.mxu0 0.0
    %900 = vmatprep.subr.mxu0 0.0
    %901 = vmatpush1.msra.mxu0 0.0
    %902 = vmatprep.subr.mxu0 0.0
    %903 = vmatpush1.msra.mxu0 0.0
    %904 = vmatprep.subr.mxu0 0.0
    %905 = vmatpush1.msra.mxu0 0.0
    %906 = vmatprep.subr.mxu0 0.0
    %907 = vmatpush1.msra.mxu0 0.0
    %908 = vmatprep.subr.mxu0 0.0
    %909 = vmatpush1.msra.mxu0 0.0
    %910 = vmatprep.subr.mxu0 0.0
    %911 = vmatpush1.msra.mxu0 0.0
    %912 = vmatprep.subr.mxu0 0.0
    %913 = vmatpush1.msra.mxu0 0.0
    %914 = vmatprep.subr.mxu0 0.0
    %915 = vmatpush1.msra.mxu0 0.0
    %916 = vmatprep.subr.mxu0 0.0
    %917 = vmatpush1.msra.mxu0 0.0
    %918 = vmatprep.subr.mxu0 0.0
    %919 = vmatpush1.msra.mxu0 0.0
    %920 = vmatprep.subr.mxu0 0.0
    %921 = vmatpush1.msra.mxu0 0.0
    %922 = vmatprep.subr.mxu0 0.0
    %923 = vmatpush1.msra.mxu0 0.0
    %924 = vmatprep.subr.mxu0 0.0
    %925 = vmatpush1.msra.mxu0 0.0
    %926 = vmatprep.mubr.f32.mxu0 0.0
    %927 = vmatmul.mubr.f32.gmra.mrb[0].mxu0 %v777
    %v928 = vpop.f32.mrb[0].mxu0
    %v929 = vadd.f32 %v772, %v928
    %v930 = vpop.f32.mrb[0].mxu0
    %v931 = vadd.f32 %v774, %v930
    %932 = vdwg.mxu0
    %933 = vrot.lane.b32.xlu0 %v612, 16
    %v934 = vpop.permute.xlu0 %933
    %935 = vrot.lane.b32.xlu0 %v613, 16
    %v936 = vpop.permute.xlu0 %935
    %937 = vrot.lane.b32.xlu0 %v614, 16
    %v938 = vpop.permute.xlu0 %937
    %939 = vrot.lane.b32.xlu0 %v615, 16
    %v940 = vpop.permute.xlu0 %939
    %vm941 = vcmp.lt.s32.totalorder %v128, 16
    %v942 = vsel %vm941, %v938, %v940
    %v943 = vsel %vm941, %v936, %v938
    %v944 = vsel %vm941, %v934, %v936
    %v945 = vsel %vm941, %v940, %v934
    %v946 = vsel %vm228, 1, 0
    %v947 = vsel %vm229, 1, 0
    %v948 = vsel %vm230, 1, 0
    %v949 = vsel %vm231, 1, 0
    %vm950 = vcmp.eq.s32.totalorder %v946, 1
    %vm951 = vcmp.eq.s32.totalorder %v947, 1
    %vm952 = vcmp.eq.s32.totalorder %v948, 1
    %vm953 = vcmp.eq.s32.totalorder %v949, 1
    %v954 = vsel %vm950, %v945, 0.0
    %v955 = vsel %vm951, %v944, 0.0
    %v956 = vsel %vm952, %v943, 0.0
    %v957 = vsel %vm953, %v942, 0.0
    %958 = vrot.lane.b32.xlu0 %v954, 1
    %v959 = vpop.permute.xlu0 %958
    %960 = vrot.lane.b32.xlu0 %v955, 1
    %v961 = vpop.permute.xlu0 %960
    %962 = vrot.lane.b32.xlu0 %v956, 1
    %v963 = vpop.permute.xlu0 %962
    %964 = vrot.lane.b32.xlu0 %v957, 1
    %v965 = vpop.permute.xlu0 %964
    %vm966 = vcmp.lt.s32.totalorder %v128, 1
    %v967 = vsel %vm966, %v963, %v965
    %v968 = vsel %vm966, %v961, %v963
    %v969 = vsel %vm966, %v959, %v961
    %v970 = vsel %vm966, %v965, %v959
    %v971 = vsel %vm236, 1, 0
    %v972 = vsel %vm237, 1, 0
    %v973 = vsel %vm238, 1, 0
    %v974 = vsel %vm239, 1, 0
    %vm975 = vcmp.eq.s32.totalorder %v971, 1
    %vm976 = vcmp.eq.s32.totalorder %v972, 1
    %vm977 = vcmp.eq.s32.totalorder %v973, 1
    %vm978 = vcmp.eq.s32.totalorder %v974, 1
    %v979 = vsel %vm975, %v970, 0.0
    %v980 = vsel %vm976, %v969, 0.0
    %v981 = vsel %vm977, %v968, 0.0
    %v982 = vsel %vm978, %v967, 0.0
    %v983 = vld [vmem:[#allocation8] sm:$0xf]
    %s984 = scalar_lea.vmem [#allocation8], 4
    %v985 = vld [vmem:[%s984] sm:$0xf]
    %v987 = vsel %vm251, %v985, 0
    %v990 = vsel %vm255, %v954, 0
    %v993 = vsel %vm255, %v955, 0
    %v996 = vsel %vm255, %v956, 0
    %v999 = vsel %vm255, %v957, 0
    %1001 = vmatprep.subr.mxu0 %v993
    %1002 = vmatpush1.msra.mxu0 %v990
    %1003 = vmatprep.subr.mxu0 0.0
    %1004 = vmatpush1.msra.mxu0 0.0
    %1005 = vmatprep.subr.mxu0 0.0
    %1006 = vmatpush1.msra.mxu0 0.0
    %1007 = vmatprep.subr.mxu0 0.0
    %1008 = vmatpush1.msra.mxu0 0.0
    %1009 = vmatprep.subr.mxu0 0.0
    %1010 = vmatpush1.msra.mxu0 0.0
    %1011 = vmatprep.subr.mxu0 0.0
    %1012 = vmatpush1.msra.mxu0 0.0
    %1013 = vmatprep.subr.mxu0 0.0
    %1014 = vmatpush1.msra.mxu0 0.0
    %1015 = vmatprep.subr.mxu0 0.0
    %1016 = vmatpush1.msra.mxu0 0.0
    %1017 = vmatprep.subr.mxu0 0.0
    %1018 = vmatpush1.msra.mxu0 0.0
    %1019 = vmatprep.subr.mxu0 0.0
    %1020 = vmatpush1.msra.mxu0 0.0
    %1021 = vmatprep.subr.mxu0 0.0
    %1022 = vmatpush1.msra.mxu0 0.0
    %1023 = vmatprep.subr.mxu0 0.0
    %1024 = vmatpush1.msra.mxu0 0.0
    %1025 = vmatprep.subr.mxu0 0.0
    %1026 = vmatpush1.msra.mxu0 0.0
    %1027 = vmatprep.subr.mxu0 0.0
    %1028 = vmatpush1.msra.mxu0 0.0
    %1029 = vmatprep.subr.mxu0 0.0
    %1030 = vmatpush1.msra.mxu0 0.0
    %1031 = vmatprep.subr.mxu0 0.0
    %1032 = vmatpush1.msra.mxu0 0.0
    %1033 = vmatprep.subr.mxu0 0.0
    %1034 = vmatpush1.msra.mxu0 0.0
    %1035 = vmatprep.subr.mxu0 0.0
    %1036 = vmatpush1.msra.mxu0 0.0
    %1037 = vmatprep.subr.mxu0 0.0
    %1038 = vmatpush1.msra.mxu0 0.0
    %1039 = vmatprep.subr.mxu0 0.0
    %1040 = vmatpush1.msra.mxu0 0.0
    %1041 = vmatprep.subr.mxu0 0.0
    %1042 = vmatpush1.msra.mxu0 0.0
    %1043 = vmatprep.subr.mxu0 0.0
    %1044 = vmatpush1.msra.mxu0 0.0
    %1045 = vmatprep.subr.mxu0 0.0
    %1046 = vmatpush1.msra.mxu0 0.0
    %1047 = vmatprep.subr.mxu0 0.0
    %1048 = vmatpush1.msra.mxu0 0.0
    %1049 = vmatprep.subr.mxu0 0.0
    %1050 = vmatpush1.msra.mxu0 0.0
    %1051 = vmatprep.subr.mxu0 0.0
    %1052 = vmatpush1.msra.mxu0 0.0
    %1053 = vmatprep.subr.mxu0 0.0
    %1054 = vmatpush1.msra.mxu0 0.0
    %1055 = vmatprep.subr.mxu0 0.0
    %1056 = vmatpush1.msra.mxu0 0.0
    %1057 = vmatprep.subr.mxu0 0.0
    %1058 = vmatpush1.msra.mxu0 0.0
    %1059 = vmatprep.subr.mxu0 0.0
    %1060 = vmatpush1.msra.mxu0 0.0
    %1061 = vmatprep.subr.mxu0 0.0
    %1062 = vmatpush1.msra.mxu0 0.0
    %1063 = vmatprep.subr.mxu0 0.0
    %1064 = vmatpush1.msra.mxu0 0.0
    %1065 = vmatprep.mubr.f32.mxu0 0.0
    %1066 = vmatmul.mubr.f32.gmra.mrb[0].mxu0 %v987
    %v1067 = vpop.f32.mrb[0].mxu0
    %v1068 = vadd.f32 0.0, %v1067
    %v1069 = vpop.f32.mrb[0].mxu0
    %v1070 = vadd.f32 0.0, %v1069
    %1071 = vdwg.mxu0
    %1072 = vmatprep.subr.mxu0 %v999
    %1073 = vmatpush1.msra.mxu0 %v996
    %1074 = vmatprep.subr.mxu0 0.0
    %1075 = vmatpush1.msra.mxu0 0.0
    %1076 = vmatprep.subr.mxu0 0.0
    %1077 = vmatpush1.msra.mxu0 0.0
    %1078 = vmatprep.subr.mxu0 0.0
    %1079 = vmatpush1.msra.mxu0 0.0
    %1080 = vmatprep.subr.mxu0 0.0
    %1081 = vmatpush1.msra.mxu0 0.0
    %1082 = vmatprep.subr.mxu0 0.0
    %1083 = vmatpush1.msra.mxu0 0.0
    %1084 = vmatprep.subr.mxu0 0.0
    %1085 = vmatpush1.msra.mxu0 0.0
    %1086 = vmatprep.subr.mxu0 0.0
    %1087 = vmatpush1.msra.mxu0 0.0
    %1088 = vmatprep.subr.mxu0 0.0
    %1089 = vmatpush1.msra.mxu0 0.0
    %1090 = vmatprep.subr.mxu0 0.0
    %1091 = vmatpush1.msra.mxu0 0.0
    %1092 = vmatprep.subr.mxu0 0.0
    %1093 = vmatpush1.msra.mxu0 0.0
    %1094 = vmatprep.subr.mxu0 0.0
    %1095 = vmatpush1.msra.mxu0 0.0
    %1096 = vmatprep.subr.mxu0 0.0
    %1097 = vmatpush1.msra.mxu0 0.0
    %1098 = vmatprep.subr.mxu0 0.0
    %1099 = vmatpush1.msra.mxu0 0.0
    %1100 = vmatprep.subr.mxu0 0.0
    %1101 = vmatpush1.msra.mxu0 0.0
    %1102 = vmatprep.subr.mxu0 0.0
    %1103 = vmatpush1.msra.mxu0 0.0
    %1104 = vmatprep.subr.mxu0 0.0
    %1105 = vmatpush1.msra.mxu0 0.0
    %1106 = vmatprep.subr.mxu0 0.0
    %1107 = vmatpush1.msra.mxu0 0.0
    %1108 = vmatprep.subr.mxu0 0.0
    %1109 = vmatpush1.msra.mxu0 0.0
    %1110 = vmatprep.subr.mxu0 0.0
    %1111 = vmatpush1.msra.mxu0 0.0
    %1112 = vmatprep.subr.mxu0 0.0
    %1113 = vmatpush1.msra.mxu0 0.0
    %1114 = vmatprep.subr.mxu0 0.0
    %1115 = vmatpush1.msra.mxu0 0.0
    %1116 = vmatprep.subr.mxu0 0.0
    %1117 = vmatpush1.msra.mxu0 0.0
    %1118 = vmatprep.subr.mxu0 0.0
    %1119 = vmatpush1.msra.mxu0 0.0
    %1120 = vmatprep.subr.mxu0 0.0
    %1121 = vmatpush1.msra.mxu0 0.0
    %1122 = vmatprep.subr.mxu0 0.0
    %1123 = vmatpush1.msra.mxu0 0.0
    %1124 = vmatprep.subr.mxu0 0.0
    %1125 = vmatpush1.msra.mxu0 0.0
    %1126 = vmatprep.subr.mxu0 0.0
    %1127 = vmatpush1.msra.mxu0 0.0
    %1128 = vmatprep.subr.mxu0 0.0
    %1129 = vmatpush1.msra.mxu0 0.0
    %1130 = vmatprep.subr.mxu0 0.0
    %1131 = vmatpush1.msra.mxu0 0.0
    %1132 = vmatprep.subr.mxu0 0.0
    %1133 = vmatpush1.msra.mxu0 0.0
    %1134 = vmatprep.subr.mxu0 0.0
    %1135 = vmatpush1.msra.mxu0 0.0
    %1136 = vmatprep.mubr.f32.mxu0 0.0
    %1137 = vmatmul.mubr.f32.gmra.mrb[0].mxu0 %v987
    %v1138 = vpop.f32.mrb[0].mxu0
    %v1139 = vadd.f32 0.0, %v1138
    %v1140 = vpop.f32.mrb[0].mxu0
    %v1141 = vadd.f32 0.0, %v1140
    %1142 = vdwg.mxu0
    %v1144 = vsel %vm251, %v983, 0
    %v1147 = vsel %vm255, %v979, 0
    %v1150 = vsel %vm255, %v980, 0
    %v1153 = vsel %vm255, %v981, 0
    %v1156 = vsel %vm255, %v982, 0
    %1158 = vmatprep.subr.mxu0 %v1150
    %1159 = vmatpush1.msra.mxu0 %v1147
    %1160 = vmatprep.subr.mxu0 0.0
    %1161 = vmatpush1.msra.mxu0 0.0
    %1162 = vmatprep.subr.mxu0 0.0
    %1163 = vmatpush1.msra.mxu0 0.0
    %1164 = vmatprep.subr.mxu0 0.0
    %1165 = vmatpush1.msra.mxu0 0.0
    %1166 = vmatprep.subr.mxu0 0.0
    %1167 = vmatpush1.msra.mxu0 0.0
    %1168 = vmatprep.subr.mxu0 0.0
    %1169 = vmatpush1.msra.mxu0 0.0
    %1170 = vmatprep.subr.mxu0 0.0
    %1171 = vmatpush1.msra.mxu0 0.0
    %1172 = vmatprep.subr.mxu0 0.0
    %1173 = vmatpush1.msra.mxu0 0.0
    %1174 = vmatprep.subr.mxu0 0.0
    %1175 = vmatpush1.msra.mxu0 0.0
    %1176 = vmatprep.subr.mxu0 0.0
    %1177 = vmatpush1.msra.mxu0 0.0
    %1178 = vmatprep.subr.mxu0 0.0
    %1179 = vmatpush1.msra.mxu0 0.0
    %1180 = vmatprep.subr.mxu0 0.0
    %1181 = vmatpush1.msra.mxu0 0.0
    %1182 = vmatprep.subr.mxu0 0.0
    %1183 = vmatpush1.msra.mxu0 0.0
    %1184 = vmatprep.subr.mxu0 0.0
    %1185 = vmatpush1.msra.mxu0 0.0
    %1186 = vmatprep.subr.mxu0 0.0
    %1187 = vmatpush1.msra.mxu0 0.0
    %1188 = vmatprep.subr.mxu0 0.0
    %1189 = vmatpush1.msra.mxu0 0.0
    %1190 = vmatprep.subr.mxu0 0.0
    %1191 = vmatpush1.msra.mxu0 0.0
    %1192 = vmatprep.subr.mxu0 0.0
    %1193 = vmatpush1.msra.mxu0 0.0
    %1194 = vmatprep.subr.mxu0 0.0
    %1195 = vmatpush1.msra.mxu0 0.0
    %1196 = vmatprep.subr.mxu0 0.0
    %1197 = vmatpush1.msra.mxu0 0.0
    %1198 = vmatprep.subr.mxu0 0.0
    %1199 = vmatpush1.msra.mxu0 0.0
    %1200 = vmatprep.subr.mxu0 0.0
    %1201 = vmatpush1.msra.mxu0 0.0
    %1202 = vmatprep.subr.mxu0 0.0
    %1203 = vmatpush1.msra.mxu0 0.0
    %1204 = vmatprep.subr.mxu0 0.0
    %1205 = vmatpush1.msra.mxu0 0.0
    %1206 = vmatprep.subr.mxu0 0.0
    %1207 = vmatpush1.msra.mxu0 0.0
    %1208 = vmatprep.subr.mxu0 0.0
    %1209 = vmatpush1.msra.mxu0 0.0
    %1210 = vmatprep.subr.mxu0 0.0
    %1211 = vmatpush1.msra.mxu0 0.0
    %1212 = vmatprep.subr.mxu0 0.0
    %1213 = vmatpush1.msra.mxu0 0.0
    %1214 = vmatprep.subr.mxu0 0.0
    %1215 = vmatpush1.msra.mxu0 0.0
    %1216 = vmatprep.subr.mxu0 0.0
    %1217 = vmatpush1.msra.mxu0 0.0
    %1218 = vmatprep.subr.mxu0 0.0
    %1219 = vmatpush1.msra.mxu0 0.0
    %1220 = vmatprep.subr.mxu0 0.0
    %1221 = vmatpush1.msra.mxu0 0.0
    %1222 = vmatprep.mubr.f32.mxu0 0.0
    %1223 = vmatmul.mubr.f32.gmra.mrb[0].mxu0 %v1144
    %v1224 = vpop.f32.mrb[0].mxu0
    %v1225 = vadd.f32 %v1068, %v1224
    %v1226 = vpop.f32.mrb[0].mxu0
    %v1227 = vadd.f32 %v1070, %v1226
    %1228 = vdwg.mxu0
    %1229 = vmatprep.subr.mxu0 %v1156
    %1230 = vmatpush1.msra.mxu0 %v1153
    %1231 = vmatprep.subr.mxu0 0.0
    %1232 = vmatpush1.msra.mxu0 0.0
    %1233 = vmatprep.subr.mxu0 0.0
    %1234 = vmatpush1.msra.mxu0 0.0
    %1235 = vmatprep.subr.mxu0 0.0
    %1236 = vmatpush1.msra.mxu0 0.0
    %1237 = vmatprep.subr.mxu0 0.0
    %1238 = vmatpush1.msra.mxu0 0.0
    %1239 = vmatprep.subr.mxu0 0.0
    %1240 = vmatpush1.msra.mxu0 0.0
    %1241 = vmatprep.subr.mxu0 0.0
    %1242 = vmatpush1.msra.mxu0 0.0
    %1243 = vmatprep.subr.mxu0 0.0
    %1244 = vmatpush1.msra.mxu0 0.0
    %1245 = vmatprep.subr.mxu0 0.0
    %1246 = vmatpush1.msra.mxu0 0.0
    %1247 = vmatprep.subr.mxu0 0.0
    %1248 = vmatpush1.msra.mxu0 0.0
    %1249 = vmatprep.subr.mxu0 0.0
    %1250 = vmatpush1.msra.mxu0 0.0
    %1251 = vmatprep.subr.mxu0 0.0
    %1252 = vmatpush1.msra.mxu0 0.0
    %1253 = vmatprep.subr.mxu0 0.0
    %1254 = vmatpush1.msra.mxu0 0.0
    %1255 = vmatprep.subr.mxu0 0.0
    %1256 = vmatpush1.msra.mxu0 0.0
    %1257 = vmatprep.subr.mxu0 0.0
    %1258 = vmatpush1.msra.mxu0 0.0
    %1259 = vmatprep.subr.mxu0 0.0
    %1260 = vmatpush1.msra.mxu0 0.0
    %1261 = vmatprep.subr.mxu0 0.0
    %1262 = vmatpush1.msra.mxu0 0.0
    %1263 = vmatprep.subr.mxu0 0.0
    %1264 = vmatpush1.msra.mxu0 0.0
    %1265 = vmatprep.subr.mxu0 0.0
    %1266 = vmatpush1.msra.mxu0 0.0
    %1267 = vmatprep.subr.mxu0 0.0
    %1268 = vmatpush1.msra.mxu0 0.0
    %1269 = vmatprep.subr.mxu0 0.0
    %1270 = vmatpush1.msra.mxu0 0.0
    %1271 = vmatprep.subr.mxu0 0.0
    %1272 = vmatpush1.msra.mxu0 0.0
    %1273 = vmatprep.subr.mxu0 0.0
    %1274 = vmatpush1.msra.mxu0 0.0
    %1275 = vmatprep.subr.mxu0 0.0
    %1276 = vmatpush1.msra.mxu0 0.0
    %1277 = vmatprep.subr.mxu0 0.0
    %1278 = vmatpush1.msra.mxu0 0.0
    %1279 = vmatprep.subr.mxu0 0.0
    %1280 = vmatpush1.msra.mxu0 0.0
    %1281 = vmatprep.subr.mxu0 0.0
    %1282 = vmatpush1.msra.mxu0 0.0
    %1283 = vmatprep.subr.mxu0 0.0
    %1284 = vmatpush1.msra.mxu0 0.0
    %1285 = vmatprep.subr.mxu0 0.0
    %1286 = vmatpush1.msra.mxu0 0.0
    %1287 = vmatprep.subr.mxu0 0.0
    %1288 = vmatpush1.msra.mxu0 0.0
    %1289 = vmatprep.subr.mxu0 0.0
    %1290 = vmatpush1.msra.mxu0 0.0
    %1291 = vmatprep.subr.mxu0 0.0
    %1292 = vmatpush1.msra.mxu0 0.0
    %1293 = vmatprep.mubr.f32.mxu0 0.0
    %1294 = vmatmul.mubr.f32.gmra.mrb[0].mxu0 %v1144
    %v1295 = vpop.f32.mrb[0].mxu0
    %v1296 = vadd.f32 %v1139, %v1295
    %v1297 = vpop.f32.mrb[0].mxu0
    %v1298 = vadd.f32 %v1141, %v1297
    %1299 = vdwg.mxu0
    %1300 = vrot.lane.b32.xlu0 %v954, 127
    %v1301 = vpop.permute.xlu0 %1300
    %1302 = vrot.lane.b32.xlu0 %v955, 127
    %v1303 = vpop.permute.xlu0 %1302
    %1304 = vrot.lane.b32.xlu0 %v956, 127
    %v1305 = vpop.permute.xlu0 %1304
    %1306 = vrot.lane.b32.xlu0 %v957, 127
    %v1307 = vpop.permute.xlu0 %1306
    %vm1308 = vcmp.lt.s32.totalorder %v128, 127
    %v1309 = vsel %vm1308, %v1305, %v1307
    %v1310 = vsel %vm1308, %v1303, %v1305
    %v1311 = vsel %vm1308, %v1301, %v1303
    %v1312 = vsel %vm1308, %v1307, %v1301
    %v1313 = vsel %vm240, 1, 0
    %v1314 = vsel %vm241, 1, 0
    %v1315 = vsel %vm242, 1, 0
    %v1316 = vsel %vm243, 1, 0
    %vm1317 = vcmp.eq.s32.totalorder %v1313, 1
    %vm1318 = vcmp.eq.s32.totalorder %v1314, 1
    %vm1319 = vcmp.eq.s32.totalorder %v1315, 1
    %vm1320 = vcmp.eq.s32.totalorder %v1316, 1
    %v1321 = vsel %vm1317, %v1311, 0.0
    %v1322 = vsel %vm1318, %v1310, 0.0
    %v1323 = vsel %vm1319, %v1309, 0.0
    %v1324 = vsel %vm1320, %v1312, 0.0
    %s1325 = scalar_lea.vmem [#allocation8], 8
    %v1326 = vld [vmem:[%s1325] sm:$0xf]
    %v1328 = vsel %vm251, %v1326, 0
    %v1331 = vsel %vm255, %v1321, 0
    %v1334 = vsel %vm255, %v1322, 0
    %v1337 = vsel %vm255, %v1323, 0
    %v1340 = vsel %vm255, %v1324, 0
    %1342 = vmatprep.subr.mxu0 %v1334
    %1343 = vmatpush1.msra.mxu0 %v1331
    %1344 = vmatprep.subr.mxu0 0.0
    %1345 = vmatpush1.msra.mxu0 0.0
    %1346 = vmatprep.subr.mxu0 0.0
    %1347 = vmatpush1.msra.mxu0 0.0
    %1348 = vmatprep.subr.mxu0 0.0
    %1349 = vmatpush1.msra.mxu0 0.0
    %1350 = vmatprep.subr.mxu0 0.0
    %1351 = vmatpush1.msra.mxu0 0.0
    %1352 = vmatprep.subr.mxu0 0.0
    %1353 = vmatpush1.msra.mxu0 0.0
    %1354 = vmatprep.subr.mxu0 0.0
    %1355 = vmatpush1.msra.mxu0 0.0
    %1356 = vmatprep.subr.mxu0 0.0
    %1357 = vmatpush1.msra.mxu0 0.0
    %1358 = vmatprep.subr.mxu0 0.0
    %1359 = vmatpush1.msra.mxu0 0.0
    %1360 = vmatprep.subr.mxu0 0.0
    %1361 = vmatpush1.msra.mxu0 0.0
    %1362 = vmatprep.subr.mxu0 0.0
    %1363 = vmatpush1.msra.mxu0 0.0
    %1364 = vmatprep.subr.mxu0 0.0
    %1365 = vmatpush1.msra.mxu0 0.0
    %1366 = vmatprep.subr.mxu0 0.0
    %1367 = vmatpush1.msra.mxu0 0.0
    %1368 = vmatprep.subr.mxu0 0.0
    %1369 = vmatpush1.msra.mxu0 0.0
    %1370 = vmatprep.subr.mxu0 0.0
    %1371 = vmatpush1.msra.mxu0 0.0
    %1372 = vmatprep.subr.mxu0 0.0
    %1373 = vmatpush1.msra.mxu0 0.0
    %1374 = vmatprep.subr.mxu0 0.0
    %1375 = vmatpush1.msra.mxu0 0.0
    %1376 = vmatprep.subr.mxu0 0.0
    %1377 = vmatpush1.msra.mxu0 0.0
    %1378 = vmatprep.subr.mxu0 0.0
    %1379 = vmatpush1.msra.mxu0 0.0
    %1380 = vmatprep.subr.mxu0 0.0
    %1381 = vmatpush1.msra.mxu0 0.0
    %1382 = vmatprep.subr.mxu0 0.0
    %1383 = vmatpush1.msra.mxu0 0.0
    %1384 = vmatprep.subr.mxu0 0.0
    %1385 = vmatpush1.msra.mxu0 0.0
    %1386 = vmatprep.subr.mxu0 0.0
    %1387 = vmatpush1.msra.mxu0 0.0
    %1388 = vmatprep.subr.mxu0 0.0
    %1389 = vmatpush1.msra.mxu0 0.0
    %1390 = vmatprep.subr.mxu0 0.0
    %1391 = vmatpush1.msra.mxu0 0.0
    %1392 = vmatprep.subr.mxu0 0.0
    %1393 = vmatpush1.msra.mxu0 0.0
    %1394 = vmatprep.subr.mxu0 0.0
    %1395 = vmatpush1.msra.mxu0 0.0
    %1396 = vmatprep.subr.mxu0 0.0
    %1397 = vmatpush1.msra.mxu0 0.0
    %1398 = vmatprep.subr.mxu0 0.0
    %1399 = vmatpush1.msra.mxu0 0.0
    %1400 = vmatprep.subr.mxu0 0.0
    %1401 = vmatpush1.msra.mxu0 0.0
    %1402 = vmatprep.subr.mxu0 0.0
    %1403 = vmatpush1.msra.mxu0 0.0
    %1404 = vmatprep.subr.mxu0 0.0
    %1405 = vmatpush1.msra.mxu0 0.0
    %1406 = vmatprep.mubr.f32.mxu0 0.0
    %1407 = vmatmul.mubr.f32.gmra.mrb[0].mxu0 %v1328
    %v1408 = vpop.f32.mrb[0].mxu0
    %v1409 = vadd.f32 0.0, %v1408
    %v1410 = vpop.f32.mrb[0].mxu0
    %v1411 = vadd.f32 0.0, %v1410
    %1412 = vdwg.mxu0
    %1413 = vmatprep.subr.mxu0 %v1340
    %1414 = vmatpush1.msra.mxu0 %v1337
    %1415 = vmatprep.subr.mxu0 0.0
    %1416 = vmatpush1.msra.mxu0 0.0
    %1417 = vmatprep.subr.mxu0 0.0
    %1418 = vmatpush1.msra.mxu0 0.0
    %1419 = vmatprep.subr.mxu0 0.0
    %1420 = vmatpush1.msra.mxu0 0.0
    %1421 = vmatprep.subr.mxu0 0.0
    %1422 = vmatpush1.msra.mxu0 0.0
    %1423 = vmatprep.subr.mxu0 0.0
    %1424 = vmatpush1.msra.mxu0 0.0
    %1425 = vmatprep.subr.mxu0 0.0
    %1426 = vmatpush1.msra.mxu0 0.0
    %1427 = vmatprep.subr.mxu0 0.0
    %1428 = vmatpush1.msra.mxu0 0.0
    %1429 = vmatprep.subr.mxu0 0.0
    %1430 = vmatpush1.msra.mxu0 0.0
    %1431 = vmatprep.subr.mxu0 0.0
    %1432 = vmatpush1.msra.mxu0 0.0
    %1433 = vmatprep.subr.mxu0 0.0
    %1434 = vmatpush1.msra.mxu0 0.0
    %1435 = vmatprep.subr.mxu0 0.0
    %1436 = vmatpush1.msra.mxu0 0.0
    %1437 = vmatprep.subr.mxu0 0.0
    %1438 = vmatpush1.msra.mxu0 0.0
    %1439 = vmatprep.subr.mxu0 0.0
    %1440 = vmatpush1.msra.mxu0 0.0
    %1441 = vmatprep.subr.mxu0 0.0
    %1442 = vmatpush1.msra.mxu0 0.0
    %1443 = vmatprep.subr.mxu0 0.0
    %1444 = vmatpush1.msra.mxu0 0.0
    %1445 = vmatprep.subr.mxu0 0.0
    %1446 = vmatpush1.msra.mxu0 0.0
    %1447 = vmatprep.subr.mxu0 0.0
    %1448 = vmatpush1.msra.mxu0 0.0
    %1449 = vmatprep.subr.mxu0 0.0
    %1450 = vmatpush1.msra.mxu0 0.0
    %1451 = vmatprep.subr.mxu0 0.0
    %1452 = vmatpush1.msra.mxu0 0.0
    %1453 = vmatprep.subr.mxu0 0.0
    %1454 = vmatpush1.msra.mxu0 0.0
    %1455 = vmatprep.subr.mxu0 0.0
    %1456 = vmatpush1.msra.mxu0 0.0
    %1457 = vmatprep.subr.mxu0 0.0
    %1458 = vmatpush1.msra.mxu0 0.0
    %1459 = vmatprep.subr.mxu0 0.0
    %1460 = vmatpush1.msra.mxu0 0.0
    %1461 = vmatprep.subr.mxu0 0.0
    %1462 = vmatpush1.msra.mxu0 0.0
    %1463 = vmatprep.subr.mxu0 0.0
    %1464 = vmatpush1.msra.mxu0 0.0
    %1465 = vmatprep.subr.mxu0 0.0
    %1466 = vmatpush1.msra.mxu0 0.0
    %1467 = vmatprep.subr.mxu0 0.0
    %1468 = vmatpush1.msra.mxu0 0.0
    %1469 = vmatprep.subr.mxu0 0.0
    %1470 = vmatpush1.msra.mxu0 0.0
    %1471 = vmatprep.subr.mxu0 0.0
    %1472 = vmatpush1.msra.mxu0 0.0
    %1473 = vmatprep.subr.mxu0 0.0
    %1474 = vmatpush1.msra.mxu0 0.0
    %1475 = vmatprep.subr.mxu0 0.0
    %1476 = vmatpush1.msra.mxu0 0.0
    %1477 = vmatprep.mubr.f32.mxu0 0.0
    %1478 = vmatmul.mubr.f32.gmra.mrb[0].mxu0 %v1328
    %v1479 = vpop.f32.mrb[0].mxu0
    %v1480 = vadd.f32 0.0, %v1479
    %v1481 = vpop.f32.mrb[0].mxu0
    %v1482 = vadd.f32 0.0, %v1481
    %1483 = vdwg.mxu0
    %v1484 = vadd.f32 %v1225, %v1409
    %v1485 = vadd.f32 %v1227, %v1411
    %v1486 = vadd.f32 %v1296, %v1480
    %v1487 = vadd.f32 %v1298, %v1482
    %1488 = vrot.lane.b32.xlu0 %v612, 1
    %v1489 = vpop.permute.xlu0 %1488
    %1490 = vrot.lane.b32.xlu0 %v613, 1
    %v1491 = vpop.permute.xlu0 %1490
    %1492 = vrot.lane.b32.xlu0 %v614, 1
    %v1493 = vpop.permute.xlu0 %1492
    %1494 = vrot.lane.b32.xlu0 %v615, 1
    %v1495 = vpop.permute.xlu0 %1494
    %v1496 = vsel %vm966, %v1493, %v1495
    %v1497 = vsel %vm966, %v1491, %v1493
    %v1498 = vsel %vm966, %v1489, %v1491
    %v1499 = vsel %vm966, %v1495, %v1489
    %v1500 = vsel %vm975, %v1499, 0.0
    %v1501 = vsel %vm976, %v1498, 0.0
    %v1502 = vsel %vm977, %v1497, 0.0
    %v1503 = vsel %vm978, %v1496, 0.0
    %s1504 = scalar_lea.vmem [#allocation8], 12
    %v1505 = vld [vmem:[%s1504] sm:$0xf]
    %v1507 = vsel %vm251, %v1505, 0
    %v1510 = vsel %vm255, %v1500, 0
    %v1513 = vsel %vm255, %v1501, 0
    %v1516 = vsel %vm255, %v1502, 0
    %v1519 = vsel %vm255, %v1503, 0
    %1521 = vmatprep.subr.mxu0 %v1513
    %1522 = vmatpush1.msra.mxu0 %v1510
    %1523 = vmatprep.subr.mxu0 0.0
    %1524 = vmatpush1.msra.mxu0 0.0
    %1525 = vmatprep.subr.mxu0 0.0
    %1526 = vmatpush1.msra.mxu0 0.0
    %1527 = vmatprep.subr.mxu0 0.0
    %1528 = vmatpush1.msra.mxu0 0.0
    %1529 = vmatprep.subr.mxu0 0.0
    %1530 = vmatpush1.msra.mxu0 0.0
    %1531 = vmatprep.subr.mxu0 0.0
    %1532 = vmatpush1.msra.mxu0 0.0
    %1533 = vmatprep.subr.mxu0 0.0
    %1534 = vmatpush1.msra.mxu0 0.0
    %1535 = vmatprep.subr.mxu0 0.0
    %1536 = vmatpush1.msra.mxu0 0.0
    %1537 = vmatprep.subr.mxu0 0.0
    %1538 = vmatpush1.msra.mxu0 0.0
    %1539 = vmatprep.subr.mxu0 0.0
    %1540 = vmatpush1.msra.mxu0 0.0
    %1541 = vmatprep.subr.mxu0 0.0
    %1542 = vmatpush1.msra.mxu0 0.0
    %1543 = vmatprep.subr.mxu0 0.0
    %1544 = vmatpush1.msra.mxu0 0.0
    %1545 = vmatprep.subr.mxu0 0.0
    %1546 = vmatpush1.msra.mxu0 0.0
    %1547 = vmatprep.subr.mxu0 0.0
    %1548 = vmatpush1.msra.mxu0 0.0
    %1549 = vmatprep.subr.mxu0 0.0
    %1550 = vmatpush1.msra.mxu0 0.0
    %1551 = vmatprep.subr.mxu0 0.0
    %1552 = vmatpush1.msra.mxu0 0.0
    %1553 = vmatprep.subr.mxu0 0.0
    %1554 = vmatpush1.msra.mxu0 0.0
    %1555 = vmatprep.subr.mxu0 0.0
    %1556 = vmatpush1.msra.mxu0 0.0
    %1557 = vmatprep.subr.mxu0 0.0
    %1558 = vmatpush1.msra.mxu0 0.0
    %1559 = vmatprep.subr.mxu0 0.0
    %1560 = vmatpush1.msra.mxu0 0.0
    %1561 = vmatprep.subr.mxu0 0.0
    %1562 = vmatpush1.msra.mxu0 0.0
    %1563 = vmatprep.subr.mxu0 0.0
    %1564 = vmatpush1.msra.mxu0 0.0
    %1565 = vmatprep.subr.mxu0 0.0
    %1566 = vmatpush1.msra.mxu0 0.0
    %1567 = vmatprep.subr.mxu0 0.0
    %1568 = vmatpush1.msra.mxu0 0.0
    %1569 = vmatprep.subr.mxu0 0.0
    %1570 = vmatpush1.msra.mxu0 0.0
    %1571 = vmatprep.subr.mxu0 0.0
    %1572 = vmatpush1.msra.mxu0 0.0
    %1573 = vmatprep.subr.mxu0 0.0
    %1574 = vmatpush1.msra.mxu0 0.0
    %1575 = vmatprep.subr.mxu0 0.0
    %1576 = vmatpush1.msra.mxu0 0.0
    %1577 = vmatprep.subr.mxu0 0.0
    %1578 = vmatpush1.msra.mxu0 0.0
    %1579 = vmatprep.subr.mxu0 0.0
    %1580 = vmatpush1.msra.mxu0 0.0
    %1581 = vmatprep.subr.mxu0 0.0
    %1582 = vmatpush1.msra.mxu0 0.0
    %1583 = vmatprep.subr.mxu0 0.0
    %1584 = vmatpush1.msra.mxu0 0.0
    %1585 = vmatprep.mubr.f32.mxu0 0.0
    %1586 = vmatmul.mubr.f32.gmra.mrb[0].mxu0 %v1507
    %v1587 = vpop.f32.mrb[0].mxu0
    %v1588 = vadd.f32 0.0, %v1587
    %v1589 = vpop.f32.mrb[0].mxu0
    %v1590 = vadd.f32 0.0, %v1589
    %1591 = vdwg.mxu0
    %1592 = vmatprep.subr.mxu0 %v1519
    %1593 = vmatpush1.msra.mxu0 %v1516
    %1594 = vmatprep.subr.mxu0 0.0
    %1595 = vmatpush1.msra.mxu0 0.0
    %1596 = vmatprep.subr.mxu0 0.0
    %1597 = vmatpush1.msra.mxu0 0.0
    %1598 = vmatprep.subr.mxu0 0.0
    %1599 = vmatpush1.msra.mxu0 0.0
    %1600 = vmatprep.subr.mxu0 0.0
    %1601 = vmatpush1.msra.mxu0 0.0
    %1602 = vmatprep.subr.mxu0 0.0
    %1603 = vmatpush1.msra.mxu0 0.0
    %1604 = vmatprep.subr.mxu0 0.0
    %1605 = vmatpush1.msra.mxu0 0.0
    %1606 = vmatprep.subr.mxu0 0.0
    %1607 = vmatpush1.msra.mxu0 0.0
    %1608 = vmatprep.subr.mxu0 0.0
    %1609 = vmatpush1.msra.mxu0 0.0
    %1610 = vmatprep.subr.mxu0 0.0
    %1611 = vmatpush1.msra.mxu0 0.0
    %1612 = vmatprep.subr.mxu0 0.0
    %1613 = vmatpush1.msra.mxu0 0.0
    %1614 = vmatprep.subr.mxu0 0.0
    %1615 = vmatpush1.msra.mxu0 0.0
    %1616 = vmatprep.subr.mxu0 0.0
    %1617 = vmatpush1.msra.mxu0 0.0
    %1618 = vmatprep.subr.mxu0 0.0
    %1619 = vmatpush1.msra.mxu0 0.0
    %1620 = vmatprep.subr.mxu0 0.0
    %1621 = vmatpush1.msra.mxu0 0.0
    %1622 = vmatprep.subr.mxu0 0.0
    %1623 = vmatpush1.msra.mxu0 0.0
    %1624 = vmatprep.subr.mxu0 0.0
    %1625 = vmatpush1.msra.mxu0 0.0
    %1626 = vmatprep.subr.mxu0 0.0
    %1627 = vmatpush1.msra.mxu0 0.0
    %1628 = vmatprep.subr.mxu0 0.0
    %1629 = vmatpush1.msra.mxu0 0.0
    %1630 = vmatprep.subr.mxu0 0.0
    %1631 = vmatpush1.msra.mxu0 0.0
    %1632 = vmatprep.subr.mxu0 0.0
    %1633 = vmatpush1.msra.mxu0 0.0
    %1634 = vmatprep.subr.mxu0 0.0
    %1635 = vmatpush1.msra.mxu0 0.0
    %1636 = vmatprep.subr.mxu0 0.0
    %1637 = vmatpush1.msra.mxu0 0.0
    %1638 = vmatprep.subr.mxu0 0.0
    %1639 = vmatpush1.msra.mxu0 0.0
    %1640 = vmatprep.subr.mxu0 0.0
    %1641 = vmatpush1.msra.mxu0 0.0
    %1642 = vmatprep.subr.mxu0 0.0
    %1643 = vmatpush1.msra.mxu0 0.0
    %1644 = vmatprep.subr.mxu0 0.0
    %1645 = vmatpush1.msra.mxu0 0.0
    %1646 = vmatprep.subr.mxu0 0.0
    %1647 = vmatpush1.msra.mxu0 0.0
    %1648 = vmatprep.subr.mxu0 0.0
    %1649 = vmatpush1.msra.mxu0 0.0
    %1650 = vmatprep.subr.mxu0 0.0
    %1651 = vmatpush1.msra.mxu0 0.0
    %1652 = vmatprep.subr.mxu0 0.0
    %1653 = vmatpush1.msra.mxu0 0.0
    %1654 = vmatprep.subr.mxu0 0.0
    %1655 = vmatpush1.msra.mxu0 0.0
    %1656 = vmatprep.mubr.f32.mxu0 0.0
    %1657 = vmatmul.mubr.f32.gmra.mrb[0].mxu0 %v1507
    %v1658 = vpop.f32.mrb[0].mxu0
    %v1659 = vadd.f32 0.0, %v1658
    %v1660 = vpop.f32.mrb[0].mxu0
    %v1661 = vadd.f32 0.0, %v1660
    %1662 = vdwg.mxu0
    %v1663 = vadd.f32 %v1484, %v1588
    %v1664 = vadd.f32 %v1485, %v1590
    %v1665 = vadd.f32 %v1486, %v1659
    %v1666 = vadd.f32 %v1487, %v1661
    %s1667 = scalar_lea.vmem [#allocation8], 16
    %v1668 = vld [vmem:[%s1667] sm:$0xf]
    %v1670 = vsel %vm251, %v1668, 0
    %1672 = vmatprep.subr.mxu0 %v626
    %1673 = vmatpush1.msra.mxu0 %v623
    %1674 = vmatprep.subr.mxu0 0.0
    %1675 = vmatpush1.msra.mxu0 0.0
    %1676 = vmatprep.subr.mxu0 0.0
    %1677 = vmatpush1.msra.mxu0 0.0
    %1678 = vmatprep.subr.mxu0 0.0
    %1679 = vmatpush1.msra.mxu0 0.0
    %1680 = vmatprep.subr.mxu0 0.0
    %1681 = vmatpush1.msra.mxu0 0.0
    %1682 = vmatprep.subr.mxu0 0.0
    %1683 = vmatpush1.msra.mxu0 0.0
    %1684 = vmatprep.subr.mxu0 0.0
    %1685 = vmatpush1.msra.mxu0 0.0
    %1686 = vmatprep.subr.mxu0 0.0
    %1687 = vmatpush1.msra.mxu0 0.0
    %1688 = vmatprep.subr.mxu0 0.0
    %1689 = vmatpush1.msra.mxu0 0.0
    %1690 = vmatprep.subr.mxu0 0.0
    %1691 = vmatpush1.msra.mxu0 0.0
    %1692 = vmatprep.subr.mxu0 0.0
    %1693 = vmatpush1.msra.mxu0 0.0
    %1694 = vmatprep.subr.mxu0 0.0
    %1695 = vmatpush1.msra.mxu0 0.0
    %1696 = vmatprep.subr.mxu0 0.0
    %1697 = vmatpush1.msra.mxu0 0.0
    %1698 = vmatprep.subr.mxu0 0.0
    %1699 = vmatpush1.msra.mxu0 0.0
    %1700 = vmatprep.subr.mxu0 0.0
    %1701 = vmatpush1.msra.mxu0 0.0
    %1702 = vmatprep.subr.mxu0 0.0
    %1703 = vmatpush1.msra.mxu0 0.0
    %1704 = vmatprep.subr.mxu0 0.0
    %1705 = vmatpush1.msra.mxu0 0.0
    %1706 = vmatprep.subr.mxu0 0.0
    %1707 = vmatpush1.msra.mxu0 0.0
    %1708 = vmatprep.subr.mxu0 0.0
    %1709 = vmatpush1.msra.mxu0 0.0
    %1710 = vmatprep.subr.mxu0 0.0
    %1711 = vmatpush1.msra.mxu0 0.0
    %1712 = vmatprep.subr.mxu0 0.0
    %1713 = vmatpush1.msra.mxu0 0.0
    %1714 = vmatprep.subr.mxu0 0.0
    %1715 = vmatpush1.msra.mxu0 0.0
    %1716 = vmatprep.subr.mxu0 0.0
    %1717 = vmatpush1.msra.mxu0 0.0
    %1718 = vmatprep.subr.mxu0 0.0
    %1719 = vmatpush1.msra.mxu0 0.0
    %1720 = vmatprep.subr.mxu0 0.0
    %1721 = vmatpush1.msra.mxu0 0.0
    %1722 = vmatprep.subr.mxu0 0.0
    %1723 = vmatpush1.msra.mxu0 0.0
    %1724 = vmatprep.subr.mxu0 0.0
    %1725 = vmatpush1.msra.mxu0 0.0
    %1726 = vmatprep.subr.mxu0 0.0
    %1727 = vmatpush1.msra.mxu0 0.0
    %1728 = vmatprep.subr.mxu0 0.0
    %1729 = vmatpush1.msra.mxu0 0.0
    %1730 = vmatprep.subr.mxu0 0.0
    %1731 = vmatpush1.msra.mxu0 0.0
    %1732 = vmatprep.subr.mxu0 0.0
    %1733 = vmatpush1.msra.mxu0 0.0
    %1734 = vmatprep.subr.mxu0 0.0
    %1735 = vmatpush1.msra.mxu0 0.0
    %1736 = vmatprep.mubr.f32.mxu0 0.0
    %1737 = vmatmul.mubr.f32.gmra.mrb[0].mxu0 %v1670
    %v1738 = vpop.f32.mrb[0].mxu0
    %v1739 = vadd.f32 0.0, %v1738
    %v1740 = vpop.f32.mrb[0].mxu0
    %v1741 = vadd.f32 0.0, %v1740
    %1742 = vdwg.mxu0
    %1743 = vmatprep.subr.mxu0 %v632
    %1744 = vmatpush1.msra.mxu0 %v629
    %1745 = vmatprep.subr.mxu0 0.0
    %1746 = vmatpush1.msra.mxu0 0.0
    %1747 = vmatprep.subr.mxu0 0.0
    %1748 = vmatpush1.msra.mxu0 0.0
    %1749 = vmatprep.subr.mxu0 0.0
    %1750 = vmatpush1.msra.mxu0 0.0
    %1751 = vmatprep.subr.mxu0 0.0
    %1752 = vmatpush1.msra.mxu0 0.0
    %1753 = vmatprep.subr.mxu0 0.0
    %1754 = vmatpush1.msra.mxu0 0.0
    %1755 = vmatprep.subr.mxu0 0.0
    %1756 = vmatpush1.msra.mxu0 0.0
    %1757 = vmatprep.subr.mxu0 0.0
    %1758 = vmatpush1.msra.mxu0 0.0
    %1759 = vmatprep.subr.mxu0 0.0
    %1760 = vmatpush1.msra.mxu0 0.0
    %1761 = vmatprep.subr.mxu0 0.0
    %1762 = vmatpush1.msra.mxu0 0.0
    %1763 = vmatprep.subr.mxu0 0.0
    %1764 = vmatpush1.msra.mxu0 0.0
    %1765 = vmatprep.subr.mxu0 0.0
    %1766 = vmatpush1.msra.mxu0 0.0
    %1767 = vmatprep.subr.mxu0 0.0
    %1768 = vmatpush1.msra.mxu0 0.0
    %1769 = vmatprep.subr.mxu0 0.0
    %1770 = vmatpush1.msra.mxu0 0.0
    %1771 = vmatprep.subr.mxu0 0.0
    %1772 = vmatpush1.msra.mxu0 0.0
    %1773 = vmatprep.subr.mxu0 0.0
    %1774 = vmatpush1.msra.mxu0 0.0
    %1775 = vmatprep.subr.mxu0 0.0
    %1776 = vmatpush1.msra.mxu0 0.0
    %1777 = vmatprep.subr.mxu0 0.0
    %1778 = vmatpush1.msra.mxu0 0.0
    %1779 = vmatprep.subr.mxu0 0.0
    %1780 = vmatpush1.msra.mxu0 0.0
    %1781 = vmatprep.subr.mxu0 0.0
    %1782 = vmatpush1.msra.mxu0 0.0
    %1783 = vmatprep.subr.mxu0 0.0
    %1784 = vmatpush1.msra.mxu0 0.0
    %1785 = vmatprep.subr.mxu0 0.0
    %1786 = vmatpush1.msra.mxu0 0.0
    %1787 = vmatprep.subr.mxu0 0.0
    %1788 = vmatpush1.msra.mxu0 0.0
    %1789 = vmatprep.subr.mxu0 0.0
    %1790 = vmatpush1.msra.mxu0 0.0
    %1791 = vmatprep.subr.mxu0 0.0
    %1792 = vmatpush1.msra.mxu0 0.0
    %1793 = vmatprep.subr.mxu0 0.0
    %1794 = vmatpush1.msra.mxu0 0.0
    %1795 = vmatprep.subr.mxu0 0.0
    %1796 = vmatpush1.msra.mxu0 0.0
    %1797 = vmatprep.subr.mxu0 0.0
    %1798 = vmatpush1.msra.mxu0 0.0
    %1799 = vmatprep.subr.mxu0 0.0
    %1800 = vmatpush1.msra.mxu0 0.0
    %1801 = vmatprep.subr.mxu0 0.0
    %1802 = vmatpush1.msra.mxu0 0.0
    %1803 = vmatprep.subr.mxu0 0.0
    %1804 = vmatpush1.msra.mxu0 0.0
    %1805 = vmatprep.subr.mxu0 0.0
    %1806 = vmatpush1.msra.mxu0 0.0
    %1807 = vmatprep.mubr.f32.mxu0 0.0
    %1808 = vmatmul.mubr.f32.gmra.mrb[0].mxu0 %v1670
    %v1809 = vpop.f32.mrb[0].mxu0
    %v1810 = vadd.f32 0.0, %v1809
    %v1811 = vpop.f32.mrb[0].mxu0
    %v1812 = vadd.f32 0.0, %v1811
    %1813 = vdwg.mxu0
    %v1814 = vadd.f32 %v1663, %v1739
    %v1815 = vadd.f32 %v1664, %v1741
    %v1816 = vadd.f32 %v1665, %v1810
    %v1817 = vadd.f32 %v1666, %v1812
    %1818 = vrot.lane.b32.xlu0 %v612, 127
    %v1819 = vpop.permute.xlu0 %1818
    %1820 = vrot.lane.b32.xlu0 %v613, 127
    %v1821 = vpop.permute.xlu0 %1820
    %1822 = vrot.lane.b32.xlu0 %v614, 127
    %v1823 = vpop.permute.xlu0 %1822
    %1824 = vrot.lane.b32.xlu0 %v615, 127
    %v1825 = vpop.permute.xlu0 %1824
    %v1826 = vsel %vm1308, %v1823, %v1825
    %v1827 = vsel %vm1308, %v1821, %v1823
    %v1828 = vsel %vm1308, %v1819, %v1821
    %v1829 = vsel %vm1308, %v1825, %v1819
    %v1830 = vsel %vm1317, %v1828, 0.0
    %v1831 = vsel %vm1318, %v1827, 0.0
    %v1832 = vsel %vm1319, %v1826, 0.0
    %v1833 = vsel %vm1320, %v1829, 0.0
    %s1834 = scalar_lea.vmem [#allocation8], 20
    %v1835 = vld [vmem:[%s1834] sm:$0xf]
    %v1837 = vsel %vm251, %v1835, 0
    %v1840 = vsel %vm255, %v1830, 0
    %v1843 = vsel %vm255, %v1831, 0
    %v1846 = vsel %vm255, %v1832, 0
    %v1849 = vsel %vm255, %v1833, 0
    %1851 = vmatprep.subr.mxu0 %v1843
    %1852 = vmatpush1.msra.mxu0 %v1840
    %1853 = vmatprep.subr.mxu0 0.0
    %1854 = vmatpush1.msra.mxu0 0.0
    %1855 = vmatprep.subr.mxu0 0.0
    %1856 = vmatpush1.msra.mxu0 0.0
    %1857 = vmatprep.subr.mxu0 0.0
    %1858 = vmatpush1.msra.mxu0 0.0
    %1859 = vmatprep.subr.mxu0 0.0
    %1860 = vmatpush1.msra.mxu0 0.0
    %1861 = vmatprep.subr.mxu0 0.0
    %1862 = vmatpush1.msra.mxu0 0.0
    %1863 = vmatprep.subr.mxu0 0.0
    %1864 = vmatpush1.msra.mxu0 0.0
    %1865 = vmatprep.subr.mxu0 0.0
    %1866 = vmatpush1.msra.mxu0 0.0
    %1867 = vmatprep.subr.mxu0 0.0
    %1868 = vmatpush1.msra.mxu0 0.0
    %1869 = vmatprep.subr.mxu0 0.0
    %1870 = vmatpush1.msra.mxu0 0.0
    %1871 = vmatprep.subr.mxu0 0.0
    %1872 = vmatpush1.msra.mxu0 0.0
    %1873 = vmatprep.subr.mxu0 0.0
    %1874 = vmatpush1.msra.mxu0 0.0
    %1875 = vmatprep.subr.mxu0 0.0
    %1876 = vmatpush1.msra.mxu0 0.0
    %1877 = vmatprep.subr.mxu0 0.0
    %1878 = vmatpush1.msra.mxu0 0.0
    %1879 = vmatprep.subr.mxu0 0.0
    %1880 = vmatpush1.msra.mxu0 0.0
    %1881 = vmatprep.subr.mxu0 0.0
    %1882 = vmatpush1.msra.mxu0 0.0
    %1883 = vmatprep.subr.mxu0 0.0
    %1884 = vmatpush1.msra.mxu0 0.0
    %1885 = vmatprep.subr.mxu0 0.0
    %1886 = vmatpush1.msra.mxu0 0.0
    %1887 = vmatprep.subr.mxu0 0.0
    %1888 = vmatpush1.msra.mxu0 0.0
    %1889 = vmatprep.subr.mxu0 0.0
    %1890 = vmatpush1.msra.mxu0 0.0
    %1891 = vmatprep.subr.mxu0 0.0
    %1892 = vmatpush1.msra.mxu0 0.0
    %1893 = vmatprep.subr.mxu0 0.0
    %1894 = vmatpush1.msra.mxu0 0.0
    %1895 = vmatprep.subr.mxu0 0.0
    %1896 = vmatpush1.msra.mxu0 0.0
    %1897 = vmatprep.subr.mxu0 0.0
    %1898 = vmatpush1.msra.mxu0 0.0
    %1899 = vmatprep.subr.mxu0 0.0
    %1900 = vmatpush1.msra.mxu0 0.0
    %1901 = vmatprep.subr.mxu0 0.0
    %1902 = vmatpush1.msra.mxu0 0.0
    %1903 = vmatprep.subr.mxu0 0.0
    %1904 = vmatpush1.msra.mxu0 0.0
    %1905 = vmatprep.subr.mxu0 0.0
    %1906 = vmatpush1.msra.mxu0 0.0
    %1907 = vmatprep.subr.mxu0 0.0
    %1908 = vmatpush1.msra.mxu0 0.0
    %1909 = vmatprep.subr.mxu0 0.0
    %1910 = vmatpush1.msra.mxu0 0.0
    %1911 = vmatprep.subr.mxu0 0.0
    %1912 = vmatpush1.msra.mxu0 0.0
    %1913 = vmatprep.subr.mxu0 0.0
    %1914 = vmatpush1.msra.mxu0 0.0
    %1915 = vmatprep.mubr.f32.mxu0 0.0
    %1916 = vmatmul.mubr.f32.gmra.mrb[0].mxu0 %v1837
    %v1917 = vpop.f32.mrb[0].mxu0
    %v1918 = vadd.f32 0.0, %v1917
    %v1919 = vpop.f32.mrb[0].mxu0
    %v1920 = vadd.f32 0.0, %v1919
    %1921 = vdwg.mxu0
    %1922 = vmatprep.subr.mxu0 %v1849
    %1923 = vmatpush1.msra.mxu0 %v1846
    %1924 = vmatprep.subr.mxu0 0.0
    %1925 = vmatpush1.msra.mxu0 0.0
    %1926 = vmatprep.subr.mxu0 0.0
    %1927 = vmatpush1.msra.mxu0 0.0
    %1928 = vmatprep.subr.mxu0 0.0
    %1929 = vmatpush1.msra.mxu0 0.0
    %1930 = vmatprep.subr.mxu0 0.0
    %1931 = vmatpush1.msra.mxu0 0.0
    %1932 = vmatprep.subr.mxu0 0.0
    %1933 = vmatpush1.msra.mxu0 0.0
    %1934 = vmatprep.subr.mxu0 0.0
    %1935 = vmatpush1.msra.mxu0 0.0
    %1936 = vmatprep.subr.mxu0 0.0
    %1937 = vmatpush1.msra.mxu0 0.0
    %1938 = vmatprep.subr.mxu0 0.0
    %1939 = vmatpush1.msra.mxu0 0.0
    %1940 = vmatprep.subr.mxu0 0.0
    %1941 = vmatpush1.msra.mxu0 0.0
    %1942 = vmatprep.subr.mxu0 0.0
    %1943 = vmatpush1.msra.mxu0 0.0
    %1944 = vmatprep.subr.mxu0 0.0
    %1945 = vmatpush1.msra.mxu0 0.0
    %1946 = vmatprep.subr.mxu0 0.0
    %1947 = vmatpush1.msra.mxu0 0.0
    %1948 = vmatprep.subr.mxu0 0.0
    %1949 = vmatpush1.msra.mxu0 0.0
    %1950 = vmatprep.subr.mxu0 0.0
    %1951 = vmatpush1.msra.mxu0 0.0
    %1952 = vmatprep.subr.mxu0 0.0
    %1953 = vmatpush1.msra.mxu0 0.0
    %1954 = vmatprep.subr.mxu0 0.0
    %1955 = vmatpush1.msra.mxu0 0.0
    %1956 = vmatprep.subr.mxu0 0.0
    %1957 = vmatpush1.msra.mxu0 0.0
    %1958 = vmatprep.subr.mxu0 0.0
    %1959 = vmatpush1.msra.mxu0 0.0
    %1960 = vmatprep.subr.mxu0 0.0
    %1961 = vmatpush1.msra.mxu0 0.0
    %1962 = vmatprep.subr.mxu0 0.0
    %1963 = vmatpush1.msra.mxu0 0.0
    %1964 = vmatprep.subr.mxu0 0.0
    %1965 = vmatpush1.msra.mxu0 0.0
    %1966 = vmatprep.subr.mxu0 0.0
    %1967 = vmatpush1.msra.mxu0 0.0
    %1968 = vmatprep.subr.mxu0 0.0
    %1969 = vmatpush1.msra.mxu0 0.0
    %1970 = vmatprep.subr.mxu0 0.0
    %1971 = vmatpush1.msra.mxu0 0.0
    %1972 = vmatprep.subr.mxu0 0.0
    %1973 = vmatpush1.msra.mxu0 0.0
    %1974 = vmatprep.subr.mxu0 0.0
    %1975 = vmatpush1.msra.mxu0 0.0
    %1976 = vmatprep.subr.mxu0 0.0
    %1977 = vmatpush1.msra.mxu0 0.0
    %1978 = vmatprep.subr.mxu0 0.0
    %1979 = vmatpush1.msra.mxu0 0.0
    %1980 = vmatprep.subr.mxu0 0.0
    %1981 = vmatpush1.msra.mxu0 0.0
    %1982 = vmatprep.subr.mxu0 0.0
    %1983 = vmatpush1.msra.mxu0 0.0
    %1984 = vmatprep.subr.mxu0 0.0
    %1985 = vmatpush1.msra.mxu0 0.0
    %1986 = vmatprep.mubr.f32.mxu0 0.0
    %1987 = vmatmul.mubr.f32.gmra.mrb[0].mxu0 %v1837
    %v1988 = vpop.f32.mrb[0].mxu0
    %v1989 = vadd.f32 0.0, %v1988
    %v1990 = vpop.f32.mrb[0].mxu0
    %v1991 = vadd.f32 0.0, %v1990
    %1992 = vdwg.mxu0
    %v1993 = vadd.f32 %v1814, %v1918
    %v1994 = vadd.f32 %v1815, %v1920
    %v1995 = vadd.f32 %v1816, %v1989
    %v1996 = vadd.f32 %v1817, %v1991
    %1997 = vrot.lane.b32.xlu0 %v612, 112
    %v1998 = vpop.permute.xlu0 %1997
    %1999 = vrot.lane.b32.xlu0 %v613, 112
    %v2000 = vpop.permute.xlu0 %1999
    %2001 = vrot.lane.b32.xlu0 %v614, 112
    %v2002 = vpop.permute.xlu0 %2001
    %2003 = vrot.lane.b32.xlu0 %v615, 112
    %v2004 = vpop.permute.xlu0 %2003
    %vm2005 = vcmp.lt.s32.totalorder %v128, 112
    %v2006 = vsel %vm2005, %v2002, %v2004
    %v2007 = vsel %vm2005, %v2000, %v2002
    %v2008 = vsel %vm2005, %v1998, %v2000
    %v2009 = vsel %vm2005, %v2004, %v1998
    %v2010 = vsel %vm232, 1, 0
    %v2011 = vsel %vm233, 1, 0
    %v2012 = vsel %vm234, 1, 0
    %v2013 = vsel %vm235, 1, 0
    %vm2014 = vcmp.eq.s32.totalorder %v2010, 1
    %vm2015 = vcmp.eq.s32.totalorder %v2011, 1
    %vm2016 = vcmp.eq.s32.totalorder %v2012, 1
    %vm2017 = vcmp.eq.s32.totalorder %v2013, 1
    %v2018 = vsel %vm2014, %v2008, 0.0
    %v2019 = vsel %vm2015, %v2007, 0.0
    %v2020 = vsel %vm2016, %v2006, 0.0
    %v2021 = vsel %vm2017, %v2009, 0.0
    %2022 = vrot.lane.b32.xlu0 %v2018, 1
    %v2023 = vpop.permute.xlu0 %2022
    %2024 = vrot.lane.b32.xlu0 %v2019, 1
    %v2025 = vpop.permute.xlu0 %2024
    %2026 = vrot.lane.b32.xlu0 %v2020, 1
    %v2027 = vpop.permute.xlu0 %2026
    %2028 = vrot.lane.b32.xlu0 %v2021, 1
    %v2029 = vpop.permute.xlu0 %2028
    %v2030 = vsel %vm966, %v2027, %v2029
    %v2031 = vsel %vm966, %v2025, %v2027
    %v2032 = vsel %vm966, %v2023, %v2025
    %v2033 = vsel %vm966, %v2029, %v2023
    %v2034 = vsel %vm975, %v2033, 0.0
    %v2035 = vsel %vm976, %v2032, 0.0
    %v2036 = vsel %vm977, %v2031, 0.0
    %v2037 = vsel %vm978, %v2030, 0.0
    %s2038 = scalar_lea.vmem [#allocation8], 24
    %v2039 = vld [vmem:[%s2038] sm:$0xf]
    %v2041 = vsel %vm251, %v2039, 0
    %v2044 = vsel %vm255, %v2034, 0
    %v2047 = vsel %vm255, %v2035, 0
    %v2050 = vsel %vm255, %v2036, 0
    %v2053 = vsel %vm255, %v2037, 0
    %2055 = vmatprep.subr.mxu0 %v2047
    %2056 = vmatpush1.msra.mxu0 %v2044
    %2057 = vmatprep.subr.mxu0 0.0
    %2058 = vmatpush1.msra.mxu0 0.0
    %2059 = vmatprep.subr.mxu0 0.0
    %2060 = vmatpush1.msra.mxu0 0.0
    %2061 = vmatprep.subr.mxu0 0.0
    %2062 = vmatpush1.msra.mxu0 0.0
    %2063 = vmatprep.subr.mxu0 0.0
    %2064 = vmatpush1.msra.mxu0 0.0
    %2065 = vmatprep.subr.mxu0 0.0
    %2066 = vmatpush1.msra.mxu0 0.0
    %2067 = vmatprep.subr.mxu0 0.0
    %2068 = vmatpush1.msra.mxu0 0.0
    %2069 = vmatprep.subr.mxu0 0.0
    %2070 = vmatpush1.msra.mxu0 0.0
    %2071 = vmatprep.subr.mxu0 0.0
    %2072 = vmatpush1.msra.mxu0 0.0
    %2073 = vmatprep.subr.mxu0 0.0
    %2074 = vmatpush1.msra.mxu0 0.0
    %2075 = vmatprep.subr.mxu0 0.0
    %2076 = vmatpush1.msra.mxu0 0.0
    %2077 = vmatprep.subr.mxu0 0.0
    %2078 = vmatpush1.msra.mxu0 0.0
    %2079 = vmatprep.subr.mxu0 0.0
    %2080 = vmatpush1.msra.mxu0 0.0
    %2081 = vmatprep.subr.mxu0 0.0
    %2082 = vmatpush1.msra.mxu0 0.0
    %2083 = vmatprep.subr.mxu0 0.0
    %2084 = vmatpush1.msra.mxu0 0.0
    %2085 = vmatprep.subr.mxu0 0.0
    %2086 = vmatpush1.msra.mxu0 0.0
    %2087 = vmatprep.subr.mxu0 0.0
    %2088 = vmatpush1.msra.mxu0 0.0
    %2089 = vmatprep.subr.mxu0 0.0
    %2090 = vmatpush1.msra.mxu0 0.0
    %2091 = vmatprep.subr.mxu0 0.0
    %2092 = vmatpush1.msra.mxu0 0.0
    %2093 = vmatprep.subr.mxu0 0.0
    %2094 = vmatpush1.msra.mxu0 0.0
    %2095 = vmatprep.subr.mxu0 0.0
    %2096 = vmatpush1.msra.mxu0 0.0
    %2097 = vmatprep.subr.mxu0 0.0
    %2098 = vmatpush1.msra.mxu0 0.0
    %2099 = vmatprep.subr.mxu0 0.0
    %2100 = vmatpush1.msra.mxu0 0.0
    %2101 = vmatprep.subr.mxu0 0.0
    %2102 = vmatpush1.msra.mxu0 0.0
    %2103 = vmatprep.subr.mxu0 0.0
    %2104 = vmatpush1.msra.mxu0 0.0
    %2105 = vmatprep.subr.mxu0 0.0
    %2106 = vmatpush1.msra.mxu0 0.0
    %2107 = vmatprep.subr.mxu0 0.0
    %2108 = vmatpush1.msra.mxu0 0.0
    %2109 = vmatprep.subr.mxu0 0.0
    %2110 = vmatpush1.msra.mxu0 0.0
    %2111 = vmatprep.subr.mxu0 0.0
    %2112 = vmatpush1.msra.mxu0 0.0
    %2113 = vmatprep.subr.mxu0 0.0
    %2114 = vmatpush1.msra.mxu0 0.0
    %2115 = vmatprep.subr.mxu0 0.0
    %2116 = vmatpush1.msra.mxu0 0.0
    %2117 = vmatprep.subr.mxu0 0.0
    %2118 = vmatpush1.msra.mxu0 0.0
    %2119 = vmatprep.mubr.f32.mxu0 0.0
    %2120 = vmatmul.mubr.f32.gmra.mrb[0].mxu0 %v2041
    %v2121 = vpop.f32.mrb[0].mxu0
    %v2122 = vadd.f32 0.0, %v2121
    %v2123 = vpop.f32.mrb[0].mxu0
    %v2124 = vadd.f32 0.0, %v2123
    %2125 = vdwg.mxu0
    %2126 = vmatprep.subr.mxu0 %v2053
    %2127 = vmatpush1.msra.mxu0 %v2050
    %2128 = vmatprep.subr.mxu0 0.0
    %2129 = vmatpush1.msra.mxu0 0.0
    %2130 = vmatprep.subr.mxu0 0.0
    %2131 = vmatpush1.msra.mxu0 0.0
    %2132 = vmatprep.subr.mxu0 0.0
    %2133 = vmatpush1.msra.mxu0 0.0
    %2134 = vmatprep.subr.mxu0 0.0
    %2135 = vmatpush1.msra.mxu0 0.0
    %2136 = vmatprep.subr.mxu0 0.0
    %2137 = vmatpush1.msra.mxu0 0.0
    %2138 = vmatprep.subr.mxu0 0.0
    %2139 = vmatpush1.msra.mxu0 0.0
    %2140 = vmatprep.subr.mxu0 0.0
    %2141 = vmatpush1.msra.mxu0 0.0
    %2142 = vmatprep.subr.mxu0 0.0
    %2143 = vmatpush1.msra.mxu0 0.0
    %2144 = vmatprep.subr.mxu0 0.0
    %2145 = vmatpush1.msra.mxu0 0.0
    %2146 = vmatprep.subr.mxu0 0.0
    %2147 = vmatpush1.msra.mxu0 0.0
    %2148 = vmatprep.subr.mxu0 0.0
    %2149 = vmatpush1.msra.mxu0 0.0
    %2150 = vmatprep.subr.mxu0 0.0
    %2151 = vmatpush1.msra.mxu0 0.0
    %2152 = vmatprep.subr.mxu0 0.0
    %2153 = vmatpush1.msra.mxu0 0.0
    %2154 = vmatprep.subr.mxu0 0.0
    %2155 = vmatpush1.msra.mxu0 0.0
    %2156 = vmatprep.subr.mxu0 0.0
    %2157 = vmatpush1.msra.mxu0 0.0
    %2158 = vmatprep.subr.mxu0 0.0
    %2159 = vmatpush1.msra.mxu0 0.0
    %2160 = vmatprep.subr.mxu0 0.0
    %2161 = vmatpush1.msra.mxu0 0.0
    %2162 = vmatprep.subr.mxu0 0.0
    %2163 = vmatpush1.msra.mxu0 0.0
    %2164 = vmatprep.subr.mxu0 0.0
    %2165 = vmatpush1.msra.mxu0 0.0
    %2166 = vmatprep.subr.mxu0 0.0
    %2167 = vmatpush1.msra.mxu0 0.0
    %2168 = vmatprep.subr.mxu0 0.0
    %2169 = vmatpush1.msra.mxu0 0.0
    %2170 = vmatprep.subr.mxu0 0.0
    %2171 = vmatpush1.msra.mxu0 0.0
    %2172 = vmatprep.subr.mxu0 0.0
    %2173 = vmatpush1.msra.mxu0 0.0
    %2174 = vmatprep.subr.mxu0 0.0
    %2175 = vmatpush1.msra.mxu0 0.0
    %2176 = vmatprep.subr.mxu0 0.0
    %2177 = vmatpush1.msra.mxu0 0.0
    %2178 = vmatprep.subr.mxu0 0.0
    %2179 = vmatpush1.msra.mxu0 0.0
    %2180 = vmatprep.subr.mxu0 0.0
    %2181 = vmatpush1.msra.mxu0 0.0
    %2182 = vmatprep.subr.mxu0 0.0
    %2183 = vmatpush1.msra.mxu0 0.0
    %2184 = vmatprep.subr.mxu0 0.0
    %2185 = vmatpush1.msra.mxu0 0.0
    %2186 = vmatprep.subr.mxu0 0.0
    %2187 = vmatpush1.msra.mxu0 0.0
    %2188 = vmatprep.subr.mxu0 0.0
    %2189 = vmatpush1.msra.mxu0 0.0
    %2190 = vmatprep.mubr.f32.mxu0 0.0
    %2191 = vmatmul.mubr.f32.gmra.mrb[0].mxu0 %v2041
    %v2192 = vpop.f32.mrb[0].mxu0
    %v2193 = vadd.f32 0.0, %v2192
    %v2194 = vpop.f32.mrb[0].mxu0
    %v2195 = vadd.f32 0.0, %v2194
    %2196 = vdwg.mxu0
    %v2197 = vadd.f32 %v1993, %v2122
    %v2198 = vadd.f32 %v1994, %v2124
    %v2199 = vadd.f32 %v1995, %v2193
    %v2200 = vadd.f32 %v1996, %v2195
    %s2201 = scalar_lea.vmem [#allocation8], 28
    %v2202 = vld [vmem:[%s2201] sm:$0xf]
    %v2204 = vsel %vm251, %v2202, 0
    %v2207 = vsel %vm255, %v2018, 0
    %v2210 = vsel %vm255, %v2019, 0
    %v2213 = vsel %vm255, %v2020, 0
    %v2216 = vsel %vm255, %v2021, 0
    %2218 = vmatprep.subr.mxu0 %v2210
    %2219 = vmatpush1.msra.mxu0 %v2207
    %2220 = vmatprep.subr.mxu0 0.0
    %2221 = vmatpush1.msra.mxu0 0.0
    %2222 = vmatprep.subr.mxu0 0.0
    %2223 = vmatpush1.msra.mxu0 0.0
    %2224 = vmatprep.subr.mxu0 0.0
    %2225 = vmatpush1.msra.mxu0 0.0
    %2226 = vmatprep.subr.mxu0 0.0
    %2227 = vmatpush1.msra.mxu0 0.0
    %2228 = vmatprep.subr.mxu0 0.0
    %2229 = vmatpush1.msra.mxu0 0.0
    %2230 = vmatprep.subr.mxu0 0.0
    %2231 = vmatpush1.msra.mxu0 0.0
    %2232 = vmatprep.subr.mxu0 0.0
    %2233 = vmatpush1.msra.mxu0 0.0
    %2234 = vmatprep.subr.mxu0 0.0
    %2235 = vmatpush1.msra.mxu0 0.0
    %2236 = vmatprep.subr.mxu0 0.0
    %2237 = vmatpush1.msra.mxu0 0.0
    %2238 = vmatprep.subr.mxu0 0.0
    %2239 = vmatpush1.msra.mxu0 0.0
    %2240 = vmatprep.subr.mxu0 0.0
    %2241 = vmatpush1.msra.mxu0 0.0
    %2242 = vmatprep.subr.mxu0 0.0
    %2243 = vmatpush1.msra.mxu0 0.0
    %2244 = vmatprep.subr.mxu0 0.0
    %2245 = vmatpush1.msra.mxu0 0.0
    %2246 = vmatprep.subr.mxu0 0.0
    %2247 = vmatpush1.msra.mxu0 0.0
    %2248 = vmatprep.subr.mxu0 0.0
    %2249 = vmatpush1.msra.mxu0 0.0
    %2250 = vmatprep.subr.mxu0 0.0
    %2251 = vmatpush1.msra.mxu0 0.0
    %2252 = vmatprep.subr.mxu0 0.0
    %2253 = vmatpush1.msra.mxu0 0.0
    %2254 = vmatprep.subr.mxu0 0.0
    %2255 = vmatpush1.msra.mxu0 0.0
    %2256 = vmatprep.subr.mxu0 0.0
    %2257 = vmatpush1.msra.mxu0 0.0
    %2258 = vmatprep.subr.mxu0 0.0
    %2259 = vmatpush1.msra.mxu0 0.0
    %2260 = vmatprep.subr.mxu0 0.0
    %2261 = vmatpush1.msra.mxu0 0.0
    %2262 = vmatprep.subr.mxu0 0.0
    %2263 = vmatpush1.msra.mxu0 0.0
    %2264 = vmatprep.subr.mxu0 0.0
    %2265 = vmatpush1.msra.mxu0 0.0
    %2266 = vmatprep.subr.mxu0 0.0
    %2267 = vmatpush1.msra.mxu0 0.0
    %2268 = vmatprep.subr.mxu0 0.0
    %2269 = vmatpush1.msra.mxu0 0.0
    %2270 = vmatprep.subr.mxu0 0.0
    %2271 = vmatpush1.msra.mxu0 0.0
    %2272 = vmatprep.subr.mxu0 0.0
    %2273 = vmatpush1.msra.mxu0 0.0
    %2274 = vmatprep.subr.mxu0 0.0
    %2275 = vmatpush1.msra.mxu0 0.0
    %2276 = vmatprep.subr.mxu0 0.0
    %2277 = vmatpush1.msra.mxu0 0.0
    %2278 = vmatprep.subr.mxu0 0.0
    %2279 = vmatpush1.msra.mxu0 0.0
    %2280 = vmatprep.subr.mxu0 0.0
    %2281 = vmatpush1.msra.mxu0 0.0
    %2282 = vmatprep.mubr.f32.mxu0 0.0
    %2283 = vmatmul.mubr.f32.gmra.mrb[0].mxu0 %v2204
    %v2284 = vpop.f32.mrb[0].mxu0
    %v2285 = vadd.f32 0.0, %v2284
    %v2286 = vpop.f32.mrb[0].mxu0
    %v2287 = vadd.f32 0.0, %v2286
    %2288 = vdwg.mxu0
    %2289 = vmatprep.subr.mxu0 %v2216
    %2290 = vmatpush1.msra.mxu0 %v2213
    %2291 = vmatprep.subr.mxu0 0.0
    %2292 = vmatpush1.msra.mxu0 0.0
    %2293 = vmatprep.subr.mxu0 0.0
    %2294 = vmatpush1.msra.mxu0 0.0
    %2295 = vmatprep.subr.mxu0 0.0
    %2296 = vmatpush1.msra.mxu0 0.0
    %2297 = vmatprep.subr.mxu0 0.0
    %2298 = vmatpush1.msra.mxu0 0.0
    %2299 = vmatprep.subr.mxu0 0.0
    %2300 = vmatpush1.msra.mxu0 0.0
    %2301 = vmatprep.subr.mxu0 0.0
    %2302 = vmatpush1.msra.mxu0 0.0
    %2303 = vmatprep.subr.mxu0 0.0
    %2304 = vmatpush1.msra.mxu0 0.0
    %2305 = vmatprep.subr.mxu0 0.0
    %2306 = vmatpush1.msra.mxu0 0.0
    %2307 = vmatprep.subr.mxu0 0.0
    %2308 = vmatpush1.msra.mxu0 0.0
    %2309 = vmatprep.subr.mxu0 0.0
    %2310 = vmatpush1.msra.mxu0 0.0
    %2311 = vmatprep.subr.mxu0 0.0
    %2312 = vmatpush1.msra.mxu0 0.0
    %2313 = vmatprep.subr.mxu0 0.0
    %2314 = vmatpush1.msra.mxu0 0.0
    %2315 = vmatprep.subr.mxu0 0.0
    %2316 = vmatpush1.msra.mxu0 0.0
    %2317 = vmatprep.subr.mxu0 0.0
    %2318 = vmatpush1.msra.mxu0 0.0
    %2319 = vmatprep.subr.mxu0 0.0
    %2320 = vmatpush1.msra.mxu0 0.0
    %2321 = vmatprep.subr.mxu0 0.0
    %2322 = vmatpush1.msra.mxu0 0.0
    %2323 = vmatprep.subr.mxu0 0.0
    %2324 = vmatpush1.msra.mxu0 0.0
    %2325 = vmatprep.subr.mxu0 0.0
    %2326 = vmatpush1.msra.mxu0 0.0
    %2327 = vmatprep.subr.mxu0 0.0
    %2328 = vmatpush1.msra.mxu0 0.0
    %2329 = vmatprep.subr.mxu0 0.0
    %2330 = vmatpush1.msra.mxu0 0.0
    %2331 = vmatprep.subr.mxu0 0.0
    %2332 = vmatpush1.msra.mxu0 0.0
    %2333 = vmatprep.subr.mxu0 0.0
    %2334 = vmatpush1.msra.mxu0 0.0
    %2335 = vmatprep.subr.mxu0 0.0
    %2336 = vmatpush1.msra.mxu0 0.0
    %2337 = vmatprep.subr.mxu0 0.0
    %2338 = vmatpush1.msra.mxu0 0.0
    %2339 = vmatprep.subr.mxu0 0.0
    %2340 = vmatpush1.msra.mxu0 0.0
    %2341 = vmatprep.subr.mxu0 0.0
    %2342 = vmatpush1.msra.mxu0 0.0
    %2343 = vmatprep.subr.mxu0 0.0
    %2344 = vmatpush1.msra.mxu0 0.0
    %2345 = vmatprep.subr.mxu0 0.0
    %2346 = vmatpush1.msra.mxu0 0.0
    %2347 = vmatprep.subr.mxu0 0.0
    %2348 = vmatpush1.msra.mxu0 0.0
    %2349 = vmatprep.subr.mxu0 0.0
    %2350 = vmatpush1.msra.mxu0 0.0
    %2351 = vmatprep.subr.mxu0 0.0
    %2352 = vmatpush1.msra.mxu0 0.0
    %2353 = vmatprep.mubr.f32.mxu0 0.0
    %2354 = vmatmul.mubr.f32.gmra.mrb[0].mxu0 %v2204
    %v2355 = vpop.f32.mrb[0].mxu0
    %v2356 = vadd.f32 0.0, %v2355
    %v2357 = vpop.f32.mrb[0].mxu0
    %v2358 = vadd.f32 0.0, %v2357
    %2359 = vdwg.mxu0
    %v2360 = vadd.f32 %v2197, %v2285
    %v2361 = vadd.f32 %v2198, %v2287
    %v2362 = vadd.f32 %v2199, %v2356
    %v2363 = vadd.f32 %v2200, %v2358
    %2364 = vrot.lane.b32.xlu0 %v2018, 127
    %v2365 = vpop.permute.xlu0 %2364
    %2366 = vrot.lane.b32.xlu0 %v2019, 127
    %v2367 = vpop.permute.xlu0 %2366
    %2368 = vrot.lane.b32.xlu0 %v2020, 127
    %v2369 = vpop.permute.xlu0 %2368
    %2370 = vrot.lane.b32.xlu0 %v2021, 127
    %v2371 = vpop.permute.xlu0 %2370
    %v2372 = vsel %vm1308, %v2369, %v2371
    %v2373 = vsel %vm1308, %v2367, %v2369
    %v2374 = vsel %vm1308, %v2365, %v2367
    %v2375 = vsel %vm1308, %v2371, %v2365
    %v2376 = vsel %vm1317, %v2374, 0.0
    %v2377 = vsel %vm1318, %v2373, 0.0
    %v2378 = vsel %vm1319, %v2372, 0.0
    %v2379 = vsel %vm1320, %v2375, 0.0
    %s2380 = scalar_lea.vmem [#allocation8], 32
    %v2381 = vld [vmem:[%s2380] sm:$0xf]
    %v2383 = vsel %vm251, %v2381, 0
    %v2386 = vsel %vm255, %v2376, 0
    %v2389 = vsel %vm255, %v2377, 0
    %v2392 = vsel %vm255, %v2378, 0
    %v2395 = vsel %vm255, %v2379, 0
    %2397 = vmatprep.subr.mxu0 %v2389
    %2398 = vmatpush1.msra.mxu0 %v2386
    %2399 = vmatprep.subr.mxu0 0.0
    %2400 = vmatpush1.msra.mxu0 0.0
    %2401 = vmatprep.subr.mxu0 0.0
    %2402 = vmatpush1.msra.mxu0 0.0
    %2403 = vmatprep.subr.mxu0 0.0
    %2404 = vmatpush1.msra.mxu0 0.0
    %2405 = vmatprep.subr.mxu0 0.0
    %2406 = vmatpush1.msra.mxu0 0.0
    %2407 = vmatprep.subr.mxu0 0.0
    %2408 = vmatpush1.msra.mxu0 0.0
    %2409 = vmatprep.subr.mxu0 0.0
    %2410 = vmatpush1.msra.mxu0 0.0
    %2411 = vmatprep.subr.mxu0 0.0
    %2412 = vmatpush1.msra.mxu0 0.0
    %2413 = vmatprep.subr.mxu0 0.0
    %2414 = vmatpush1.msra.mxu0 0.0
    %2415 = vmatprep.subr.mxu0 0.0
    %2416 = vmatpush1.msra.mxu0 0.0
    %2417 = vmatprep.subr.mxu0 0.0
    %2418 = vmatpush1.msra.mxu0 0.0
    %2419 = vmatprep.subr.mxu0 0.0
    %2420 = vmatpush1.msra.mxu0 0.0
    %2421 = vmatprep.subr.mxu0 0.0
    %2422 = vmatpush1.msra.mxu0 0.0
    %2423 = vmatprep.subr.mxu0 0.0
    %2424 = vmatpush1.msra.mxu0 0.0
    %2425 = vmatprep.subr.mxu0 0.0
    %2426 = vmatpush1.msra.mxu0 0.0
    %2427 = vmatprep.subr.mxu0 0.0
    %2428 = vmatpush1.msra.mxu0 0.0
    %2429 = vmatprep.subr.mxu0 0.0
    %2430 = vmatpush1.msra.mxu0 0.0
    %2431 = vmatprep.subr.mxu0 0.0
    %2432 = vmatpush1.msra.mxu0 0.0
    %2433 = vmatprep.subr.mxu0 0.0
    %2434 = vmatpush1.msra.mxu0 0.0
    %2435 = vmatprep.subr.mxu0 0.0
    %2436 = vmatpush1.msra.mxu0 0.0
    %2437 = vmatprep.subr.mxu0 0.0
    %2438 = vmatpush1.msra.mxu0 0.0
    %2439 = vmatprep.subr.mxu0 0.0
    %2440 = vmatpush1.msra.mxu0 0.0
    %2441 = vmatprep.subr.mxu0 0.0
    %2442 = vmatpush1.msra.mxu0 0.0
    %2443 = vmatprep.subr.mxu0 0.0
    %2444 = vmatpush1.msra.mxu0 0.0
    %2445 = vmatprep.subr.mxu0 0.0
    %2446 = vmatpush1.msra.mxu0 0.0
    %2447 = vmatprep.subr.mxu0 0.0
    %2448 = vmatpush1.msra.mxu0 0.0
    %2449 = vmatprep.subr.mxu0 0.0
    %2450 = vmatpush1.msra.mxu0 0.0
    %2451 = vmatprep.subr.mxu0 0.0
    %2452 = vmatpush1.msra.mxu0 0.0
    %2453 = vmatprep.subr.mxu0 0.0
    %2454 = vmatpush1.msra.mxu0 0.0
    %2455 = vmatprep.subr.mxu0 0.0
    %2456 = vmatpush1.msra.mxu0 0.0
    %2457 = vmatprep.subr.mxu0 0.0
    %2458 = vmatpush1.msra.mxu0 0.0
    %2459 = vmatprep.subr.mxu0 0.0
    %2460 = vmatpush1.msra.mxu0 0.0
    %2461 = vmatprep.mubr.f32.mxu0 0.0
    %2462 = vmatmul.mubr.f32.gmra.mrb[0].mxu0 %v2383
    %v2463 = vpop.f32.mrb[0].mxu0
    %v2464 = vadd.f32 0.0, %v2463
    %v2465 = vpop.f32.mrb[0].mxu0
    %v2466 = vadd.f32 0.0, %v2465
    %2467 = vdwg.mxu0
    %2468 = vmatprep.subr.mxu0 %v2395
    %2469 = vmatpush1.msra.mxu0 %v2392
    %2470 = vmatprep.subr.mxu0 0.0
    %2471 = vmatpush1.msra.mxu0 0.0
    %2472 = vmatprep.subr.mxu0 0.0
    %2473 = vmatpush1.msra.mxu0 0.0
    %2474 = vmatprep.subr.mxu0 0.0
    %2475 = vmatpush1.msra.mxu0 0.0
    %2476 = vmatprep.subr.mxu0 0.0
    %2477 = vmatpush1.msra.mxu0 0.0
    %2478 = vmatprep.subr.mxu0 0.0
    %2479 = vmatpush1.msra.mxu0 0.0
    %2480 = vmatprep.subr.mxu0 0.0
    %2481 = vmatpush1.msra.mxu0 0.0
    %2482 = vmatprep.subr.mxu0 0.0
    %2483 = vmatpush1.msra.mxu0 0.0
    %2484 = vmatprep.subr.mxu0 0.0
    %2485 = vmatpush1.msra.mxu0 0.0
    %2486 = vmatprep.subr.mxu0 0.0
    %2487 = vmatpush1.msra.mxu0 0.0
    %2488 = vmatprep.subr.mxu0 0.0
    %2489 = vmatpush1.msra.mxu0 0.0
    %2490 = vmatprep.subr.mxu0 0.0
    %2491 = vmatpush1.msra.mxu0 0.0
    %2492 = vmatprep.subr.mxu0 0.0
    %2493 = vmatpush1.msra.mxu0 0.0
    %2494 = vmatprep.subr.mxu0 0.0
    %2495 = vmatpush1.msra.mxu0 0.0
    %2496 = vmatprep.subr.mxu0 0.0
    %2497 = vmatpush1.msra.mxu0 0.0
    %2498 = vmatprep.subr.mxu0 0.0
    %2499 = vmatpush1.msra.mxu0 0.0
    %2500 = vmatprep.subr.mxu0 0.0
    %2501 = vmatpush1.msra.mxu0 0.0
    %2502 = vmatprep.subr.mxu0 0.0
    %2503 = vmatpush1.msra.mxu0 0.0
    %2504 = vmatprep.subr.mxu0 0.0
    %2505 = vmatpush1.msra.mxu0 0.0
    %2506 = vmatprep.subr.mxu0 0.0
    %2507 = vmatpush1.msra.mxu0 0.0
    %2508 = vmatprep.subr.mxu0 0.0
    %2509 = vmatpush1.msra.mxu0 0.0
    %2510 = vmatprep.subr.mxu0 0.0
    %2511 = vmatpush1.msra.mxu0 0.0
    %2512 = vmatprep.subr.mxu0 0.0
    %2513 = vmatpush1.msra.mxu0 0.0
    %2514 = vmatprep.subr.mxu0 0.0
    %2515 = vmatpush1.msra.mxu0 0.0
    %2516 = vmatprep.subr.mxu0 0.0
    %2517 = vmatpush1.msra.mxu0 0.0
    %2518 = vmatprep.subr.mxu0 0.0
    %2519 = vmatpush1.msra.mxu0 0.0
    %2520 = vmatprep.subr.mxu0 0.0
    %2521 = vmatpush1.msra.mxu0 0.0
    %2522 = vmatprep.subr.mxu0 0.0
    %2523 = vmatpush1.msra.mxu0 0.0
    %2524 = vmatprep.subr.mxu0 0.0
    %2525 = vmatpush1.msra.mxu0 0.0
    %2526 = vmatprep.subr.mxu0 0.0
    %2527 = vmatpush1.msra.mxu0 0.0
    %2528 = vmatprep.subr.mxu0 0.0
    %2529 = vmatpush1.msra.mxu0 0.0
    %2530 = vmatprep.subr.mxu0 0.0
    %2531 = vmatpush1.msra.mxu0 0.0
    %2532 = vmatprep.mubr.f32.mxu0 0.0
    %2533 = vmatmul.mubr.f32.gmra.mrb[0].mxu0 %v2383
    %v2534 = vpop.f32.mrb[0].mxu0
    %v2535 = vadd.f32 0.0, %v2534
    %v2536 = vpop.f32.mrb[0].mxu0
    %v2537 = vadd.f32 0.0, %v2536
    %2538 = vdwg.mxu0
    %v2539 = vadd.f32 %v2360, %v2464
    %v2540 = vadd.f32 %v2361, %v2466
    %v2541 = vadd.f32 %v2362, %v2535
    %v2542 = vadd.f32 %v2363, %v2537
    %v2543 = vld [vmem:[#allocation10] sm:$0xf]
    %2545 = vset.pattern.permute.xlu0 0
    %2546 = vperm.xlu0 %2545, %v2543
    %v2547 = vpop.permute.xlu0 %2546
    %v2549 = vadd.f32 %v2539, %v2547
    %v2550 = vadd.f32 %v2540, %v2547
    %v2551 = vadd.f32 %v2541, %v2547
    %v2552 = vadd.f32 %v2542, %v2547
    %v2553 = vxor.u32 %v2549, 2147483648
    %v2554 = vxor.u32 %v2550, 2147483648
    %v2555 = vxor.u32 %v2551, 2147483648
    %v2556 = vxor.u32 %v2552, 2147483648
    %v2557 = vmul.f32 %v2553, 1.442695
    %v2558 = vpow.pop %v2557
    %v2559 = vmul.f32 %v2554, 1.442695
    %v2560 = vpow.pop %v2559
    %v2561 = vmul.f32 %v2555, 1.442695
    %v2562 = vpow.pop %v2561
    %v2563 = vmul.f32 %v2556, 1.442695
    %v2564 = vpow.pop %v2563
    %v2565 = vadd.f32 %v2558, 1.0
    %v2566 = vadd.f32 %v2560, 1.0
    %v2567 = vadd.f32 %v2562, 1.0
    %v2568 = vadd.f32 %v2564, 1.0
    %v2569 = vrcp.pop %v2565
    %v2570 = vmul.f32 1.0, %v2569
    %v2571 = vrcp.pop %v2566
    %v2572 = vmul.f32 1.0, %v2571
    %v2573 = vrcp.pop %v2567
    %v2574 = vmul.f32 1.0, %v2573
    %v2575 = vrcp.pop %v2568
    %v2576 = vmul.f32 1.0, %v2575
    %v2577 = vmul.f32 %v2549, %v2570
    %v2578 = vmul.f32 %v2550, %v2572
    %v2579 = vmul.f32 %v2551, %v2574
    %v2580 = vmul.f32 %v2552, %v2576
    %2581 = vrot.lane.b32.xlu0 %v2577, 16
    %v2582 = vpop.permute.xlu0 %2581
    %2583 = vrot.lane.b32.xlu0 %v2578, 16
    %v2584 = vpop.permute.xlu0 %2583
    %2585 = vrot.lane.b32.xlu0 %v2579, 16
    %v2586 = vpop.permute.xlu0 %2585
    %2587 = vrot.lane.b32.xlu0 %v2580, 16
    %v2588 = vpop.permute.xlu0 %2587
    %v2589 = vsel %vm941, %v2586, %v2588
    %v2590 = vsel %vm941, %v2584, %v2586
    %v2591 = vsel %vm941, %v2582, %v2584
    %v2592 = vsel %vm941, %v2588, %v2582
    %v2593 = vsel %vm950, %v2592, 0.0
    %v2594 = vsel %vm951, %v2591, 0.0
    %v2595 = vsel %vm952, %v2590, 0.0
    %v2596 = vsel %vm953, %v2589, 0.0
    %2597 = vrot.lane.b32.xlu0 %v2593, 1
    %v2598 = vpop.permute.xlu0 %2597
    %2599 = vrot.lane.b32.xlu0 %v2594, 1
    %v2600 = vpop.permute.xlu0 %2599
    %2601 = vrot.lane.b32.xlu0 %v2595, 1
    %v2602 = vpop.permute.xlu0 %2601
    %2603 = vrot.lane.b32.xlu0 %v2596, 1
    %v2604 = vpop.permute.xlu0 %2603
    %v2605 = vsel %vm966, %v2602, %v2604
    %v2606 = vsel %vm966, %v2600, %v2602
    %v2607 = vsel %vm966, %v2598, %v2600
    %v2608 = vsel %vm966, %v2604, %v2598
    %v2609 = vsel %vm975, %v2608, 0.0
    %v2610 = vsel %vm976, %v2607, 0.0
    %v2611 = vsel %vm977, %v2606, 0.0
    %v2612 = vsel %vm978, %v2605, 0.0
    %s2613 = scalar_lea.vmem [#allocation8], 36
    %v2614 = vld [vmem:[%s2613] sm:$0xf]
    %s2615 = scalar_lea.vmem [#allocation8], 40
    %v2616 = vld [vmem:[%s2615] sm:$0xf]
    %v2618 = vsel %vm251, %v2616, 0
    %v2621 = vsel %vm255, %v2593, 0
    %v2624 = vsel %vm255, %v2594, 0
    %v2627 = vsel %vm255, %v2595, 0
    %v2630 = vsel %vm255, %v2596, 0
    %2632 = vmatprep.subr.mxu0 %v2624
    %2633 = vmatpush1.msra.mxu0 %v2621
    %2634 = vmatprep.subr.mxu0 0.0
    %2635 = vmatpush1.msra.mxu0 0.0
    %2636 = vmatprep.subr.mxu0 0.0
    %2637 = vmatpush1.msra.mxu0 0.0
    %2638 = vmatprep.subr.mxu0 0.0
    %2639 = vmatpush1.msra.mxu0 0.0
    %2640 = vmatprep.subr.mxu0 0.0
    %2641 = vmatpush1.msra.mxu0 0.0
    %2642 = vmatprep.subr.mxu0 0.0
    %2643 = vmatpush1.msra.mxu0 0.0
    %2644 = vmatprep.subr.mxu0 0.0
    %2645 = vmatpush1.msra.mxu0 0.0
    %2646 = vmatprep.subr.mxu0 0.0
    %2647 = vmatpush1.msra.mxu0 0.0
    %2648 = vmatprep.subr.mxu0 0.0
    %2649 = vmatpush1.msra.mxu0 0.0
    %2650 = vmatprep.subr.mxu0 0.0
    %2651 = vmatpush1.msra.mxu0 0.0
    %2652 = vmatprep.subr.mxu0 0.0
    %2653 = vmatpush1.msra.mxu0 0.0
    %2654 = vmatprep.subr.mxu0 0.0
    %2655 = vmatpush1.msra.mxu0 0.0
    %2656 = vmatprep.subr.mxu0 0.0
    %2657 = vmatpush1.msra.mxu0 0.0
    %2658 = vmatprep.subr.mxu0 0.0
    %2659 = vmatpush1.msra.mxu0 0.0
    %2660 = vmatprep.subr.mxu0 0.0
    %2661 = vmatpush1.msra.mxu0 0.0
    %2662 = vmatprep.subr.mxu0 0.0
    %2663 = vmatpush1.msra.mxu0 0.0
    %2664 = vmatprep.subr.mxu0 0.0
    %2665 = vmatpush1.msra.mxu0 0.0
    %2666 = vmatprep.subr.mxu0 0.0
    %2667 = vmatpush1.msra.mxu0 0.0
    %2668 = vmatprep.subr.mxu0 0.0
    %2669 = vmatpush1.msra.mxu0 0.0
    %2670 = vmatprep.subr.mxu0 0.0
    %2671 = vmatpush1.msra.mxu0 0.0
    %2672 = vmatprep.subr.mxu0 0.0
    %2673 = vmatpush1.msra.mxu0 0.0
    %2674 = vmatprep.subr.mxu0 0.0
    %2675 = vmatpush1.msra.mxu0 0.0
    %2676 = vmatprep.subr.mxu0 0.0
    %2677 = vmatpush1.msra.mxu0 0.0
    %2678 = vmatprep.subr.mxu0 0.0
    %2679 = vmatpush1.msra.mxu0 0.0
    %2680 = vmatprep.subr.mxu0 0.0
    %2681 = vmatpush1.msra.mxu0 0.0
    %2682 = vmatprep.subr.mxu0 0.0
    %2683 = vmatpush1.msra.mxu0 0.0
    %2684 = vmatprep.subr.mxu0 0.0
    %2685 = vmatpush1.msra.mxu0 0.0
    %2686 = vmatprep.subr.mxu0 0.0
    %2687 = vmatpush1.msra.mxu0 0.0
    %2688 = vmatprep.subr.mxu0 0.0
    %2689 = vmatpush1.msra.mxu0 0.0
    %2690 = vmatprep.subr.mxu0 0.0
    %2691 = vmatpush1.msra.mxu0 0.0
    %2692 = vmatprep.subr.mxu0 0.0
    %2693 = vmatpush1.msra.mxu0 0.0
    %2694 = vmatprep.subr.mxu0 0.0
    %2695 = vmatpush1.msra.mxu0 0.0
    %2696 = vmatprep.mubr.f32.mxu0 0.0
    %2697 = vmatmul.mubr.f32.gmra.mrb[0].mxu0 %v2618
    %v2698 = vpop.f32.mrb[0].mxu0
    %v2699 = vadd.f32 0.0, %v2698
    %v2700 = vpop.f32.mrb[0].mxu0
    %v2701 = vadd.f32 0.0, %v2700
    %2702 = vdwg.mxu0
    %2703 = vmatprep.subr.mxu0 %v2630
    %2704 = vmatpush1.msra.mxu0 %v2627
    %2705 = vmatprep.subr.mxu0 0.0
    %2706 = vmatpush1.msra.mxu0 0.0
    %2707 = vmatprep.subr.mxu0 0.0
    %2708 = vmatpush1.msra.mxu0 0.0
    %2709 = vmatprep.subr.mxu0 0.0
    %2710 = vmatpush1.msra.mxu0 0.0
    %2711 = vmatprep.subr.mxu0 0.0
    %2712 = vmatpush1.msra.mxu0 0.0
    %2713 = vmatprep.subr.mxu0 0.0
    %2714 = vmatpush1.msra.mxu0 0.0
    %2715 = vmatprep.subr.mxu0 0.0
    %2716 = vmatpush1.msra.mxu0 0.0
    %2717 = vmatprep.subr.mxu0 0.0
    %2718 = vmatpush1.msra.mxu0 0.0
    %2719 = vmatprep.subr.mxu0 0.0
    %2720 = vmatpush1.msra.mxu0 0.0
    %2721 = vmatprep.subr.mxu0 0.0
    %2722 = vmatpush1.msra.mxu0 0.0
    %2723 = vmatprep.subr.mxu0 0.0
    %2724 = vmatpush1.msra.mxu0 0.0
    %2725 = vmatprep.subr.mxu0 0.0
    %2726 = vmatpush1.msra.mxu0 0.0
    %2727 = vmatprep.subr.mxu0 0.0
    %2728 = vmatpush1.msra.mxu0 0.0
    %2729 = vmatprep.subr.mxu0 0.0
    %2730 = vmatpush1.msra.mxu0 0.0
    %2731 = vmatprep.subr.mxu0 0.0
    %2732 = vmatpush1.msra.mxu0 0.0
    %2733 = vmatprep.subr.mxu0 0.0
    %2734 = vmatpush1.msra.mxu0 0.0
    %2735 = vmatprep.subr.mxu0 0.0
    %2736 = vmatpush1.msra.mxu0 0.0
    %2737 = vmatprep.subr.mxu0 0.0
    %2738 = vmatpush1.msra.mxu0 0.0
    %2739 = vmatprep.subr.mxu0 0.0
    %2740 = vmatpush1.msra.mxu0 0.0
    %2741 = vmatprep.subr.mxu0 0.0
    %2742 = vmatpush1.msra.mxu0 0.0
    %2743 = vmatprep.subr.mxu0 0.0
    %2744 = vmatpush1.msra.mxu0 0.0
    %2745 = vmatprep.subr.mxu0 0.0
    %2746 = vmatpush1.msra.mxu0 0.0
    %2747 = vmatprep.subr.mxu0 0.0
    %2748 = vmatpush1.msra.mxu0 0.0
    %2749 = vmatprep.subr.mxu0 0.0
    %2750 = vmatpush1.msra.mxu0 0.0
    %2751 = vmatprep.subr.mxu0 0.0
    %2752 = vmatpush1.msra.mxu0 0.0
    %2753 = vmatprep.subr.mxu0 0.0
    %2754 = vmatpush1.msra.mxu0 0.0
    %2755 = vmatprep.subr.mxu0 0.0
    %2756 = vmatpush1.msra.mxu0 0.0
    %2757 = vmatprep.subr.mxu0 0.0
    %2758 = vmatpush1.msra.mxu0 0.0
    %2759 = vmatprep.subr.mxu0 0.0
    %2760 = vmatpush1.msra.mxu0 0.0
    %2761 = vmatprep.subr.mxu0 0.0
    %2762 = vmatpush1.msra.mxu0 0.0
    %2763 = vmatprep.subr.mxu0 0.0
    %2764 = vmatpush1.msra.mxu0 0.0
    %2765 = vmatprep.subr.mxu0 0.0
    %2766 = vmatpush1.msra.mxu0 0.0
    %2767 = vmatprep.mubr.f32.mxu0 0.0
    %2768 = vmatmul.mubr.f32.gmra.mrb[0].mxu0 %v2618
    %v2769 = vpop.f32.mrb[0].mxu0
    %v2770 = vadd.f32 0.0, %v2769
    %v2771 = vpop.f32.mrb[0].mxu0
    %v2772 = vadd.f32 0.0, %v2771
    %2773 = vdwg.mxu0
    %v2775 = vsel %vm251, %v2614, 0
    %v2778 = vsel %vm255, %v2609, 0
    %v2781 = vsel %vm255, %v2610, 0
    %v2784 = vsel %vm255, %v2611, 0
    %v2787 = vsel %vm255, %v2612, 0
    %2789 = vmatprep.subr.mxu0 %v2781
    %2790 = vmatpush1.msra.mxu0 %v2778
    %2791 = vmatprep.subr.mxu0 0.0
    %2792 = vmatpush1.msra.mxu0 0.0
    %2793 = vmatprep.subr.mxu0 0.0
    %2794 = vmatpush1.msra.mxu0 0.0
    %2795 = vmatprep.subr.mxu0 0.0
    %2796 = vmatpush1.msra.mxu0 0.0
    %2797 = vmatprep.subr.mxu0 0.0
    %2798 = vmatpush1.msra.mxu0 0.0
    %2799 = vmatprep.subr.mxu0 0.0
    %2800 = vmatpush1.msra.mxu0 0.0
    %2801 = vmatprep.subr.mxu0 0.0
    %2802 = vmatpush1.msra.mxu0 0.0
    %2803 = vmatprep.subr.mxu0 0.0
    %2804 = vmatpush1.msra.mxu0 0.0
    %2805 = vmatprep.subr.mxu0 0.0
    %2806 = vmatpush1.msra.mxu0 0.0
    %2807 = vmatprep.subr.mxu0 0.0
    %2808 = vmatpush1.msra.mxu0 0.0
    %2809 = vmatprep.subr.mxu0 0.0
    %2810 = vmatpush1.msra.mxu0 0.0
    %2811 = vmatprep.subr.mxu0 0.0
    %2812 = vmatpush1.msra.mxu0 0.0
    %2813 = vmatprep.subr.mxu0 0.0
    %2814 = vmatpush1.msra.mxu0 0.0
    %2815 = vmatprep.subr.mxu0 0.0
    %2816 = vmatpush1.msra.mxu0 0.0
    %2817 = vmatprep.subr.mxu0 0.0
    %2818 = vmatpush1.msra.mxu0 0.0
    %2819 = vmatprep.subr.mxu0 0.0
    %2820 = vmatpush1.msra.mxu0 0.0
    %2821 = vmatprep.subr.mxu0 0.0
    %2822 = vmatpush1.msra.mxu0 0.0
    %2823 = vmatprep.subr.mxu0 0.0
    %2824 = vmatpush1.msra.mxu0 0.0
    %2825 = vmatprep.subr.mxu0 0.0
    %2826 = vmatpush1.msra.mxu0 0.0
    %2827 = vmatprep.subr.mxu0 0.0
    %2828 = vmatpush1.msra.mxu0 0.0
    %2829 = vmatprep.subr.mxu0 0.0
    %2830 = vmatpush1.msra.mxu0 0.0
    %2831 = vmatprep.subr.mxu0 0.0
    %2832 = vmatpush1.msra.mxu0 0.0
    %2833 = vmatprep.subr.mxu0 0.0
    %2834 = vmatpush1.msra.mxu0 0.0
    %2835 = vmatprep.subr.mxu0 0.0
    %2836 = vmatpush1.msra.mxu0 0.0
    %2837 = vmatprep.subr.mxu0 0.0
    %2838 = vmatpush1.msra.mxu0 0.0
    %2839 = vmatprep.subr.mxu0 0.0
    %2840 = vmatpush1.msra.mxu0 0.0
    %2841 = vmatprep.subr.mxu0 0.0
    %2842 = vmatpush1.msra.mxu0 0.0
    %2843 = vmatprep.subr.mxu0 0.0
    %2844 = vmatpush1.msra.mxu0 0.0
    %2845 = vmatprep.subr.mxu0 0.0
    %2846 = vmatpush1.msra.mxu0 0.0
    %2847 = vmatprep.subr.mxu0 0.0
    %2848 = vmatpush1.msra.mxu0 0.0
    %2849 = vmatprep.subr.mxu0 0.0
    %2850 = vmatpush1.msra.mxu0 0.0
    %2851 = vmatprep.subr.mxu0 0.0
    %2852 = vmatpush1.msra.mxu0 0.0
    %2853 = vmatprep.mubr.f32.mxu0 0.0
    %2854 = vmatmul.mubr.f32.gmra.mrb[0].mxu0 %v2775
    %v2855 = vpop.f32.mrb[0].mxu0
    %v2856 = vadd.f32 %v2699, %v2855
    %v2857 = vpop.f32.mrb[0].mxu0
    %v2858 = vadd.f32 %v2701, %v2857
    %2859 = vdwg.mxu0
    %2860 = vmatprep.subr.mxu0 %v2787
    %2861 = vmatpush1.msra.mxu0 %v2784
    %2862 = vmatprep.subr.mxu0 0.0
    %2863 = vmatpush1.msra.mxu0 0.0
    %2864 = vmatprep.subr.mxu0 0.0
    %2865 = vmatpush1.msra.mxu0 0.0
    %2866 = vmatprep.subr.mxu0 0.0
    %2867 = vmatpush1.msra.mxu0 0.0
    %2868 = vmatprep.subr.mxu0 0.0
    %2869 = vmatpush1.msra.mxu0 0.0
    %2870 = vmatprep.subr.mxu0 0.0
    %2871 = vmatpush1.msra.mxu0 0.0
    %2872 = vmatprep.subr.mxu0 0.0
    %2873 = vmatpush1.msra.mxu0 0.0
    %2874 = vmatprep.subr.mxu0 0.0
    %2875 = vmatpush1.msra.mxu0 0.0
    %2876 = vmatprep.subr.mxu0 0.0
    %2877 = vmatpush1.msra.mxu0 0.0
    %2878 = vmatprep.subr.mxu0 0.0
    %2879 = vmatpush1.msra.mxu0 0.0
    %2880 = vmatprep.subr.mxu0 0.0
    %2881 = vmatpush1.msra.mxu0 0.0
    %2882 = vmatprep.subr.mxu0 0.0
    %2883 = vmatpush1.msra.mxu0 0.0
    %2884 = vmatprep.subr.mxu0 0.0
    %2885 = vmatpush1.msra.mxu0 0.0
    %2886 = vmatprep.subr.mxu0 0.0
    %2887 = vmatpush1.msra.mxu0 0.0
    %2888 = vmatprep.subr.mxu0 0.0
    %2889 = vmatpush1.msra.mxu0 0.0
    %2890 = vmatprep.subr.mxu0 0.0
    %2891 = vmatpush1.msra.mxu0 0.0
    %2892 = vmatprep.subr.mxu0 0.0
    %2893 = vmatpush1.msra.mxu0 0.0
    %2894 = vmatprep.subr.mxu0 0.0
    %2895 = vmatpush1.msra.mxu0 0.0
    %2896 = vmatprep.subr.mxu0 0.0
    %2897 = vmatpush1.msra.mxu0 0.0
    %2898 = vmatprep.subr.mxu0 0.0
    %2899 = vmatpush1.msra.mxu0 0.0
    %2900 = vmatprep.subr.mxu0 0.0
    %2901 = vmatpush1.msra.mxu0 0.0
    %2902 = vmatprep.subr.mxu0 0.0
    %2903 = vmatpush1.msra.mxu0 0.0
    %2904 = vmatprep.subr.mxu0 0.0
    %2905 = vmatpush1.msra.mxu0 0.0
    %2906 = vmatprep.subr.mxu0 0.0
    %2907 = vmatpush1.msra.mxu0 0.0
    %2908 = vmatprep.subr.mxu0 0.0
    %2909 = vmatpush1.msra.mxu0 0.0
    %2910 = vmatprep.subr.mxu0 0.0
    %2911 = vmatpush1.msra.mxu0 0.0
    %2912 = vmatprep.subr.mxu0 0.0
    %2913 = vmatpush1.msra.mxu0 0.0
    %2914 = vmatprep.subr.mxu0 0.0
    %2915 = vmatpush1.msra.mxu0 0.0
    %2916 = vmatprep.subr.mxu0 0.0
    %2917 = vmatpush1.msra.mxu0 0.0
    %2918 = vmatprep.subr.mxu0 0.0
    %2919 = vmatpush1.msra.mxu0 0.0
    %2920 = vmatprep.subr.mxu0 0.0
    %2921 = vmatpush1.msra.mxu0 0.0
    %2922 = vmatprep.subr.mxu0 0.0
    %2923 = vmatpush1.msra.mxu0 0.0
    %2924 = vmatprep.mubr.f32.mxu0 0.0
    %2925 = vmatmul.mubr.f32.gmra.mrb[0].mxu0 %v2775
    %v2926 = vpop.f32.mrb[0].mxu0
    %v2927 = vadd.f32 %v2770, %v2926
    %v2928 = vpop.f32.mrb[0].mxu0
    %v2929 = vadd.f32 %v2772, %v2928
    %2930 = vdwg.mxu0
    %2931 = vrot.lane.b32.xlu0 %v2593, 127
    %v2932 = vpop.permute.xlu0 %2931
    %2933 = vrot.lane.b32.xlu0 %v2594, 127
    %v2934 = vpop.permute.xlu0 %2933
    %2935 = vrot.lane.b32.xlu0 %v2595, 127
    %v2936 = vpop.permute.xlu0 %2935
    %2937 = vrot.lane.b32.xlu0 %v2596, 127
    %v2938 = vpop.permute.xlu0 %2937
    %v2939 = vsel %vm1308, %v2936, %v2938
    %v2940 = vsel %vm1308, %v2934, %v2936
    %v2941 = vsel %vm1308, %v2932, %v2934
    %v2942 = vsel %vm1308, %v2938, %v2932
    %v2943 = vsel %vm1317, %v2941, 0.0
    %v2944 = vsel %vm1318, %v2940, 0.0
    %v2945 = vsel %vm1319, %v2939, 0.0
    %v2946 = vsel %vm1320, %v2942, 0.0
    %s2947 = scalar_lea.vmem [#allocation8], 44
    %v2948 = vld [vmem:[%s2947] sm:$0xf]
    %v2950 = vsel %vm251, %v2948, 0
    %v2953 = vsel %vm255, %v2943, 0
    %v2956 = vsel %vm255, %v2944, 0
    %v2959 = vsel %vm255, %v2945, 0
    %v2962 = vsel %vm255, %v2946, 0
    %2964 = vmatprep.subr.mxu0 %v2956
    %2965 = vmatpush1.msra.mxu0 %v2953
    %2966 = vmatprep.subr.mxu0 0.0
    %2967 = vmatpush1.msra.mxu0 0.0
    %2968 = vmatprep.subr.mxu0 0.0
    %2969 = vmatpush1.msra.mxu0 0.0
    %2970 = vmatprep.subr.mxu0 0.0
    %2971 = vmatpush1.msra.mxu0 0.0
    %2972 = vmatprep.subr.mxu0 0.0
    %2973 = vmatpush1.msra.mxu0 0.0
    %2974 = vmatprep.subr.mxu0 0.0
    %2975 = vmatpush1.msra.mxu0 0.0
    %2976 = vmatprep.subr.mxu0 0.0
    %2977 = vmatpush1.msra.mxu0 0.0
    %2978 = vmatprep.subr.mxu0 0.0
    %2979 = vmatpush1.msra.mxu0 0.0
    %2980 = vmatprep.subr.mxu0 0.0
    %2981 = vmatpush1.msra.mxu0 0.0
    %2982 = vmatprep.subr.mxu0 0.0
    %2983 = vmatpush1.msra.mxu0 0.0
    %2984 = vmatprep.subr.mxu0 0.0
    %2985 = vmatpush1.msra.mxu0 0.0
    %2986 = vmatprep.subr.mxu0 0.0
    %2987 = vmatpush1.msra.mxu0 0.0
    %2988 = vmatprep.subr.mxu0 0.0
    %2989 = vmatpush1.msra.mxu0 0.0
    %2990 = vmatprep.subr.mxu0 0.0
    %2991 = vmatpush1.msra.mxu0 0.0
    %2992 = vmatprep.subr.mxu0 0.0
    %2993 = vmatpush1.msra.mxu0 0.0
    %2994 = vmatprep.subr.mxu0 0.0
    %2995 = vmatpush1.msra.mxu0 0.0
    %2996 = vmatprep.subr.mxu0 0.0
    %2997 = vmatpush1.msra.mxu0 0.0
    %2998 = vmatprep.subr.mxu0 0.0
    %2999 = vmatpush1.msra.mxu0 0.0
    %3000 = vmatprep.subr.mxu0 0.0
    %3001 = vmatpush1.msra.mxu0 0.0
    %3002 = vmatprep.subr.mxu0 0.0
    %3003 = vmatpush1.msra.mxu0 0.0
    %3004 = vmatprep.subr.mxu0 0.0
    %3005 = vmatpush1.msra.mxu0 0.0
    %3006 = vmatprep.subr.mxu0 0.0
    %3007 = vmatpush1.msra.mxu0 0.0
    %3008 = vmatprep.subr.mxu0 0.0
    %3009 = vmatpush1.msra.mxu0 0.0
    %3010 = vmatprep.subr.mxu0 0.0
    %3011 = vmatpush1.msra.mxu0 0.0
    %3012 = vmatprep.subr.mxu0 0.0
    %3013 = vmatpush1.msra.mxu0 0.0
    %3014 = vmatprep.subr.mxu0 0.0
    %3015 = vmatpush1.msra.mxu0 0.0
    %3016 = vmatprep.subr.mxu0 0.0
    %3017 = vmatpush1.msra.mxu0 0.0
    %3018 = vmatprep.subr.mxu0 0.0
    %3019 = vmatpush1.msra.mxu0 0.0
    %3020 = vmatprep.subr.mxu0 0.0
    %3021 = vmatpush1.msra.mxu0 0.0
    %3022 = vmatprep.subr.mxu0 0.0
    %3023 = vmatpush1.msra.mxu0 0.0
    %3024 = vmatprep.subr.mxu0 0.0
    %3025 = vmatpush1.msra.mxu0 0.0
    %3026 = vmatprep.subr.mxu0 0.0
    %3027 = vmatpush1.msra.mxu0 0.0
    %3028 = vmatprep.mubr.f32.mxu0 0.0
    %3029 = vmatmul.mubr.f32.gmra.mrb[0].mxu0 %v2950
    %v3030 = vpop.f32.mrb[0].mxu0
    %v3031 = vadd.f32 0.0, %v3030
    %v3032 = vpop.f32.mrb[0].mxu0
    %v3033 = vadd.f32 0.0, %v3032
    %3034 = vdwg.mxu0
    %3035 = vmatprep.subr.mxu0 %v2962
    %3036 = vmatpush1.msra.mxu0 %v2959
    %3037 = vmatprep.subr.mxu0 0.0
    %3038 = vmatpush1.msra.mxu0 0.0
    %3039 = vmatprep.subr.mxu0 0.0
    %3040 = vmatpush1.msra.mxu0 0.0
    %3041 = vmatprep.subr.mxu0 0.0
    %3042 = vmatpush1.msra.mxu0 0.0
    %3043 = vmatprep.subr.mxu0 0.0
    %3044 = vmatpush1.msra.mxu0 0.0
    %3045 = vmatprep.subr.mxu0 0.0
    %3046 = vmatpush1.msra.mxu0 0.0
    %3047 = vmatprep.subr.mxu0 0.0
    %3048 = vmatpush1.msra.mxu0 0.0
    %3049 = vmatprep.subr.mxu0 0.0
    %3050 = vmatpush1.msra.mxu0 0.0
    %3051 = vmatprep.subr.mxu0 0.0
    %3052 = vmatpush1.msra.mxu0 0.0
    %3053 = vmatprep.subr.mxu0 0.0
    %3054 = vmatpush1.msra.mxu0 0.0
    %3055 = vmatprep.subr.mxu0 0.0
    %3056 = vmatpush1.msra.mxu0 0.0
    %3057 = vmatprep.subr.mxu0 0.0
    %3058 = vmatpush1.msra.mxu0 0.0
    %3059 = vmatprep.subr.mxu0 0.0
    %3060 = vmatpush1.msra.mxu0 0.0
    %3061 = vmatprep.subr.mxu0 0.0
    %3062 = vmatpush1.msra.mxu0 0.0
    %3063 = vmatprep.subr.mxu0 0.0
    %3064 = vmatpush1.msra.mxu0 0.0
    %3065 = vmatprep.subr.mxu0 0.0
    %3066 = vmatpush1.msra.mxu0 0.0
    %3067 = vmatprep.subr.mxu0 0.0
    %3068 = vmatpush1.msra.mxu0 0.0
    %3069 = vmatprep.subr.mxu0 0.0
    %3070 = vmatpush1.msra.mxu0 0.0
    %3071 = vmatprep.subr.mxu0 0.0
    %3072 = vmatpush1.msra.mxu0 0.0
    %3073 = vmatprep.subr.mxu0 0.0
    %3074 = vmatpush1.msra.mxu0 0.0
    %3075 = vmatprep.subr.mxu0 0.0
    %3076 = vmatpush1.msra.mxu0 0.0
    %3077 = vmatprep.subr.mxu0 0.0
    %3078 = vmatpush1.msra.mxu0 0.0
    %3079 = vmatprep.subr.mxu0 0.0
    %3080 = vmatpush1.msra.mxu0 0.0
    %3081 = vmatprep.subr.mxu0 0.0
    %3082 = vmatpush1.msra.mxu0 0.0
    %3083 = vmatprep.subr.mxu0 0.0
    %3084 = vmatpush1.msra.mxu0 0.0
    %3085 = vmatprep.subr.mxu0 0.0
    %3086 = vmatpush1.msra.mxu0 0.0
    %3087 = vmatprep.subr.mxu0 0.0
    %3088 = vmatpush1.msra.mxu0 0.0
    %3089 = vmatprep.subr.mxu0 0.0
    %3090 = vmatpush1.msra.mxu0 0.0
    %3091 = vmatprep.subr.mxu0 0.0
    %3092 = vmatpush1.msra.mxu0 0.0
    %3093 = vmatprep.subr.mxu0 0.0
    %3094 = vmatpush1.msra.mxu0 0.0
    %3095 = vmatprep.subr.mxu0 0.0
    %3096 = vmatpush1.msra.mxu0 0.0
    %3097 = vmatprep.subr.mxu0 0.0
    %3098 = vmatpush1.msra.mxu0 0.0
    %3099 = vmatprep.mubr.f32.mxu0 0.0
    %3100 = vmatmul.mubr.f32.gmra.mrb[0].mxu0 %v2950
    %v3101 = vpop.f32.mrb[0].mxu0
    %v3102 = vadd.f32 0.0, %v3101
    %v3103 = vpop.f32.mrb[0].mxu0
    %v3104 = vadd.f32 0.0, %v3103
    %3105 = vdwg.mxu0
    %v3106 = vadd.f32 %v2856, %v3031
    %v3107 = vadd.f32 %v2858, %v3033
    %v3108 = vadd.f32 %v2927, %v3102
    %v3109 = vadd.f32 %v2929, %v3104
    %3110 = vrot.lane.b32.xlu0 %v2577, 1
    %v3111 = vpop.permute.xlu0 %3110
    %3112 = vrot.lane.b32.xlu0 %v2578, 1
    %v3113 = vpop.permute.xlu0 %3112
    %3114 = vrot.lane.b32.xlu0 %v2579, 1
    %v3115 = vpop.permute.xlu0 %3114
    %3116 = vrot.lane.b32.xlu0 %v2580, 1
    %v3117 = vpop.permute.xlu0 %3116
    %v3118 = vsel %vm966, %v3115, %v3117
    %v3119 = vsel %vm966, %v3113, %v3115
    %v3120 = vsel %vm966, %v3111, %v3113
    %v3121 = vsel %vm966, %v3117, %v3111
    %v3122 = vsel %vm975, %v3121, 0.0
    %v3123 = vsel %vm976, %v3120, 0.0
    %v3124 = vsel %vm977, %v3119, 0.0
    %v3125 = vsel %vm978, %v3118, 0.0
    %s3126 = scalar_lea.vmem [#allocation8], 48
    %v3127 = vld [vmem:[%s3126] sm:$0xf]
    %v3129 = vsel %vm251, %v3127, 0
    %v3132 = vsel %vm255, %v3122, 0
    %v3135 = vsel %vm255, %v3123, 0
    %v3138 = vsel %vm255, %v3124, 0
    %v3141 = vsel %vm255, %v3125, 0
    %3143 = vmatprep.subr.mxu0 %v3135
    %3144 = vmatpush1.msra.mxu0 %v3132
    %3145 = vmatprep.subr.mxu0 0.0
    %3146 = vmatpush1.msra.mxu0 0.0
    %3147 = vmatprep.subr.mxu0 0.0
    %3148 = vmatpush1.msra.mxu0 0.0
    %3149 = vmatprep.subr.mxu0 0.0
    %3150 = vmatpush1.msra.mxu0 0.0
    %3151 = vmatprep.subr.mxu0 0.0
    %3152 = vmatpush1.msra.mxu0 0.0
    %3153 = vmatprep.subr.mxu0 0.0
    %3154 = vmatpush1.msra.mxu0 0.0
    %3155 = vmatprep.subr.mxu0 0.0
    %3156 = vmatpush1.msra.mxu0 0.0
    %3157 = vmatprep.subr.mxu0 0.0
    %3158 = vmatpush1.msra.mxu0 0.0
    %3159 = vmatprep.subr.mxu0 0.0
    %3160 = vmatpush1.msra.mxu0 0.0
    %3161 = vmatprep.subr.mxu0 0.0
    %3162 = vmatpush1.msra.mxu0 0.0
    %3163 = vmatprep.subr.mxu0 0.0
    %3164 = vmatpush1.msra.mxu0 0.0
    %3165 = vmatprep.subr.mxu0 0.0
    %3166 = vmatpush1.msra.mxu0 0.0
    %3167 = vmatprep.subr.mxu0 0.0
    %3168 = vmatpush1.msra.mxu0 0.0
    %3169 = vmatprep.subr.mxu0 0.0
    %3170 = vmatpush1.msra.mxu0 0.0
    %3171 = vmatprep.subr.mxu0 0.0
    %3172 = vmatpush1.msra.mxu0 0.0
    %3173 = vmatprep.subr.mxu0 0.0
    %3174 = vmatpush1.msra.mxu0 0.0
    %3175 = vmatprep.subr.mxu0 0.0
    %3176 = vmatpush1.msra.mxu0 0.0
    %3177 = vmatprep.subr.mxu0 0.0
    %3178 = vmatpush1.msra.mxu0 0.0
    %3179 = vmatprep.subr.mxu0 0.0
    %3180 = vmatpush1.msra.mxu0 0.0
    %3181 = vmatprep.subr.mxu0 0.0
    %3182 = vmatpush1.msra.mxu0 0.0
    %3183 = vmatprep.subr.mxu0 0.0
    %3184 = vmatpush1.msra.mxu0 0.0
    %3185 = vmatprep.subr.mxu0 0.0
    %3186 = vmatpush1.msra.mxu0 0.0
    %3187 = vmatprep.subr.mxu0 0.0
    %3188 = vmatpush1.msra.mxu0 0.0
    %3189 = vmatprep.subr.mxu0 0.0
    %3190 = vmatpush1.msra.mxu0 0.0
    %3191 = vmatprep.subr.mxu0 0.0
    %3192 = vmatpush1.msra.mxu0 0.0
    %3193 = vmatprep.subr.mxu0 0.0
    %3194 = vmatpush1.msra.mxu0 0.0
    %3195 = vmatprep.subr.mxu0 0.0
    %3196 = vmatpush1.msra.mxu0 0.0
    %3197 = vmatprep.subr.mxu0 0.0
    %3198 = vmatpush1.msra.mxu0 0.0
    %3199 = vmatprep.subr.mxu0 0.0
    %3200 = vmatpush1.msra.mxu0 0.0
    %3201 = vmatprep.subr.mxu0 0.0
    %3202 = vmatpush1.msra.mxu0 0.0
    %3203 = vmatprep.subr.mxu0 0.0
    %3204 = vmatpush1.msra.mxu0 0.0
    %3205 = vmatprep.subr.mxu0 0.0
    %3206 = vmatpush1.msra.mxu0 0.0
    %3207 = vmatprep.mubr.f32.mxu0 0.0
    %3208 = vmatmul.mubr.f32.gmra.mrb[0].mxu0 %v3129
    %v3209 = vpop.f32.mrb[0].mxu0
    %v3210 = vadd.f32 0.0, %v3209
    %v3211 = vpop.f32.mrb[0].mxu0
    %v3212 = vadd.f32 0.0, %v3211
    %3213 = vdwg.mxu0
    %3214 = vmatprep.subr.mxu0 %v3141
    %3215 = vmatpush1.msra.mxu0 %v3138
    %3216 = vmatprep.subr.mxu0 0.0
    %3217 = vmatpush1.msra.mxu0 0.0
    %3218 = vmatprep.subr.mxu0 0.0
    %3219 = vmatpush1.msra.mxu0 0.0
    %3220 = vmatprep.subr.mxu0 0.0
    %3221 = vmatpush1.msra.mxu0 0.0
    %3222 = vmatprep.subr.mxu0 0.0
    %3223 = vmatpush1.msra.mxu0 0.0
    %3224 = vmatprep.subr.mxu0 0.0
    %3225 = vmatpush1.msra.mxu0 0.0
    %3226 = vmatprep.subr.mxu0 0.0
    %3227 = vmatpush1.msra.mxu0 0.0
    %3228 = vmatprep.subr.mxu0 0.0
    %3229 = vmatpush1.msra.mxu0 0.0
    %3230 = vmatprep.subr.mxu0 0.0
    %3231 = vmatpush1.msra.mxu0 0.0
    %3232 = vmatprep.subr.mxu0 0.0
    %3233 = vmatpush1.msra.mxu0 0.0
    %3234 = vmatprep.subr.mxu0 0.0
    %3235 = vmatpush1.msra.mxu0 0.0
    %3236 = vmatprep.subr.mxu0 0.0
    %3237 = vmatpush1.msra.mxu0 0.0
    %3238 = vmatprep.subr.mxu0 0.0
    %3239 = vmatpush1.msra.mxu0 0.0
    %3240 = vmatprep.subr.mxu0 0.0
    %3241 = vmatpush1.msra.mxu0 0.0
    %3242 = vmatprep.subr.mxu0 0.0
    %3243 = vmatpush1.msra.mxu0 0.0
    %3244 = vmatprep.subr.mxu0 0.0
    %3245 = vmatpush1.msra.mxu0 0.0
    %3246 = vmatprep.subr.mxu0 0.0
    %3247 = vmatpush1.msra.mxu0 0.0
    %3248 = vmatprep.subr.mxu0 0.0
    %3249 = vmatpush1.msra.mxu0 0.0
    %3250 = vmatprep.subr.mxu0 0.0
    %3251 = vmatpush1.msra.mxu0 0.0
    %3252 = vmatprep.subr.mxu0 0.0
    %3253 = vmatpush1.msra.mxu0 0.0
    %3254 = vmatprep.subr.mxu0 0.0
    %3255 = vmatpush1.msra.mxu0 0.0
    %3256 = vmatprep.subr.mxu0 0.0
    %3257 = vmatpush1.msra.mxu0 0.0
    %3258 = vmatprep.subr.mxu0 0.0
    %3259 = vmatpush1.msra.mxu0 0.0
    %3260 = vmatprep.subr.mxu0 0.0
    %3261 = vmatpush1.msra.mxu0 0.0
    %3262 = vmatprep.subr.mxu0 0.0
    %3263 = vmatpush1.msra.mxu0 0.0
    %3264 = vmatprep.subr.mxu0 0.0
    %3265 = vmatpush1.msra.mxu0 0.0
    %3266 = vmatprep.subr.mxu0 0.0
    %3267 = vmatpush1.msra.mxu0 0.0
    %3268 = vmatprep.subr.mxu0 0.0
    %3269 = vmatpush1.msra.mxu0 0.0
    %3270 = vmatprep.subr.mxu0 0.0
    %3271 = vmatpush1.msra.mxu0 0.0
    %3272 = vmatprep.subr.mxu0 0.0
    %3273 = vmatpush1.msra.mxu0 0.0
    %3274 = vmatprep.subr.mxu0 0.0
    %3275 = vmatpush1.msra.mxu0 0.0
    %3276 = vmatprep.subr.mxu0 0.0
    %3277 = vmatpush1.msra.mxu0 0.0
    %3278 = vmatprep.mubr.f32.mxu0 0.0
    %3279 = vmatmul.mubr.f32.gmra.mrb[0].mxu0 %v3129
    %v3280 = vpop.f32.mrb[0].mxu0
    %v3281 = vadd.f32 0.0, %v3280
    %v3282 = vpop.f32.mrb[0].mxu0
    %v3283 = vadd.f32 0.0, %v3282
    %3284 = vdwg.mxu0
    %v3285 = vadd.f32 %v3106, %v3210
    %v3286 = vadd.f32 %v3107, %v3212
    %v3287 = vadd.f32 %v3108, %v3281
    %v3288 = vadd.f32 %v3109, %v3283
    %s3289 = scalar_lea.vmem [#allocation8], 52
    %v3290 = vld [vmem:[%s3289] sm:$0xf]
    %v3292 = vsel %vm251, %v3290, 0
    %v3295 = vsel %vm255, %v2577, 0
    %v3298 = vsel %vm255, %v2578, 0
    %v3301 = vsel %vm255, %v2579, 0
    %v3304 = vsel %vm255, %v2580, 0
    %3306 = vmatprep.subr.mxu0 %v3298
    %3307 = vmatpush1.msra.mxu0 %v3295
    %3308 = vmatprep.subr.mxu0 0.0
    %3309 = vmatpush1.msra.mxu0 0.0
    %3310 = vmatprep.subr.mxu0 0.0
    %3311 = vmatpush1.msra.mxu0 0.0
    %3312 = vmatprep.subr.mxu0 0.0
    %3313 = vmatpush1.msra.mxu0 0.0
    %3314 = vmatprep.subr.mxu0 0.0
    %3315 = vmatpush1.msra.mxu0 0.0
    %3316 = vmatprep.subr.mxu0 0.0
    %3317 = vmatpush1.msra.mxu0 0.0
    %3318 = vmatprep.subr.mxu0 0.0
    %3319 = vmatpush1.msra.mxu0 0.0
    %3320 = vmatprep.subr.mxu0 0.0
    %3321 = vmatpush1.msra.mxu0 0.0
    %3322 = vmatprep.subr.mxu0 0.0
    %3323 = vmatpush1.msra.mxu0 0.0
    %3324 = vmatprep.subr.mxu0 0.0
    %3325 = vmatpush1.msra.mxu0 0.0
    %3326 = vmatprep.subr.mxu0 0.0
    %3327 = vmatpush1.msra.mxu0 0.0
    %3328 = vmatprep.subr.mxu0 0.0
    %3329 = vmatpush1.msra.mxu0 0.0
    %3330 = vmatprep.subr.mxu0 0.0
    %3331 = vmatpush1.msra.mxu0 0.0
    %3332 = vmatprep.subr.mxu0 0.0
    %3333 = vmatpush1.msra.mxu0 0.0
    %3334 = vmatprep.subr.mxu0 0.0
    %3335 = vmatpush1.msra.mxu0 0.0
    %3336 = vmatprep.subr.mxu0 0.0
    %3337 = vmatpush1.msra.mxu0 0.0
    %3338 = vmatprep.subr.mxu0 0.0
    %3339 = vmatpush1.msra.mxu0 0.0
    %3340 = vmatprep.subr.mxu0 0.0
    %3341 = vmatpush1.msra.mxu0 0.0
    %3342 = vmatprep.subr.mxu0 0.0
    %3343 = vmatpush1.msra.mxu0 0.0
    %3344 = vmatprep.subr.mxu0 0.0
    %3345 = vmatpush1.msra.mxu0 0.0
    %3346 = vmatprep.subr.mxu0 0.0
    %3347 = vmatpush1.msra.mxu0 0.0
    %3348 = vmatprep.subr.mxu0 0.0
    %3349 = vmatpush1.msra.mxu0 0.0
    %3350 = vmatprep.subr.mxu0 0.0
    %3351 = vmatpush1.msra.mxu0 0.0
    %3352 = vmatprep.subr.mxu0 0.0
    %3353 = vmatpush1.msra.mxu0 0.0
    %3354 = vmatprep.subr.mxu0 0.0
    %3355 = vmatpush1.msra.mxu0 0.0
    %3356 = vmatprep.subr.mxu0 0.0
    %3357 = vmatpush1.msra.mxu0 0.0
    %3358 = vmatprep.subr.mxu0 0.0
    %3359 = vmatpush1.msra.mxu0 0.0
    %3360 = vmatprep.subr.mxu0 0.0
    %3361 = vmatpush1.msra.mxu0 0.0
    %3362 = vmatprep.subr.mxu0 0.0
    %3363 = vmatpush1.msra.mxu0 0.0
    %3364 = vmatprep.subr.mxu0 0.0
    %3365 = vmatpush1.msra.mxu0 0.0
    %3366 = vmatprep.subr.mxu0 0.0
    %3367 = vmatpush1.msra.mxu0 0.0
    %3368 = vmatprep.subr.mxu0 0.0
    %3369 = vmatpush1.msra.mxu0 0.0
    %3370 = vmatprep.mubr.f32.mxu0 0.0
    %3371 = vmatmul.mubr.f32.gmra.mrb[0].mxu0 %v3292
    %v3372 = vpop.f32.mrb[0].mxu0
    %v3373 = vadd.f32 0.0, %v3372
    %v3374 = vpop.f32.mrb[0].mxu0
    %v3375 = vadd.f32 0.0, %v3374
    %3376 = vdwg.mxu0
    %3377 = vmatprep.subr.mxu0 %v3304
    %3378 = vmatpush1.msra.mxu0 %v3301
    %3379 = vmatprep.subr.mxu0 0.0
    %3380 = vmatpush1.msra.mxu0 0.0
    %3381 = vmatprep.subr.mxu0 0.0
    %3382 = vmatpush1.msra.mxu0 0.0
    %3383 = vmatprep.subr.mxu0 0.0
    %3384 = vmatpush1.msra.mxu0 0.0
    %3385 = vmatprep.subr.mxu0 0.0
    %3386 = vmatpush1.msra.mxu0 0.0
    %3387 = vmatprep.subr.mxu0 0.0
    %3388 = vmatpush1.msra.mxu0 0.0
    %3389 = vmatprep.subr.mxu0 0.0
    %3390 = vmatpush1.msra.mxu0 0.0
    %3391 = vmatprep.subr.mxu0 0.0
    %3392 = vmatpush1.msra.mxu0 0.0
    %3393 = vmatprep.subr.mxu0 0.0
    %3394 = vmatpush1.msra.mxu0 0.0
    %3395 = vmatprep.subr.mxu0 0.0
    %3396 = vmatpush1.msra.mxu0 0.0
    %3397 = vmatprep.subr.mxu0 0.0
    %3398 = vmatpush1.msra.mxu0 0.0
    %3399 = vmatprep.subr.mxu0 0.0
    %3400 = vmatpush1.msra.mxu0 0.0
    %3401 = vmatprep.subr.mxu0 0.0
    %3402 = vmatpush1.msra.mxu0 0.0
    %3403 = vmatprep.subr.mxu0 0.0
    %3404 = vmatpush1.msra.mxu0 0.0
    %3405 = vmatprep.subr.mxu0 0.0
    %3406 = vmatpush1.msra.mxu0 0.0
    %3407 = vmatprep.subr.mxu0 0.0
    %3408 = vmatpush1.msra.mxu0 0.0
    %3409 = vmatprep.subr.mxu0 0.0
    %3410 = vmatpush1.msra.mxu0 0.0
    %3411 = vmatprep.subr.mxu0 0.0
    %3412 = vmatpush1.msra.mxu0 0.0
    %3413 = vmatprep.subr.mxu0 0.0
    %3414 = vmatpush1.msra.mxu0 0.0
    %3415 = vmatprep.subr.mxu0 0.0
    %3416 = vmatpush1.msra.mxu0 0.0
    %3417 = vmatprep.subr.mxu0 0.0
    %3418 = vmatpush1.msra.mxu0 0.0
    %3419 = vmatprep.subr.mxu0 0.0
    %3420 = vmatpush1.msra.mxu0 0.0
    %3421 = vmatprep.subr.mxu0 0.0
    %3422 = vmatpush1.msra.mxu0 0.0
    %3423 = vmatprep.subr.mxu0 0.0
    %3424 = vmatpush1.msra.mxu0 0.0
    %3425 = vmatprep.subr.mxu0 0.0
    %3426 = vmatpush1.msra.mxu0 0.0
    %3427 = vmatprep.subr.mxu0 0.0
    %3428 = vmatpush1.msra.mxu0 0.0
    %3429 = vmatprep.subr.mxu0 0.0
    %3430 = vmatpush1.msra.mxu0 0.0
    %3431 = vmatprep.subr.mxu0 0.0
    %3432 = vmatpush1.msra.mxu0 0.0
    %3433 = vmatprep.subr.mxu0 0.0
    %3434 = vmatpush1.msra.mxu0 0.0
    %3435 = vmatprep.subr.mxu0 0.0
    %3436 = vmatpush1.msra.mxu0 0.0
    %3437 = vmatprep.subr.mxu0 0.0
    %3438 = vmatpush1.msra.mxu0 0.0
    %3439 = vmatprep.subr.mxu0 0.0
    %3440 = vmatpush1.msra.mxu0 0.0
    %3441 = vmatprep.mubr.f32.mxu0 0.0
    %3442 = vmatmul.mubr.f32.gmra.mrb[0].mxu0 %v3292
    %v3443 = vpop.f32.mrb[0].mxu0
    %v3444 = vadd.f32 0.0, %v3443
    %v3445 = vpop.f32.mrb[0].mxu0
    %v3446 = vadd.f32 0.0, %v3445
    %3447 = vdwg.mxu0
    %v3448 = vadd.f32 %v3285, %v3373
    %v3449 = vadd.f32 %v3286, %v3375
    %v3450 = vadd.f32 %v3287, %v3444
    %v3451 = vadd.f32 %v3288, %v3446
    %3452 = vrot.lane.b32.xlu0 %v2577, 127
    %v3453 = vpop.permute.xlu0 %3452
    %3454 = vrot.lane.b32.xlu0 %v2578, 127
    %v3455 = vpop.permute.xlu0 %3454
    %3456 = vrot.lane.b32.xlu0 %v2579, 127
    %v3457 = vpop.permute.xlu0 %3456
    %3458 = vrot.lane.b32.xlu0 %v2580, 127
    %v3459 = vpop.permute.xlu0 %3458
    %v3460 = vsel %vm1308, %v3457, %v3459
    %v3461 = vsel %vm1308, %v3455, %v3457
    %v3462 = vsel %vm1308, %v3453, %v3455
    %v3463 = vsel %vm1308, %v3459, %v3453
    %v3464 = vsel %vm1317, %v3462, 0.0
    %v3465 = vsel %vm1318, %v3461, 0.0
    %v3466 = vsel %vm1319, %v3460, 0.0
    %v3467 = vsel %vm1320, %v3463, 0.0
    %s3468 = scalar_lea.vmem [#allocation8], 56
    %v3469 = vld [vmem:[%s3468] sm:$0xf]
    %v3471 = vsel %vm251, %v3469, 0
    %v3474 = vsel %vm255, %v3464, 0
    %v3477 = vsel %vm255, %v3465, 0
    %v3480 = vsel %vm255, %v3466, 0
    %v3483 = vsel %vm255, %v3467, 0
    %3485 = vmatprep.subr.mxu0 %v3477
    %3486 = vmatpush1.msra.mxu0 %v3474
    %3487 = vmatprep.subr.mxu0 0.0
    %3488 = vmatpush1.msra.mxu0 0.0
    %3489 = vmatprep.subr.mxu0 0.0
    %3490 = vmatpush1.msra.mxu0 0.0
    %3491 = vmatprep.subr.mxu0 0.0
    %3492 = vmatpush1.msra.mxu0 0.0
    %3493 = vmatprep.subr.mxu0 0.0
    %3494 = vmatpush1.msra.mxu0 0.0
    %3495 = vmatprep.subr.mxu0 0.0
    %3496 = vmatpush1.msra.mxu0 0.0
    %3497 = vmatprep.subr.mxu0 0.0
    %3498 = vmatpush1.msra.mxu0 0.0
    %3499 = vmatprep.subr.mxu0 0.0
    %3500 = vmatpush1.msra.mxu0 0.0
    %3501 = vmatprep.subr.mxu0 0.0
    %3502 = vmatpush1.msra.mxu0 0.0
    %3503 = vmatprep.subr.mxu0 0.0
    %3504 = vmatpush1.msra.mxu0 0.0
    %3505 = vmatprep.subr.mxu0 0.0
    %3506 = vmatpush1.msra.mxu0 0.0
    %3507 = vmatprep.subr.mxu0 0.0
    %3508 = vmatpush1.msra.mxu0 0.0
    %3509 = vmatprep.subr.mxu0 0.0
    %3510 = vmatpush1.msra.mxu0 0.0
    %3511 = vmatprep.subr.mxu0 0.0
    %3512 = vmatpush1.msra.mxu0 0.0
    %3513 = vmatprep.subr.mxu0 0.0
    %3514 = vmatpush1.msra.mxu0 0.0
    %3515 = vmatprep.subr.mxu0 0.0
    %3516 = vmatpush1.msra.mxu0 0.0
    %3517 = vmatprep.subr.mxu0 0.0
    %3518 = vmatpush1.msra.mxu0 0.0
    %3519 = vmatprep.subr.mxu0 0.0
    %3520 = vmatpush1.msra.mxu0 0.0
    %3521 = vmatprep.subr.mxu0 0.0
    %3522 = vmatpush1.msra.mxu0 0.0
    %3523 = vmatprep.subr.mxu0 0.0
    %3524 = vmatpush1.msra.mxu0 0.0
    %3525 = vmatprep.subr.mxu0 0.0
    %3526 = vmatpush1.msra.mxu0 0.0
    %3527 = vmatprep.subr.mxu0 0.0
    %3528 = vmatpush1.msra.mxu0 0.0
    %3529 = vmatprep.subr.mxu0 0.0
    %3530 = vmatpush1.msra.mxu0 0.0
    %3531 = vmatprep.subr.mxu0 0.0
    %3532 = vmatpush1.msra.mxu0 0.0
    %3533 = vmatprep.subr.mxu0 0.0
    %3534 = vmatpush1.msra.mxu0 0.0
    %3535 = vmatprep.subr.mxu0 0.0
    %3536 = vmatpush1.msra.mxu0 0.0
    %3537 = vmatprep.subr.mxu0 0.0
    %3538 = vmatpush1.msra.mxu0 0.0
    %3539 = vmatprep.subr.mxu0 0.0
    %3540 = vmatpush1.msra.mxu0 0.0
    %3541 = vmatprep.subr.mxu0 0.0
    %3542 = vmatpush1.msra.mxu0 0.0
    %3543 = vmatprep.subr.mxu0 0.0
    %3544 = vmatpush1.msra.mxu0 0.0
    %3545 = vmatprep.subr.mxu0 0.0
    %3546 = vmatpush1.msra.mxu0 0.0
    %3547 = vmatprep.subr.mxu0 0.0
    %3548 = vmatpush1.msra.mxu0 0.0
    %3549 = vmatprep.mubr.f32.mxu0 0.0
    %3550 = vmatmul.mubr.f32.gmra.mrb[0].mxu0 %v3471
    %v3551 = vpop.f32.mrb[0].mxu0
    %v3552 = vadd.f32 0.0, %v3551
    %v3553 = vpop.f32.mrb[0].mxu0
    %v3554 = vadd.f32 0.0, %v3553
    %3555 = vdwg.mxu0
    %3556 = vmatprep.subr.mxu0 %v3483
    %3557 = vmatpush1.msra.mxu0 %v3480
    %3558 = vmatprep.subr.mxu0 0.0
    %3559 = vmatpush1.msra.mxu0 0.0
    %3560 = vmatprep.subr.mxu0 0.0
    %3561 = vmatpush1.msra.mxu0 0.0
    %3562 = vmatprep.subr.mxu0 0.0
    %3563 = vmatpush1.msra.mxu0 0.0
    %3564 = vmatprep.subr.mxu0 0.0
    %3565 = vmatpush1.msra.mxu0 0.0
    %3566 = vmatprep.subr.mxu0 0.0
    %3567 = vmatpush1.msra.mxu0 0.0
    %3568 = vmatprep.subr.mxu0 0.0
    %3569 = vmatpush1.msra.mxu0 0.0
    %3570 = vmatprep.subr.mxu0 0.0
    %3571 = vmatpush1.msra.mxu0 0.0
    %3572 = vmatprep.subr.mxu0 0.0
    %3573 = vmatpush1.msra.mxu0 0.0
    %3574 = vmatprep.subr.mxu0 0.0
    %3575 = vmatpush1.msra.mxu0 0.0
    %3576 = vmatprep.subr.mxu0 0.0
    %3577 = vmatpush1.msra.mxu0 0.0
    %3578 = vmatprep.subr.mxu0 0.0
    %3579 = vmatpush1.msra.mxu0 0.0
    %3580 = vmatprep.subr.mxu0 0.0
    %3581 = vmatpush1.msra.mxu0 0.0
    %3582 = vmatprep.subr.mxu0 0.0
    %3583 = vmatpush1.msra.mxu0 0.0
    %3584 = vmatprep.subr.mxu0 0.0
    %3585 = vmatpush1.msra.mxu0 0.0
    %3586 = vmatprep.subr.mxu0 0.0
    %3587 = vmatpush1.msra.mxu0 0.0
    %3588 = vmatprep.subr.mxu0 0.0
    %3589 = vmatpush1.msra.mxu0 0.0
    %3590 = vmatprep.subr.mxu0 0.0
    %3591 = vmatpush1.msra.mxu0 0.0
    %3592 = vmatprep.subr.mxu0 0.0
    %3593 = vmatpush1.msra.mxu0 0.0
    %3594 = vmatprep.subr.mxu0 0.0
    %3595 = vmatpush1.msra.mxu0 0.0
    %3596 = vmatprep.subr.mxu0 0.0
    %3597 = vmatpush1.msra.mxu0 0.0
    %3598 = vmatprep.subr.mxu0 0.0
    %3599 = vmatpush1.msra.mxu0 0.0
    %3600 = vmatprep.subr.mxu0 0.0
    %3601 = vmatpush1.msra.mxu0 0.0
    %3602 = vmatprep.subr.mxu0 0.0
    %3603 = vmatpush1.msra.mxu0 0.0
    %3604 = vmatprep.subr.mxu0 0.0
    %3605 = vmatpush1.msra.mxu0 0.0
    %3606 = vmatprep.subr.mxu0 0.0
    %3607 = vmatpush1.msra.mxu0 0.0
    %3608 = vmatprep.subr.mxu0 0.0
    %3609 = vmatpush1.msra.mxu0 0.0
    %3610 = vmatprep.subr.mxu0 0.0
    %3611 = vmatpush1.msra.mxu0 0.0
    %3612 = vmatprep.subr.mxu0 0.0
    %3613 = vmatpush1.msra.mxu0 0.0
    %3614 = vmatprep.subr.mxu0 0.0
    %3615 = vmatpush1.msra.mxu0 0.0
    %3616 = vmatprep.subr.mxu0 0.0
    %3617 = vmatpush1.msra.mxu0 0.0
    %3618 = vmatprep.subr.mxu0 0.0
    %3619 = vmatpush1.msra.mxu0 0.0
    %3620 = vmatprep.mubr.f32.mxu0 0.0
    %3621 = vmatmul.mubr.f32.gmra.mrb[0].mxu0 %v3471
    %v3622 = vpop.f32.mrb[0].mxu0
    %v3623 = vadd.f32 0.0, %v3622
    %v3624 = vpop.f32.mrb[0].mxu0
    %v3625 = vadd.f32 0.0, %v3624
    %3626 = vdwg.mxu0
    %v3627 = vadd.f32 %v3448, %v3552
    %v3628 = vadd.f32 %v3449, %v3554
    %v3629 = vadd.f32 %v3450, %v3623
    %v3630 = vadd.f32 %v3451, %v3625
    %3631 = vrot.lane.b32.xlu0 %v2577, 112
    %v3632 = vpop.permute.xlu0 %3631
    %3633 = vrot.lane.b32.xlu0 %v2578, 112
    %v3634 = vpop.permute.xlu0 %3633
    %3635 = vrot.lane.b32.xlu0 %v2579, 112
    %v3636 = vpop.permute.xlu0 %3635
    %3637 = vrot.lane.b32.xlu0 %v2580, 112
    %v3638 = vpop.permute.xlu0 %3637
    %v3639 = vsel %vm2005, %v3636, %v3638
    %v3640 = vsel %vm2005, %v3634, %v3636
    %v3641 = vsel %vm2005, %v3632, %v3634
    %v3642 = vsel %vm2005, %v3638, %v3632
    %v3643 = vsel %vm2014, %v3641, 0.0
    %v3644 = vsel %vm2015, %v3640, 0.0
    %v3645 = vsel %vm2016, %v3639, 0.0
    %v3646 = vsel %vm2017, %v3642, 0.0
    %3647 = vrot.lane.b32.xlu0 %v3643, 1
    %v3648 = vpop.permute.xlu0 %3647
    %3649 = vrot.lane.b32.xlu0 %v3644, 1
    %v3650 = vpop.permute.xlu0 %3649
    %3651 = vrot.lane.b32.xlu0 %v3645, 1
    %v3652 = vpop.permute.xlu0 %3651
    %3653 = vrot.lane.b32.xlu0 %v3646, 1
    %v3654 = vpop.permute.xlu0 %3653
    %v3655 = vsel %vm966, %v3652, %v3654
    %v3656 = vsel %vm966, %v3650, %v3652
    %v3657 = vsel %vm966, %v3648, %v3650
    %v3658 = vsel %vm966, %v3654, %v3648
    %v3659 = vsel %vm975, %v3658, 0.0
    %v3660 = vsel %vm976, %v3657, 0.0
    %v3661 = vsel %vm977, %v3656, 0.0
    %v3662 = vsel %vm978, %v3655, 0.0
    %s3663 = scalar_lea.vmem [#allocation8], 60
    %v3664 = vld [vmem:[%s3663] sm:$0xf]
    %v3666 = vsel %vm251, %v3664, 0
    %v3669 = vsel %vm255, %v3659, 0
    %v3672 = vsel %vm255, %v3660, 0
    %v3675 = vsel %vm255, %v3661, 0
    %v3678 = vsel %vm255, %v3662, 0
    %3680 = vmatprep.subr.mxu0 %v3672
    %3681 = vmatpush1.msra.mxu0 %v3669
    %3682 = vmatprep.subr.mxu0 0.0
    %3683 = vmatpush1.msra.mxu0 0.0
    %3684 = vmatprep.subr.mxu0 0.0
    %3685 = vmatpush1.msra.mxu0 0.0
    %3686 = vmatprep.subr.mxu0 0.0
    %3687 = vmatpush1.msra.mxu0 0.0
    %3688 = vmatprep.subr.mxu0 0.0
    %3689 = vmatpush1.msra.mxu0 0.0
    %3690 = vmatprep.subr.mxu0 0.0
    %3691 = vmatpush1.msra.mxu0 0.0
    %3692 = vmatprep.subr.mxu0 0.0
    %3693 = vmatpush1.msra.mxu0 0.0
    %3694 = vmatprep.subr.mxu0 0.0
    %3695 = vmatpush1.msra.mxu0 0.0
    %3696 = vmatprep.subr.mxu0 0.0
    %3697 = vmatpush1.msra.mxu0 0.0
    %3698 = vmatprep.subr.mxu0 0.0
    %3699 = vmatpush1.msra.mxu0 0.0
    %3700 = vmatprep.subr.mxu0 0.0
    %3701 = vmatpush1.msra.mxu0 0.0
    %3702 = vmatprep.subr.mxu0 0.0
    %3703 = vmatpush1.msra.mxu0 0.0
    %3704 = vmatprep.subr.mxu0 0.0
    %3705 = vmatpush1.msra.mxu0 0.0
    %3706 = vmatprep.subr.mxu0 0.0
    %3707 = vmatpush1.msra.mxu0 0.0
    %3708 = vmatprep.subr.mxu0 0.0
    %3709 = vmatpush1.msra.mxu0 0.0
    %3710 = vmatprep.subr.mxu0 0.0
    %3711 = vmatpush1.msra.mxu0 0.0
    %3712 = vmatprep.subr.mxu0 0.0
    %3713 = vmatpush1.msra.mxu0 0.0
    %3714 = vmatprep.subr.mxu0 0.0
    %3715 = vmatpush1.msra.mxu0 0.0
    %3716 = vmatprep.subr.mxu0 0.0
    %3717 = vmatpush1.msra.mxu0 0.0
    %3718 = vmatprep.subr.mxu0 0.0
    %3719 = vmatpush1.msra.mxu0 0.0
    %3720 = vmatprep.subr.mxu0 0.0
    %3721 = vmatpush1.msra.mxu0 0.0
    %3722 = vmatprep.subr.mxu0 0.0
    %3723 = vmatpush1.msra.mxu0 0.0
    %3724 = vmatprep.subr.mxu0 0.0
    %3725 = vmatpush1.msra.mxu0 0.0
    %3726 = vmatprep.subr.mxu0 0.0
    %3727 = vmatpush1.msra.mxu0 0.0
    %3728 = vmatprep.subr.mxu0 0.0
    %3729 = vmatpush1.msra.mxu0 0.0
    %3730 = vmatprep.subr.mxu0 0.0
    %3731 = vmatpush1.msra.mxu0 0.0
    %3732 = vmatprep.subr.mxu0 0.0
    %3733 = vmatpush1.msra.mxu0 0.0
    %3734 = vmatprep.subr.mxu0 0.0
    %3735 = vmatpush1.msra.mxu0 0.0
    %3736 = vmatprep.subr.mxu0 0.0
    %3737 = vmatpush1.msra.mxu0 0.0
    %3738 = vmatprep.subr.mxu0 0.0
    %3739 = vmatpush1.msra.mxu0 0.0
    %3740 = vmatprep.subr.mxu0 0.0
    %3741 = vmatpush1.msra.mxu0 0.0
    %3742 = vmatprep.subr.mxu0 0.0
    %3743 = vmatpush1.msra.mxu0 0.0
    %3744 = vmatprep.mubr.f32.mxu0 0.0
    %3745 = vmatmul.mubr.f32.gmra.mrb[0].mxu0 %v3666
    %v3746 = vpop.f32.mrb[0].mxu0
    %v3747 = vadd.f32 0.0, %v3746
    %v3748 = vpop.f32.mrb[0].mxu0
    %v3749 = vadd.f32 0.0, %v3748
    %3750 = vdwg.mxu0
    %3751 = vmatprep.subr.mxu0 %v3678
    %3752 = vmatpush1.msra.mxu0 %v3675
    %3753 = vmatprep.subr.mxu0 0.0
    %3754 = vmatpush1.msra.mxu0 0.0
    %3755 = vmatprep.subr.mxu0 0.0
    %3756 = vmatpush1.msra.mxu0 0.0
    %3757 = vmatprep.subr.mxu0 0.0
    %3758 = vmatpush1.msra.mxu0 0.0
    %3759 = vmatprep.subr.mxu0 0.0
    %3760 = vmatpush1.msra.mxu0 0.0
    %3761 = vmatprep.subr.mxu0 0.0
    %3762 = vmatpush1.msra.mxu0 0.0
    %3763 = vmatprep.subr.mxu0 0.0
    %3764 = vmatpush1.msra.mxu0 0.0
    %3765 = vmatprep.subr.mxu0 0.0
    %3766 = vmatpush1.msra.mxu0 0.0
    %3767 = vmatprep.subr.mxu0 0.0
    %3768 = vmatpush1.msra.mxu0 0.0
    %3769 = vmatprep.subr.mxu0 0.0
    %3770 = vmatpush1.msra.mxu0 0.0
    %3771 = vmatprep.subr.mxu0 0.0
    %3772 = vmatpush1.msra.mxu0 0.0
    %3773 = vmatprep.subr.mxu0 0.0
    %3774 = vmatpush1.msra.mxu0 0.0
    %3775 = vmatprep.subr.mxu0 0.0
    %3776 = vmatpush1.msra.mxu0 0.0
    %3777 = vmatprep.subr.mxu0 0.0
    %3778 = vmatpush1.msra.mxu0 0.0
    %3779 = vmatprep.subr.mxu0 0.0
    %3780 = vmatpush1.msra.mxu0 0.0
    %3781 = vmatprep.subr.mxu0 0.0
    %3782 = vmatpush1.msra.mxu0 0.0
    %3783 = vmatprep.subr.mxu0 0.0
    %3784 = vmatpush1.msra.mxu0 0.0
    %3785 = vmatprep.subr.mxu0 0.0
    %3786 = vmatpush1.msra.mxu0 0.0
    %3787 = vmatprep.subr.mxu0 0.0
    %3788 = vmatpush1.msra.mxu0 0.0
    %3789 = vmatprep.subr.mxu0 0.0
    %3790 = vmatpush1.msra.mxu0 0.0
    %3791 = vmatprep.subr.mxu0 0.0
    %3792 = vmatpush1.msra.mxu0 0.0
    %3793 = vmatprep.subr.mxu0 0.0
    %3794 = vmatpush1.msra.mxu0 0.0
    %3795 = vmatprep.subr.mxu0 0.0
    %3796 = vmatpush1.msra.mxu0 0.0
    %3797 = vmatprep.subr.mxu0 0.0
    %3798 = vmatpush1.msra.mxu0 0.0
    %3799 = vmatprep.subr.mxu0 0.0
    %3800 = vmatpush1.msra.mxu0 0.0
    %3801 = vmatprep.subr.mxu0 0.0
    %3802 = vmatpush1.msra.mxu0 0.0
    %3803 = vmatprep.subr.mxu0 0.0
    %3804 = vmatpush1.msra.mxu0 0.0
    %3805 = vmatprep.subr.mxu0 0.0
    %3806 = vmatpush1.msra.mxu0 0.0
    %3807 = vmatprep.subr.mxu0 0.0
    %3808 = vmatpush1.msra.mxu0 0.0
    %3809 = vmatprep.subr.mxu0 0.0
    %3810 = vmatpush1.msra.mxu0 0.0
    %3811 = vmatprep.subr.mxu0 0.0
    %3812 = vmatpush1.msra.mxu0 0.0
    %3813 = vmatprep.subr.mxu0 0.0
    %3814 = vmatpush1.msra.mxu0 0.0
    %3815 = vmatprep.mubr.f32.mxu0 0.0
    %3816 = vmatmul.mubr.f32.gmra.mrb[0].mxu0 %v3666
    %v3817 = vpop.f32.mrb[0].mxu0
    %v3818 = vadd.f32 0.0, %v3817
    %v3819 = vpop.f32.mrb[0].mxu0
    %v3820 = vadd.f32 0.0, %v3819
    %3821 = vdwg.mxu0
    %v3822 = vadd.f32 %v3627, %v3747
    %v3823 = vadd.f32 %v3628, %v3749
    %v3824 = vadd.f32 %v3629, %v3818
    %v3825 = vadd.f32 %v3630, %v3820
    %s3826 = scalar_lea.vmem [#allocation8], 64
    %v3827 = vld [vmem:[%s3826] sm:$0xf]
    %v3829 = vsel %vm251, %v3827, 0
    %v3832 = vsel %vm255, %v3643, 0
    %v3835 = vsel %vm255, %v3644, 0
    %v3838 = vsel %vm255, %v3645, 0
    %v3841 = vsel %vm255, %v3646, 0
    %3843 = vmatprep.subr.mxu0 %v3835
    %3844 = vmatpush1.msra.mxu0 %v3832
    %3845 = vmatprep.subr.mxu0 0.0
    %3846 = vmatpush1.msra.mxu0 0.0
    %3847 = vmatprep.subr.mxu0 0.0
    %3848 = vmatpush1.msra.mxu0 0.0
    %3849 = vmatprep.subr.mxu0 0.0
    %3850 = vmatpush1.msra.mxu0 0.0
    %3851 = vmatprep.subr.mxu0 0.0
    %3852 = vmatpush1.msra.mxu0 0.0
    %3853 = vmatprep.subr.mxu0 0.0
    %3854 = vmatpush1.msra.mxu0 0.0
    %3855 = vmatprep.subr.mxu0 0.0
    %3856 = vmatpush1.msra.mxu0 0.0
    %3857 = vmatprep.subr.mxu0 0.0
    %3858 = vmatpush1.msra.mxu0 0.0
    %3859 = vmatprep.subr.mxu0 0.0
    %3860 = vmatpush1.msra.mxu0 0.0
    %3861 = vmatprep.subr.mxu0 0.0
    %3862 = vmatpush1.msra.mxu0 0.0
    %3863 = vmatprep.subr.mxu0 0.0
    %3864 = vmatpush1.msra.mxu0 0.0
    %3865 = vmatprep.subr.mxu0 0.0
    %3866 = vmatpush1.msra.mxu0 0.0
    %3867 = vmatprep.subr.mxu0 0.0
    %3868 = vmatpush1.msra.mxu0 0.0
    %3869 = vmatprep.subr.mxu0 0.0
    %3870 = vmatpush1.msra.mxu0 0.0
    %3871 = vmatprep.subr.mxu0 0.0
    %3872 = vmatpush1.msra.mxu0 0.0
    %3873 = vmatprep.subr.mxu0 0.0
    %3874 = vmatpush1.msra.mxu0 0.0
    %3875 = vmatprep.subr.mxu0 0.0
    %3876 = vmatpush1.msra.mxu0 0.0
    %3877 = vmatprep.subr.mxu0 0.0
    %3878 = vmatpush1.msra.mxu0 0.0
    %3879 = vmatprep.subr.mxu0 0.0
    %3880 = vmatpush1.msra.mxu0 0.0
    %3881 = vmatprep.subr.mxu0 0.0
    %3882 = vmatpush1.msra.mxu0 0.0
    %3883 = vmatprep.subr.mxu0 0.0
    %3884 = vmatpush1.msra.mxu0 0.0
    %3885 = vmatprep.subr.mxu0 0.0
    %3886 = vmatpush1.msra.mxu0 0.0
    %3887 = vmatprep.subr.mxu0 0.0
    %3888 = vmatpush1.msra.mxu0 0.0
    %3889 = vmatprep.subr.mxu0 0.0
    %3890 = vmatpush1.msra.mxu0 0.0
    %3891 = vmatprep.subr.mxu0 0.0
    %3892 = vmatpush1.msra.mxu0 0.0
    %3893 = vmatprep.subr.mxu0 0.0
    %3894 = vmatpush1.msra.mxu0 0.0
    %3895 = vmatprep.subr.mxu0 0.0
    %3896 = vmatpush1.msra.mxu0 0.0
    %3897 = vmatprep.subr.mxu0 0.0
    %3898 = vmatpush1.msra.mxu0 0.0
    %3899 = vmatprep.subr.mxu0 0.0
    %3900 = vmatpush1.msra.mxu0 0.0
    %3901 = vmatprep.subr.mxu0 0.0
    %3902 = vmatpush1.msra.mxu0 0.0
    %3903 = vmatprep.subr.mxu0 0.0
    %3904 = vmatpush1.msra.mxu0 0.0
    %3905 = vmatprep.subr.mxu0 0.0
    %3906 = vmatpush1.msra.mxu0 0.0
    %3907 = vmatprep.mubr.f32.mxu0 0.0
    %3908 = vmatmul.mubr.f32.gmra.mrb[0].mxu0 %v3829
    %v3909 = vpop.f32.mrb[0].mxu0
    %v3910 = vadd.f32 0.0, %v3909
    %v3911 = vpop.f32.mrb[0].mxu0
    %v3912 = vadd.f32 0.0, %v3911
    %3913 = vdwg.mxu0
    %3914 = vmatprep.subr.mxu0 %v3841
    %3915 = vmatpush1.msra.mxu0 %v3838
    %3916 = vmatprep.subr.mxu0 0.0
    %3917 = vmatpush1.msra.mxu0 0.0
    %3918 = vmatprep.subr.mxu0 0.0
    %3919 = vmatpush1.msra.mxu0 0.0
    %3920 = vmatprep.subr.mxu0 0.0
    %3921 = vmatpush1.msra.mxu0 0.0
    %3922 = vmatprep.subr.mxu0 0.0
    %3923 = vmatpush1.msra.mxu0 0.0
    %3924 = vmatprep.subr.mxu0 0.0
    %3925 = vmatpush1.msra.mxu0 0.0
    %3926 = vmatprep.subr.mxu0 0.0
    %3927 = vmatpush1.msra.mxu0 0.0
    %3928 = vmatprep.subr.mxu0 0.0
    %3929 = vmatpush1.msra.mxu0 0.0
    %3930 = vmatprep.subr.mxu0 0.0
    %3931 = vmatpush1.msra.mxu0 0.0
    %3932 = vmatprep.subr.mxu0 0.0
    %3933 = vmatpush1.msra.mxu0 0.0
    %3934 = vmatprep.subr.mxu0 0.0
    %3935 = vmatpush1.msra.mxu0 0.0
    %3936 = vmatprep.subr.mxu0 0.0
    %3937 = vmatpush1.msra.mxu0 0.0
    %3938 = vmatprep.subr.mxu0 0.0
    %3939 = vmatpush1.msra.mxu0 0.0
    %3940 = vmatprep.subr.mxu0 0.0
    %3941 = vmatpush1.msra.mxu0 0.0
    %3942 = vmatprep.subr.mxu0 0.0
    %3943 = vmatpush1.msra.mxu0 0.0
    %3944 = vmatprep.subr.mxu0 0.0
    %3945 = vmatpush1.msra.mxu0 0.0
    %3946 = vmatprep.subr.mxu0 0.0
    %3947 = vmatpush1.msra.mxu0 0.0
    %3948 = vmatprep.subr.mxu0 0.0
    %3949 = vmatpush1.msra.mxu0 0.0
    %3950 = vmatprep.subr.mxu0 0.0
    %3951 = vmatpush1.msra.mxu0 0.0
    %3952 = vmatprep.subr.mxu0 0.0
    %3953 = vmatpush1.msra.mxu0 0.0
    %3954 = vmatprep.subr.mxu0 0.0
    %3955 = vmatpush1.msra.mxu0 0.0
    %3956 = vmatprep.subr.mxu0 0.0
    %3957 = vmatpush1.msra.mxu0 0.0
    %3958 = vmatprep.subr.mxu0 0.0
    %3959 = vmatpush1.msra.mxu0 0.0
    %3960 = vmatprep.subr.mxu0 0.0
    %3961 = vmatpush1.msra.mxu0 0.0
    %3962 = vmatprep.subr.mxu0 0.0
    %3963 = vmatpush1.msra.mxu0 0.0
    %3964 = vmatprep.subr.mxu0 0.0
    %3965 = vmatpush1.msra.mxu0 0.0
    %3966 = vmatprep.subr.mxu0 0.0
    %3967 = vmatpush1.msra.mxu0 0.0
    %3968 = vmatprep.subr.mxu0 0.0
    %3969 = vmatpush1.msra.mxu0 0.0
    %3970 = vmatprep.subr.mxu0 0.0
    %3971 = vmatpush1.msra.mxu0 0.0
    %3972 = vmatprep.subr.mxu0 0.0
    %3973 = vmatpush1.msra.mxu0 0.0
    %3974 = vmatprep.subr.mxu0 0.0
    %3975 = vmatpush1.msra.mxu0 0.0
    %3976 = vmatprep.subr.mxu0 0.0
    %3977 = vmatpush1.msra.mxu0 0.0
    %3978 = vmatprep.mubr.f32.mxu0 0.0
    %3979 = vmatmul.mubr.f32.gmra.mrb[0].mxu0 %v3829
    %v3980 = vpop.f32.mrb[0].mxu0
    %v3981 = vadd.f32 0.0, %v3980
    %v3982 = vpop.f32.mrb[0].mxu0
    %v3983 = vadd.f32 0.0, %v3982
    %3984 = vdwg.mxu0
    %v3985 = vadd.f32 %v3822, %v3910
    %v3986 = vadd.f32 %v3823, %v3912
    %v3987 = vadd.f32 %v3824, %v3981
    %v3988 = vadd.f32 %v3825, %v3983
    %3989 = vrot.lane.b32.xlu0 %v3643, 127
    %v3990 = vpop.permute.xlu0 %3989
    %3991 = vrot.lane.b32.xlu0 %v3644, 127
    %v3992 = vpop.permute.xlu0 %3991
    %3993 = vrot.lane.b32.xlu0 %v3645, 127
    %v3994 = vpop.permute.xlu0 %3993
    %3995 = vrot.lane.b32.xlu0 %v3646, 127
    %v3996 = vpop.permute.xlu0 %3995
    %v3997 = vsel %vm1308, %v3994, %v3996
    %v3998 = vsel %vm1308, %v3992, %v3994
    %v3999 = vsel %vm1308, %v3990, %v3992
    %v4000 = vsel %vm1308, %v3996, %v3990
    %v4001 = vsel %vm1317, %v3999, 0.0
    %v4002 = vsel %vm1318, %v3998, 0.0
    %v4003 = vsel %vm1319, %v3997, 0.0
    %v4004 = vsel %vm1320, %v4000, 0.0
    %s4005 = scalar_lea.vmem [#allocation8], 68
    %v4006 = vld [vmem:[%s4005] sm:$0xf]
    %v4008 = vsel %vm251, %v4006, 0
    %v4011 = vsel %vm255, %v4001, 0
    %v4014 = vsel %vm255, %v4002, 0
    %v4017 = vsel %vm255, %v4003, 0
    %v4020 = vsel %vm255, %v4004, 0
    %4022 = vmatprep.subr.mxu0 %v4014
    %4023 = vmatpush1.msra.mxu0 %v4011
    %4024 = vmatprep.subr.mxu0 0.0
    %4025 = vmatpush1.msra.mxu0 0.0
    %4026 = vmatprep.subr.mxu0 0.0
    %4027 = vmatpush1.msra.mxu0 0.0
    %4028 = vmatprep.subr.mxu0 0.0
    %4029 = vmatpush1.msra.mxu0 0.0
    %4030 = vmatprep.subr.mxu0 0.0
    %4031 = vmatpush1.msra.mxu0 0.0
    %4032 = vmatprep.subr.mxu0 0.0
    %4033 = vmatpush1.msra.mxu0 0.0
    %4034 = vmatprep.subr.mxu0 0.0
    %4035 = vmatpush1.msra.mxu0 0.0
    %4036 = vmatprep.subr.mxu0 0.0
    %4037 = vmatpush1.msra.mxu0 0.0
    %4038 = vmatprep.subr.mxu0 0.0
    %4039 = vmatpush1.msra.mxu0 0.0
    %4040 = vmatprep.subr.mxu0 0.0
    %4041 = vmatpush1.msra.mxu0 0.0
    %4042 = vmatprep.subr.mxu0 0.0
    %4043 = vmatpush1.msra.mxu0 0.0
    %4044 = vmatprep.subr.mxu0 0.0
    %4045 = vmatpush1.msra.mxu0 0.0
    %4046 = vmatprep.subr.mxu0 0.0
    %4047 = vmatpush1.msra.mxu0 0.0
    %4048 = vmatprep.subr.mxu0 0.0
    %4049 = vmatpush1.msra.mxu0 0.0
    %4050 = vmatprep.subr.mxu0 0.0
    %4051 = vmatpush1.msra.mxu0 0.0
    %4052 = vmatprep.subr.mxu0 0.0
    %4053 = vmatpush1.msra.mxu0 0.0
    %4054 = vmatprep.subr.mxu0 0.0
    %4055 = vmatpush1.msra.mxu0 0.0
    %4056 = vmatprep.subr.mxu0 0.0
    %4057 = vmatpush1.msra.mxu0 0.0
    %4058 = vmatprep.subr.mxu0 0.0
    %4059 = vmatpush1.msra.mxu0 0.0
    %4060 = vmatprep.subr.mxu0 0.0
    %4061 = vmatpush1.msra.mxu0 0.0
    %4062 = vmatprep.subr.mxu0 0.0
    %4063 = vmatpush1.msra.mxu0 0.0
    %4064 = vmatprep.subr.mxu0 0.0
    %4065 = vmatpush1.msra.mxu0 0.0
    %4066 = vmatprep.subr.mxu0 0.0
    %4067 = vmatpush1.msra.mxu0 0.0
    %4068 = vmatprep.subr.mxu0 0.0
    %4069 = vmatpush1.msra.mxu0 0.0
    %4070 = vmatprep.subr.mxu0 0.0
    %4071 = vmatpush1.msra.mxu0 0.0
    %4072 = vmatprep.subr.mxu0 0.0
    %4073 = vmatpush1.msra.mxu0 0.0
    %4074 = vmatprep.subr.mxu0 0.0
    %4075 = vmatpush1.msra.mxu0 0.0
    %4076 = vmatprep.subr.mxu0 0.0
    %4077 = vmatpush1.msra.mxu0 0.0
    %4078 = vmatprep.subr.mxu0 0.0
    %4079 = vmatpush1.msra.mxu0 0.0
    %4080 = vmatprep.subr.mxu0 0.0
    %4081 = vmatpush1.msra.mxu0 0.0
    %4082 = vmatprep.subr.mxu0 0.0
    %4083 = vmatpush1.msra.mxu0 0.0
    %4084 = vmatprep.subr.mxu0 0.0
    %4085 = vmatpush1.msra.mxu0 0.0
    %4086 = vmatprep.mubr.f32.mxu0 0.0
    %4087 = vmatmul.mubr.f32.gmra.mrb[0].mxu0 %v4008
    %v4088 = vpop.f32.mrb[0].mxu0
    %v4089 = vadd.f32 0.0, %v4088
    %v4090 = vpop.f32.mrb[0].mxu0
    %v4091 = vadd.f32 0.0, %v4090
    %4092 = vdwg.mxu0
    %4093 = vmatprep.subr.mxu0 %v4020
    %4094 = vmatpush1.msra.mxu0 %v4017
    %4095 = vmatprep.subr.mxu0 0.0
    %4096 = vmatpush1.msra.mxu0 0.0
    %4097 = vmatprep.subr.mxu0 0.0
    %4098 = vmatpush1.msra.mxu0 0.0
    %4099 = vmatprep.subr.mxu0 0.0
    %4100 = vmatpush1.msra.mxu0 0.0
    %4101 = vmatprep.subr.mxu0 0.0
    %4102 = vmatpush1.msra.mxu0 0.0
    %4103 = vmatprep.subr.mxu0 0.0
    %4104 = vmatpush1.msra.mxu0 0.0
    %4105 = vmatprep.subr.mxu0 0.0
    %4106 = vmatpush1.msra.mxu0 0.0
    %4107 = vmatprep.subr.mxu0 0.0
    %4108 = vmatpush1.msra.mxu0 0.0
    %4109 = vmatprep.subr.mxu0 0.0
    %4110 = vmatpush1.msra.mxu0 0.0
    %4111 = vmatprep.subr.mxu0 0.0
    %4112 = vmatpush1.msra.mxu0 0.0
    %4113 = vmatprep.subr.mxu0 0.0
    %4114 = vmatpush1.msra.mxu0 0.0
    %4115 = vmatprep.subr.mxu0 0.0
    %4116 = vmatpush1.msra.mxu0 0.0
    %4117 = vmatprep.subr.mxu0 0.0
    %4118 = vmatpush1.msra.mxu0 0.0
    %4119 = vmatprep.subr.mxu0 0.0
    %4120 = vmatpush1.msra.mxu0 0.0
    %4121 = vmatprep.subr.mxu0 0.0
    %4122 = vmatpush1.msra.mxu0 0.0
    %4123 = vmatprep.subr.mxu0 0.0
    %4124 = vmatpush1.msra.mxu0 0.0
    %4125 = vmatprep.subr.mxu0 0.0
    %4126 = vmatpush1.msra.mxu0 0.0
    %4127 = vmatprep.subr.mxu0 0.0
    %4128 = vmatpush1.msra.mxu0 0.0
    %4129 = vmatprep.subr.mxu0 0.0
    %4130 = vmatpush1.msra.mxu0 0.0
    %4131 = vmatprep.subr.mxu0 0.0
    %4132 = vmatpush1.msra.mxu0 0.0
    %4133 = vmatprep.subr.mxu0 0.0
    %4134 = vmatpush1.msra.mxu0 0.0
    %4135 = vmatprep.subr.mxu0 0.0
    %4136 = vmatpush1.msra.mxu0 0.0
    %4137 = vmatprep.subr.mxu0 0.0
    %4138 = vmatpush1.msra.mxu0 0.0
    %4139 = vmatprep.subr.mxu0 0.0
    %4140 = vmatpush1.msra.mxu0 0.0
    %4141 = vmatprep.subr.mxu0 0.0
    %4142 = vmatpush1.msra.mxu0 0.0
    %4143 = vmatprep.subr.mxu0 0.0
    %4144 = vmatpush1.msra.mxu0 0.0
    %4145 = vmatprep.subr.mxu0 0.0
    %4146 = vmatpush1.msra.mxu0 0.0
    %4147 = vmatprep.subr.mxu0 0.0
    %4148 = vmatpush1.msra.mxu0 0.0
    %4149 = vmatprep.subr.mxu0 0.0
    %4150 = vmatpush1.msra.mxu0 0.0
    %4151 = vmatprep.subr.mxu0 0.0
    %4152 = vmatpush1.msra.mxu0 0.0
    %4153 = vmatprep.subr.mxu0 0.0
    %4154 = vmatpush1.msra.mxu0 0.0
    %4155 = vmatprep.subr.mxu0 0.0
    %4156 = vmatpush1.msra.mxu0 0.0
    %4157 = vmatprep.mubr.f32.mxu0 0.0
    %4158 = vmatmul.mubr.f32.gmra.mrb[0].mxu0 %v4008
    %v4159 = vpop.f32.mrb[0].mxu0
    %v4160 = vadd.f32 0.0, %v4159
    %v4161 = vpop.f32.mrb[0].mxu0
    %v4162 = vadd.f32 0.0, %v4161
    %4163 = vdwg.mxu0
    %v4164 = vadd.f32 %v3985, %v4089
    %v4165 = vadd.f32 %v3986, %v4091
    %v4166 = vadd.f32 %v3987, %v4160
    %v4167 = vadd.f32 %v3988, %v4162
    %s4168 = scalar_lea.vmem [#allocation10], 4
    %v4169 = vld [vmem:[%s4168] sm:$0xf]
    %4171 = vset.pattern.permute.xlu0 0
    %4172 = vperm.xlu0 %4171, %v4169
    %v4173 = vpop.permute.xlu0 %4172
    %v4175 = vadd.f32 %v4164, %v4173
    %v4176 = vadd.f32 %v4165, %v4173
    %v4177 = vadd.f32 %v4166, %v4173
    %v4178 = vadd.f32 %v4167, %v4173
    %v4179 = vxor.u32 %v4175, 2147483648
    %v4180 = vxor.u32 %v4176, 2147483648
    %v4181 = vxor.u32 %v4177, 2147483648
    %v4182 = vxor.u32 %v4178, 2147483648
    %v4183 = vmul.f32 %v4179, 1.442695
    %v4184 = vpow.pop %v4183
    %v4185 = vmul.f32 %v4180, 1.442695
    %v4186 = vpow.pop %v4185
    %v4187 = vmul.f32 %v4181, 1.442695
    %v4188 = vpow.pop %v4187
    %v4189 = vmul.f32 %v4182, 1.442695
    %v4190 = vpow.pop %v4189
    %v4191 = vadd.f32 %v4184, 1.0
    %v4192 = vadd.f32 %v4186, 1.0
    %v4193 = vadd.f32 %v4188, 1.0
    %v4194 = vadd.f32 %v4190, 1.0
    %v4195 = vrcp.pop %v4191
    %v4196 = vmul.f32 1.0, %v4195
    %v4197 = vrcp.pop %v4192
    %v4198 = vmul.f32 1.0, %v4197
    %v4199 = vrcp.pop %v4193
    %v4200 = vmul.f32 1.0, %v4199
    %v4201 = vrcp.pop %v4194
    %v4202 = vmul.f32 1.0, %v4201
    %v4203 = vmul.f32 %v4175, %v4196
    %v4204 = vmul.f32 %v4176, %v4198
    %v4205 = vmul.f32 %v4177, %v4200
    %v4206 = vmul.f32 %v4178, %v4202
    %s4207 = scalar_lea.vmem [#allocation11], 16
    %v4208 = vld [vmem:[%s4207] sm:$0xff]
    %v4210 = vsel %vm251, %v4208, 0
    %v4213 = vsel %vm255, %v4203, 0
    %v4216 = vsel %vm255, %v4204, 0
    %v4219 = vsel %vm255, %v4205, 0
    %v4222 = vsel %vm255, %v4206, 0
    %4224 = vmatprep.subr.mxu0 %v4216
    %4225 = vmatpush1.msra.mxu0 %v4213
    %4226 = vmatprep.subr.mxu0 0.0
    %4227 = vmatpush1.msra.mxu0 0.0
    %4228 = vmatprep.subr.mxu0 0.0
    %4229 = vmatpush1.msra.mxu0 0.0
    %4230 = vmatprep.subr.mxu0 0.0
    %4231 = vmatpush1.msra.mxu0 0.0
    %4232 = vmatprep.subr.mxu0 0.0
    %4233 = vmatpush1.msra.mxu0 0.0
    %4234 = vmatprep.subr.mxu0 0.0
    %4235 = vmatpush1.msra.mxu0 0.0
    %4236 = vmatprep.subr.mxu0 0.0
    %4237 = vmatpush1.msra.mxu0 0.0
    %4238 = vmatprep.subr.mxu0 0.0
    %4239 = vmatpush1.msra.mxu0 0.0
    %4240 = vmatprep.subr.mxu0 0.0
    %4241 = vmatpush1.msra.mxu0 0.0
    %4242 = vmatprep.subr.mxu0 0.0
    %4243 = vmatpush1.msra.mxu0 0.0
    %4244 = vmatprep.subr.mxu0 0.0
    %4245 = vmatpush1.msra.mxu0 0.0
    %4246 = vmatprep.subr.mxu0 0.0
    %4247 = vmatpush1.msra.mxu0 0.0
    %4248 = vmatprep.subr.mxu0 0.0
    %4249 = vmatpush1.msra.mxu0 0.0
    %4250 = vmatprep.subr.mxu0 0.0
    %4251 = vmatpush1.msra.mxu0 0.0
    %4252 = vmatprep.subr.mxu0 0.0
    %4253 = vmatpush1.msra.mxu0 0.0
    %4254 = vmatprep.subr.mxu0 0.0
    %4255 = vmatpush1.msra.mxu0 0.0
    %4256 = vmatprep.subr.mxu0 0.0
    %4257 = vmatpush1.msra.mxu0 0.0
    %4258 = vmatprep.subr.mxu0 0.0
    %4259 = vmatpush1.msra.mxu0 0.0
    %4260 = vmatprep.subr.mxu0 0.0
    %4261 = vmatpush1.msra.mxu0 0.0
    %4262 = vmatprep.subr.mxu0 0.0
    %4263 = vmatpush1.msra.mxu0 0.0
    %4264 = vmatprep.subr.mxu0 0.0
    %4265 = vmatpush1.msra.mxu0 0.0
    %4266 = vmatprep.subr.mxu0 0.0
    %4267 = vmatpush1.msra.mxu0 0.0
    %4268 = vmatprep.subr.mxu0 0.0
    %4269 = vmatpush1.msra.mxu0 0.0
    %4270 = vmatprep.subr.mxu0 0.0
    %4271 = vmatpush1.msra.mxu0 0.0
    %4272 = vmatprep.subr.mxu0 0.0
    %4273 = vmatpush1.msra.mxu0 0.0
    %4274 = vmatprep.subr.mxu0 0.0
    %4275 = vmatpush1.msra.mxu0 0.0
    %4276 = vmatprep.subr.mxu0 0.0
    %4277 = vmatpush1.msra.mxu0 0.0
    %4278 = vmatprep.subr.mxu0 0.0
    %4279 = vmatpush1.msra.mxu0 0.0
    %4280 = vmatprep.subr.mxu0 0.0
    %4281 = vmatpush1.msra.mxu0 0.0
    %4282 = vmatprep.subr.mxu0 0.0
    %4283 = vmatpush1.msra.mxu0 0.0
    %4284 = vmatprep.subr.mxu0 0.0
    %4285 = vmatpush1.msra.mxu0 0.0
    %4286 = vmatprep.subr.mxu0 0.0
    %4287 = vmatpush1.msra.mxu0 0.0
    %4288 = vmatprep.mubr.f32.mxu0 0.0
    %4289 = vmatmul.mubr.f32.gmra.mrb[0].mxu0 %v4210
    %v4290 = vpop.f32.mrb[0].mxu0
    %v4291 = vadd.f32 0.0, %v4290
    %v4292 = vpop.f32.mrb[0].mxu0
    %v4293 = vadd.f32 0.0, %v4292
    %4294 = vdwg.mxu0
    %4295 = vmatprep.subr.mxu0 %v4222
    %4296 = vmatpush1.msra.mxu0 %v4219
    %4297 = vmatprep.subr.mxu0 0.0
    %4298 = vmatpush1.msra.mxu0 0.0
    %4299 = vmatprep.subr.mxu0 0.0
    %4300 = vmatpush1.msra.mxu0 0.0
    %4301 = vmatprep.subr.mxu0 0.0
    %4302 = vmatpush1.msra.mxu0 0.0
    %4303 = vmatprep.subr.mxu0 0.0
    %4304 = vmatpush1.msra.mxu0 0.0
    %4305 = vmatprep.subr.mxu0 0.0
    %4306 = vmatpush1.msra.mxu0 0.0
    %4307 = vmatprep.subr.mxu0 0.0
    %4308 = vmatpush1.msra.mxu0 0.0
    %4309 = vmatprep.subr.mxu0 0.0
    %4310 = vmatpush1.msra.mxu0 0.0
    %4311 = vmatprep.subr.mxu0 0.0
    %4312 = vmatpush1.msra.mxu0 0.0
    %4313 = vmatprep.subr.mxu0 0.0
    %4314 = vmatpush1.msra.mxu0 0.0
    %4315 = vmatprep.subr.mxu0 0.0
    %4316 = vmatpush1.msra.mxu0 0.0
    %4317 = vmatprep.subr.mxu0 0.0
    %4318 = vmatpush1.msra.mxu0 0.0
    %4319 = vmatprep.subr.mxu0 0.0
    %4320 = vmatpush1.msra.mxu0 0.0
    %4321 = vmatprep.subr.mxu0 0.0
    %4322 = vmatpush1.msra.mxu0 0.0
    %4323 = vmatprep.subr.mxu0 0.0
    %4324 = vmatpush1.msra.mxu0 0.0
    %4325 = vmatprep.subr.mxu0 0.0
    %4326 = vmatpush1.msra.mxu0 0.0
    %4327 = vmatprep.subr.mxu0 0.0
    %4328 = vmatpush1.msra.mxu0 0.0
    %4329 = vmatprep.subr.mxu0 0.0
    %4330 = vmatpush1.msra.mxu0 0.0
    %4331 = vmatprep.subr.mxu0 0.0
    %4332 = vmatpush1.msra.mxu0 0.0
    %4333 = vmatprep.subr.mxu0 0.0
    %4334 = vmatpush1.msra.mxu0 0.0
    %4335 = vmatprep.subr.mxu0 0.0
    %4336 = vmatpush1.msra.mxu0 0.0
    %4337 = vmatprep.subr.mxu0 0.0
    %4338 = vmatpush1.msra.mxu0 0.0
    %4339 = vmatprep.subr.mxu0 0.0
    %4340 = vmatpush1.msra.mxu0 0.0
    %4341 = vmatprep.subr.mxu0 0.0
    %4342 = vmatpush1.msra.mxu0 0.0
    %4343 = vmatprep.subr.mxu0 0.0
    %4344 = vmatpush1.msra.mxu0 0.0
    %4345 = vmatprep.subr.mxu0 0.0
    %4346 = vmatpush1.msra.mxu0 0.0
    %4347 = vmatprep.subr.mxu0 0.0
    %4348 = vmatpush1.msra.mxu0 0.0
    %4349 = vmatprep.subr.mxu0 0.0
    %4350 = vmatpush1.msra.mxu0 0.0
    %4351 = vmatprep.subr.mxu0 0.0
    %4352 = vmatpush1.msra.mxu0 0.0
    %4353 = vmatprep.subr.mxu0 0.0
    %4354 = vmatpush1.msra.mxu0 0.0
    %4355 = vmatprep.subr.mxu0 0.0
    %4356 = vmatpush1.msra.mxu0 0.0
    %4357 = vmatprep.subr.mxu0 0.0
    %4358 = vmatpush1.msra.mxu0 0.0
    %4359 = vmatprep.mubr.f32.mxu0 0.0
    %4360 = vmatmul.mubr.f32.gmra.mrb[0].mxu0 %v4210
    %v4361 = vpop.f32.mrb[0].mxu0
    %v4362 = vadd.f32 0.0, %v4361
    %v4363 = vpop.f32.mrb[0].mxu0
    %v4364 = vadd.f32 0.0, %v4363
    %4365 = vdwg.mxu0
    %v4366 = vadd.f32 %v858, %v4291
    %v4367 = vadd.f32 %v860, %v4293
    %v4368 = vadd.f32 %v929, %v4362
    %v4369 = vadd.f32 %v931, %v4364
    %4370 = vrot.lane.b32.xlu0 %v4203, 16
    %v4371 = vpop.permute.xlu0 %4370
    %4372 = vrot.lane.b32.xlu0 %v4204, 16
    %v4373 = vpop.permute.xlu0 %4372
    %4374 = vrot.lane.b32.xlu0 %v4205, 16
    %v4375 = vpop.permute.xlu0 %4374
    %4376 = vrot.lane.b32.xlu0 %v4206, 16
    %v4377 = vpop.permute.xlu0 %4376
    %v4378 = vsel %vm941, %v4375, %v4377
    %v4379 = vsel %vm941, %v4373, %v4375
    %v4380 = vsel %vm941, %v4371, %v4373
    %v4381 = vsel %vm941, %v4377, %v4371
    %v4382 = vsel %vm950, %v4381, 0.0
    %v4383 = vsel %vm951, %v4380, 0.0
    %v4384 = vsel %vm952, %v4379, 0.0
    %v4385 = vsel %vm953, %v4378, 0.0
    %4386 = vrot.lane.b32.xlu0 %v4382, 1
    %v4387 = vpop.permute.xlu0 %4386
    %4388 = vrot.lane.b32.xlu0 %v4383, 1
    %v4389 = vpop.permute.xlu0 %4388
    %4390 = vrot.lane.b32.xlu0 %v4384, 1
    %v4391 = vpop.permute.xlu0 %4390
    %4392 = vrot.lane.b32.xlu0 %v4385, 1
    %v4393 = vpop.permute.xlu0 %4392
    %v4394 = vsel %vm966, %v4391, %v4393
    %v4395 = vsel %vm966, %v4389, %v4391
    %v4396 = vsel %vm966, %v4387, %v4389
    %v4397 = vsel %vm966, %v4393, %v4387
    %v4398 = vsel %vm975, %v4397, 0.0
    %v4399 = vsel %vm976, %v4396, 0.0
    %v4400 = vsel %vm977, %v4395, 0.0
    %v4401 = vsel %vm978, %v4394, 0.0
    %s4402 = scalar_lea.vmem [#allocation8], 72
    %v4403 = vld [vmem:[%s4402] sm:$0xf]
    %s4404 = scalar_lea.vmem [#allocation8], 76
    %v4405 = vld [vmem:[%s4404] sm:$0xf]
    %v4407 = vsel %vm251, %v4405, 0
    %v4410 = vsel %vm255, %v4382, 0
    %v4413 = vsel %vm255, %v4383, 0
    %v4416 = vsel %vm255, %v4384, 0
    %v4419 = vsel %vm255, %v4385, 0
    %4421 = vmatprep.subr.mxu0 %v4413
    %4422 = vmatpush1.msra.mxu0 %v4410
    %4423 = vmatprep.subr.mxu0 0.0
    %4424 = vmatpush1.msra.mxu0 0.0
    %4425 = vmatprep.subr.mxu0 0.0
    %4426 = vmatpush1.msra.mxu0 0.0
    %4427 = vmatprep.subr.mxu0 0.0
    %4428 = vmatpush1.msra.mxu0 0.0
    %4429 = vmatprep.subr.mxu0 0.0
    %4430 = vmatpush1.msra.mxu0 0.0
    %4431 = vmatprep.subr.mxu0 0.0
    %4432 = vmatpush1.msra.mxu0 0.0
    %4433 = vmatprep.subr.mxu0 0.0
    %4434 = vmatpush1.msra.mxu0 0.0
    %4435 = vmatprep.subr.mxu0 0.0
    %4436 = vmatpush1.msra.mxu0 0.0
    %4437 = vmatprep.subr.mxu0 0.0
    %4438 = vmatpush1.msra.mxu0 0.0
    %4439 = vmatprep.subr.mxu0 0.0
    %4440 = vmatpush1.msra.mxu0 0.0
    %4441 = vmatprep.subr.mxu0 0.0
    %4442 = vmatpush1.msra.mxu0 0.0
    %4443 = vmatprep.subr.mxu0 0.0
    %4444 = vmatpush1.msra.mxu0 0.0
    %4445 = vmatprep.subr.mxu0 0.0
    %4446 = vmatpush1.msra.mxu0 0.0
    %4447 = vmatprep.subr.mxu0 0.0
    %4448 = vmatpush1.msra.mxu0 0.0
    %4449 = vmatprep.subr.mxu0 0.0
    %4450 = vmatpush1.msra.mxu0 0.0
    %4451 = vmatprep.subr.mxu0 0.0
    %4452 = vmatpush1.msra.mxu0 0.0
    %4453 = vmatprep.subr.mxu0 0.0
    %4454 = vmatpush1.msra.mxu0 0.0
    %4455 = vmatprep.subr.mxu0 0.0
    %4456 = vmatpush1.msra.mxu0 0.0
    %4457 = vmatprep.subr.mxu0 0.0
    %4458 = vmatpush1.msra.mxu0 0.0
    %4459 = vmatprep.subr.mxu0 0.0
    %4460 = vmatpush1.msra.mxu0 0.0
    %4461 = vmatprep.subr.mxu0 0.0
    %4462 = vmatpush1.msra.mxu0 0.0
    %4463 = vmatprep.subr.mxu0 0.0
    %4464 = vmatpush1.msra.mxu0 0.0
    %4465 = vmatprep.subr.mxu0 0.0
    %4466 = vmatpush1.msra.mxu0 0.0
    %4467 = vmatprep.subr.mxu0 0.0
    %4468 = vmatpush1.msra.mxu0 0.0
    %4469 = vmatprep.subr.mxu0 0.0
    %4470 = vmatpush1.msra.mxu0 0.0
    %4471 = vmatprep.subr.mxu0 0.0
    %4472 = vmatpush1.msra.mxu0 0.0
    %4473 = vmatprep.subr.mxu0 0.0
    %4474 = vmatpush1.msra.mxu0 0.0
    %4475 = vmatprep.subr.mxu0 0.0
    %4476 = vmatpush1.msra.mxu0 0.0
    %4477 = vmatprep.subr.mxu0 0.0
    %4478 = vmatpush1.msra.mxu0 0.0
    %4479 = vmatprep.subr.mxu0 0.0
    %4480 = vmatpush1.msra.mxu0 0.0
    %4481 = vmatprep.subr.mxu0 0.0
    %4482 = vmatpush1.msra.mxu0 0.0
    %4483 = vmatprep.subr.mxu0 0.0
    %4484 = vmatpush1.msra.mxu0 0.0
    %4485 = vmatprep.mubr.f32.mxu0 0.0
    %4486 = vmatmul.mubr.f32.gmra.mrb[0].mxu0 %v4407
    %v4487 = vpop.f32.mrb[0].mxu0
    %v4488 = vadd.f32 0.0, %v4487
    %v4489 = vpop.f32.mrb[0].mxu0
    %v4490 = vadd.f32 0.0, %v4489
    %4491 = vdwg.mxu0
    %4492 = vmatprep.subr.mxu0 %v4419
    %4493 = vmatpush1.msra.mxu0 %v4416
    %4494 = vmatprep.subr.mxu0 0.0
    %4495 = vmatpush1.msra.mxu0 0.0
    %4496 = vmatprep.subr.mxu0 0.0
    %4497 = vmatpush1.msra.mxu0 0.0
    %4498 = vmatprep.subr.mxu0 0.0
    %4499 = vmatpush1.msra.mxu0 0.0
    %4500 = vmatprep.subr.mxu0 0.0
    %4501 = vmatpush1.msra.mxu0 0.0
    %4502 = vmatprep.subr.mxu0 0.0
    %4503 = vmatpush1.msra.mxu0 0.0
    %4504 = vmatprep.subr.mxu0 0.0
    %4505 = vmatpush1.msra.mxu0 0.0
    %4506 = vmatprep.subr.mxu0 0.0
    %4507 = vmatpush1.msra.mxu0 0.0
    %4508 = vmatprep.subr.mxu0 0.0
    %4509 = vmatpush1.msra.mxu0 0.0
    %4510 = vmatprep.subr.mxu0 0.0
    %4511 = vmatpush1.msra.mxu0 0.0
    %4512 = vmatprep.subr.mxu0 0.0
    %4513 = vmatpush1.msra.mxu0 0.0
    %4514 = vmatprep.subr.mxu0 0.0
    %4515 = vmatpush1.msra.mxu0 0.0
    %4516 = vmatprep.subr.mxu0 0.0
    %4517 = vmatpush1.msra.mxu0 0.0
    %4518 = vmatprep.subr.mxu0 0.0
    %4519 = vmatpush1.msra.mxu0 0.0
    %4520 = vmatprep.subr.mxu0 0.0
    %4521 = vmatpush1.msra.mxu0 0.0
    %4522 = vmatprep.subr.mxu0 0.0
    %4523 = vmatpush1.msra.mxu0 0.0
    %4524 = vmatprep.subr.mxu0 0.0
    %4525 = vmatpush1.msra.mxu0 0.0
    %4526 = vmatprep.subr.mxu0 0.0
    %4527 = vmatpush1.msra.mxu0 0.0
    %4528 = vmatprep.subr.mxu0 0.0
    %4529 = vmatpush1.msra.mxu0 0.0
    %4530 = vmatprep.subr.mxu0 0.0
    %4531 = vmatpush1.msra.mxu0 0.0
    %4532 = vmatprep.subr.mxu0 0.0
    %4533 = vmatpush1.msra.mxu0 0.0
    %4534 = vmatprep.subr.mxu0 0.0
    %4535 = vmatpush1.msra.mxu0 0.0
    %4536 = vmatprep.subr.mxu0 0.0
    %4537 = vmatpush1.msra.mxu0 0.0
    %4538 = vmatprep.subr.mxu0 0.0
    %4539 = vmatpush1.msra.mxu0 0.0
    %4540 = vmatprep.subr.mxu0 0.0
    %4541 = vmatpush1.msra.mxu0 0.0
    %4542 = vmatprep.subr.mxu0 0.0
    %4543 = vmatpush1.msra.mxu0 0.0
    %4544 = vmatprep.subr.mxu0 0.0
    %4545 = vmatpush1.msra.mxu0 0.0
    %4546 = vmatprep.subr.mxu0 0.0
    %4547 = vmatpush1.msra.mxu0 0.0
    %4548 = vmatprep.subr.mxu0 0.0
    %4549 = vmatpush1.msra.mxu0 0.0
    %4550 = vmatprep.subr.mxu0 0.0
    %4551 = vmatpush1.msra.mxu0 0.0
    %4552 = vmatprep.subr.mxu0 0.0
    %4553 = vmatpush1.msra.mxu0 0.0
    %4554 = vmatprep.subr.mxu0 0.0
    %4555 = vmatpush1.msra.mxu0 0.0
    %4556 = vmatprep.mubr.f32.mxu0 0.0
    %4557 = vmatmul.mubr.f32.gmra.mrb[0].mxu0 %v4407
    %v4558 = vpop.f32.mrb[0].mxu0
    %v4559 = vadd.f32 0.0, %v4558
    %v4560 = vpop.f32.mrb[0].mxu0
    %v4561 = vadd.f32 0.0, %v4560
    %4562 = vdwg.mxu0
    %v4564 = vsel %vm251, %v4403, 0
    %v4567 = vsel %vm255, %v4398, 0
    %v4570 = vsel %vm255, %v4399, 0
    %v4573 = vsel %vm255, %v4400, 0
    %v4576 = vsel %vm255, %v4401, 0
    %4578 = vmatprep.subr.mxu0 %v4570
    %4579 = vmatpush1.msra.mxu0 %v4567
    %4580 = vmatprep.subr.mxu0 0.0
    %4581 = vmatpush1.msra.mxu0 0.0
    %4582 = vmatprep.subr.mxu0 0.0
    %4583 = vmatpush1.msra.mxu0 0.0
    %4584 = vmatprep.subr.mxu0 0.0
    %4585 = vmatpush1.msra.mxu0 0.0
    %4586 = vmatprep.subr.mxu0 0.0
    %4587 = vmatpush1.msra.mxu0 0.0
    %4588 = vmatprep.subr.mxu0 0.0
    %4589 = vmatpush1.msra.mxu0 0.0
    %4590 = vmatprep.subr.mxu0 0.0
    %4591 = vmatpush1.msra.mxu0 0.0
    %4592 = vmatprep.subr.mxu0 0.0
    %4593 = vmatpush1.msra.mxu0 0.0
    %4594 = vmatprep.subr.mxu0 0.0
    %4595 = vmatpush1.msra.mxu0 0.0
    %4596 = vmatprep.subr.mxu0 0.0
    %4597 = vmatpush1.msra.mxu0 0.0
    %4598 = vmatprep.subr.mxu0 0.0
    %4599 = vmatpush1.msra.mxu0 0.0
    %4600 = vmatprep.subr.mxu0 0.0
    %4601 = vmatpush1.msra.mxu0 0.0
    %4602 = vmatprep.subr.mxu0 0.0
    %4603 = vmatpush1.msra.mxu0 0.0
    %4604 = vmatprep.subr.mxu0 0.0
    %4605 = vmatpush1.msra.mxu0 0.0
    %4606 = vmatprep.subr.mxu0 0.0
    %4607 = vmatpush1.msra.mxu0 0.0
    %4608 = vmatprep.subr.mxu0 0.0
    %4609 = vmatpush1.msra.mxu0 0.0
    %4610 = vmatprep.subr.mxu0 0.0
    %4611 = vmatpush1.msra.mxu0 0.0
    %4612 = vmatprep.subr.mxu0 0.0
    %4613 = vmatpush1.msra.mxu0 0.0
    %4614 = vmatprep.subr.mxu0 0.0
    %4615 = vmatpush1.msra.mxu0 0.0
    %4616 = vmatprep.subr.mxu0 0.0
    %4617 = vmatpush1.msra.mxu0 0.0
    %4618 = vmatprep.subr.mxu0 0.0
    %4619 = vmatpush1.msra.mxu0 0.0
    %4620 = vmatprep.subr.mxu0 0.0
    %4621 = vmatpush1.msra.mxu0 0.0
    %4622 = vmatprep.subr.mxu0 0.0
    %4623 = vmatpush1.msra.mxu0 0.0
    %4624 = vmatprep.subr.mxu0 0.0
    %4625 = vmatpush1.msra.mxu0 0.0
    %4626 = vmatprep.subr.mxu0 0.0
    %4627 = vmatpush1.msra.mxu0 0.0
    %4628 = vmatprep.subr.mxu0 0.0
    %4629 = vmatpush1.msra.mxu0 0.0
    %4630 = vmatprep.subr.mxu0 0.0
    %4631 = vmatpush1.msra.mxu0 0.0
    %4632 = vmatprep.subr.mxu0 0.0
    %4633 = vmatpush1.msra.mxu0 0.0
    %4634 = vmatprep.subr.mxu0 0.0
    %4635 = vmatpush1.msra.mxu0 0.0
    %4636 = vmatprep.subr.mxu0 0.0
    %4637 = vmatpush1.msra.mxu0 0.0
    %4638 = vmatprep.subr.mxu0 0.0
    %4639 = vmatpush1.msra.mxu0 0.0
    %4640 = vmatprep.subr.mxu0 0.0
    %4641 = vmatpush1.msra.mxu0 0.0
    %4642 = vmatprep.mubr.f32.mxu0 0.0
    %4643 = vmatmul.mubr.f32.gmra.mrb[0].mxu0 %v4564
    %v4644 = vpop.f32.mrb[0].mxu0
    %v4645 = vadd.f32 %v4488, %v4644
    %v4646 = vpop.f32.mrb[0].mxu0
    %v4647 = vadd.f32 %v4490, %v4646
    %4648 = vdwg.mxu0
    %4649 = vmatprep.subr.mxu0 %v4576
    %4650 = vmatpush1.msra.mxu0 %v4573
    %4651 = vmatprep.subr.mxu0 0.0
    %4652 = vmatpush1.msra.mxu0 0.0
    %4653 = vmatprep.subr.mxu0 0.0
    %4654 = vmatpush1.msra.mxu0 0.0
    %4655 = vmatprep.subr.mxu0 0.0
    %4656 = vmatpush1.msra.mxu0 0.0
    %4657 = vmatprep.subr.mxu0 0.0
    %4658 = vmatpush1.msra.mxu0 0.0
    %4659 = vmatprep.subr.mxu0 0.0
    %4660 = vmatpush1.msra.mxu0 0.0
    %4661 = vmatprep.subr.mxu0 0.0
    %4662 = vmatpush1.msra.mxu0 0.0
    %4663 = vmatprep.subr.mxu0 0.0
    %4664 = vmatpush1.msra.mxu0 0.0
    %4665 = vmatprep.subr.mxu0 0.0
    %4666 = vmatpush1.msra.mxu0 0.0
    %4667 = vmatprep.subr.mxu0 0.0
    %4668 = vmatpush1.msra.mxu0 0.0
    %4669 = vmatprep.subr.mxu0 0.0
    %4670 = vmatpush1.msra.mxu0 0.0
    %4671 = vmatprep.subr.mxu0 0.0
    %4672 = vmatpush1.msra.mxu0 0.0
    %4673 = vmatprep.subr.mxu0 0.0
    %4674 = vmatpush1.msra.mxu0 0.0
    %4675 = vmatprep.subr.mxu0 0.0
    %4676 = vmatpush1.msra.mxu0 0.0
    %4677 = vmatprep.subr.mxu0 0.0
    %4678 = vmatpush1.msra.mxu0 0.0
    %4679 = vmatprep.subr.mxu0 0.0
    %4680 = vmatpush1.msra.mxu0 0.0
    %4681 = vmatprep.subr.mxu0 0.0
    %4682 = vmatpush1.msra.mxu0 0.0
    %4683 = vmatprep.subr.mxu0 0.0
    %4684 = vmatpush1.msra.mxu0 0.0
    %4685 = vmatprep.subr.mxu0 0.0
    %4686 = vmatpush1.msra.mxu0 0.0
    %4687 = vmatprep.subr.mxu0 0.0
    %4688 = vmatpush1.msra.mxu0 0.0
    %4689 = vmatprep.subr.mxu0 0.0
    %4690 = vmatpush1.msra.mxu0 0.0
    %4691 = vmatprep.subr.mxu0 0.0
    %4692 = vmatpush1.msra.mxu0 0.0
    %4693 = vmatprep.subr.mxu0 0.0
    %4694 = vmatpush1.msra.mxu0 0.0
    %4695 = vmatprep.subr.mxu0 0.0
    %4696 = vmatpush1.msra.mxu0 0.0
    %4697 = vmatprep.subr.mxu0 0.0
    %4698 = vmatpush1.msra.mxu0 0.0
    %4699 = vmatprep.subr.mxu0 0.0
    %4700 = vmatpush1.msra.mxu0 0.0
    %4701 = vmatprep.subr.mxu0 0.0
    %4702 = vmatpush1.msra.mxu0 0.0
    %4703 = vmatprep.subr.mxu0 0.0
    %4704 = vmatpush1.msra.mxu0 0.0
    %4705 = vmatprep.subr.mxu0 0.0
    %4706 = vmatpush1.msra.mxu0 0.0
    %4707 = vmatprep.subr.mxu0 0.0
    %4708 = vmatpush1.msra.mxu0 0.0
    %4709 = vmatprep.subr.mxu0 0.0
    %4710 = vmatpush1.msra.mxu0 0.0
    %4711 = vmatprep.subr.mxu0 0.0
    %4712 = vmatpush1.msra.mxu0 0.0
    %4713 = vmatprep.mubr.f32.mxu0 0.0
    %4714 = vmatmul.mubr.f32.gmra.mrb[0].mxu0 %v4564
    %v4715 = vpop.f32.mrb[0].mxu0
    %v4716 = vadd.f32 %v4559, %v4715
    %v4717 = vpop.f32.mrb[0].mxu0
    %v4718 = vadd.f32 %v4561, %v4717
    %4719 = vdwg.mxu0
    %4720 = vrot.lane.b32.xlu0 %v4382, 127
    %v4721 = vpop.permute.xlu0 %4720
    %4722 = vrot.lane.b32.xlu0 %v4383, 127
    %v4723 = vpop.permute.xlu0 %4722
    %4724 = vrot.lane.b32.xlu0 %v4384, 127
    %v4725 = vpop.permute.xlu0 %4724
    %4726 = vrot.lane.b32.xlu0 %v4385, 127
    %v4727 = vpop.permute.xlu0 %4726
    %v4728 = vsel %vm1308, %v4725, %v4727
    %v4729 = vsel %vm1308, %v4723, %v4725
    %v4730 = vsel %vm1308, %v4721, %v4723
    %v4731 = vsel %vm1308, %v4727, %v4721
    %v4732 = vsel %vm1317, %v4730, 0.0
    %v4733 = vsel %vm1318, %v4729, 0.0
    %v4734 = vsel %vm1319, %v4728, 0.0
    %v4735 = vsel %vm1320, %v4731, 0.0
    %s4736 = scalar_lea.vmem [#allocation8], 80
    %v4737 = vld [vmem:[%s4736] sm:$0xf]
    %v4739 = vsel %vm251, %v4737, 0
    %v4742 = vsel %vm255, %v4732, 0
    %v4745 = vsel %vm255, %v4733, 0
    %v4748 = vsel %vm255, %v4734, 0
    %v4751 = vsel %vm255, %v4735, 0
    %4753 = vmatprep.subr.mxu0 %v4745
    %4754 = vmatpush1.msra.mxu0 %v4742
    %4755 = vmatprep.subr.mxu0 0.0
    %4756 = vmatpush1.msra.mxu0 0.0
    %4757 = vmatprep.subr.mxu0 0.0
    %4758 = vmatpush1.msra.mxu0 0.0
    %4759 = vmatprep.subr.mxu0 0.0
    %4760 = vmatpush1.msra.mxu0 0.0
    %4761 = vmatprep.subr.mxu0 0.0
    %4762 = vmatpush1.msra.mxu0 0.0
    %4763 = vmatprep.subr.mxu0 0.0
    %4764 = vmatpush1.msra.mxu0 0.0
    %4765 = vmatprep.subr.mxu0 0.0
    %4766 = vmatpush1.msra.mxu0 0.0
    %4767 = vmatprep.subr.mxu0 0.0
    %4768 = vmatpush1.msra.mxu0 0.0
    %4769 = vmatprep.subr.mxu0 0.0
    %4770 = vmatpush1.msra.mxu0 0.0
    %4771 = vmatprep.subr.mxu0 0.0
    %4772 = vmatpush1.msra.mxu0 0.0
    %4773 = vmatprep.subr.mxu0 0.0
    %4774 = vmatpush1.msra.mxu0 0.0
    %4775 = vmatprep.subr.mxu0 0.0
    %4776 = vmatpush1.msra.mxu0 0.0
    %4777 = vmatprep.subr.mxu0 0.0
    %4778 = vmatpush1.msra.mxu0 0.0
    %4779 = vmatprep.subr.mxu0 0.0
    %4780 = vmatpush1.msra.mxu0 0.0
    %4781 = vmatprep.subr.mxu0 0.0
    %4782 = vmatpush1.msra.mxu0 0.0
    %4783 = vmatprep.subr.mxu0 0.0
    %4784 = vmatpush1.msra.mxu0 0.0
    %4785 = vmatprep.subr.mxu0 0.0
    %4786 = vmatpush1.msra.mxu0 0.0
    %4787 = vmatprep.subr.mxu0 0.0
    %4788 = vmatpush1.msra.mxu0 0.0
    %4789 = vmatprep.subr.mxu0 0.0
    %4790 = vmatpush1.msra.mxu0 0.0
    %4791 = vmatprep.subr.mxu0 0.0
    %4792 = vmatpush1.msra.mxu0 0.0
    %4793 = vmatprep.subr.mxu0 0.0
    %4794 = vmatpush1.msra.mxu0 0.0
    %4795 = vmatprep.subr.mxu0 0.0
    %4796 = vmatpush1.msra.mxu0 0.0
    %4797 = vmatprep.subr.mxu0 0.0
    %4798 = vmatpush1.msra.mxu0 0.0
    %4799 = vmatprep.subr.mxu0 0.0
    %4800 = vmatpush1.msra.mxu0 0.0
    %4801 = vmatprep.subr.mxu0 0.0
    %4802 = vmatpush1.msra.mxu0 0.0
    %4803 = vmatprep.subr.mxu0 0.0
    %4804 = vmatpush1.msra.mxu0 0.0
    %4805 = vmatprep.subr.mxu0 0.0
    %4806 = vmatpush1.msra.mxu0 0.0
    %4807 = vmatprep.subr.mxu0 0.0
    %4808 = vmatpush1.msra.mxu0 0.0
    %4809 = vmatprep.subr.mxu0 0.0
    %4810 = vmatpush1.msra.mxu0 0.0
    %4811 = vmatprep.subr.mxu0 0.0
    %4812 = vmatpush1.msra.mxu0 0.0
    %4813 = vmatprep.subr.mxu0 0.0
    %4814 = vmatpush1.msra.mxu0 0.0
    %4815 = vmatprep.subr.mxu0 0.0
    %4816 = vmatpush1.msra.mxu0 0.0
    %4817 = vmatprep.mubr.f32.mxu0 0.0
    %4818 = vmatmul.mubr.f32.gmra.mrb[0].mxu0 %v4739
    %v4819 = vpop.f32.mrb[0].mxu0
    %v4820 = vadd.f32 0.0, %v4819
    %v4821 = vpop.f32.mrb[0].mxu0
    %v4822 = vadd.f32 0.0, %v4821
    %4823 = vdwg.mxu0
    %4824 = vmatprep.subr.mxu0 %v4751
    %4825 = vmatpush1.msra.mxu0 %v4748
    %4826 = vmatprep.subr.mxu0 0.0
    %4827 = vmatpush1.msra.mxu0 0.0
    %4828 = vmatprep.subr.mxu0 0.0
    %4829 = vmatpush1.msra.mxu0 0.0
    %4830 = vmatprep.subr.mxu0 0.0
    %4831 = vmatpush1.msra.mxu0 0.0
    %4832 = vmatprep.subr.mxu0 0.0
    %4833 = vmatpush1.msra.mxu0 0.0
    %4834 = vmatprep.subr.mxu0 0.0
    %4835 = vmatpush1.msra.mxu0 0.0
    %4836 = vmatprep.subr.mxu0 0.0
    %4837 = vmatpush1.msra.mxu0 0.0
    %4838 = vmatprep.subr.mxu0 0.0
    %4839 = vmatpush1.msra.mxu0 0.0
    %4840 = vmatprep.subr.mxu0 0.0
    %4841 = vmatpush1.msra.mxu0 0.0
    %4842 = vmatprep.subr.mxu0 0.0
    %4843 = vmatpush1.msra.mxu0 0.0
    %4844 = vmatprep.subr.mxu0 0.0
    %4845 = vmatpush1.msra.mxu0 0.0
    %4846 = vmatprep.subr.mxu0 0.0
    %4847 = vmatpush1.msra.mxu0 0.0
    %4848 = vmatprep.subr.mxu0 0.0
    %4849 = vmatpush1.msra.mxu0 0.0
    %4850 = vmatprep.subr.mxu0 0.0
    %4851 = vmatpush1.msra.mxu0 0.0
    %4852 = vmatprep.subr.mxu0 0.0
    %4853 = vmatpush1.msra.mxu0 0.0
    %4854 = vmatprep.subr.mxu0 0.0
    %4855 = vmatpush1.msra.mxu0 0.0
    %4856 = vmatprep.subr.mxu0 0.0
    %4857 = vmatpush1.msra.mxu0 0.0
    %4858 = vmatprep.subr.mxu0 0.0
    %4859 = vmatpush1.msra.mxu0 0.0
    %4860 = vmatprep.subr.mxu0 0.0
    %4861 = vmatpush1.msra.mxu0 0.0
    %4862 = vmatprep.subr.mxu0 0.0
    %4863 = vmatpush1.msra.mxu0 0.0
    %4864 = vmatprep.subr.mxu0 0.0
    %4865 = vmatpush1.msra.mxu0 0.0
    %4866 = vmatprep.subr.mxu0 0.0
    %4867 = vmatpush1.msra.mxu0 0.0
    %4868 = vmatprep.subr.mxu0 0.0
    %4869 = vmatpush1.msra.mxu0 0.0
    %4870 = vmatprep.subr.mxu0 0.0
    %4871 = vmatpush1.msra.mxu0 0.0
    %4872 = vmatprep.subr.mxu0 0.0
    %4873 = vmatpush1.msra.mxu0 0.0
    %4874 = vmatprep.subr.mxu0 0.0
    %4875 = vmatpush1.msra.mxu0 0.0
    %4876 = vmatprep.subr.mxu0 0.0
    %4877 = vmatpush1.msra.mxu0 0.0
    %4878 = vmatprep.subr.mxu0 0.0
    %4879 = vmatpush1.msra.mxu0 0.0
    %4880 = vmatprep.subr.mxu0 0.0
    %4881 = vmatpush1.msra.mxu0 0.0
    %4882 = vmatprep.subr.mxu0 0.0
    %4883 = vmatpush1.msra.mxu0 0.0
    %4884 = vmatprep.subr.mxu0 0.0
    %4885 = vmatpush1.msra.mxu0 0.0
    %4886 = vmatprep.subr.mxu0 0.0
    %4887 = vmatpush1.msra.mxu0 0.0
    %4888 = vmatprep.mubr.f32.mxu0 0.0
    %4889 = vmatmul.mubr.f32.gmra.mrb[0].mxu0 %v4739
    %v4890 = vpop.f32.mrb[0].mxu0
    %v4891 = vadd.f32 0.0, %v4890
    %v4892 = vpop.f32.mrb[0].mxu0
    %v4893 = vadd.f32 0.0, %v4892
    %4894 = vdwg.mxu0
    %v4895 = vadd.f32 %v4645, %v4820
    %v4896 = vadd.f32 %v4647, %v4822
    %v4897 = vadd.f32 %v4716, %v4891
    %v4898 = vadd.f32 %v4718, %v4893
    %4899 = vrot.lane.b32.xlu0 %v4203, 1
    %v4900 = vpop.permute.xlu0 %4899
    %4901 = vrot.lane.b32.xlu0 %v4204, 1
    %v4902 = vpop.permute.xlu0 %4901
    %4903 = vrot.lane.b32.xlu0 %v4205, 1
    %v4904 = vpop.permute.xlu0 %4903
    %4905 = vrot.lane.b32.xlu0 %v4206, 1
    %v4906 = vpop.permute.xlu0 %4905
    %v4907 = vsel %vm966, %v4904, %v4906
    %v4908 = vsel %vm966, %v4902, %v4904
    %v4909 = vsel %vm966, %v4900, %v4902
    %v4910 = vsel %vm966, %v4906, %v4900
    %v4911 = vsel %vm975, %v4910, 0.0
    %v4912 = vsel %vm976, %v4909, 0.0
    %v4913 = vsel %vm977, %v4908, 0.0
    %v4914 = vsel %vm978, %v4907, 0.0
    %s4915 = scalar_lea.vmem [#allocation8], 84
    %v4916 = vld [vmem:[%s4915] sm:$0xf]
    %v4918 = vsel %vm251, %v4916, 0
    %v4921 = vsel %vm255, %v4911, 0
    %v4924 = vsel %vm255, %v4912, 0
    %v4927 = vsel %vm255, %v4913, 0
    %v4930 = vsel %vm255, %v4914, 0
    %4932 = vmatprep.subr.mxu0 %v4924
    %4933 = vmatpush1.msra.mxu0 %v4921
    %4934 = vmatprep.subr.mxu0 0.0
    %4935 = vmatpush1.msra.mxu0 0.0
    %4936 = vmatprep.subr.mxu0 0.0
    %4937 = vmatpush1.msra.mxu0 0.0
    %4938 = vmatprep.subr.mxu0 0.0
    %4939 = vmatpush1.msra.mxu0 0.0
    %4940 = vmatprep.subr.mxu0 0.0
    %4941 = vmatpush1.msra.mxu0 0.0
    %4942 = vmatprep.subr.mxu0 0.0
    %4943 = vmatpush1.msra.mxu0 0.0
    %4944 = vmatprep.subr.mxu0 0.0
    %4945 = vmatpush1.msra.mxu0 0.0
    %4946 = vmatprep.subr.mxu0 0.0
    %4947 = vmatpush1.msra.mxu0 0.0
    %4948 = vmatprep.subr.mxu0 0.0
    %4949 = vmatpush1.msra.mxu0 0.0
    %4950 = vmatprep.subr.mxu0 0.0
    %4951 = vmatpush1.msra.mxu0 0.0
    %4952 = vmatprep.subr.mxu0 0.0
    %4953 = vmatpush1.msra.mxu0 0.0
    %4954 = vmatprep.subr.mxu0 0.0
    %4955 = vmatpush1.msra.mxu0 0.0
    %4956 = vmatprep.subr.mxu0 0.0
    %4957 = vmatpush1.msra.mxu0 0.0
    %4958 = vmatprep.subr.mxu0 0.0
    %4959 = vmatpush1.msra.mxu0 0.0
    %4960 = vmatprep.subr.mxu0 0.0
    %4961 = vmatpush1.msra.mxu0 0.0
    %4962 = vmatprep.subr.mxu0 0.0
    %4963 = vmatpush1.msra.mxu0 0.0
    %4964 = vmatprep.subr.mxu0 0.0
    %4965 = vmatpush1.msra.mxu0 0.0
    %4966 = vmatprep.subr.mxu0 0.0
    %4967 = vmatpush1.msra.mxu0 0.0
    %4968 = vmatprep.subr.mxu0 0.0
    %4969 = vmatpush1.msra.mxu0 0.0
    %4970 = vmatprep.subr.mxu0 0.0
    %4971 = vmatpush1.msra.mxu0 0.0
    %4972 = vmatprep.subr.mxu0 0.0
    %4973 = vmatpush1.msra.mxu0 0.0
    %4974 = vmatprep.subr.mxu0 0.0
    %4975 = vmatpush1.msra.mxu0 0.0
    %4976 = vmatprep.subr.mxu0 0.0
    %4977 = vmatpush1.msra.mxu0 0.0
    %4978 = vmatprep.subr.mxu0 0.0
    %4979 = vmatpush1.msra.mxu0 0.0
    %4980 = vmatprep.subr.mxu0 0.0
    %4981 = vmatpush1.msra.mxu0 0.0
    %4982 = vmatprep.subr.mxu0 0.0
    %4983 = vmatpush1.msra.mxu0 0.0
    %4984 = vmatprep.subr.mxu0 0.0
    %4985 = vmatpush1.msra.mxu0 0.0
    %4986 = vmatprep.subr.mxu0 0.0
    %4987 = vmatpush1.msra.mxu0 0.0
    %4988 = vmatprep.subr.mxu0 0.0
    %4989 = vmatpush1.msra.mxu0 0.0
    %4990 = vmatprep.subr.mxu0 0.0
    %4991 = vmatpush1.msra.mxu0 0.0
    %4992 = vmatprep.subr.mxu0 0.0
    %4993 = vmatpush1.msra.mxu0 0.0
    %4994 = vmatprep.subr.mxu0 0.0
    %4995 = vmatpush1.msra.mxu0 0.0
    %4996 = vmatprep.mubr.f32.mxu0 0.0
    %4997 = vmatmul.mubr.f32.gmra.mrb[0].mxu0 %v4918
    %v4998 = vpop.f32.mrb[0].mxu0
    %v4999 = vadd.f32 0.0, %v4998
    %v5000 = vpop.f32.mrb[0].mxu0
    %v5001 = vadd.f32 0.0, %v5000
    %5002 = vdwg.mxu0
    %5003 = vmatprep.subr.mxu0 %v4930
    %5004 = vmatpush1.msra.mxu0 %v4927
    %5005 = vmatprep.subr.mxu0 0.0
    %5006 = vmatpush1.msra.mxu0 0.0
    %5007 = vmatprep.subr.mxu0 0.0
    %5008 = vmatpush1.msra.mxu0 0.0
    %5009 = vmatprep.subr.mxu0 0.0
    %5010 = vmatpush1.msra.mxu0 0.0
    %5011 = vmatprep.subr.mxu0 0.0
    %5012 = vmatpush1.msra.mxu0 0.0
    %5013 = vmatprep.subr.mxu0 0.0
    %5014 = vmatpush1.msra.mxu0 0.0
    %5015 = vmatprep.subr.mxu0 0.0
    %5016 = vmatpush1.msra.mxu0 0.0
    %5017 = vmatprep.subr.mxu0 0.0
    %5018 = vmatpush1.msra.mxu0 0.0
    %5019 = vmatprep.subr.mxu0 0.0
    %5020 = vmatpush1.msra.mxu0 0.0
    %5021 = vmatprep.subr.mxu0 0.0
    %5022 = vmatpush1.msra.mxu0 0.0
    %5023 = vmatprep.subr.mxu0 0.0
    %5024 = vmatpush1.msra.mxu0 0.0
    %5025 = vmatprep.subr.mxu0 0.0
    %5026 = vmatpush1.msra.mxu0 0.0
    %5027 = vmatprep.subr.mxu0 0.0
    %5028 = vmatpush1.msra.mxu0 0.0
    %5029 = vmatprep.subr.mxu0 0.0
    %5030 = vmatpush1.msra.mxu0 0.0
    %5031 = vmatprep.subr.mxu0 0.0
    %5032 = vmatpush1.msra.mxu0 0.0
    %5033 = vmatprep.subr.mxu0 0.0
    %5034 = vmatpush1.msra.mxu0 0.0
    %5035 = vmatprep.subr.mxu0 0.0
    %5036 = vmatpush1.msra.mxu0 0.0
    %5037 = vmatprep.subr.mxu0 0.0
    %5038 = vmatpush1.msra.mxu0 0.0
    %5039 = vmatprep.subr.mxu0 0.0
    %5040 = vmatpush1.msra.mxu0 0.0
    %5041 = vmatprep.subr.mxu0 0.0
    %5042 = vmatpush1.msra.mxu0 0.0
    %5043 = vmatprep.subr.mxu0 0.0
    %5044 = vmatpush1.msra.mxu0 0.0
    %5045 = vmatprep.subr.mxu0 0.0
    %5046 = vmatpush1.msra.mxu0 0.0
    %5047 = vmatprep.subr.mxu0 0.0
    %5048 = vmatpush1.msra.mxu0 0.0
    %5049 = vmatprep.subr.mxu0 0.0
    %5050 = vmatpush1.msra.mxu0 0.0
    %5051 = vmatprep.subr.mxu0 0.0
    %5052 = vmatpush1.msra.mxu0 0.0
    %5053 = vmatprep.subr.mxu0 0.0
    %5054 = vmatpush1.msra.mxu0 0.0
    %5055 = vmatprep.subr.mxu0 0.0
    %5056 = vmatpush1.msra.mxu0 0.0
    %5057 = vmatprep.subr.mxu0 0.0
    %5058 = vmatpush1.msra.mxu0 0.0
    %5059 = vmatprep.subr.mxu0 0.0
    %5060 = vmatpush1.msra.mxu0 0.0
    %5061 = vmatprep.subr.mxu0 0.0
    %5062 = vmatpush1.msra.mxu0 0.0
    %5063 = vmatprep.subr.mxu0 0.0
    %5064 = vmatpush1.msra.mxu0 0.0
    %5065 = vmatprep.subr.mxu0 0.0
    %5066 = vmatpush1.msra.mxu0 0.0
    %5067 = vmatprep.mubr.f32.mxu0 0.0
    %5068 = vmatmul.mubr.f32.gmra.mrb[0].mxu0 %v4918
    %v5069 = vpop.f32.mrb[0].mxu0
    %v5070 = vadd.f32 0.0, %v5069
    %v5071 = vpop.f32.mrb[0].mxu0
    %v5072 = vadd.f32 0.0, %v5071
    %5073 = vdwg.mxu0
    %v5074 = vadd.f32 %v4895, %v4999
    %v5075 = vadd.f32 %v4896, %v5001
    %v5076 = vadd.f32 %v4897, %v5070
    %v5077 = vadd.f32 %v4898, %v5072
    %s5078 = scalar_lea.vmem [#allocation8], 88
    %v5079 = vld [vmem:[%s5078] sm:$0xf]
    %v5081 = vsel %vm251, %v5079, 0
    %5083 = vmatprep.subr.mxu0 %v4216
    %5084 = vmatpush1.msra.mxu0 %v4213
    %5085 = vmatprep.subr.mxu0 0.0
    %5086 = vmatpush1.msra.mxu0 0.0
    %5087 = vmatprep.subr.mxu0 0.0
    %5088 = vmatpush1.msra.mxu0 0.0
    %5089 = vmatprep.subr.mxu0 0.0
    %5090 = vmatpush1.msra.mxu0 0.0
    %5091 = vmatprep.subr.mxu0 0.0
    %5092 = vmatpush1.msra.mxu0 0.0
    %5093 = vmatprep.subr.mxu0 0.0
    %5094 = vmatpush1.msra.mxu0 0.0
    %5095 = vmatprep.subr.mxu0 0.0
    %5096 = vmatpush1.msra.mxu0 0.0
    %5097 = vmatprep.subr.mxu0 0.0
    %5098 = vmatpush1.msra.mxu0 0.0
    %5099 = vmatprep.subr.mxu0 0.0
    %5100 = vmatpush1.msra.mxu0 0.0
    %5101 = vmatprep.subr.mxu0 0.0
    %5102 = vmatpush1.msra.mxu0 0.0
    %5103 = vmatprep.subr.mxu0 0.0
    %5104 = vmatpush1.msra.mxu0 0.0
    %5105 = vmatprep.subr.mxu0 0.0
    %5106 = vmatpush1.msra.mxu0 0.0
    %5107 = vmatprep.subr.mxu0 0.0
    %5108 = vmatpush1.msra.mxu0 0.0
    %5109 = vmatprep.subr.mxu0 0.0
    %5110 = vmatpush1.msra.mxu0 0.0
    %5111 = vmatprep.subr.mxu0 0.0
    %5112 = vmatpush1.msra.mxu0 0.0
    %5113 = vmatprep.subr.mxu0 0.0
    %5114 = vmatpush1.msra.mxu0 0.0
    %5115 = vmatprep.subr.mxu0 0.0
    %5116 = vmatpush1.msra.mxu0 0.0
    %5117 = vmatprep.subr.mxu0 0.0
    %5118 = vmatpush1.msra.mxu0 0.0
    %5119 = vmatprep.subr.mxu0 0.0
    %5120 = vmatpush1.msra.mxu0 0.0
    %5121 = vmatprep.subr.mxu0 0.0
    %5122 = vmatpush1.msra.mxu0 0.0
    %5123 = vmatprep.subr.mxu0 0.0
    %5124 = vmatpush1.msra.mxu0 0.0
    %5125 = vmatprep.subr.mxu0 0.0
    %5126 = vmatpush1.msra.mxu0 0.0
    %5127 = vmatprep.subr.mxu0 0.0
    %5128 = vmatpush1.msra.mxu0 0.0
    %5129 = vmatprep.subr.mxu0 0.0
    %5130 = vmatpush1.msra.mxu0 0.0
    %5131 = vmatprep.subr.mxu0 0.0
    %5132 = vmatpush1.msra.mxu0 0.0
    %5133 = vmatprep.subr.mxu0 0.0
    %5134 = vmatpush1.msra.mxu0 0.0
    %5135 = vmatprep.subr.mxu0 0.0
    %5136 = vmatpush1.msra.mxu0 0.0
    %5137 = vmatprep.subr.mxu0 0.0
    %5138 = vmatpush1.msra.mxu0 0.0
    %5139 = vmatprep.subr.mxu0 0.0
    %5140 = vmatpush1.msra.mxu0 0.0
    %5141 = vmatprep.subr.mxu0 0.0
    %5142 = vmatpush1.msra.mxu0 0.0
    %5143 = vmatprep.subr.mxu0 0.0
    %5144 = vmatpush1.msra.mxu0 0.0
    %5145 = vmatprep.subr.mxu0 0.0
    %5146 = vmatpush1.msra.mxu0 0.0
    %5147 = vmatprep.mubr.f32.mxu0 0.0
    %5148 = vmatmul.mubr.f32.gmra.mrb[0].mxu0 %v5081
    %v5149 = vpop.f32.mrb[0].mxu0
    %v5150 = vadd.f32 0.0, %v5149
    %v5151 = vpop.f32.mrb[0].mxu0
    %v5152 = vadd.f32 0.0, %v5151
    %5153 = vdwg.mxu0
    %5154 = vmatprep.subr.mxu0 %v4222
    %5155 = vmatpush1.msra.mxu0 %v4219
    %5156 = vmatprep.subr.mxu0 0.0
    %5157 = vmatpush1.msra.mxu0 0.0
    %5158 = vmatprep.subr.mxu0 0.0
    %5159 = vmatpush1.msra.mxu0 0.0
    %5160 = vmatprep.subr.mxu0 0.0
    %5161 = vmatpush1.msra.mxu0 0.0
    %5162 = vmatprep.subr.mxu0 0.0
    %5163 = vmatpush1.msra.mxu0 0.0
    %5164 = vmatprep.subr.mxu0 0.0
    %5165 = vmatpush1.msra.mxu0 0.0
    %5166 = vmatprep.subr.mxu0 0.0
    %5167 = vmatpush1.msra.mxu0 0.0
    %5168 = vmatprep.subr.mxu0 0.0
    %5169 = vmatpush1.msra.mxu0 0.0
    %5170 = vmatprep.subr.mxu0 0.0
    %5171 = vmatpush1.msra.mxu0 0.0
    %5172 = vmatprep.subr.mxu0 0.0
    %5173 = vmatpush1.msra.mxu0 0.0
    %5174 = vmatprep.subr.mxu0 0.0
    %5175 = vmatpush1.msra.mxu0 0.0
    %5176 = vmatprep.subr.mxu0 0.0
    %5177 = vmatpush1.msra.mxu0 0.0
    %5178 = vmatprep.subr.mxu0 0.0
    %5179 = vmatpush1.msra.mxu0 0.0
    %5180 = vmatprep.subr.mxu0 0.0
    %5181 = vmatpush1.msra.mxu0 0.0
    %5182 = vmatprep.subr.mxu0 0.0
    %5183 = vmatpush1.msra.mxu0 0.0
    %5184 = vmatprep.subr.mxu0 0.0
    %5185 = vmatpush1.msra.mxu0 0.0
    %5186 = vmatprep.subr.mxu0 0.0
    %5187 = vmatpush1.msra.mxu0 0.0
    %5188 = vmatprep.subr.mxu0 0.0
    %5189 = vmatpush1.msra.mxu0 0.0
    %5190 = vmatprep.subr.mxu0 0.0
    %5191 = vmatpush1.msra.mxu0 0.0
    %5192 = vmatprep.subr.mxu0 0.0
    %5193 = vmatpush1.msra.mxu0 0.0
    %5194 = vmatprep.subr.mxu0 0.0
    %5195 = vmatpush1.msra.mxu0 0.0
    %5196 = vmatprep.subr.mxu0 0.0
    %5197 = vmatpush1.msra.mxu0 0.0
    %5198 = vmatprep.subr.mxu0 0.0
    %5199 = vmatpush1.msra.mxu0 0.0
    %5200 = vmatprep.subr.mxu0 0.0
    %5201 = vmatpush1.msra.mxu0 0.0
    %5202 = vmatprep.subr.mxu0 0.0
    %5203 = vmatpush1.msra.mxu0 0.0
    %5204 = vmatprep.subr.mxu0 0.0
    %5205 = vmatpush1.msra.mxu0 0.0
    %5206 = vmatprep.subr.mxu0 0.0
    %5207 = vmatpush1.msra.mxu0 0.0
    %5208 = vmatprep.subr.mxu0 0.0
    %5209 = vmatpush1.msra.mxu0 0.0
    %5210 = vmatprep.subr.mxu0 0.0
    %5211 = vmatpush1.msra.mxu0 0.0
    %5212 = vmatprep.subr.mxu0 0.0
    %5213 = vmatpush1.msra.mxu0 0.0
    %5214 = vmatprep.subr.mxu0 0.0
    %5215 = vmatpush1.msra.mxu0 0.0
    %5216 = vmatprep.subr.mxu0 0.0
    %5217 = vmatpush1.msra.mxu0 0.0
    %5218 = vmatprep.mubr.f32.mxu0 0.0
    %5219 = vmatmul.mubr.f32.gmra.mrb[0].mxu0 %v5081
    %v5220 = vpop.f32.mrb[0].mxu0
    %v5221 = vadd.f32 0.0, %v5220
    %v5222 = vpop.f32.mrb[0].mxu0
    %v5223 = vadd.f32 0.0, %v5222
    %5224 = vdwg.mxu0
    %v5225 = vadd.f32 %v5074, %v5150
    %v5226 = vadd.f32 %v5075, %v5152
    %v5227 = vadd.f32 %v5076, %v5221
    %v5228 = vadd.f32 %v5077, %v5223
    %5229 = vrot.lane.b32.xlu0 %v4203, 127
    %v5230 = vpop.permute.xlu0 %5229
    %5231 = vrot.lane.b32.xlu0 %v4204, 127
    %v5232 = vpop.permute.xlu0 %5231
    %5233 = vrot.lane.b32.xlu0 %v4205, 127
    %v5234 = vpop.permute.xlu0 %5233
    %5235 = vrot.lane.b32.xlu0 %v4206, 127
    %v5236 = vpop.permute.xlu0 %5235
    %v5237 = vsel %vm1308, %v5234, %v5236
    %v5238 = vsel %vm1308, %v5232, %v5234
    %v5239 = vsel %vm1308, %v5230, %v5232
    %v5240 = vsel %vm1308, %v5236, %v5230
    %v5241 = vsel %vm1317, %v5239, 0.0
    %v5242 = vsel %vm1318, %v5238, 0.0
    %v5243 = vsel %vm1319, %v5237, 0.0
    %v5244 = vsel %vm1320, %v5240, 0.0
    %s5245 = scalar_lea.vmem [#allocation8], 92
    %v5246 = vld [vmem:[%s5245] sm:$0xf]
    %v5248 = vsel %vm251, %v5246, 0
    %v5251 = vsel %vm255, %v5241, 0
    %v5254 = vsel %vm255, %v5242, 0
    %v5257 = vsel %vm255, %v5243, 0
    %v5260 = vsel %vm255, %v5244, 0
    %5262 = vmatprep.subr.mxu0 %v5254
    %5263 = vmatpush1.msra.mxu0 %v5251
    %5264 = vmatprep.subr.mxu0 0.0
    %5265 = vmatpush1.msra.mxu0 0.0
    %5266 = vmatprep.subr.mxu0 0.0
    %5267 = vmatpush1.msra.mxu0 0.0
    %5268 = vmatprep.subr.mxu0 0.0
    %5269 = vmatpush1.msra.mxu0 0.0
    %5270 = vmatprep.subr.mxu0 0.0
    %5271 = vmatpush1.msra.mxu0 0.0
    %5272 = vmatprep.subr.mxu0 0.0
    %5273 = vmatpush1.msra.mxu0 0.0
    %5274 = vmatprep.subr.mxu0 0.0
    %5275 = vmatpush1.msra.mxu0 0.0
    %5276 = vmatprep.subr.mxu0 0.0
    %5277 = vmatpush1.msra.mxu0 0.0
    %5278 = vmatprep.subr.mxu0 0.0
    %5279 = vmatpush1.msra.mxu0 0.0
    %5280 = vmatprep.subr.mxu0 0.0
    %5281 = vmatpush1.msra.mxu0 0.0
    %5282 = vmatprep.subr.mxu0 0.0
    %5283 = vmatpush1.msra.mxu0 0.0
    %5284 = vmatprep.subr.mxu0 0.0
    %5285 = vmatpush1.msra.mxu0 0.0
    %5286 = vmatprep.subr.mxu0 0.0
    %5287 = vmatpush1.msra.mxu0 0.0
    %5288 = vmatprep.subr.mxu0 0.0
    %5289 = vmatpush1.msra.mxu0 0.0
    %5290 = vmatprep.subr.mxu0 0.0
    %5291 = vmatpush1.msra.mxu0 0.0
    %5292 = vmatprep.subr.mxu0 0.0
    %5293 = vmatpush1.msra.mxu0 0.0
    %5294 = vmatprep.subr.mxu0 0.0
    %5295 = vmatpush1.msra.mxu0 0.0
    %5296 = vmatprep.subr.mxu0 0.0
    %5297 = vmatpush1.msra.mxu0 0.0
    %5298 = vmatprep.subr.mxu0 0.0
    %5299 = vmatpush1.msra.mxu0 0.0
    %5300 = vmatprep.subr.mxu0 0.0
    %5301 = vmatpush1.msra.mxu0 0.0
    %5302 = vmatprep.subr.mxu0 0.0
    %5303 = vmatpush1.msra.mxu0 0.0
    %5304 = vmatprep.subr.mxu0 0.0
    %5305 = vmatpush1.msra.mxu0 0.0
    %5306 = vmatprep.subr.mxu0 0.0
    %5307 = vmatpush1.msra.mxu0 0.0
    %5308 = vmatprep.subr.mxu0 0.0
    %5309 = vmatpush1.msra.mxu0 0.0
    %5310 = vmatprep.subr.mxu0 0.0
    %5311 = vmatpush1.msra.mxu0 0.0
    %5312 = vmatprep.subr.mxu0 0.0
    %5313 = vmatpush1.msra.mxu0 0.0
    %5314 = vmatprep.subr.mxu0 0.0
    %5315 = vmatpush1.msra.mxu0 0.0
    %5316 = vmatprep.subr.mxu0 0.0
    %5317 = vmatpush1.msra.mxu0 0.0
    %5318 = vmatprep.subr.mxu0 0.0
    %5319 = vmatpush1.msra.mxu0 0.0
    %5320 = vmatprep.subr.mxu0 0.0
    %5321 = vmatpush1.msra.mxu0 0.0
    %5322 = vmatprep.subr.mxu0 0.0
    %5323 = vmatpush1.msra.mxu0 0.0
    %5324 = vmatprep.subr.mxu0 0.0
    %5325 = vmatpush1.msra.mxu0 0.0
    %5326 = vmatprep.mubr.f32.mxu0 0.0
    %5327 = vmatmul.mubr.f32.gmra.mrb[0].mxu0 %v5248
    %v5328 = vpop.f32.mrb[0].mxu0
    %v5329 = vadd.f32 0.0, %v5328
    %v5330 = vpop.f32.mrb[0].mxu0
    %v5331 = vadd.f32 0.0, %v5330
    %5332 = vdwg.mxu0
    %5333 = vmatprep.subr.mxu0 %v5260
    %5334 = vmatpush1.msra.mxu0 %v5257
    %5335 = vmatprep.subr.mxu0 0.0
    %5336 = vmatpush1.msra.mxu0 0.0
    %5337 = vmatprep.subr.mxu0 0.0
    %5338 = vmatpush1.msra.mxu0 0.0
    %5339 = vmatprep.subr.mxu0 0.0
    %5340 = vmatpush1.msra.mxu0 0.0
    %5341 = vmatprep.subr.mxu0 0.0
    %5342 = vmatpush1.msra.mxu0 0.0
    %5343 = vmatprep.subr.mxu0 0.0
    %5344 = vmatpush1.msra.mxu0 0.0
    %5345 = vmatprep.subr.mxu0 0.0
    %5346 = vmatpush1.msra.mxu0 0.0
    %5347 = vmatprep.subr.mxu0 0.0
    %5348 = vmatpush1.msra.mxu0 0.0
    %5349 = vmatprep.subr.mxu0 0.0
    %5350 = vmatpush1.msra.mxu0 0.0
    %5351 = vmatprep.subr.mxu0 0.0
    %5352 = vmatpush1.msra.mxu0 0.0
    %5353 = vmatprep.subr.mxu0 0.0
    %5354 = vmatpush1.msra.mxu0 0.0
    %5355 = vmatprep.subr.mxu0 0.0
    %5356 = vmatpush1.msra.mxu0 0.0
    %5357 = vmatprep.subr.mxu0 0.0
    %5358 = vmatpush1.msra.mxu0 0.0
    %5359 = vmatprep.subr.mxu0 0.0
    %5360 = vmatpush1.msra.mxu0 0.0
    %5361 = vmatprep.subr.mxu0 0.0
    %5362 = vmatpush1.msra.mxu0 0.0
    %5363 = vmatprep.subr.mxu0 0.0
    %5364 = vmatpush1.msra.mxu0 0.0
    %5365 = vmatprep.subr.mxu0 0.0
    %5366 = vmatpush1.msra.mxu0 0.0
    %5367 = vmatprep.subr.mxu0 0.0
    %5368 = vmatpush1.msra.mxu0 0.0
    %5369 = vmatprep.subr.mxu0 0.0
    %5370 = vmatpush1.msra.mxu0 0.0
    %5371 = vmatprep.subr.mxu0 0.0
    %5372 = vmatpush1.msra.mxu0 0.0
    %5373 = vmatprep.subr.mxu0 0.0
    %5374 = vmatpush1.msra.mxu0 0.0
    %5375 = vmatprep.subr.mxu0 0.0
    %5376 = vmatpush1.msra.mxu0 0.0
    %5377 = vmatprep.subr.mxu0 0.0
    %5378 = vmatpush1.msra.mxu0 0.0
    %5379 = vmatprep.subr.mxu0 0.0
    %5380 = vmatpush1.msra.mxu0 0.0
    %5381 = vmatprep.subr.mxu0 0.0
    %5382 = vmatpush1.msra.mxu0 0.0
    %5383 = vmatprep.subr.mxu0 0.0
    %5384 = vmatpush1.msra.mxu0 0.0
    %5385 = vmatprep.subr.mxu0 0.0
    %5386 = vmatpush1.msra.mxu0 0.0
    %5387 = vmatprep.subr.mxu0 0.0
    %5388 = vmatpush1.msra.mxu0 0.0
    %5389 = vmatprep.subr.mxu0 0.0
    %5390 = vmatpush1.msra.mxu0 0.0
    %5391 = vmatprep.subr.mxu0 0.0
    %5392 = vmatpush1.msra.mxu0 0.0
    %5393 = vmatprep.subr.mxu0 0.0
    %5394 = vmatpush1.msra.mxu0 0.0
    %5395 = vmatprep.subr.mxu0 0.0
    %5396 = vmatpush1.msra.mxu0 0.0
    %5397 = vmatprep.mubr.f32.mxu0 0.0
    %5398 = vmatmul.mubr.f32.gmra.mrb[0].mxu0 %v5248
    %v5399 = vpop.f32.mrb[0].mxu0
    %v5400 = vadd.f32 0.0, %v5399
    %v5401 = vpop.f32.mrb[0].mxu0
    %v5402 = vadd.f32 0.0, %v5401
    %5403 = vdwg.mxu0
    %v5404 = vadd.f32 %v5225, %v5329
    %v5405 = vadd.f32 %v5226, %v5331
    %v5406 = vadd.f32 %v5227, %v5400
    %v5407 = vadd.f32 %v5228, %v5402
    %5408 = vrot.lane.b32.xlu0 %v4203, 112
    %v5409 = vpop.permute.xlu0 %5408
    %5410 = vrot.lane.b32.xlu0 %v4204, 112
    %v5411 = vpop.permute.xlu0 %5410
    %5412 = vrot.lane.b32.xlu0 %v4205, 112
    %v5413 = vpop.permute.xlu0 %5412
    %5414 = vrot.lane.b32.xlu0 %v4206, 112
    %v5415 = vpop.permute.xlu0 %5414
    %v5416 = vsel %vm2005, %v5413, %v5415
    %v5417 = vsel %vm2005, %v5411, %v5413
    %v5418 = vsel %vm2005, %v5409, %v5411
    %v5419 = vsel %vm2005, %v5415, %v5409
    %v5420 = vsel %vm2014, %v5418, 0.0
    %v5421 = vsel %vm2015, %v5417, 0.0
    %v5422 = vsel %vm2016, %v5416, 0.0
    %v5423 = vsel %vm2017, %v5419, 0.0
    %5424 = vrot.lane.b32.xlu0 %v5420, 1
    %v5425 = vpop.permute.xlu0 %5424
    %5426 = vrot.lane.b32.xlu0 %v5421, 1
    %v5427 = vpop.permute.xlu0 %5426
    %5428 = vrot.lane.b32.xlu0 %v5422, 1
    %v5429 = vpop.permute.xlu0 %5428
    %5430 = vrot.lane.b32.xlu0 %v5423, 1
    %v5431 = vpop.permute.xlu0 %5430
    %v5432 = vsel %vm966, %v5429, %v5431
    %v5433 = vsel %vm966, %v5427, %v5429
    %v5434 = vsel %vm966, %v5425, %v5427
    %v5435 = vsel %vm966, %v5431, %v5425
    %v5436 = vsel %vm975, %v5435, 0.0
    %v5437 = vsel %vm976, %v5434, 0.0
    %v5438 = vsel %vm977, %v5433, 0.0
    %v5439 = vsel %vm978, %v5432, 0.0
    %s5440 = scalar_lea.vmem [#allocation8], 96
    %v5441 = vld [vmem:[%s5440] sm:$0xf]
    %v5443 = vsel %vm251, %v5441, 0
    %v5446 = vsel %vm255, %v5436, 0
    %v5449 = vsel %vm255, %v5437, 0
    %v5452 = vsel %vm255, %v5438, 0
    %v5455 = vsel %vm255, %v5439, 0
    %5457 = vmatprep.subr.mxu0 %v5449
    %5458 = vmatpush1.msra.mxu0 %v5446
    %5459 = vmatprep.subr.mxu0 0.0
    %5460 = vmatpush1.msra.mxu0 0.0
    %5461 = vmatprep.subr.mxu0 0.0
    %5462 = vmatpush1.msra.mxu0 0.0
    %5463 = vmatprep.subr.mxu0 0.0
    %5464 = vmatpush1.msra.mxu0 0.0
    %5465 = vmatprep.subr.mxu0 0.0
    %5466 = vmatpush1.msra.mxu0 0.0
    %5467 = vmatprep.subr.mxu0 0.0
    %5468 = vmatpush1.msra.mxu0 0.0
    %5469 = vmatprep.subr.mxu0 0.0
    %5470 = vmatpush1.msra.mxu0 0.0
    %5471 = vmatprep.subr.mxu0 0.0
    %5472 = vmatpush1.msra.mxu0 0.0
    %5473 = vmatprep.subr.mxu0 0.0
    %5474 = vmatpush1.msra.mxu0 0.0
    %5475 = vmatprep.subr.mxu0 0.0
    %5476 = vmatpush1.msra.mxu0 0.0
    %5477 = vmatprep.subr.mxu0 0.0
    %5478 = vmatpush1.msra.mxu0 0.0
    %5479 = vmatprep.subr.mxu0 0.0
    %5480 = vmatpush1.msra.mxu0 0.0
    %5481 = vmatprep.subr.mxu0 0.0
    %5482 = vmatpush1.msra.mxu0 0.0
    %5483 = vmatprep.subr.mxu0 0.0
    %5484 = vmatpush1.msra.mxu0 0.0
    %5485 = vmatprep.subr.mxu0 0.0
    %5486 = vmatpush1.msra.mxu0 0.0
    %5487 = vmatprep.subr.mxu0 0.0
    %5488 = vmatpush1.msra.mxu0 0.0
    %5489 = vmatprep.subr.mxu0 0.0
    %5490 = vmatpush1.msra.mxu0 0.0
    %5491 = vmatprep.subr.mxu0 0.0
    %5492 = vmatpush1.msra.mxu0 0.0
    %5493 = vmatprep.subr.mxu0 0.0
    %5494 = vmatpush1.msra.mxu0 0.0
    %5495 = vmatprep.subr.mxu0 0.0
    %5496 = vmatpush1.msra.mxu0 0.0
    %5497 = vmatprep.subr.mxu0 0.0
    %5498 = vmatpush1.msra.mxu0 0.0
    %5499 = vmatprep.subr.mxu0 0.0
    %5500 = vmatpush1.msra.mxu0 0.0
    %5501 = vmatprep.subr.mxu0 0.0
    %5502 = vmatpush1.msra.mxu0 0.0
    %5503 = vmatprep.subr.mxu0 0.0
    %5504 = vmatpush1.msra.mxu0 0.0
    %5505 = vmatprep.subr.mxu0 0.0
    %5506 = vmatpush1.msra.mxu0 0.0
    %5507 = vmatprep.subr.mxu0 0.0
    %5508 = vmatpush1.msra.mxu0 0.0
    %5509 = vmatprep.subr.mxu0 0.0
    %5510 = vmatpush1.msra.mxu0 0.0
    %5511 = vmatprep.subr.mxu0 0.0
    %5512 = vmatpush1.msra.mxu0 0.0
    %5513 = vmatprep.subr.mxu0 0.0
    %5514 = vmatpush1.msra.mxu0 0.0
    %5515 = vmatprep.subr.mxu0 0.0
    %5516 = vmatpush1.msra.mxu0 0.0
    %5517 = vmatprep.subr.mxu0 0.0
    %5518 = vmatpush1.msra.mxu0 0.0
    %5519 = vmatprep.subr.mxu0 0.0
    %5520 = vmatpush1.msra.mxu0 0.0
    %5521 = vmatprep.mubr.f32.mxu0 0.0
    %5522 = vmatmul.mubr.f32.gmra.mrb[0].mxu0 %v5443
    %v5523 = vpop.f32.mrb[0].mxu0
    %v5524 = vadd.f32 0.0, %v5523
    %v5525 = vpop.f32.mrb[0].mxu0
    %v5526 = vadd.f32 0.0, %v5525
    %5527 = vdwg.mxu0
    %5528 = vmatprep.subr.mxu0 %v5455
    %5529 = vmatpush1.msra.mxu0 %v5452
    %5530 = vmatprep.subr.mxu0 0.0
    %5531 = vmatpush1.msra.mxu0 0.0
    %5532 = vmatprep.subr.mxu0 0.0
    %5533 = vmatpush1.msra.mxu0 0.0
    %5534 = vmatprep.subr.mxu0 0.0
    %5535 = vmatpush1.msra.mxu0 0.0
    %5536 = vmatprep.subr.mxu0 0.0
    %5537 = vmatpush1.msra.mxu0 0.0
    %5538 = vmatprep.subr.mxu0 0.0
    %5539 = vmatpush1.msra.mxu0 0.0
    %5540 = vmatprep.subr.mxu0 0.0
    %5541 = vmatpush1.msra.mxu0 0.0
    %5542 = vmatprep.subr.mxu0 0.0
    %5543 = vmatpush1.msra.mxu0 0.0
    %5544 = vmatprep.subr.mxu0 0.0
    %5545 = vmatpush1.msra.mxu0 0.0
    %5546 = vmatprep.subr.mxu0 0.0
    %5547 = vmatpush1.msra.mxu0 0.0
    %5548 = vmatprep.subr.mxu0 0.0
    %5549 = vmatpush1.msra.mxu0 0.0
    %5550 = vmatprep.subr.mxu0 0.0
    %5551 = vmatpush1.msra.mxu0 0.0
    %5552 = vmatprep.subr.mxu0 0.0
    %5553 = vmatpush1.msra.mxu0 0.0
    %5554 = vmatprep.subr.mxu0 0.0
    %5555 = vmatpush1.msra.mxu0 0.0
    %5556 = vmatprep.subr.mxu0 0.0
    %5557 = vmatpush1.msra.mxu0 0.0
    %5558 = vmatprep.subr.mxu0 0.0
    %5559 = vmatpush1.msra.mxu0 0.0
    %5560 = vmatprep.subr.mxu0 0.0
    %5561 = vmatpush1.msra.mxu0 0.0
    %5562 = vmatprep.subr.mxu0 0.0
    %5563 = vmatpush1.msra.mxu0 0.0
    %5564 = vmatprep.subr.mxu0 0.0
    %5565 = vmatpush1.msra.mxu0 0.0
    %5566 = vmatprep.subr.mxu0 0.0
    %5567 = vmatpush1.msra.mxu0 0.0
    %5568 = vmatprep.subr.mxu0 0.0
    %5569 = vmatpush1.msra.mxu0 0.0
    %5570 = vmatprep.subr.mxu0 0.0
    %5571 = vmatpush1.msra.mxu0 0.0
    %5572 = vmatprep.subr.mxu0 0.0
    %5573 = vmatpush1.msra.mxu0 0.0
    %5574 = vmatprep.subr.mxu0 0.0
    %5575 = vmatpush1.msra.mxu0 0.0
    %5576 = vmatprep.subr.mxu0 0.0
    %5577 = vmatpush1.msra.mxu0 0.0
    %5578 = vmatprep.subr.mxu0 0.0
    %5579 = vmatpush1.msra.mxu0 0.0
    %5580 = vmatprep.subr.mxu0 0.0
    %5581 = vmatpush1.msra.mxu0 0.0
    %5582 = vmatprep.subr.mxu0 0.0
    %5583 = vmatpush1.msra.mxu0 0.0
    %5584 = vmatprep.subr.mxu0 0.0
    %5585 = vmatpush1.msra.mxu0 0.0
    %5586 = vmatprep.subr.mxu0 0.0
    %5587 = vmatpush1.msra.mxu0 0.0
    %5588 = vmatprep.subr.mxu0 0.0
    %5589 = vmatpush1.msra.mxu0 0.0
    %5590 = vmatprep.subr.mxu0 0.0
    %5591 = vmatpush1.msra.mxu0 0.0
    %5592 = vmatprep.mubr.f32.mxu0 0.0
    %5593 = vmatmul.mubr.f32.gmra.mrb[0].mxu0 %v5443
    %v5594 = vpop.f32.mrb[0].mxu0
    %v5595 = vadd.f32 0.0, %v5594
    %v5596 = vpop.f32.mrb[0].mxu0
    %v5597 = vadd.f32 0.0, %v5596
    %5598 = vdwg.mxu0
    %v5599 = vadd.f32 %v5404, %v5524
    %v5600 = vadd.f32 %v5405, %v5526
    %v5601 = vadd.f32 %v5406, %v5595
    %v5602 = vadd.f32 %v5407, %v5597
    %s5603 = scalar_lea.vmem [#allocation8], 100
    %v5604 = vld [vmem:[%s5603] sm:$0xf]
    %v5606 = vsel %vm251, %v5604, 0
    %v5609 = vsel %vm255, %v5420, 0
    %v5612 = vsel %vm255, %v5421, 0
    %v5615 = vsel %vm255, %v5422, 0
    %v5618 = vsel %vm255, %v5423, 0
    %5620 = vmatprep.subr.mxu0 %v5612
    %5621 = vmatpush1.msra.mxu0 %v5609
    %5622 = vmatprep.subr.mxu0 0.0
    %5623 = vmatpush1.msra.mxu0 0.0
    %5624 = vmatprep.subr.mxu0 0.0
    %5625 = vmatpush1.msra.mxu0 0.0
    %5626 = vmatprep.subr.mxu0 0.0
    %5627 = vmatpush1.msra.mxu0 0.0
    %5628 = vmatprep.subr.mxu0 0.0
    %5629 = vmatpush1.msra.mxu0 0.0
    %5630 = vmatprep.subr.mxu0 0.0
    %5631 = vmatpush1.msra.mxu0 0.0
    %5632 = vmatprep.subr.mxu0 0.0
    %5633 = vmatpush1.msra.mxu0 0.0
    %5634 = vmatprep.subr.mxu0 0.0
    %5635 = vmatpush1.msra.mxu0 0.0
    %5636 = vmatprep.subr.mxu0 0.0
    %5637 = vmatpush1.msra.mxu0 0.0
    %5638 = vmatprep.subr.mxu0 0.0
    %5639 = vmatpush1.msra.mxu0 0.0
    %5640 = vmatprep.subr.mxu0 0.0
    %5641 = vmatpush1.msra.mxu0 0.0
    %5642 = vmatprep.subr.mxu0 0.0
    %5643 = vmatpush1.msra.mxu0 0.0
    %5644 = vmatprep.subr.mxu0 0.0
    %5645 = vmatpush1.msra.mxu0 0.0
    %5646 = vmatprep.subr.mxu0 0.0
    %5647 = vmatpush1.msra.mxu0 0.0
    %5648 = vmatprep.subr.mxu0 0.0
    %5649 = vmatpush1.msra.mxu0 0.0
    %5650 = vmatprep.subr.mxu0 0.0
    %5651 = vmatpush1.msra.mxu0 0.0
    %5652 = vmatprep.subr.mxu0 0.0
    %5653 = vmatpush1.msra.mxu0 0.0
    %5654 = vmatprep.subr.mxu0 0.0
    %5655 = vmatpush1.msra.mxu0 0.0
    %5656 = vmatprep.subr.mxu0 0.0
    %5657 = vmatpush1.msra.mxu0 0.0
    %5658 = vmatprep.subr.mxu0 0.0
    %5659 = vmatpush1.msra.mxu0 0.0
    %5660 = vmatprep.subr.mxu0 0.0
    %5661 = vmatpush1.msra.mxu0 0.0
    %5662 = vmatprep.subr.mxu0 0.0
    %5663 = vmatpush1.msra.mxu0 0.0
    %5664 = vmatprep.subr.mxu0 0.0
    %5665 = vmatpush1.msra.mxu0 0.0
    %5666 = vmatprep.subr.mxu0 0.0
    %5667 = vmatpush1.msra.mxu0 0.0
    %5668 = vmatprep.subr.mxu0 0.0
    %5669 = vmatpush1.msra.mxu0 0.0
    %5670 = vmatprep.subr.mxu0 0.0
    %5671 = vmatpush1.msra.mxu0 0.0
    %5672 = vmatprep.subr.mxu0 0.0
    %5673 = vmatpush1.msra.mxu0 0.0
    %5674 = vmatprep.subr.mxu0 0.0
    %5675 = vmatpush1.msra.mxu0 0.0
    %5676 = vmatprep.subr.mxu0 0.0
    %5677 = vmatpush1.msra.mxu0 0.0
    %5678 = vmatprep.subr.mxu0 0.0
    %5679 = vmatpush1.msra.mxu0 0.0
    %5680 = vmatprep.subr.mxu0 0.0
    %5681 = vmatpush1.msra.mxu0 0.0
    %5682 = vmatprep.subr.mxu0 0.0
    %5683 = vmatpush1.msra.mxu0 0.0
    %5684 = vmatprep.mubr.f32.mxu0 0.0
    %5685 = vmatmul.mubr.f32.gmra.mrb[0].mxu0 %v5606
    %v5686 = vpop.f32.mrb[0].mxu0
    %v5687 = vadd.f32 0.0, %v5686
    %v5688 = vpop.f32.mrb[0].mxu0
    %v5689 = vadd.f32 0.0, %v5688
    %5690 = vdwg.mxu0
    %5691 = vmatprep.subr.mxu0 %v5618
    %5692 = vmatpush1.msra.mxu0 %v5615
    %5693 = vmatprep.subr.mxu0 0.0
    %5694 = vmatpush1.msra.mxu0 0.0
    %5695 = vmatprep.subr.mxu0 0.0
    %5696 = vmatpush1.msra.mxu0 0.0
    %5697 = vmatprep.subr.mxu0 0.0
    %5698 = vmatpush1.msra.mxu0 0.0
    %5699 = vmatprep.subr.mxu0 0.0
    %5700 = vmatpush1.msra.mxu0 0.0
    %5701 = vmatprep.subr.mxu0 0.0
    %5702 = vmatpush1.msra.mxu0 0.0
    %5703 = vmatprep.subr.mxu0 0.0
    %5704 = vmatpush1.msra.mxu0 0.0
    %5705 = vmatprep.subr.mxu0 0.0
    %5706 = vmatpush1.msra.mxu0 0.0
    %5707 = vmatprep.subr.mxu0 0.0
    %5708 = vmatpush1.msra.mxu0 0.0
    %5709 = vmatprep.subr.mxu0 0.0
    %5710 = vmatpush1.msra.mxu0 0.0
    %5711 = vmatprep.subr.mxu0 0.0
    %5712 = vmatpush1.msra.mxu0 0.0
    %5713 = vmatprep.subr.mxu0 0.0
    %5714 = vmatpush1.msra.mxu0 0.0
    %5715 = vmatprep.subr.mxu0 0.0
    %5716 = vmatpush1.msra.mxu0 0.0
    %5717 = vmatprep.subr.mxu0 0.0
    %5718 = vmatpush1.msra.mxu0 0.0
    %5719 = vmatprep.subr.mxu0 0.0
    %5720 = vmatpush1.msra.mxu0 0.0
    %5721 = vmatprep.subr.mxu0 0.0
    %5722 = vmatpush1.msra.mxu0 0.0
    %5723 = vmatprep.subr.mxu0 0.0
    %5724 = vmatpush1.msra.mxu0 0.0
    %5725 = vmatprep.subr.mxu0 0.0
    %5726 = vmatpush1.msra.mxu0 0.0
    %5727 = vmatprep.subr.mxu0 0.0
    %5728 = vmatpush1.msra.mxu0 0.0
    %5729 = vmatprep.subr.mxu0 0.0
    %5730 = vmatpush1.msra.mxu0 0.0
    %5731 = vmatprep.subr.mxu0 0.0
    %5732 = vmatpush1.msra.mxu0 0.0
    %5733 = vmatprep.subr.mxu0 0.0
    %5734 = vmatpush1.msra.mxu0 0.0
    %5735 = vmatprep.subr.mxu0 0.0
    %5736 = vmatpush1.msra.mxu0 0.0
    %5737 = vmatprep.subr.mxu0 0.0
    %5738 = vmatpush1.msra.mxu0 0.0
    %5739 = vmatprep.subr.mxu0 0.0
    %5740 = vmatpush1.msra.mxu0 0.0
    %5741 = vmatprep.subr.mxu0 0.0
    %5742 = vmatpush1.msra.mxu0 0.0
    %5743 = vmatprep.subr.mxu0 0.0
    %5744 = vmatpush1.msra.mxu0 0.0
    %5745 = vmatprep.subr.mxu0 0.0
    %5746 = vmatpush1.msra.mxu0 0.0
    %5747 = vmatprep.subr.mxu0 0.0
    %5748 = vmatpush1.msra.mxu0 0.0
    %5749 = vmatprep.subr.mxu0 0.0
    %5750 = vmatpush1.msra.mxu0 0.0
    %5751 = vmatprep.subr.mxu0 0.0
    %5752 = vmatpush1.msra.mxu0 0.0
    %5753 = vmatprep.subr.mxu0 0.0
    %5754 = vmatpush1.msra.mxu0 0.0
    %5755 = vmatprep.mubr.f32.mxu0 0.0
    %5756 = vmatmul.mubr.f32.gmra.mrb[0].mxu0 %v5606
    %v5757 = vpop.f32.mrb[0].mxu0
    %v5758 = vadd.f32 0.0, %v5757
    %v5759 = vpop.f32.mrb[0].mxu0
    %v5760 = vadd.f32 0.0, %v5759
    %5761 = vdwg.mxu0
    %v5762 = vadd.f32 %v5599, %v5687
    %v5763 = vadd.f32 %v5600, %v5689
    %v5764 = vadd.f32 %v5601, %v5758
    %v5765 = vadd.f32 %v5602, %v5760
    %5766 = vrot.lane.b32.xlu0 %v5420, 127
    %v5767 = vpop.permute.xlu0 %5766
    %5768 = vrot.lane.b32.xlu0 %v5421, 127
    %v5769 = vpop.permute.xlu0 %5768
    %5770 = vrot.lane.b32.xlu0 %v5422, 127
    %v5771 = vpop.permute.xlu0 %5770
    %5772 = vrot.lane.b32.xlu0 %v5423, 127
    %v5773 = vpop.permute.xlu0 %5772
    %v5774 = vsel %vm1308, %v5771, %v5773
    %v5775 = vsel %vm1308, %v5769, %v5771
    %v5776 = vsel %vm1308, %v5767, %v5769
    %v5777 = vsel %vm1308, %v5773, %v5767
    %v5778 = vsel %vm1317, %v5776, 0.0
    %v5779 = vsel %vm1318, %v5775, 0.0
    %v5780 = vsel %vm1319, %v5774, 0.0
    %v5781 = vsel %vm1320, %v5777, 0.0
    %s5782 = scalar_lea.vmem [#allocation8], 104
    %v5783 = vld [vmem:[%s5782] sm:$0xf]
    %v5785 = vsel %vm251, %v5783, 0
    %v5788 = vsel %vm255, %v5778, 0
    %v5791 = vsel %vm255, %v5779, 0
    %v5794 = vsel %vm255, %v5780, 0
    %v5797 = vsel %vm255, %v5781, 0
    %5799 = vmatprep.subr.mxu0 %v5791
    %5800 = vmatpush1.msra.mxu0 %v5788
    %5801 = vmatprep.subr.mxu0 0.0
    %5802 = vmatpush1.msra.mxu0 0.0
    %5803 = vmatprep.subr.mxu0 0.0
    %5804 = vmatpush1.msra.mxu0 0.0
    %5805 = vmatprep.subr.mxu0 0.0
    %5806 = vmatpush1.msra.mxu0 0.0
    %5807 = vmatprep.subr.mxu0 0.0
    %5808 = vmatpush1.msra.mxu0 0.0
    %5809 = vmatprep.subr.mxu0 0.0
    %5810 = vmatpush1.msra.mxu0 0.0
    %5811 = vmatprep.subr.mxu0 0.0
    %5812 = vmatpush1.msra.mxu0 0.0
    %5813 = vmatprep.subr.mxu0 0.0
    %5814 = vmatpush1.msra.mxu0 0.0
    %5815 = vmatprep.subr.mxu0 0.0
    %5816 = vmatpush1.msra.mxu0 0.0
    %5817 = vmatprep.subr.mxu0 0.0
    %5818 = vmatpush1.msra.mxu0 0.0
    %5819 = vmatprep.subr.mxu0 0.0
    %5820 = vmatpush1.msra.mxu0 0.0
    %5821 = vmatprep.subr.mxu0 0.0
    %5822 = vmatpush1.msra.mxu0 0.0
    %5823 = vmatprep.subr.mxu0 0.0
    %5824 = vmatpush1.msra.mxu0 0.0
    %5825 = vmatprep.subr.mxu0 0.0
    %5826 = vmatpush1.msra.mxu0 0.0
    %5827 = vmatprep.subr.mxu0 0.0
    %5828 = vmatpush1.msra.mxu0 0.0
    %5829 = vmatprep.subr.mxu0 0.0
    %5830 = vmatpush1.msra.mxu0 0.0
    %5831 = vmatprep.subr.mxu0 0.0
    %5832 = vmatpush1.msra.mxu0 0.0
    %5833 = vmatprep.subr.mxu0 0.0
    %5834 = vmatpush1.msra.mxu0 0.0
    %5835 = vmatprep.subr.mxu0 0.0
    %5836 = vmatpush1.msra.mxu0 0.0
    %5837 = vmatprep.subr.mxu0 0.0
    %5838 = vmatpush1.msra.mxu0 0.0
    %5839 = vmatprep.subr.mxu0 0.0
    %5840 = vmatpush1.msra.mxu0 0.0
    %5841 = vmatprep.subr.mxu0 0.0
    %5842 = vmatpush1.msra.mxu0 0.0
    %5843 = vmatprep.subr.mxu0 0.0
    %5844 = vmatpush1.msra.mxu0 0.0
    %5845 = vmatprep.subr.mxu0 0.0
    %5846 = vmatpush1.msra.mxu0 0.0
    %5847 = vmatprep.subr.mxu0 0.0
    %5848 = vmatpush1.msra.mxu0 0.0
    %5849 = vmatprep.subr.mxu0 0.0
    %5850 = vmatpush1.msra.mxu0 0.0
    %5851 = vmatprep.subr.mxu0 0.0
    %5852 = vmatpush1.msra.mxu0 0.0
    %5853 = vmatprep.subr.mxu0 0.0
    %5854 = vmatpush1.msra.mxu0 0.0
    %5855 = vmatprep.subr.mxu0 0.0
    %5856 = vmatpush1.msra.mxu0 0.0
    %5857 = vmatprep.subr.mxu0 0.0
    %5858 = vmatpush1.msra.mxu0 0.0
    %5859 = vmatprep.subr.mxu0 0.0
    %5860 = vmatpush1.msra.mxu0 0.0
    %5861 = vmatprep.subr.mxu0 0.0
    %5862 = vmatpush1.msra.mxu0 0.0
    %5863 = vmatprep.mubr.f32.mxu0 0.0
    %5864 = vmatmul.mubr.f32.gmra.mrb[0].mxu0 %v5785
    %v5865 = vpop.f32.mrb[0].mxu0
    %v5866 = vadd.f32 0.0, %v5865
    %v5867 = vpop.f32.mrb[0].mxu0
    %v5868 = vadd.f32 0.0, %v5867
    %5869 = vdwg.mxu0
    %5870 = vmatprep.subr.mxu0 %v5797
    %5871 = vmatpush1.msra.mxu0 %v5794
    %5872 = vmatprep.subr.mxu0 0.0
    %5873 = vmatpush1.msra.mxu0 0.0
    %5874 = vmatprep.subr.mxu0 0.0
    %5875 = vmatpush1.msra.mxu0 0.0
    %5876 = vmatprep.subr.mxu0 0.0
    %5877 = vmatpush1.msra.mxu0 0.0
    %5878 = vmatprep.subr.mxu0 0.0
    %5879 = vmatpush1.msra.mxu0 0.0
    %5880 = vmatprep.subr.mxu0 0.0
    %5881 = vmatpush1.msra.mxu0 0.0
    %5882 = vmatprep.subr.mxu0 0.0
    %5883 = vmatpush1.msra.mxu0 0.0
    %5884 = vmatprep.subr.mxu0 0.0
    %5885 = vmatpush1.msra.mxu0 0.0
    %5886 = vmatprep.subr.mxu0 0.0
    %5887 = vmatpush1.msra.mxu0 0.0
    %5888 = vmatprep.subr.mxu0 0.0
    %5889 = vmatpush1.msra.mxu0 0.0
    %5890 = vmatprep.subr.mxu0 0.0
    %5891 = vmatpush1.msra.mxu0 0.0
    %5892 = vmatprep.subr.mxu0 0.0
    %5893 = vmatpush1.msra.mxu0 0.0
    %5894 = vmatprep.subr.mxu0 0.0
    %5895 = vmatpush1.msra.mxu0 0.0
    %5896 = vmatprep.subr.mxu0 0.0
    %5897 = vmatpush1.msra.mxu0 0.0
    %5898 = vmatprep.subr.mxu0 0.0
    %5899 = vmatpush1.msra.mxu0 0.0
    %5900 = vmatprep.subr.mxu0 0.0
    %5901 = vmatpush1.msra.mxu0 0.0
    %5902 = vmatprep.subr.mxu0 0.0
    %5903 = vmatpush1.msra.mxu0 0.0
    %5904 = vmatprep.subr.mxu0 0.0
    %5905 = vmatpush1.msra.mxu0 0.0
    %5906 = vmatprep.subr.mxu0 0.0
    %5907 = vmatpush1.msra.mxu0 0.0
    %5908 = vmatprep.subr.mxu0 0.0
    %5909 = vmatpush1.msra.mxu0 0.0
    %5910 = vmatprep.subr.mxu0 0.0
    %5911 = vmatpush1.msra.mxu0 0.0
    %5912 = vmatprep.subr.mxu0 0.0
    %5913 = vmatpush1.msra.mxu0 0.0
    %5914 = vmatprep.subr.mxu0 0.0
    %5915 = vmatpush1.msra.mxu0 0.0
    %5916 = vmatprep.subr.mxu0 0.0
    %5917 = vmatpush1.msra.mxu0 0.0
    %5918 = vmatprep.subr.mxu0 0.0
    %5919 = vmatpush1.msra.mxu0 0.0
    %5920 = vmatprep.subr.mxu0 0.0
    %5921 = vmatpush1.msra.mxu0 0.0
    %5922 = vmatprep.subr.mxu0 0.0
    %5923 = vmatpush1.msra.mxu0 0.0
    %5924 = vmatprep.subr.mxu0 0.0
    %5925 = vmatpush1.msra.mxu0 0.0
    %5926 = vmatprep.subr.mxu0 0.0
    %5927 = vmatpush1.msra.mxu0 0.0
    %5928 = vmatprep.subr.mxu0 0.0
    %5929 = vmatpush1.msra.mxu0 0.0
    %5930 = vmatprep.subr.mxu0 0.0
    %5931 = vmatpush1.msra.mxu0 0.0
    %5932 = vmatprep.subr.mxu0 0.0
    %5933 = vmatpush1.msra.mxu0 0.0
    %5934 = vmatprep.mubr.f32.mxu0 0.0
    %5935 = vmatmul.mubr.f32.gmra.mrb[0].mxu0 %v5785
    %v5936 = vpop.f32.mrb[0].mxu0
    %v5937 = vadd.f32 0.0, %v5936
    %v5938 = vpop.f32.mrb[0].mxu0
    %v5939 = vadd.f32 0.0, %v5938
    %5940 = vdwg.mxu0
    %v5941 = vadd.f32 %v5762, %v5866
    %v5942 = vadd.f32 %v5763, %v5868
    %v5943 = vadd.f32 %v5764, %v5937
    %v5944 = vadd.f32 %v5765, %v5939
    %s5945 = scalar_lea.vmem [#allocation10], 8
    %v5946 = vld [vmem:[%s5945] sm:$0xf]
    %5948 = vset.pattern.permute.xlu0 0
    %5949 = vperm.xlu0 %5948, %v5946
    %v5950 = vpop.permute.xlu0 %5949
    %v5952 = vadd.f32 %v5941, %v5950
    %v5953 = vadd.f32 %v5942, %v5950
    %v5954 = vadd.f32 %v5943, %v5950
    %v5955 = vadd.f32 %v5944, %v5950
    %v5956 = vxor.u32 %v5952, 2147483648
    %v5957 = vxor.u32 %v5953, 2147483648
    %v5958 = vxor.u32 %v5954, 2147483648
    %v5959 = vxor.u32 %v5955, 2147483648
    %v5960 = vmul.f32 %v5956, 1.442695
    %v5961 = vpow.pop %v5960
    %v5962 = vmul.f32 %v5957, 1.442695
    %v5963 = vpow.pop %v5962
    %v5964 = vmul.f32 %v5958, 1.442695
    %v5965 = vpow.pop %v5964
    %v5966 = vmul.f32 %v5959, 1.442695
    %v5967 = vpow.pop %v5966
    %v5968 = vadd.f32 %v5961, 1.0
    %v5969 = vadd.f32 %v5963, 1.0
    %v5970 = vadd.f32 %v5965, 1.0
    %v5971 = vadd.f32 %v5967, 1.0
    %v5972 = vrcp.pop %v5968
    %v5973 = vmul.f32 1.0, %v5972
    %v5974 = vrcp.pop %v5969
    %v5975 = vmul.f32 1.0, %v5974
    %v5976 = vrcp.pop %v5970
    %v5977 = vmul.f32 1.0, %v5976
    %v5978 = vrcp.pop %v5971
    %v5979 = vmul.f32 1.0, %v5978
    %v5980 = vmul.f32 %v5952, %v5973
    %v5981 = vmul.f32 %v5953, %v5975
    %v5982 = vmul.f32 %v5954, %v5977
    %v5983 = vmul.f32 %v5955, %v5979
    %5984 = vrot.lane.b32.xlu0 %v5980, 16
    %v5985 = vpop.permute.xlu0 %5984
    %5986 = vrot.lane.b32.xlu0 %v5981, 16
    %v5987 = vpop.permute.xlu0 %5986
    %5988 = vrot.lane.b32.xlu0 %v5982, 16
    %v5989 = vpop.permute.xlu0 %5988
    %5990 = vrot.lane.b32.xlu0 %v5983, 16
    %v5991 = vpop.permute.xlu0 %5990
    %v5992 = vsel %vm941, %v5989, %v5991
    %v5993 = vsel %vm941, %v5987, %v5989
    %v5994 = vsel %vm941, %v5985, %v5987
    %v5995 = vsel %vm941, %v5991, %v5985
    %v5996 = vsel %vm950, %v5995, 0.0
    %v5997 = vsel %vm951, %v5994, 0.0
    %v5998 = vsel %vm952, %v5993, 0.0
    %v5999 = vsel %vm953, %v5992, 0.0
    %6000 = vrot.lane.b32.xlu0 %v5996, 1
    %v6001 = vpop.permute.xlu0 %6000
    %6002 = vrot.lane.b32.xlu0 %v5997, 1
    %v6003 = vpop.permute.xlu0 %6002
    %6004 = vrot.lane.b32.xlu0 %v5998, 1
    %v6005 = vpop.permute.xlu0 %6004
    %6006 = vrot.lane.b32.xlu0 %v5999, 1
    %v6007 = vpop.permute.xlu0 %6006
    %v6008 = vsel %vm966, %v6005, %v6007
    %v6009 = vsel %vm966, %v6003, %v6005
    %v6010 = vsel %vm966, %v6001, %v6003
    %v6011 = vsel %vm966, %v6007, %v6001
    %v6012 = vsel %vm975, %v6011, 0.0
    %v6013 = vsel %vm976, %v6010, 0.0
    %v6014 = vsel %vm977, %v6009, 0.0
    %v6015 = vsel %vm978, %v6008, 0.0
    %s6016 = scalar_lea.vmem [#allocation8], 108
    %v6017 = vld [vmem:[%s6016] sm:$0xf]
    %s6018 = scalar_lea.vmem [#allocation8], 112
    %v6019 = vld [vmem:[%s6018] sm:$0xf]
    %v6021 = vsel %vm251, %v6019, 0
    %v6024 = vsel %vm255, %v5996, 0
    %v6027 = vsel %vm255, %v5997, 0
    %v6030 = vsel %vm255, %v5998, 0
    %v6033 = vsel %vm255, %v5999, 0
    %6035 = vmatprep.subr.mxu0 %v6027
    %6036 = vmatpush1.msra.mxu0 %v6024
    %6037 = vmatprep.subr.mxu0 0.0
    %6038 = vmatpush1.msra.mxu0 0.0
    %6039 = vmatprep.subr.mxu0 0.0
    %6040 = vmatpush1.msra.mxu0 0.0
    %6041 = vmatprep.subr.mxu0 0.0
    %6042 = vmatpush1.msra.mxu0 0.0
    %6043 = vmatprep.subr.mxu0 0.0
    %6044 = vmatpush1.msra.mxu0 0.0
    %6045 = vmatprep.subr.mxu0 0.0
    %6046 = vmatpush1.msra.mxu0 0.0
    %6047 = vmatprep.subr.mxu0 0.0
    %6048 = vmatpush1.msra.mxu0 0.0
    %6049 = vmatprep.subr.mxu0 0.0
    %6050 = vmatpush1.msra.mxu0 0.0
    %6051 = vmatprep.subr.mxu0 0.0
    %6052 = vmatpush1.msra.mxu0 0.0
    %6053 = vmatprep.subr.mxu0 0.0
    %6054 = vmatpush1.msra.mxu0 0.0
    %6055 = vmatprep.subr.mxu0 0.0
    %6056 = vmatpush1.msra.mxu0 0.0
    %6057 = vmatprep.subr.mxu0 0.0
    %6058 = vmatpush1.msra.mxu0 0.0
    %6059 = vmatprep.subr.mxu0 0.0
    %6060 = vmatpush1.msra.mxu0 0.0
    %6061 = vmatprep.subr.mxu0 0.0
    %6062 = vmatpush1.msra.mxu0 0.0
    %6063 = vmatprep.subr.mxu0 0.0
    %6064 = vmatpush1.msra.mxu0 0.0
    %6065 = vmatprep.subr.mxu0 0.0
    %6066 = vmatpush1.msra.mxu0 0.0
    %6067 = vmatprep.subr.mxu0 0.0
    %6068 = vmatpush1.msra.mxu0 0.0
    %6069 = vmatprep.subr.mxu0 0.0
    %6070 = vmatpush1.msra.mxu0 0.0
    %6071 = vmatprep.subr.mxu0 0.0
    %6072 = vmatpush1.msra.mxu0 0.0
    %6073 = vmatprep.subr.mxu0 0.0
    %6074 = vmatpush1.msra.mxu0 0.0
    %6075 = vmatprep.subr.mxu0 0.0
    %6076 = vmatpush1.msra.mxu0 0.0
    %6077 = vmatprep.subr.mxu0 0.0
    %6078 = vmatpush1.msra.mxu0 0.0
    %6079 = vmatprep.subr.mxu0 0.0
    %6080 = vmatpush1.msra.mxu0 0.0
    %6081 = vmatprep.subr.mxu0 0.0
    %6082 = vmatpush1.msra.mxu0 0.0
    %6083 = vmatprep.subr.mxu0 0.0
    %6084 = vmatpush1.msra.mxu0 0.0
    %6085 = vmatprep.subr.mxu0 0.0
    %6086 = vmatpush1.msra.mxu0 0.0
    %6087 = vmatprep.subr.mxu0 0.0
    %6088 = vmatpush1.msra.mxu0 0.0
    %6089 = vmatprep.subr.mxu0 0.0
    %6090 = vmatpush1.msra.mxu0 0.0
    %6091 = vmatprep.subr.mxu0 0.0
    %6092 = vmatpush1.msra.mxu0 0.0
    %6093 = vmatprep.subr.mxu0 0.0
    %6094 = vmatpush1.msra.mxu0 0.0
    %6095 = vmatprep.subr.mxu0 0.0
    %6096 = vmatpush1.msra.mxu0 0.0
    %6097 = vmatprep.subr.mxu0 0.0
    %6098 = vmatpush1.msra.mxu0 0.0
    %6099 = vmatprep.mubr.f32.mxu0 0.0
    %6100 = vmatmul.mubr.f32.gmra.mrb[0].mxu0 %v6021
    %v6101 = vpop.f32.mrb[0].mxu0
    %v6102 = vadd.f32 0.0, %v6101
    %v6103 = vpop.f32.mrb[0].mxu0
    %v6104 = vadd.f32 0.0, %v6103
    %6105 = vdwg.mxu0
    %6106 = vmatprep.subr.mxu0 %v6033
    %6107 = vmatpush1.msra.mxu0 %v6030
    %6108 = vmatprep.subr.mxu0 0.0
    %6109 = vmatpush1.msra.mxu0 0.0
    %6110 = vmatprep.subr.mxu0 0.0
    %6111 = vmatpush1.msra.mxu0 0.0
    %6112 = vmatprep.subr.mxu0 0.0
    %6113 = vmatpush1.msra.mxu0 0.0
    %6114 = vmatprep.subr.mxu0 0.0
    %6115 = vmatpush1.msra.mxu0 0.0
    %6116 = vmatprep.subr.mxu0 0.0
    %6117 = vmatpush1.msra.mxu0 0.0
    %6118 = vmatprep.subr.mxu0 0.0
    %6119 = vmatpush1.msra.mxu0 0.0
    %6120 = vmatprep.subr.mxu0 0.0
    %6121 = vmatpush1.msra.mxu0 0.0
    %6122 = vmatprep.subr.mxu0 0.0
    %6123 = vmatpush1.msra.mxu0 0.0
    %6124 = vmatprep.subr.mxu0 0.0
    %6125 = vmatpush1.msra.mxu0 0.0
    %6126 = vmatprep.subr.mxu0 0.0
    %6127 = vmatpush1.msra.mxu0 0.0
    %6128 = vmatprep.subr.mxu0 0.0
    %6129 = vmatpush1.msra.mxu0 0.0
    %6130 = vmatprep.subr.mxu0 0.0
    %6131 = vmatpush1.msra.mxu0 0.0
    %6132 = vmatprep.subr.mxu0 0.0
    %6133 = vmatpush1.msra.mxu0 0.0
    %6134 = vmatprep.subr.mxu0 0.0
    %6135 = vmatpush1.msra.mxu0 0.0
    %6136 = vmatprep.subr.mxu0 0.0
    %6137 = vmatpush1.msra.mxu0 0.0
    %6138 = vmatprep.subr.mxu0 0.0
    %6139 = vmatpush1.msra.mxu0 0.0
    %6140 = vmatprep.subr.mxu0 0.0
    %6141 = vmatpush1.msra.mxu0 0.0
    %6142 = vmatprep.subr.mxu0 0.0
    %6143 = vmatpush1.msra.mxu0 0.0
    %6144 = vmatprep.subr.mxu0 0.0
    %6145 = vmatpush1.msra.mxu0 0.0
    %6146 = vmatprep.subr.mxu0 0.0
    %6147 = vmatpush1.msra.mxu0 0.0
    %6148 = vmatprep.subr.mxu0 0.0
    %6149 = vmatpush1.msra.mxu0 0.0
    %6150 = vmatprep.subr.mxu0 0.0
    %6151 = vmatpush1.msra.mxu0 0.0
    %6152 = vmatprep.subr.mxu0 0.0
    %6153 = vmatpush1.msra.mxu0 0.0
    %6154 = vmatprep.subr.mxu0 0.0
    %6155 = vmatpush1.msra.mxu0 0.0
    %6156 = vmatprep.subr.mxu0 0.0
    %6157 = vmatpush1.msra.mxu0 0.0
    %6158 = vmatprep.subr.mxu0 0.0
    %6159 = vmatpush1.msra.mxu0 0.0
    %6160 = vmatprep.subr.mxu0 0.0
    %6161 = vmatpush1.msra.mxu0 0.0
    %6162 = vmatprep.subr.mxu0 0.0
    %6163 = vmatpush1.msra.mxu0 0.0
    %6164 = vmatprep.subr.mxu0 0.0
    %6165 = vmatpush1.msra.mxu0 0.0
    %6166 = vmatprep.subr.mxu0 0.0
    %6167 = vmatpush1.msra.mxu0 0.0
    %6168 = vmatprep.subr.mxu0 0.0
    %6169 = vmatpush1.msra.mxu0 0.0
    %6170 = vmatprep.mubr.f32.mxu0 0.0
    %6171 = vmatmul.mubr.f32.gmra.mrb[0].mxu0 %v6021
    %v6172 = vpop.f32.mrb[0].mxu0
    %v6173 = vadd.f32 0.0, %v6172
    %v6174 = vpop.f32.mrb[0].mxu0
    %v6175 = vadd.f32 0.0, %v6174
    %6176 = vdwg.mxu0
    %v6178 = vsel %vm251, %v6017, 0
    %v6181 = vsel %vm255, %v6012, 0
    %v6184 = vsel %vm255, %v6013, 0
    %v6187 = vsel %vm255, %v6014, 0
    %v6190 = vsel %vm255, %v6015, 0
    %6192 = vmatprep.subr.mxu0 %v6184
    %6193 = vmatpush1.msra.mxu0 %v6181
    %6194 = vmatprep.subr.mxu0 0.0
    %6195 = vmatpush1.msra.mxu0 0.0
    %6196 = vmatprep.subr.mxu0 0.0
    %6197 = vmatpush1.msra.mxu0 0.0
    %6198 = vmatprep.subr.mxu0 0.0
    %6199 = vmatpush1.msra.mxu0 0.0
    %6200 = vmatprep.subr.mxu0 0.0
    %6201 = vmatpush1.msra.mxu0 0.0
    %6202 = vmatprep.subr.mxu0 0.0
    %6203 = vmatpush1.msra.mxu0 0.0
    %6204 = vmatprep.subr.mxu0 0.0
    %6205 = vmatpush1.msra.mxu0 0.0
    %6206 = vmatprep.subr.mxu0 0.0
    %6207 = vmatpush1.msra.mxu0 0.0
    %6208 = vmatprep.subr.mxu0 0.0
    %6209 = vmatpush1.msra.mxu0 0.0
    %6210 = vmatprep.subr.mxu0 0.0
    %6211 = vmatpush1.msra.mxu0 0.0
    %6212 = vmatprep.subr.mxu0 0.0
    %6213 = vmatpush1.msra.mxu0 0.0
    %6214 = vmatprep.subr.mxu0 0.0
    %6215 = vmatpush1.msra.mxu0 0.0
    %6216 = vmatprep.subr.mxu0 0.0
    %6217 = vmatpush1.msra.mxu0 0.0
    %6218 = vmatprep.subr.mxu0 0.0
    %6219 = vmatpush1.msra.mxu0 0.0
    %6220 = vmatprep.subr.mxu0 0.0
    %6221 = vmatpush1.msra.mxu0 0.0
    %6222 = vmatprep.subr.mxu0 0.0
    %6223 = vmatpush1.msra.mxu0 0.0
    %6224 = vmatprep.subr.mxu0 0.0
    %6225 = vmatpush1.msra.mxu0 0.0
    %6226 = vmatprep.subr.mxu0 0.0
    %6227 = vmatpush1.msra.mxu0 0.0
    %6228 = vmatprep.subr.mxu0 0.0
    %6229 = vmatpush1.msra.mxu0 0.0
    %6230 = vmatprep.subr.mxu0 0.0
    %6231 = vmatpush1.msra.mxu0 0.0
    %6232 = vmatprep.subr.mxu0 0.0
    %6233 = vmatpush1.msra.mxu0 0.0
    %6234 = vmatprep.subr.mxu0 0.0
    %6235 = vmatpush1.msra.mxu0 0.0
    %6236 = vmatprep.subr.mxu0 0.0
    %6237 = vmatpush1.msra.mxu0 0.0
    %6238 = vmatprep.subr.mxu0 0.0
    %6239 = vmatpush1.msra.mxu0 0.0
    %6240 = vmatprep.subr.mxu0 0.0
    %6241 = vmatpush1.msra.mxu0 0.0
    %6242 = vmatprep.subr.mxu0 0.0
    %6243 = vmatpush1.msra.mxu0 0.0
    %6244 = vmatprep.subr.mxu0 0.0
    %6245 = vmatpush1.msra.mxu0 0.0
    %6246 = vmatprep.subr.mxu0 0.0
    %6247 = vmatpush1.msra.mxu0 0.0
    %6248 = vmatprep.subr.mxu0 0.0
    %6249 = vmatpush1.msra.mxu0 0.0
    %6250 = vmatprep.subr.mxu0 0.0
    %6251 = vmatpush1.msra.mxu0 0.0
    %6252 = vmatprep.subr.mxu0 0.0
    %6253 = vmatpush1.msra.mxu0 0.0
    %6254 = vmatprep.subr.mxu0 0.0
    %6255 = vmatpush1.msra.mxu0 0.0
    %6256 = vmatprep.mubr.f32.mxu0 0.0
    %6257 = vmatmul.mubr.f32.gmra.mrb[0].mxu0 %v6178
    %v6258 = vpop.f32.mrb[0].mxu0
    %v6259 = vadd.f32 %v6102, %v6258
    %v6260 = vpop.f32.mrb[0].mxu0
    %v6261 = vadd.f32 %v6104, %v6260
    %6262 = vdwg.mxu0
    %6263 = vmatprep.subr.mxu0 %v6190
    %6264 = vmatpush1.msra.mxu0 %v6187
    %6265 = vmatprep.subr.mxu0 0.0
    %6266 = vmatpush1.msra.mxu0 0.0
    %6267 = vmatprep.subr.mxu0 0.0
    %6268 = vmatpush1.msra.mxu0 0.0
    %6269 = vmatprep.subr.mxu0 0.0
    %6270 = vmatpush1.msra.mxu0 0.0
    %6271 = vmatprep.subr.mxu0 0.0
    %6272 = vmatpush1.msra.mxu0 0.0
    %6273 = vmatprep.subr.mxu0 0.0
    %6274 = vmatpush1.msra.mxu0 0.0
    %6275 = vmatprep.subr.mxu0 0.0
    %6276 = vmatpush1.msra.mxu0 0.0
    %6277 = vmatprep.subr.mxu0 0.0
    %6278 = vmatpush1.msra.mxu0 0.0
    %6279 = vmatprep.subr.mxu0 0.0
    %6280 = vmatpush1.msra.mxu0 0.0
    %6281 = vmatprep.subr.mxu0 0.0
    %6282 = vmatpush1.msra.mxu0 0.0
    %6283 = vmatprep.subr.mxu0 0.0
    %6284 = vmatpush1.msra.mxu0 0.0
    %6285 = vmatprep.subr.mxu0 0.0
    %6286 = vmatpush1.msra.mxu0 0.0
    %6287 = vmatprep.subr.mxu0 0.0
    %6288 = vmatpush1.msra.mxu0 0.0
    %6289 = vmatprep.subr.mxu0 0.0
    %6290 = vmatpush1.msra.mxu0 0.0
    %6291 = vmatprep.subr.mxu0 0.0
    %6292 = vmatpush1.msra.mxu0 0.0
    %6293 = vmatprep.subr.mxu0 0.0
    %6294 = vmatpush1.msra.mxu0 0.0
    %6295 = vmatprep.subr.mxu0 0.0
    %6296 = vmatpush1.msra.mxu0 0.0
    %6297 = vmatprep.subr.mxu0 0.0
    %6298 = vmatpush1.msra.mxu0 0.0
    %6299 = vmatprep.subr.mxu0 0.0
    %6300 = vmatpush1.msra.mxu0 0.0
    %6301 = vmatprep.subr.mxu0 0.0
    %6302 = vmatpush1.msra.mxu0 0.0
    %6303 = vmatprep.subr.mxu0 0.0
    %6304 = vmatpush1.msra.mxu0 0.0
    %6305 = vmatprep.subr.mxu0 0.0
    %6306 = vmatpush1.msra.mxu0 0.0
    %6307 = vmatprep.subr.mxu0 0.0
    %6308 = vmatpush1.msra.mxu0 0.0
    %6309 = vmatprep.subr.mxu0 0.0
    %6310 = vmatpush1.msra.mxu0 0.0
    %6311 = vmatprep.subr.mxu0 0.0
    %6312 = vmatpush1.msra.mxu0 0.0
    %6313 = vmatprep.subr.mxu0 0.0
    %6314 = vmatpush1.msra.mxu0 0.0
    %6315 = vmatprep.subr.mxu0 0.0
    %6316 = vmatpush1.msra.mxu0 0.0
    %6317 = vmatprep.subr.mxu0 0.0
    %6318 = vmatpush1.msra.mxu0 0.0
    %6319 = vmatprep.subr.mxu0 0.0
    %6320 = vmatpush1.msra.mxu0 0.0
    %6321 = vmatprep.subr.mxu0 0.0
    %6322 = vmatpush1.msra.mxu0 0.0
    %6323 = vmatprep.subr.mxu0 0.0
    %6324 = vmatpush1.msra.mxu0 0.0
    %6325 = vmatprep.subr.mxu0 0.0
    %6326 = vmatpush1.msra.mxu0 0.0
    %6327 = vmatprep.mubr.f32.mxu0 0.0
    %6328 = vmatmul.mubr.f32.gmra.mrb[0].mxu0 %v6178
    %v6329 = vpop.f32.mrb[0].mxu0
    %v6330 = vadd.f32 %v6173, %v6329
    %v6331 = vpop.f32.mrb[0].mxu0
    %v6332 = vadd.f32 %v6175, %v6331
    %6333 = vdwg.mxu0
    %6334 = vrot.lane.b32.xlu0 %v5996, 127
    %v6335 = vpop.permute.xlu0 %6334
    %6336 = vrot.lane.b32.xlu0 %v5997, 127
    %v6337 = vpop.permute.xlu0 %6336
    %6338 = vrot.lane.b32.xlu0 %v5998, 127
    %v6339 = vpop.permute.xlu0 %6338
    %6340 = vrot.lane.b32.xlu0 %v5999, 127
    %v6341 = vpop.permute.xlu0 %6340
    %v6342 = vsel %vm1308, %v6339, %v6341
    %v6343 = vsel %vm1308, %v6337, %v6339
    %v6344 = vsel %vm1308, %v6335, %v6337
    %v6345 = vsel %vm1308, %v6341, %v6335
    %v6346 = vsel %vm1317, %v6344, 0.0
    %v6347 = vsel %vm1318, %v6343, 0.0
    %v6348 = vsel %vm1319, %v6342, 0.0
    %v6349 = vsel %vm1320, %v6345, 0.0
    %s6350 = scalar_lea.vmem [#allocation8], 116
    %v6351 = vld [vmem:[%s6350] sm:$0xf]
    %v6353 = vsel %vm251, %v6351, 0
    %v6356 = vsel %vm255, %v6346, 0
    %v6359 = vsel %vm255, %v6347, 0
    %v6362 = vsel %vm255, %v6348, 0
    %v6365 = vsel %vm255, %v6349, 0
    %6367 = vmatprep.subr.mxu0 %v6359
    %6368 = vmatpush1.msra.mxu0 %v6356
    %6369 = vmatprep.subr.mxu0 0.0
    %6370 = vmatpush1.msra.mxu0 0.0
    %6371 = vmatprep.subr.mxu0 0.0
    %6372 = vmatpush1.msra.mxu0 0.0
    %6373 = vmatprep.subr.mxu0 0.0
    %6374 = vmatpush1.msra.mxu0 0.0
    %6375 = vmatprep.subr.mxu0 0.0
    %6376 = vmatpush1.msra.mxu0 0.0
    %6377 = vmatprep.subr.mxu0 0.0
    %6378 = vmatpush1.msra.mxu0 0.0
    %6379 = vmatprep.subr.mxu0 0.0
    %6380 = vmatpush1.msra.mxu0 0.0
    %6381 = vmatprep.subr.mxu0 0.0
    %6382 = vmatpush1.msra.mxu0 0.0
    %6383 = vmatprep.subr.mxu0 0.0
    %6384 = vmatpush1.msra.mxu0 0.0
    %6385 = vmatprep.subr.mxu0 0.0
    %6386 = vmatpush1.msra.mxu0 0.0
    %6387 = vmatprep.subr.mxu0 0.0
    %6388 = vmatpush1.msra.mxu0 0.0
    %6389 = vmatprep.subr.mxu0 0.0
    %6390 = vmatpush1.msra.mxu0 0.0
    %6391 = vmatprep.subr.mxu0 0.0
    %6392 = vmatpush1.msra.mxu0 0.0
    %6393 = vmatprep.subr.mxu0 0.0
    %6394 = vmatpush1.msra.mxu0 0.0
    %6395 = vmatprep.subr.mxu0 0.0
    %6396 = vmatpush1.msra.mxu0 0.0
    %6397 = vmatprep.subr.mxu0 0.0
    %6398 = vmatpush1.msra.mxu0 0.0
    %6399 = vmatprep.subr.mxu0 0.0
    %6400 = vmatpush1.msra.mxu0 0.0
    %6401 = vmatprep.subr.mxu0 0.0
    %6402 = vmatpush1.msra.mxu0 0.0
    %6403 = vmatprep.subr.mxu0 0.0
    %6404 = vmatpush1.msra.mxu0 0.0
    %6405 = vmatprep.subr.mxu0 0.0
    %6406 = vmatpush1.msra.mxu0 0.0
    %6407 = vmatprep.subr.mxu0 0.0
    %6408 = vmatpush1.msra.mxu0 0.0
    %6409 = vmatprep.subr.mxu0 0.0
    %6410 = vmatpush1.msra.mxu0 0.0
    %6411 = vmatprep.subr.mxu0 0.0
    %6412 = vmatpush1.msra.mxu0 0.0
    %6413 = vmatprep.subr.mxu0 0.0
    %6414 = vmatpush1.msra.mxu0 0.0
    %6415 = vmatprep.subr.mxu0 0.0
    %6416 = vmatpush1.msra.mxu0 0.0
    %6417 = vmatprep.subr.mxu0 0.0
    %6418 = vmatpush1.msra.mxu0 0.0
    %6419 = vmatprep.subr.mxu0 0.0
    %6420 = vmatpush1.msra.mxu0 0.0
    %6421 = vmatprep.subr.mxu0 0.0
    %6422 = vmatpush1.msra.mxu0 0.0
    %6423 = vmatprep.subr.mxu0 0.0
    %6424 = vmatpush1.msra.mxu0 0.0
    %6425 = vmatprep.subr.mxu0 0.0
    %6426 = vmatpush1.msra.mxu0 0.0
    %6427 = vmatprep.subr.mxu0 0.0
    %6428 = vmatpush1.msra.mxu0 0.0
    %6429 = vmatprep.subr.mxu0 0.0
    %6430 = vmatpush1.msra.mxu0 0.0
    %6431 = vmatprep.mubr.f32.mxu0 0.0
    %6432 = vmatmul.mubr.f32.gmra.mrb[0].mxu0 %v6353
    %v6433 = vpop.f32.mrb[0].mxu0
    %v6434 = vadd.f32 0.0, %v6433
    %v6435 = vpop.f32.mrb[0].mxu0
    %v6436 = vadd.f32 0.0, %v6435
    %6437 = vdwg.mxu0
    %6438 = vmatprep.subr.mxu0 %v6365
    %6439 = vmatpush1.msra.mxu0 %v6362
    %6440 = vmatprep.subr.mxu0 0.0
    %6441 = vmatpush1.msra.mxu0 0.0
    %6442 = vmatprep.subr.mxu0 0.0
    %6443 = vmatpush1.msra.mxu0 0.0
    %6444 = vmatprep.subr.mxu0 0.0
    %6445 = vmatpush1.msra.mxu0 0.0
    %6446 = vmatprep.subr.mxu0 0.0
    %6447 = vmatpush1.msra.mxu0 0.0
    %6448 = vmatprep.subr.mxu0 0.0
    %6449 = vmatpush1.msra.mxu0 0.0
    %6450 = vmatprep.subr.mxu0 0.0
    %6451 = vmatpush1.msra.mxu0 0.0
    %6452 = vmatprep.subr.mxu0 0.0
    %6453 = vmatpush1.msra.mxu0 0.0
    %6454 = vmatprep.subr.mxu0 0.0
    %6455 = vmatpush1.msra.mxu0 0.0
    %6456 = vmatprep.subr.mxu0 0.0
    %6457 = vmatpush1.msra.mxu0 0.0
    %6458 = vmatprep.subr.mxu0 0.0
    %6459 = vmatpush1.msra.mxu0 0.0
    %6460 = vmatprep.subr.mxu0 0.0
    %6461 = vmatpush1.msra.mxu0 0.0
    %6462 = vmatprep.subr.mxu0 0.0
    %6463 = vmatpush1.msra.mxu0 0.0
    %6464 = vmatprep.subr.mxu0 0.0
    %6465 = vmatpush1.msra.mxu0 0.0
    %6466 = vmatprep.subr.mxu0 0.0
    %6467 = vmatpush1.msra.mxu0 0.0
    %6468 = vmatprep.subr.mxu0 0.0
    %6469 = vmatpush1.msra.mxu0 0.0
    %6470 = vmatprep.subr.mxu0 0.0
    %6471 = vmatpush1.msra.mxu0 0.0
    %6472 = vmatprep.subr.mxu0 0.0
    %6473 = vmatpush1.msra.mxu0 0.0
    %6474 = vmatprep.subr.mxu0 0.0
    %6475 = vmatpush1.msra.mxu0 0.0
    %6476 = vmatprep.subr.mxu0 0.0
    %6477 = vmatpush1.msra.mxu0 0.0
    %6478 = vmatprep.subr.mxu0 0.0
    %6479 = vmatpush1.msra.mxu0 0.0
    %6480 = vmatprep.subr.mxu0 0.0
    %6481 = vmatpush1.msra.mxu0 0.0
    %6482 = vmatprep.subr.mxu0 0.0
    %6483 = vmatpush1.msra.mxu0 0.0
    %6484 = vmatprep.subr.mxu0 0.0
    %6485 = vmatpush1.msra.mxu0 0.0
    %6486 = vmatprep.subr.mxu0 0.0
    %6487 = vmatpush1.msra.mxu0 0.0
    %6488 = vmatprep.subr.mxu0 0.0
    %6489 = vmatpush1.msra.mxu0 0.0
    %6490 = vmatprep.subr.mxu0 0.0
    %6491 = vmatpush1.msra.mxu0 0.0
    %6492 = vmatprep.subr.mxu0 0.0
    %6493 = vmatpush1.msra.mxu0 0.0
    %6494 = vmatprep.subr.mxu0 0.0
    %6495 = vmatpush1.msra.mxu0 0.0
    %6496 = vmatprep.subr.mxu0 0.0
    %6497 = vmatpush1.msra.mxu0 0.0
    %6498 = vmatprep.subr.mxu0 0.0
    %6499 = vmatpush1.msra.mxu0 0.0
    %6500 = vmatprep.subr.mxu0 0.0
    %6501 = vmatpush1.msra.mxu0 0.0
    %6502 = vmatprep.mubr.f32.mxu0 0.0
    %6503 = vmatmul.mubr.f32.gmra.mrb[0].mxu0 %v6353
    %v6504 = vpop.f32.mrb[0].mxu0
    %v6505 = vadd.f32 0.0, %v6504
    %v6506 = vpop.f32.mrb[0].mxu0
    %v6507 = vadd.f32 0.0, %v6506
    %6508 = vdwg.mxu0
    %v6509 = vadd.f32 %v6259, %v6434
    %v6510 = vadd.f32 %v6261, %v6436
    %v6511 = vadd.f32 %v6330, %v6505
    %v6512 = vadd.f32 %v6332, %v6507
    %6513 = vrot.lane.b32.xlu0 %v5980, 1
    %v6514 = vpop.permute.xlu0 %6513
    %6515 = vrot.lane.b32.xlu0 %v5981, 1
    %v6516 = vpop.permute.xlu0 %6515
    %6517 = vrot.lane.b32.xlu0 %v5982, 1
    %v6518 = vpop.permute.xlu0 %6517
    %6519 = vrot.lane.b32.xlu0 %v5983, 1
    %v6520 = vpop.permute.xlu0 %6519
    %v6521 = vsel %vm966, %v6518, %v6520
    %v6522 = vsel %vm966, %v6516, %v6518
    %v6523 = vsel %vm966, %v6514, %v6516
    %v6524 = vsel %vm966, %v6520, %v6514
    %v6525 = vsel %vm975, %v6524, 0.0
    %v6526 = vsel %vm976, %v6523, 0.0
    %v6527 = vsel %vm977, %v6522, 0.0
    %v6528 = vsel %vm978, %v6521, 0.0
    %s6529 = scalar_lea.vmem [#allocation8], 120
    %v6530 = vld [vmem:[%s6529] sm:$0xf]
    %v6532 = vsel %vm251, %v6530, 0
    %v6535 = vsel %vm255, %v6525, 0
    %v6538 = vsel %vm255, %v6526, 0
    %v6541 = vsel %vm255, %v6527, 0
    %v6544 = vsel %vm255, %v6528, 0
    %6546 = vmatprep.subr.mxu0 %v6538
    %6547 = vmatpush1.msra.mxu0 %v6535
    %6548 = vmatprep.subr.mxu0 0.0
    %6549 = vmatpush1.msra.mxu0 0.0
    %6550 = vmatprep.subr.mxu0 0.0
    %6551 = vmatpush1.msra.mxu0 0.0
    %6552 = vmatprep.subr.mxu0 0.0
    %6553 = vmatpush1.msra.mxu0 0.0
    %6554 = vmatprep.subr.mxu0 0.0
    %6555 = vmatpush1.msra.mxu0 0.0
    %6556 = vmatprep.subr.mxu0 0.0
    %6557 = vmatpush1.msra.mxu0 0.0
    %6558 = vmatprep.subr.mxu0 0.0
    %6559 = vmatpush1.msra.mxu0 0.0
    %6560 = vmatprep.subr.mxu0 0.0
    %6561 = vmatpush1.msra.mxu0 0.0
    %6562 = vmatprep.subr.mxu0 0.0
    %6563 = vmatpush1.msra.mxu0 0.0
    %6564 = vmatprep.subr.mxu0 0.0
    %6565 = vmatpush1.msra.mxu0 0.0
    %6566 = vmatprep.subr.mxu0 0.0
    %6567 = vmatpush1.msra.mxu0 0.0
    %6568 = vmatprep.subr.mxu0 0.0
    %6569 = vmatpush1.msra.mxu0 0.0
    %6570 = vmatprep.subr.mxu0 0.0
    %6571 = vmatpush1.msra.mxu0 0.0
    %6572 = vmatprep.subr.mxu0 0.0
    %6573 = vmatpush1.msra.mxu0 0.0
    %6574 = vmatprep.subr.mxu0 0.0
    %6575 = vmatpush1.msra.mxu0 0.0
    %6576 = vmatprep.subr.mxu0 0.0
    %6577 = vmatpush1.msra.mxu0 0.0
    %6578 = vmatprep.subr.mxu0 0.0
    %6579 = vmatpush1.msra.mxu0 0.0
    %6580 = vmatprep.subr.mxu0 0.0
    %6581 = vmatpush1.msra.mxu0 0.0
    %6582 = vmatprep.subr.mxu0 0.0
    %6583 = vmatpush1.msra.mxu0 0.0
    %6584 = vmatprep.subr.mxu0 0.0
    %6585 = vmatpush1.msra.mxu0 0.0
    %6586 = vmatprep.subr.mxu0 0.0
    %6587 = vmatpush1.msra.mxu0 0.0
    %6588 = vmatprep.subr.mxu0 0.0
    %6589 = vmatpush1.msra.mxu0 0.0
    %6590 = vmatprep.subr.mxu0 0.0
    %6591 = vmatpush1.msra.mxu0 0.0
    %6592 = vmatprep.subr.mxu0 0.0
    %6593 = vmatpush1.msra.mxu0 0.0
    %6594 = vmatprep.subr.mxu0 0.0
    %6595 = vmatpush1.msra.mxu0 0.0
    %6596 = vmatprep.subr.mxu0 0.0
    %6597 = vmatpush1.msra.mxu0 0.0
    %6598 = vmatprep.subr.mxu0 0.0
    %6599 = vmatpush1.msra.mxu0 0.0
    %6600 = vmatprep.subr.mxu0 0.0
    %6601 = vmatpush1.msra.mxu0 0.0
    %6602 = vmatprep.subr.mxu0 0.0
    %6603 = vmatpush1.msra.mxu0 0.0
    %6604 = vmatprep.subr.mxu0 0.0
    %6605 = vmatpush1.msra.mxu0 0.0
    %6606 = vmatprep.subr.mxu0 0.0
    %6607 = vmatpush1.msra.mxu0 0.0
    %6608 = vmatprep.subr.mxu0 0.0
    %6609 = vmatpush1.msra.mxu0 0.0
    %6610 = vmatprep.mubr.f32.mxu0 0.0
    %6611 = vmatmul.mubr.f32.gmra.mrb[0].mxu0 %v6532
    %v6612 = vpop.f32.mrb[0].mxu0
    %v6613 = vadd.f32 0.0, %v6612
    %v6614 = vpop.f32.mrb[0].mxu0
    %v6615 = vadd.f32 0.0, %v6614
    %6616 = vdwg.mxu0
    %6617 = vmatprep.subr.mxu0 %v6544
    %6618 = vmatpush1.msra.mxu0 %v6541
    %6619 = vmatprep.subr.mxu0 0.0
    %6620 = vmatpush1.msra.mxu0 0.0
    %6621 = vmatprep.subr.mxu0 0.0
    %6622 = vmatpush1.msra.mxu0 0.0
    %6623 = vmatprep.subr.mxu0 0.0
    %6624 = vmatpush1.msra.mxu0 0.0
    %6625 = vmatprep.subr.mxu0 0.0
    %6626 = vmatpush1.msra.mxu0 0.0
    %6627 = vmatprep.subr.mxu0 0.0
    %6628 = vmatpush1.msra.mxu0 0.0
    %6629 = vmatprep.subr.mxu0 0.0
    %6630 = vmatpush1.msra.mxu0 0.0
    %6631 = vmatprep.subr.mxu0 0.0
    %6632 = vmatpush1.msra.mxu0 0.0
    %6633 = vmatprep.subr.mxu0 0.0
    %6634 = vmatpush1.msra.mxu0 0.0
    %6635 = vmatprep.subr.mxu0 0.0
    %6636 = vmatpush1.msra.mxu0 0.0
    %6637 = vmatprep.subr.mxu0 0.0
    %6638 = vmatpush1.msra.mxu0 0.0
    %6639 = vmatprep.subr.mxu0 0.0
    %6640 = vmatpush1.msra.mxu0 0.0
    %6641 = vmatprep.subr.mxu0 0.0
    %6642 = vmatpush1.msra.mxu0 0.0
    %6643 = vmatprep.subr.mxu0 0.0
    %6644 = vmatpush1.msra.mxu0 0.0
    %6645 = vmatprep.subr.mxu0 0.0
    %6646 = vmatpush1.msra.mxu0 0.0
    %6647 = vmatprep.subr.mxu0 0.0
    %6648 = vmatpush1.msra.mxu0 0.0
    %6649 = vmatprep.subr.mxu0 0.0
    %6650 = vmatpush1.msra.mxu0 0.0
    %6651 = vmatprep.subr.mxu0 0.0
    %6652 = vmatpush1.msra.mxu0 0.0
    %6653 = vmatprep.subr.mxu0 0.0
    %6654 = vmatpush1.msra.mxu0 0.0
    %6655 = vmatprep.subr.mxu0 0.0
    %6656 = vmatpush1.msra.mxu0 0.0
    %6657 = vmatprep.subr.mxu0 0.0
    %6658 = vmatpush1.msra.mxu0 0.0
    %6659 = vmatprep.subr.mxu0 0.0
    %6660 = vmatpush1.msra.mxu0 0.0
    %6661 = vmatprep.subr.mxu0 0.0
    %6662 = vmatpush1.msra.mxu0 0.0
    %6663 = vmatprep.subr.mxu0 0.0
    %6664 = vmatpush1.msra.mxu0 0.0
    %6665 = vmatprep.subr.mxu0 0.0
    %6666 = vmatpush1.msra.mxu0 0.0
    %6667 = vmatprep.subr.mxu0 0.0
    %6668 = vmatpush1.msra.mxu0 0.0
    %6669 = vmatprep.subr.mxu0 0.0
    %6670 = vmatpush1.msra.mxu0 0.0
    %6671 = vmatprep.subr.mxu0 0.0
    %6672 = vmatpush1.msra.mxu0 0.0
    %6673 = vmatprep.subr.mxu0 0.0
    %6674 = vmatpush1.msra.mxu0 0.0
    %6675 = vmatprep.subr.mxu0 0.0
    %6676 = vmatpush1.msra.mxu0 0.0
    %6677 = vmatprep.subr.mxu0 0.0
    %6678 = vmatpush1.msra.mxu0 0.0
    %6679 = vmatprep.subr.mxu0 0.0
    %6680 = vmatpush1.msra.mxu0 0.0
    %6681 = vmatprep.mubr.f32.mxu0 0.0
    %6682 = vmatmul.mubr.f32.gmra.mrb[0].mxu0 %v6532
    %v6683 = vpop.f32.mrb[0].mxu0
    %v6684 = vadd.f32 0.0, %v6683
    %v6685 = vpop.f32.mrb[0].mxu0
    %v6686 = vadd.f32 0.0, %v6685
    %6687 = vdwg.mxu0
    %v6688 = vadd.f32 %v6509, %v6613
    %v6689 = vadd.f32 %v6510, %v6615
    %v6690 = vadd.f32 %v6511, %v6684
    %v6691 = vadd.f32 %v6512, %v6686
    %s6692 = scalar_lea.vmem [#allocation8], 124
    %v6693 = vld [vmem:[%s6692] sm:$0xf]
    %v6695 = vsel %vm251, %v6693, 0
    %v6698 = vsel %vm255, %v5980, 0
    %v6701 = vsel %vm255, %v5981, 0
    %v6704 = vsel %vm255, %v5982, 0
    %v6707 = vsel %vm255, %v5983, 0
    %6709 = vmatprep.subr.mxu0 %v6701
    %6710 = vmatpush1.msra.mxu0 %v6698
    %6711 = vmatprep.subr.mxu0 0.0
    %6712 = vmatpush1.msra.mxu0 0.0
    %6713 = vmatprep.subr.mxu0 0.0
    %6714 = vmatpush1.msra.mxu0 0.0
    %6715 = vmatprep.subr.mxu0 0.0
    %6716 = vmatpush1.msra.mxu0 0.0
    %6717 = vmatprep.subr.mxu0 0.0
    %6718 = vmatpush1.msra.mxu0 0.0
    %6719 = vmatprep.subr.mxu0 0.0
    %6720 = vmatpush1.msra.mxu0 0.0
    %6721 = vmatprep.subr.mxu0 0.0
    %6722 = vmatpush1.msra.mxu0 0.0
    %6723 = vmatprep.subr.mxu0 0.0
    %6724 = vmatpush1.msra.mxu0 0.0
    %6725 = vmatprep.subr.mxu0 0.0
    %6726 = vmatpush1.msra.mxu0 0.0
    %6727 = vmatprep.subr.mxu0 0.0
    %6728 = vmatpush1.msra.mxu0 0.0
    %6729 = vmatprep.subr.mxu0 0.0
    %6730 = vmatpush1.msra.mxu0 0.0
    %6731 = vmatprep.subr.mxu0 0.0
    %6732 = vmatpush1.msra.mxu0 0.0
    %6733 = vmatprep.subr.mxu0 0.0
    %6734 = vmatpush1.msra.mxu0 0.0
    %6735 = vmatprep.subr.mxu0 0.0
    %6736 = vmatpush1.msra.mxu0 0.0
    %6737 = vmatprep.subr.mxu0 0.0
    %6738 = vmatpush1.msra.mxu0 0.0
    %6739 = vmatprep.subr.mxu0 0.0
    %6740 = vmatpush1.msra.mxu0 0.0
    %6741 = vmatprep.subr.mxu0 0.0
    %6742 = vmatpush1.msra.mxu0 0.0
    %6743 = vmatprep.subr.mxu0 0.0
    %6744 = vmatpush1.msra.mxu0 0.0
    %6745 = vmatprep.subr.mxu0 0.0
    %6746 = vmatpush1.msra.mxu0 0.0
    %6747 = vmatprep.subr.mxu0 0.0
    %6748 = vmatpush1.msra.mxu0 0.0
    %6749 = vmatprep.subr.mxu0 0.0
    %6750 = vmatpush1.msra.mxu0 0.0
    %6751 = vmatprep.subr.mxu0 0.0
    %6752 = vmatpush1.msra.mxu0 0.0
    %6753 = vmatprep.subr.mxu0 0.0
    %6754 = vmatpush1.msra.mxu0 0.0
    %6755 = vmatprep.subr.mxu0 0.0
    %6756 = vmatpush1.msra.mxu0 0.0
    %6757 = vmatprep.subr.mxu0 0.0
    %6758 = vmatpush1.msra.mxu0 0.0
    %6759 = vmatprep.subr.mxu0 0.0
    %6760 = vmatpush1.msra.mxu0 0.0
    %6761 = vmatprep.subr.mxu0 0.0
    %6762 = vmatpush1.msra.mxu0 0.0
    %6763 = vmatprep.subr.mxu0 0.0
    %6764 = vmatpush1.msra.mxu0 0.0
    %6765 = vmatprep.subr.mxu0 0.0
    %6766 = vmatpush1.msra.mxu0 0.0
    %6767 = vmatprep.subr.mxu0 0.0
    %6768 = vmatpush1.msra.mxu0 0.0
    %6769 = vmatprep.subr.mxu0 0.0
    %6770 = vmatpush1.msra.mxu0 0.0
    %6771 = vmatprep.subr.mxu0 0.0
    %6772 = vmatpush1.msra.mxu0 0.0
    %6773 = vmatprep.mubr.f32.mxu0 0.0
    %6774 = vmatmul.mubr.f32.gmra.mrb[0].mxu0 %v6695
    %v6775 = vpop.f32.mrb[0].mxu0
    %v6776 = vadd.f32 0.0, %v6775
    %v6777 = vpop.f32.mrb[0].mxu0
    %v6778 = vadd.f32 0.0, %v6777
    %6779 = vdwg.mxu0
    %6780 = vmatprep.subr.mxu0 %v6707
    %6781 = vmatpush1.msra.mxu0 %v6704
    %6782 = vmatprep.subr.mxu0 0.0
    %6783 = vmatpush1.msra.mxu0 0.0
    %6784 = vmatprep.subr.mxu0 0.0
    %6785 = vmatpush1.msra.mxu0 0.0
    %6786 = vmatprep.subr.mxu0 0.0
    %6787 = vmatpush1.msra.mxu0 0.0
    %6788 = vmatprep.subr.mxu0 0.0
    %6789 = vmatpush1.msra.mxu0 0.0
    %6790 = vmatprep.subr.mxu0 0.0
    %6791 = vmatpush1.msra.mxu0 0.0
    %6792 = vmatprep.subr.mxu0 0.0
    %6793 = vmatpush1.msra.mxu0 0.0
    %6794 = vmatprep.subr.mxu0 0.0
    %6795 = vmatpush1.msra.mxu0 0.0
    %6796 = vmatprep.subr.mxu0 0.0
    %6797 = vmatpush1.msra.mxu0 0.0
    %6798 = vmatprep.subr.mxu0 0.0
    %6799 = vmatpush1.msra.mxu0 0.0
    %6800 = vmatprep.subr.mxu0 0.0
    %6801 = vmatpush1.msra.mxu0 0.0
    %6802 = vmatprep.subr.mxu0 0.0
    %6803 = vmatpush1.msra.mxu0 0.0
    %6804 = vmatprep.subr.mxu0 0.0
    %6805 = vmatpush1.msra.mxu0 0.0
    %6806 = vmatprep.subr.mxu0 0.0
    %6807 = vmatpush1.msra.mxu0 0.0
    %6808 = vmatprep.subr.mxu0 0.0
    %6809 = vmatpush1.msra.mxu0 0.0
    %6810 = vmatprep.subr.mxu0 0.0
    %6811 = vmatpush1.msra.mxu0 0.0
    %6812 = vmatprep.subr.mxu0 0.0
    %6813 = vmatpush1.msra.mxu0 0.0
    %6814 = vmatprep.subr.mxu0 0.0
    %6815 = vmatpush1.msra.mxu0 0.0
    %6816 = vmatprep.subr.mxu0 0.0
    %6817 = vmatpush1.msra.mxu0 0.0
    %6818 = vmatprep.subr.mxu0 0.0
    %6819 = vmatpush1.msra.mxu0 0.0
    %6820 = vmatprep.subr.mxu0 0.0
    %6821 = vmatpush1.msra.mxu0 0.0
    %6822 = vmatprep.subr.mxu0 0.0
    %6823 = vmatpush1.msra.mxu0 0.0
    %6824 = vmatprep.subr.mxu0 0.0
    %6825 = vmatpush1.msra.mxu0 0.0
    %6826 = vmatprep.subr.mxu0 0.0
    %6827 = vmatpush1.msra.mxu0 0.0
    %6828 = vmatprep.subr.mxu0 0.0
    %6829 = vmatpush1.msra.mxu0 0.0
    %6830 = vmatprep.subr.mxu0 0.0
    %6831 = vmatpush1.msra.mxu0 0.0
    %6832 = vmatprep.subr.mxu0 0.0
    %6833 = vmatpush1.msra.mxu0 0.0
    %6834 = vmatprep.subr.mxu0 0.0
    %6835 = vmatpush1.msra.mxu0 0.0
    %6836 = vmatprep.subr.mxu0 0.0
    %6837 = vmatpush1.msra.mxu0 0.0
    %6838 = vmatprep.subr.mxu0 0.0
    %6839 = vmatpush1.msra.mxu0 0.0
    %6840 = vmatprep.subr.mxu0 0.0
    %6841 = vmatpush1.msra.mxu0 0.0
    %6842 = vmatprep.subr.mxu0 0.0
    %6843 = vmatpush1.msra.mxu0 0.0
    %6844 = vmatprep.mubr.f32.mxu0 0.0
    %6845 = vmatmul.mubr.f32.gmra.mrb[0].mxu0 %v6695
    %v6846 = vpop.f32.mrb[0].mxu0
    %v6847 = vadd.f32 0.0, %v6846
    %v6848 = vpop.f32.mrb[0].mxu0
    %v6849 = vadd.f32 0.0, %v6848
    %6850 = vdwg.mxu0
    %v6851 = vadd.f32 %v6688, %v6776
    %v6852 = vadd.f32 %v6689, %v6778
    %v6853 = vadd.f32 %v6690, %v6847
    %v6854 = vadd.f32 %v6691, %v6849
    %6855 = vrot.lane.b32.xlu0 %v5980, 127
    %v6856 = vpop.permute.xlu0 %6855
    %6857 = vrot.lane.b32.xlu0 %v5981, 127
    %v6858 = vpop.permute.xlu0 %6857
    %6859 = vrot.lane.b32.xlu0 %v5982, 127
    %v6860 = vpop.permute.xlu0 %6859
    %6861 = vrot.lane.b32.xlu0 %v5983, 127
    %v6862 = vpop.permute.xlu0 %6861
    %v6863 = vsel %vm1308, %v6860, %v6862
    %v6864 = vsel %vm1308, %v6858, %v6860
    %v6865 = vsel %vm1308, %v6856, %v6858
    %v6866 = vsel %vm1308, %v6862, %v6856
    %v6867 = vsel %vm1317, %v6865, 0.0
    %v6868 = vsel %vm1318, %v6864, 0.0
    %v6869 = vsel %vm1319, %v6863, 0.0
    %v6870 = vsel %vm1320, %v6866, 0.0
    %s6871 = scalar_lea.vmem [#allocation8], 128
    %v6872 = vld [vmem:[%s6871] sm:$0xf]
    %v6874 = vsel %vm251, %v6872, 0
    %v6877 = vsel %vm255, %v6867, 0
    %v6880 = vsel %vm255, %v6868, 0
    %v6883 = vsel %vm255, %v6869, 0
    %v6886 = vsel %vm255, %v6870, 0
    %6888 = vmatprep.subr.mxu0 %v6880
    %6889 = vmatpush1.msra.mxu0 %v6877
    %6890 = vmatprep.subr.mxu0 0.0
    %6891 = vmatpush1.msra.mxu0 0.0
    %6892 = vmatprep.subr.mxu0 0.0
    %6893 = vmatpush1.msra.mxu0 0.0
    %6894 = vmatprep.subr.mxu0 0.0
    %6895 = vmatpush1.msra.mxu0 0.0
    %6896 = vmatprep.subr.mxu0 0.0
    %6897 = vmatpush1.msra.mxu0 0.0
    %6898 = vmatprep.subr.mxu0 0.0
    %6899 = vmatpush1.msra.mxu0 0.0
    %6900 = vmatprep.subr.mxu0 0.0
    %6901 = vmatpush1.msra.mxu0 0.0
    %6902 = vmatprep.subr.mxu0 0.0
    %6903 = vmatpush1.msra.mxu0 0.0
    %6904 = vmatprep.subr.mxu0 0.0
    %6905 = vmatpush1.msra.mxu0 0.0
    %6906 = vmatprep.subr.mxu0 0.0
    %6907 = vmatpush1.msra.mxu0 0.0
    %6908 = vmatprep.subr.mxu0 0.0
    %6909 = vmatpush1.msra.mxu0 0.0
    %6910 = vmatprep.subr.mxu0 0.0
    %6911 = vmatpush1.msra.mxu0 0.0
    %6912 = vmatprep.subr.mxu0 0.0
    %6913 = vmatpush1.msra.mxu0 0.0
    %6914 = vmatprep.subr.mxu0 0.0
    %6915 = vmatpush1.msra.mxu0 0.0
    %6916 = vmatprep.subr.mxu0 0.0
    %6917 = vmatpush1.msra.mxu0 0.0
    %6918 = vmatprep.subr.mxu0 0.0
    %6919 = vmatpush1.msra.mxu0 0.0
    %6920 = vmatprep.subr.mxu0 0.0
    %6921 = vmatpush1.msra.mxu0 0.0
    %6922 = vmatprep.subr.mxu0 0.0
    %6923 = vmatpush1.msra.mxu0 0.0
    %6924 = vmatprep.subr.mxu0 0.0
    %6925 = vmatpush1.msra.mxu0 0.0
    %6926 = vmatprep.subr.mxu0 0.0
    %6927 = vmatpush1.msra.mxu0 0.0
    %6928 = vmatprep.subr.mxu0 0.0
    %6929 = vmatpush1.msra.mxu0 0.0
    %6930 = vmatprep.subr.mxu0 0.0
    %6931 = vmatpush1.msra.mxu0 0.0
    %6932 = vmatprep.subr.mxu0 0.0
    %6933 = vmatpush1.msra.mxu0 0.0
    %6934 = vmatprep.subr.mxu0 0.0
    %6935 = vmatpush1.msra.mxu0 0.0
    %6936 = vmatprep.subr.mxu0 0.0
    %6937 = vmatpush1.msra.mxu0 0.0
    %6938 = vmatprep.subr.mxu0 0.0
    %6939 = vmatpush1.msra.mxu0 0.0
    %6940 = vmatprep.subr.mxu0 0.0
    %6941 = vmatpush1.msra.mxu0 0.0
    %6942 = vmatprep.subr.mxu0 0.0
    %6943 = vmatpush1.msra.mxu0 0.0
    %6944 = vmatprep.subr.mxu0 0.0
    %6945 = vmatpush1.msra.mxu0 0.0
    %6946 = vmatprep.subr.mxu0 0.0
    %6947 = vmatpush1.msra.mxu0 0.0
    %6948 = vmatprep.subr.mxu0 0.0
    %6949 = vmatpush1.msra.mxu0 0.0
    %6950 = vmatprep.subr.mxu0 0.0
    %6951 = vmatpush1.msra.mxu0 0.0
    %6952 = vmatprep.mubr.f32.mxu0 0.0
    %6953 = vmatmul.mubr.f32.gmra.mrb[0].mxu0 %v6874
    %v6954 = vpop.f32.mrb[0].mxu0
    %v6955 = vadd.f32 0.0, %v6954
    %v6956 = vpop.f32.mrb[0].mxu0
    %v6957 = vadd.f32 0.0, %v6956
    %6958 = vdwg.mxu0
    %6959 = vmatprep.subr.mxu0 %v6886
    %6960 = vmatpush1.msra.mxu0 %v6883
    %6961 = vmatprep.subr.mxu0 0.0
    %6962 = vmatpush1.msra.mxu0 0.0
    %6963 = vmatprep.subr.mxu0 0.0
    %6964 = vmatpush1.msra.mxu0 0.0
    %6965 = vmatprep.subr.mxu0 0.0
    %6966 = vmatpush1.msra.mxu0 0.0
    %6967 = vmatprep.subr.mxu0 0.0
    %6968 = vmatpush1.msra.mxu0 0.0
    %6969 = vmatprep.subr.mxu0 0.0
    %6970 = vmatpush1.msra.mxu0 0.0
    %6971 = vmatprep.subr.mxu0 0.0
    %6972 = vmatpush1.msra.mxu0 0.0
    %6973 = vmatprep.subr.mxu0 0.0
    %6974 = vmatpush1.msra.mxu0 0.0
    %6975 = vmatprep.subr.mxu0 0.0
    %6976 = vmatpush1.msra.mxu0 0.0
    %6977 = vmatprep.subr.mxu0 0.0
    %6978 = vmatpush1.msra.mxu0 0.0
    %6979 = vmatprep.subr.mxu0 0.0
    %6980 = vmatpush1.msra.mxu0 0.0
    %6981 = vmatprep.subr.mxu0 0.0
    %6982 = vmatpush1.msra.mxu0 0.0
    %6983 = vmatprep.subr.mxu0 0.0
    %6984 = vmatpush1.msra.mxu0 0.0
    %6985 = vmatprep.subr.mxu0 0.0
    %6986 = vmatpush1.msra.mxu0 0.0
    %6987 = vmatprep.subr.mxu0 0.0
    %6988 = vmatpush1.msra.mxu0 0.0
    %6989 = vmatprep.subr.mxu0 0.0
    %6990 = vmatpush1.msra.mxu0 0.0
    %6991 = vmatprep.subr.mxu0 0.0
    %6992 = vmatpush1.msra.mxu0 0.0
    %6993 = vmatprep.subr.mxu0 0.0
    %6994 = vmatpush1.msra.mxu0 0.0
    %6995 = vmatprep.subr.mxu0 0.0
    %6996 = vmatpush1.msra.mxu0 0.0
    %6997 = vmatprep.subr.mxu0 0.0
    %6998 = vmatpush1.msra.mxu0 0.0
    %6999 = vmatprep.subr.mxu0 0.0
    %7000 = vmatpush1.msra.mxu0 0.0
    %7001 = vmatprep.subr.mxu0 0.0
    %7002 = vmatpush1.msra.mxu0 0.0
    %7003 = vmatprep.subr.mxu0 0.0
    %7004 = vmatpush1.msra.mxu0 0.0
    %7005 = vmatprep.subr.mxu0 0.0
    %7006 = vmatpush1.msra.mxu0 0.0
    %7007 = vmatprep.subr.mxu0 0.0
    %7008 = vmatpush1.msra.mxu0 0.0
    %7009 = vmatprep.subr.mxu0 0.0
    %7010 = vmatpush1.msra.mxu0 0.0
    %7011 = vmatprep.subr.mxu0 0.0
    %7012 = vmatpush1.msra.mxu0 0.0
    %7013 = vmatprep.subr.mxu0 0.0
    %7014 = vmatpush1.msra.mxu0 0.0
    %7015 = vmatprep.subr.mxu0 0.0
    %7016 = vmatpush1.msra.mxu0 0.0
    %7017 = vmatprep.subr.mxu0 0.0
    %7018 = vmatpush1.msra.mxu0 0.0
    %7019 = vmatprep.subr.mxu0 0.0
    %7020 = vmatpush1.msra.mxu0 0.0
    %7021 = vmatprep.subr.mxu0 0.0
    %7022 = vmatpush1.msra.mxu0 0.0
    %7023 = vmatprep.mubr.f32.mxu0 0.0
    %7024 = vmatmul.mubr.f32.gmra.mrb[0].mxu0 %v6874
    %v7025 = vpop.f32.mrb[0].mxu0
    %v7026 = vadd.f32 0.0, %v7025
    %v7027 = vpop.f32.mrb[0].mxu0
    %v7028 = vadd.f32 0.0, %v7027
    %7029 = vdwg.mxu0
    %v7030 = vadd.f32 %v6851, %v6955
    %v7031 = vadd.f32 %v6852, %v6957
    %v7032 = vadd.f32 %v6853, %v7026
    %v7033 = vadd.f32 %v6854, %v7028
    %7034 = vrot.lane.b32.xlu0 %v5980, 112
    %v7035 = vpop.permute.xlu0 %7034
    %7036 = vrot.lane.b32.xlu0 %v5981, 112
    %v7037 = vpop.permute.xlu0 %7036
    %7038 = vrot.lane.b32.xlu0 %v5982, 112
    %v7039 = vpop.permute.xlu0 %7038
    %7040 = vrot.lane.b32.xlu0 %v5983, 112
    %v7041 = vpop.permute.xlu0 %7040
    %v7042 = vsel %vm2005, %v7039, %v7041
    %v7043 = vsel %vm2005, %v7037, %v7039
    %v7044 = vsel %vm2005, %v7035, %v7037
    %v7045 = vsel %vm2005, %v7041, %v7035
    %v7046 = vsel %vm2014, %v7044, 0.0
    %v7047 = vsel %vm2015, %v7043, 0.0
    %v7048 = vsel %vm2016, %v7042, 0.0
    %v7049 = vsel %vm2017, %v7045, 0.0
    %7050 = vrot.lane.b32.xlu0 %v7046, 1
    %v7051 = vpop.permute.xlu0 %7050
    %7052 = vrot.lane.b32.xlu0 %v7047, 1
    %v7053 = vpop.permute.xlu0 %7052
    %7054 = vrot.lane.b32.xlu0 %v7048, 1
    %v7055 = vpop.permute.xlu0 %7054
    %7056 = vrot.lane.b32.xlu0 %v7049, 1
    %v7057 = vpop.permute.xlu0 %7056
    %v7058 = vsel %vm966, %v7055, %v7057
    %v7059 = vsel %vm966, %v7053, %v7055
    %v7060 = vsel %vm966, %v7051, %v7053
    %v7061 = vsel %vm966, %v7057, %v7051
    %v7062 = vsel %vm975, %v7061, 0.0
    %v7063 = vsel %vm976, %v7060, 0.0
    %v7064 = vsel %vm977, %v7059, 0.0
    %v7065 = vsel %vm978, %v7058, 0.0
    %s7066 = scalar_lea.vmem [#allocation8], 132
    %v7067 = vld [vmem:[%s7066] sm:$0xf]
    %v7069 = vsel %vm251, %v7067, 0
    %v7072 = vsel %vm255, %v7062, 0
    %v7075 = vsel %vm255, %v7063, 0
    %v7078 = vsel %vm255, %v7064, 0
    %v7081 = vsel %vm255, %v7065, 0
    %7083 = vmatprep.subr.mxu0 %v7075
    %7084 = vmatpush1.msra.mxu0 %v7072
    %7085 = vmatprep.subr.mxu0 0.0
    %7086 = vmatpush1.msra.mxu0 0.0
    %7087 = vmatprep.subr.mxu0 0.0
    %7088 = vmatpush1.msra.mxu0 0.0
    %7089 = vmatprep.subr.mxu0 0.0
    %7090 = vmatpush1.msra.mxu0 0.0
    %7091 = vmatprep.subr.mxu0 0.0
    %7092 = vmatpush1.msra.mxu0 0.0
    %7093 = vmatprep.subr.mxu0 0.0
    %7094 = vmatpush1.msra.mxu0 0.0
    %7095 = vmatprep.subr.mxu0 0.0
    %7096 = vmatpush1.msra.mxu0 0.0
    %7097 = vmatprep.subr.mxu0 0.0
    %7098 = vmatpush1.msra.mxu0 0.0
    %7099 = vmatprep.subr.mxu0 0.0
    %7100 = vmatpush1.msra.mxu0 0.0
    %7101 = vmatprep.subr.mxu0 0.0
    %7102 = vmatpush1.msra.mxu0 0.0
    %7103 = vmatprep.subr.mxu0 0.0
    %7104 = vmatpush1.msra.mxu0 0.0
    %7105 = vmatprep.subr.mxu0 0.0
    %7106 = vmatpush1.msra.mxu0 0.0
    %7107 = vmatprep.subr.mxu0 0.0
    %7108 = vmatpush1.msra.mxu0 0.0
    %7109 = vmatprep.subr.mxu0 0.0
    %7110 = vmatpush1.msra.mxu0 0.0
    %7111 = vmatprep.subr.mxu0 0.0
    %7112 = vmatpush1.msra.mxu0 0.0
    %7113 = vmatprep.subr.mxu0 0.0
    %7114 = vmatpush1.msra.mxu0 0.0
    %7115 = vmatprep.subr.mxu0 0.0
    %7116 = vmatpush1.msra.mxu0 0.0
    %7117 = vmatprep.subr.mxu0 0.0
    %7118 = vmatpush1.msra.mxu0 0.0
    %7119 = vmatprep.subr.mxu0 0.0
    %7120 = vmatpush1.msra.mxu0 0.0
    %7121 = vmatprep.subr.mxu0 0.0
    %7122 = vmatpush1.msra.mxu0 0.0
    %7123 = vmatprep.subr.mxu0 0.0
    %7124 = vmatpush1.msra.mxu0 0.0
    %7125 = vmatprep.subr.mxu0 0.0
    %7126 = vmatpush1.msra.mxu0 0.0
    %7127 = vmatprep.subr.mxu0 0.0
    %7128 = vmatpush1.msra.mxu0 0.0
    %7129 = vmatprep.subr.mxu0 0.0
    %7130 = vmatpush1.msra.mxu0 0.0
    %7131 = vmatprep.subr.mxu0 0.0
    %7132 = vmatpush1.msra.mxu0 0.0
    %7133 = vmatprep.subr.mxu0 0.0
    %7134 = vmatpush1.msra.mxu0 0.0
    %7135 = vmatprep.subr.mxu0 0.0
    %7136 = vmatpush1.msra.mxu0 0.0
    %7137 = vmatprep.subr.mxu0 0.0
    %7138 = vmatpush1.msra.mxu0 0.0
    %7139 = vmatprep.subr.mxu0 0.0
    %7140 = vmatpush1.msra.mxu0 0.0
    %7141 = vmatprep.subr.mxu0 0.0
    %7142 = vmatpush1.msra.mxu0 0.0
    %7143 = vmatprep.subr.mxu0 0.0
    %7144 = vmatpush1.msra.mxu0 0.0
    %7145 = vmatprep.subr.mxu0 0.0
    %7146 = vmatpush1.msra.mxu0 0.0
    %7147 = vmatprep.mubr.f32.mxu0 0.0
    %7148 = vmatmul.mubr.f32.gmra.mrb[0].mxu0 %v7069
    %v7149 = vpop.f32.mrb[0].mxu0
    %v7150 = vadd.f32 0.0, %v7149
    %v7151 = vpop.f32.mrb[0].mxu0
    %v7152 = vadd.f32 0.0, %v7151
    %7153 = vdwg.mxu0
    %7154 = vmatprep.subr.mxu0 %v7081
    %7155 = vmatpush1.msra.mxu0 %v7078
    %7156 = vmatprep.subr.mxu0 0.0
    %7157 = vmatpush1.msra.mxu0 0.0
    %7158 = vmatprep.subr.mxu0 0.0
    %7159 = vmatpush1.msra.mxu0 0.0
    %7160 = vmatprep.subr.mxu0 0.0
    %7161 = vmatpush1.msra.mxu0 0.0
    %7162 = vmatprep.subr.mxu0 0.0
    %7163 = vmatpush1.msra.mxu0 0.0
    %7164 = vmatprep.subr.mxu0 0.0
    %7165 = vmatpush1.msra.mxu0 0.0
    %7166 = vmatprep.subr.mxu0 0.0
    %7167 = vmatpush1.msra.mxu0 0.0
    %7168 = vmatprep.subr.mxu0 0.0
    %7169 = vmatpush1.msra.mxu0 0.0
    %7170 = vmatprep.subr.mxu0 0.0
    %7171 = vmatpush1.msra.mxu0 0.0
    %7172 = vmatprep.subr.mxu0 0.0
    %7173 = vmatpush1.msra.mxu0 0.0
    %7174 = vmatprep.subr.mxu0 0.0
    %7175 = vmatpush1.msra.mxu0 0.0
    %7176 = vmatprep.subr.mxu0 0.0
    %7177 = vmatpush1.msra.mxu0 0.0
    %7178 = vmatprep.subr.mxu0 0.0
    %7179 = vmatpush1.msra.mxu0 0.0
    %7180 = vmatprep.subr.mxu0 0.0
    %7181 = vmatpush1.msra.mxu0 0.0
    %7182 = vmatprep.subr.mxu0 0.0
    %7183 = vmatpush1.msra.mxu0 0.0
    %7184 = vmatprep.subr.mxu0 0.0
    %7185 = vmatpush1.msra.mxu0 0.0
    %7186 = vmatprep.subr.mxu0 0.0
    %7187 = vmatpush1.msra.mxu0 0.0
    %7188 = vmatprep.subr.mxu0 0.0
    %7189 = vmatpush1.msra.mxu0 0.0
    %7190 = vmatprep.subr.mxu0 0.0
    %7191 = vmatpush1.msra.mxu0 0.0
    %7192 = vmatprep.subr.mxu0 0.0
    %7193 = vmatpush1.msra.mxu0 0.0
    %7194 = vmatprep.subr.mxu0 0.0
    %7195 = vmatpush1.msra.mxu0 0.0
    %7196 = vmatprep.subr.mxu0 0.0
    %7197 = vmatpush1.msra.mxu0 0.0
    %7198 = vmatprep.subr.mxu0 0.0
    %7199 = vmatpush1.msra.mxu0 0.0
    %7200 = vmatprep.subr.mxu0 0.0
    %7201 = vmatpush1.msra.mxu0 0.0
    %7202 = vmatprep.subr.mxu0 0.0
    %7203 = vmatpush1.msra.mxu0 0.0
    %7204 = vmatprep.subr.mxu0 0.0
    %7205 = vmatpush1.msra.mxu0 0.0
    %7206 = vmatprep.subr.mxu0 0.0
    %7207 = vmatpush1.msra.mxu0 0.0
    %7208 = vmatprep.subr.mxu0 0.0
    %7209 = vmatpush1.msra.mxu0 0.0
    %7210 = vmatprep.subr.mxu0 0.0
    %7211 = vmatpush1.msra.mxu0 0.0
    %7212 = vmatprep.subr.mxu0 0.0
    %7213 = vmatpush1.msra.mxu0 0.0
    %7214 = vmatprep.subr.mxu0 0.0
    %7215 = vmatpush1.msra.mxu0 0.0
    %7216 = vmatprep.subr.mxu0 0.0
    %7217 = vmatpush1.msra.mxu0 0.0
    %7218 = vmatprep.mubr.f32.mxu0 0.0
    %7219 = vmatmul.mubr.f32.gmra.mrb[0].mxu0 %v7069
    %v7220 = vpop.f32.mrb[0].mxu0
    %v7221 = vadd.f32 0.0, %v7220
    %v7222 = vpop.f32.mrb[0].mxu0
    %v7223 = vadd.f32 0.0, %v7222
    %7224 = vdwg.mxu0
    %v7225 = vadd.f32 %v7030, %v7150
    %v7226 = vadd.f32 %v7031, %v7152
    %v7227 = vadd.f32 %v7032, %v7221
    %v7228 = vadd.f32 %v7033, %v7223
    %s7229 = scalar_lea.vmem [#allocation8], 136
    %v7230 = vld [vmem:[%s7229] sm:$0xf]
    %v7232 = vsel %vm251, %v7230, 0
    %v7235 = vsel %vm255, %v7046, 0
    %v7238 = vsel %vm255, %v7047, 0
    %v7241 = vsel %vm255, %v7048, 0
    %v7244 = vsel %vm255, %v7049, 0
    %7246 = vmatprep.subr.mxu0 %v7238
    %7247 = vmatpush1.msra.mxu0 %v7235
    %7248 = vmatprep.subr.mxu0 0.0
    %7249 = vmatpush1.msra.mxu0 0.0
    %7250 = vmatprep.subr.mxu0 0.0
    %7251 = vmatpush1.msra.mxu0 0.0
    %7252 = vmatprep.subr.mxu0 0.0
    %7253 = vmatpush1.msra.mxu0 0.0
    %7254 = vmatprep.subr.mxu0 0.0
    %7255 = vmatpush1.msra.mxu0 0.0
    %7256 = vmatprep.subr.mxu0 0.0
    %7257 = vmatpush1.msra.mxu0 0.0
    %7258 = vmatprep.subr.mxu0 0.0
    %7259 = vmatpush1.msra.mxu0 0.0
    %7260 = vmatprep.subr.mxu0 0.0
    %7261 = vmatpush1.msra.mxu0 0.0
    %7262 = vmatprep.subr.mxu0 0.0
    %7263 = vmatpush1.msra.mxu0 0.0
    %7264 = vmatprep.subr.mxu0 0.0
    %7265 = vmatpush1.msra.mxu0 0.0
    %7266 = vmatprep.subr.mxu0 0.0
    %7267 = vmatpush1.msra.mxu0 0.0
    %7268 = vmatprep.subr.mxu0 0.0
    %7269 = vmatpush1.msra.mxu0 0.0
    %7270 = vmatprep.subr.mxu0 0.0
    %7271 = vmatpush1.msra.mxu0 0.0
    %7272 = vmatprep.subr.mxu0 0.0
    %7273 = vmatpush1.msra.mxu0 0.0
    %7274 = vmatprep.subr.mxu0 0.0
    %7275 = vmatpush1.msra.mxu0 0.0
    %7276 = vmatprep.subr.mxu0 0.0
    %7277 = vmatpush1.msra.mxu0 0.0
    %7278 = vmatprep.subr.mxu0 0.0
    %7279 = vmatpush1.msra.mxu0 0.0
    %7280 = vmatprep.subr.mxu0 0.0
    %7281 = vmatpush1.msra.mxu0 0.0
    %7282 = vmatprep.subr.mxu0 0.0
    %7283 = vmatpush1.msra.mxu0 0.0
    %7284 = vmatprep.subr.mxu0 0.0
    %7285 = vmatpush1.msra.mxu0 0.0
    %7286 = vmatprep.subr.mxu0 0.0
    %7287 = vmatpush1.msra.mxu0 0.0
    %7288 = vmatprep.subr.mxu0 0.0
    %7289 = vmatpush1.msra.mxu0 0.0
    %7290 = vmatprep.subr.mxu0 0.0
    %7291 = vmatpush1.msra.mxu0 0.0
    %7292 = vmatprep.subr.mxu0 0.0
    %7293 = vmatpush1.msra.mxu0 0.0
    %7294 = vmatprep.subr.mxu0 0.0
    %7295 = vmatpush1.msra.mxu0 0.0
    %7296 = vmatprep.subr.mxu0 0.0
    %7297 = vmatpush1.msra.mxu0 0.0
    %7298 = vmatprep.subr.mxu0 0.0
    %7299 = vmatpush1.msra.mxu0 0.0
    %7300 = vmatprep.subr.mxu0 0.0
    %7301 = vmatpush1.msra.mxu0 0.0
    %7302 = vmatprep.subr.mxu0 0.0
    %7303 = vmatpush1.msra.mxu0 0.0
    %7304 = vmatprep.subr.mxu0 0.0
    %7305 = vmatpush1.msra.mxu0 0.0
    %7306 = vmatprep.subr.mxu0 0.0
    %7307 = vmatpush1.msra.mxu0 0.0
    %7308 = vmatprep.subr.mxu0 0.0
    %7309 = vmatpush1.msra.mxu0 0.0
    %7310 = vmatprep.mubr.f32.mxu0 0.0
    %7311 = vmatmul.mubr.f32.gmra.mrb[0].mxu0 %v7232
    %v7312 = vpop.f32.mrb[0].mxu0
    %v7313 = vadd.f32 0.0, %v7312
    %v7314 = vpop.f32.mrb[0].mxu0
    %v7315 = vadd.f32 0.0, %v7314
    %7316 = vdwg.mxu0
    %7317 = vmatprep.subr.mxu0 %v7244
    %7318 = vmatpush1.msra.mxu0 %v7241
    %7319 = vmatprep.subr.mxu0 0.0
    %7320 = vmatpush1.msra.mxu0 0.0
    %7321 = vmatprep.subr.mxu0 0.0
    %7322 = vmatpush1.msra.mxu0 0.0
    %7323 = vmatprep.subr.mxu0 0.0
    %7324 = vmatpush1.msra.mxu0 0.0
    %7325 = vmatprep.subr.mxu0 0.0
    %7326 = vmatpush1.msra.mxu0 0.0
    %7327 = vmatprep.subr.mxu0 0.0
    %7328 = vmatpush1.msra.mxu0 0.0
    %7329 = vmatprep.subr.mxu0 0.0
    %7330 = vmatpush1.msra.mxu0 0.0
    %7331 = vmatprep.subr.mxu0 0.0
    %7332 = vmatpush1.msra.mxu0 0.0
    %7333 = vmatprep.subr.mxu0 0.0
    %7334 = vmatpush1.msra.mxu0 0.0
    %7335 = vmatprep.subr.mxu0 0.0
    %7336 = vmatpush1.msra.mxu0 0.0
    %7337 = vmatprep.subr.mxu0 0.0
    %7338 = vmatpush1.msra.mxu0 0.0
    %7339 = vmatprep.subr.mxu0 0.0
    %7340 = vmatpush1.msra.mxu0 0.0
    %7341 = vmatprep.subr.mxu0 0.0
    %7342 = vmatpush1.msra.mxu0 0.0
    %7343 = vmatprep.subr.mxu0 0.0
    %7344 = vmatpush1.msra.mxu0 0.0
    %7345 = vmatprep.subr.mxu0 0.0
    %7346 = vmatpush1.msra.mxu0 0.0
    %7347 = vmatprep.subr.mxu0 0.0
    %7348 = vmatpush1.msra.mxu0 0.0
    %7349 = vmatprep.subr.mxu0 0.0
    %7350 = vmatpush1.msra.mxu0 0.0
    %7351 = vmatprep.subr.mxu0 0.0
    %7352 = vmatpush1.msra.mxu0 0.0
    %7353 = vmatprep.subr.mxu0 0.0
    %7354 = vmatpush1.msra.mxu0 0.0
    %7355 = vmatprep.subr.mxu0 0.0
    %7356 = vmatpush1.msra.mxu0 0.0
    %7357 = vmatprep.subr.mxu0 0.0
    %7358 = vmatpush1.msra.mxu0 0.0
    %7359 = vmatprep.subr.mxu0 0.0
    %7360 = vmatpush1.msra.mxu0 0.0
    %7361 = vmatprep.subr.mxu0 0.0
    %7362 = vmatpush1.msra.mxu0 0.0
    %7363 = vmatprep.subr.mxu0 0.0
    %7364 = vmatpush1.msra.mxu0 0.0
    %7365 = vmatprep.subr.mxu0 0.0
    %7366 = vmatpush1.msra.mxu0 0.0
    %7367 = vmatprep.subr.mxu0 0.0
    %7368 = vmatpush1.msra.mxu0 0.0
    %7369 = vmatprep.subr.mxu0 0.0
    %7370 = vmatpush1.msra.mxu0 0.0
    %7371 = vmatprep.subr.mxu0 0.0
    %7372 = vmatpush1.msra.mxu0 0.0
    %7373 = vmatprep.subr.mxu0 0.0
    %7374 = vmatpush1.msra.mxu0 0.0
    %7375 = vmatprep.subr.mxu0 0.0
    %7376 = vmatpush1.msra.mxu0 0.0
    %7377 = vmatprep.subr.mxu0 0.0
    %7378 = vmatpush1.msra.mxu0 0.0
    %7379 = vmatprep.subr.mxu0 0.0
    %7380 = vmatpush1.msra.mxu0 0.0
    %7381 = vmatprep.mubr.f32.mxu0 0.0
    %7382 = vmatmul.mubr.f32.gmra.mrb[0].mxu0 %v7232
    %v7383 = vpop.f32.mrb[0].mxu0
    %v7384 = vadd.f32 0.0, %v7383
    %v7385 = vpop.f32.mrb[0].mxu0
    %v7386 = vadd.f32 0.0, %v7385
    %7387 = vdwg.mxu0
    %v7388 = vadd.f32 %v7225, %v7313
    %v7389 = vadd.f32 %v7226, %v7315
    %v7390 = vadd.f32 %v7227, %v7384
    %v7391 = vadd.f32 %v7228, %v7386
    %7392 = vrot.lane.b32.xlu0 %v7046, 127
    %v7393 = vpop.permute.xlu0 %7392
    %7394 = vrot.lane.b32.xlu0 %v7047, 127
    %v7395 = vpop.permute.xlu0 %7394
    %7396 = vrot.lane.b32.xlu0 %v7048, 127
    %v7397 = vpop.permute.xlu0 %7396
    %7398 = vrot.lane.b32.xlu0 %v7049, 127
    %v7399 = vpop.permute.xlu0 %7398
    %v7400 = vsel %vm1308, %v7397, %v7399
    %v7401 = vsel %vm1308, %v7395, %v7397
    %v7402 = vsel %vm1308, %v7393, %v7395
    %v7403 = vsel %vm1308, %v7399, %v7393
    %v7404 = vsel %vm1317, %v7402, 0.0
    %v7405 = vsel %vm1318, %v7401, 0.0
    %v7406 = vsel %vm1319, %v7400, 0.0
    %v7407 = vsel %vm1320, %v7403, 0.0
    %s7408 = scalar_lea.vmem [#allocation8], 140
    %v7409 = vld [vmem:[%s7408] sm:$0xf]
    %v7411 = vsel %vm251, %v7409, 0
    %v7414 = vsel %vm255, %v7404, 0
    %v7417 = vsel %vm255, %v7405, 0
    %v7420 = vsel %vm255, %v7406, 0
    %v7423 = vsel %vm255, %v7407, 0
    %7425 = vmatprep.subr.mxu0 %v7417
    %7426 = vmatpush1.msra.mxu0 %v7414
    %7427 = vmatprep.subr.mxu0 0.0
    %7428 = vmatpush1.msra.mxu0 0.0
    %7429 = vmatprep.subr.mxu0 0.0
    %7430 = vmatpush1.msra.mxu0 0.0
    %7431 = vmatprep.subr.mxu0 0.0
    %7432 = vmatpush1.msra.mxu0 0.0
    %7433 = vmatprep.subr.mxu0 0.0
    %7434 = vmatpush1.msra.mxu0 0.0
    %7435 = vmatprep.subr.mxu0 0.0
    %7436 = vmatpush1.msra.mxu0 0.0
    %7437 = vmatprep.subr.mxu0 0.0
    %7438 = vmatpush1.msra.mxu0 0.0
    %7439 = vmatprep.subr.mxu0 0.0
    %7440 = vmatpush1.msra.mxu0 0.0
    %7441 = vmatprep.subr.mxu0 0.0
    %7442 = vmatpush1.msra.mxu0 0.0
    %7443 = vmatprep.subr.mxu0 0.0
    %7444 = vmatpush1.msra.mxu0 0.0
    %7445 = vmatprep.subr.mxu0 0.0
    %7446 = vmatpush1.msra.mxu0 0.0
    %7447 = vmatprep.subr.mxu0 0.0
    %7448 = vmatpush1.msra.mxu0 0.0
    %7449 = vmatprep.subr.mxu0 0.0
    %7450 = vmatpush1.msra.mxu0 0.0
    %7451 = vmatprep.subr.mxu0 0.0
    %7452 = vmatpush1.msra.mxu0 0.0
    %7453 = vmatprep.subr.mxu0 0.0
    %7454 = vmatpush1.msra.mxu0 0.0
    %7455 = vmatprep.subr.mxu0 0.0
    %7456 = vmatpush1.msra.mxu0 0.0
    %7457 = vmatprep.subr.mxu0 0.0
    %7458 = vmatpush1.msra.mxu0 0.0
    %7459 = vmatprep.subr.mxu0 0.0
    %7460 = vmatpush1.msra.mxu0 0.0
    %7461 = vmatprep.subr.mxu0 0.0
    %7462 = vmatpush1.msra.mxu0 0.0
    %7463 = vmatprep.subr.mxu0 0.0
    %7464 = vmatpush1.msra.mxu0 0.0
    %7465 = vmatprep.subr.mxu0 0.0
    %7466 = vmatpush1.msra.mxu0 0.0
    %7467 = vmatprep.subr.mxu0 0.0
    %7468 = vmatpush1.msra.mxu0 0.0
    %7469 = vmatprep.subr.mxu0 0.0
    %7470 = vmatpush1.msra.mxu0 0.0
    %7471 = vmatprep.subr.mxu0 0.0
    %7472 = vmatpush1.msra.mxu0 0.0
    %7473 = vmatprep.subr.mxu0 0.0
    %7474 = vmatpush1.msra.mxu0 0.0
    %7475 = vmatprep.subr.mxu0 0.0
    %7476 = vmatpush1.msra.mxu0 0.0
    %7477 = vmatprep.subr.mxu0 0.0
    %7478 = vmatpush1.msra.mxu0 0.0
    %7479 = vmatprep.subr.mxu0 0.0
    %7480 = vmatpush1.msra.mxu0 0.0
    %7481 = vmatprep.subr.mxu0 0.0
    %7482 = vmatpush1.msra.mxu0 0.0
    %7483 = vmatprep.subr.mxu0 0.0
    %7484 = vmatpush1.msra.mxu0 0.0
    %7485 = vmatprep.subr.mxu0 0.0
    %7486 = vmatpush1.msra.mxu0 0.0
    %7487 = vmatprep.subr.mxu0 0.0
    %7488 = vmatpush1.msra.mxu0 0.0
    %7489 = vmatprep.mubr.f32.mxu0 0.0
    %7490 = vmatmul.mubr.f32.gmra.mrb[0].mxu0 %v7411
    %v7491 = vpop.f32.mrb[0].mxu0
    %v7492 = vadd.f32 0.0, %v7491
    %v7493 = vpop.f32.mrb[0].mxu0
    %v7494 = vadd.f32 0.0, %v7493
    %7495 = vdwg.mxu0
    %7496 = vmatprep.subr.mxu0 %v7423
    %7497 = vmatpush1.msra.mxu0 %v7420
    %7498 = vmatprep.subr.mxu0 0.0
    %7499 = vmatpush1.msra.mxu0 0.0
    %7500 = vmatprep.subr.mxu0 0.0
    %7501 = vmatpush1.msra.mxu0 0.0
    %7502 = vmatprep.subr.mxu0 0.0
    %7503 = vmatpush1.msra.mxu0 0.0
    %7504 = vmatprep.subr.mxu0 0.0
    %7505 = vmatpush1.msra.mxu0 0.0
    %7506 = vmatprep.subr.mxu0 0.0
    %7507 = vmatpush1.msra.mxu0 0.0
    %7508 = vmatprep.subr.mxu0 0.0
    %7509 = vmatpush1.msra.mxu0 0.0
    %7510 = vmatprep.subr.mxu0 0.0
    %7511 = vmatpush1.msra.mxu0 0.0
    %7512 = vmatprep.subr.mxu0 0.0
    %7513 = vmatpush1.msra.mxu0 0.0
    %7514 = vmatprep.subr.mxu0 0.0
    %7515 = vmatpush1.msra.mxu0 0.0
    %7516 = vmatprep.subr.mxu0 0.0
    %7517 = vmatpush1.msra.mxu0 0.0
    %7518 = vmatprep.subr.mxu0 0.0
    %7519 = vmatpush1.msra.mxu0 0.0
    %7520 = vmatprep.subr.mxu0 0.0
    %7521 = vmatpush1.msra.mxu0 0.0
    %7522 = vmatprep.subr.mxu0 0.0
    %7523 = vmatpush1.msra.mxu0 0.0
    %7524 = vmatprep.subr.mxu0 0.0
    %7525 = vmatpush1.msra.mxu0 0.0
    %7526 = vmatprep.subr.mxu0 0.0
    %7527 = vmatpush1.msra.mxu0 0.0
    %7528 = vmatprep.subr.mxu0 0.0
    %7529 = vmatpush1.msra.mxu0 0.0
    %7530 = vmatprep.subr.mxu0 0.0
    %7531 = vmatpush1.msra.mxu0 0.0
    %7532 = vmatprep.subr.mxu0 0.0
    %7533 = vmatpush1.msra.mxu0 0.0
    %7534 = vmatprep.subr.mxu0 0.0
    %7535 = vmatpush1.msra.mxu0 0.0
    %7536 = vmatprep.subr.mxu0 0.0
    %7537 = vmatpush1.msra.mxu0 0.0
    %7538 = vmatprep.subr.mxu0 0.0
    %7539 = vmatpush1.msra.mxu0 0.0
    %7540 = vmatprep.subr.mxu0 0.0
    %7541 = vmatpush1.msra.mxu0 0.0
    %7542 = vmatprep.subr.mxu0 0.0
    %7543 = vmatpush1.msra.mxu0 0.0
    %7544 = vmatprep.subr.mxu0 0.0
    %7545 = vmatpush1.msra.mxu0 0.0
    %7546 = vmatprep.subr.mxu0 0.0
    %7547 = vmatpush1.msra.mxu0 0.0
    %7548 = vmatprep.subr.mxu0 0.0
    %7549 = vmatpush1.msra.mxu0 0.0
    %7550 = vmatprep.subr.mxu0 0.0
    %7551 = vmatpush1.msra.mxu0 0.0
    %7552 = vmatprep.subr.mxu0 0.0
    %7553 = vmatpush1.msra.mxu0 0.0
    %7554 = vmatprep.subr.mxu0 0.0
    %7555 = vmatpush1.msra.mxu0 0.0
    %7556 = vmatprep.subr.mxu0 0.0
    %7557 = vmatpush1.msra.mxu0 0.0
    %7558 = vmatprep.subr.mxu0 0.0
    %7559 = vmatpush1.msra.mxu0 0.0
    %7560 = vmatprep.mubr.f32.mxu0 0.0
    %7561 = vmatmul.mubr.f32.gmra.mrb[0].mxu0 %v7411
    %v7562 = vpop.f32.mrb[0].mxu0
    %v7563 = vadd.f32 0.0, %v7562
    %v7564 = vpop.f32.mrb[0].mxu0
    %v7565 = vadd.f32 0.0, %v7564
    %7566 = vdwg.mxu0
    %v7567 = vadd.f32 %v7388, %v7492
    %v7568 = vadd.f32 %v7389, %v7494
    %v7569 = vadd.f32 %v7390, %v7563
    %v7570 = vadd.f32 %v7391, %v7565
    %s7571 = scalar_lea.vmem [#allocation10], 12
    %v7572 = vld [vmem:[%s7571] sm:$0xf]
    %7574 = vset.pattern.permute.xlu0 0
    %7575 = vperm.xlu0 %7574, %v7572
    %v7576 = vpop.permute.xlu0 %7575
    %v7578 = vadd.f32 %v7567, %v7576
    %v7579 = vadd.f32 %v7568, %v7576
    %v7580 = vadd.f32 %v7569, %v7576
    %v7581 = vadd.f32 %v7570, %v7576
    %v7582 = vxor.u32 %v7578, 2147483648
    %v7583 = vxor.u32 %v7579, 2147483648
    %v7584 = vxor.u32 %v7580, 2147483648
    %v7585 = vxor.u32 %v7581, 2147483648
    %v7586 = vmul.f32 %v7582, 1.442695
    %v7587 = vpow.pop %v7586
    %v7588 = vmul.f32 %v7583, 1.442695
    %v7589 = vpow.pop %v7588
    %v7590 = vmul.f32 %v7584, 1.442695
    %v7591 = vpow.pop %v7590
    %v7592 = vmul.f32 %v7585, 1.442695
    %v7593 = vpow.pop %v7592
    %v7594 = vadd.f32 %v7587, 1.0
    %v7595 = vadd.f32 %v7589, 1.0
    %v7596 = vadd.f32 %v7591, 1.0
    %v7597 = vadd.f32 %v7593, 1.0
    %v7598 = vrcp.pop %v7594
    %v7599 = vmul.f32 1.0, %v7598
    %v7600 = vrcp.pop %v7595
    %v7601 = vmul.f32 1.0, %v7600
    %v7602 = vrcp.pop %v7596
    %v7603 = vmul.f32 1.0, %v7602
    %v7604 = vrcp.pop %v7597
    %v7605 = vmul.f32 1.0, %v7604
    %v7606 = vmul.f32 %v7578, %v7599
    %v7607 = vmul.f32 %v7579, %v7601
    %v7608 = vmul.f32 %v7580, %v7603
    %v7609 = vmul.f32 %v7581, %v7605
    %s7610 = scalar_lea.vmem [#allocation11], 24
    %v7611 = vld [vmem:[%s7610] sm:$0xff]
    %v7613 = vsel %vm251, %v7611, 0
    %v7616 = vsel %vm255, %v7606, 0
    %v7619 = vsel %vm255, %v7607, 0
    %v7622 = vsel %vm255, %v7608, 0
    %v7625 = vsel %vm255, %v7609, 0
    %7627 = vmatprep.subr.mxu0 %v7619
    %7628 = vmatpush1.msra.mxu0 %v7616
    %7629 = vmatprep.subr.mxu0 0.0
    %7630 = vmatpush1.msra.mxu0 0.0
    %7631 = vmatprep.subr.mxu0 0.0
    %7632 = vmatpush1.msra.mxu0 0.0
    %7633 = vmatprep.subr.mxu0 0.0
    %7634 = vmatpush1.msra.mxu0 0.0
    %7635 = vmatprep.subr.mxu0 0.0
    %7636 = vmatpush1.msra.mxu0 0.0
    %7637 = vmatprep.subr.mxu0 0.0
    %7638 = vmatpush1.msra.mxu0 0.0
    %7639 = vmatprep.subr.mxu0 0.0
    %7640 = vmatpush1.msra.mxu0 0.0
    %7641 = vmatprep.subr.mxu0 0.0
    %7642 = vmatpush1.msra.mxu0 0.0
    %7643 = vmatprep.subr.mxu0 0.0
    %7644 = vmatpush1.msra.mxu0 0.0
    %7645 = vmatprep.subr.mxu0 0.0
    %7646 = vmatpush1.msra.mxu0 0.0
    %7647 = vmatprep.subr.mxu0 0.0
    %7648 = vmatpush1.msra.mxu0 0.0
    %7649 = vmatprep.subr.mxu0 0.0
    %7650 = vmatpush1.msra.mxu0 0.0
    %7651 = vmatprep.subr.mxu0 0.0
    %7652 = vmatpush1.msra.mxu0 0.0
    %7653 = vmatprep.subr.mxu0 0.0
    %7654 = vmatpush1.msra.mxu0 0.0
    %7655 = vmatprep.subr.mxu0 0.0
    %7656 = vmatpush1.msra.mxu0 0.0
    %7657 = vmatprep.subr.mxu0 0.0
    %7658 = vmatpush1.msra.mxu0 0.0
    %7659 = vmatprep.subr.mxu0 0.0
    %7660 = vmatpush1.msra.mxu0 0.0
    %7661 = vmatprep.subr.mxu0 0.0
    %7662 = vmatpush1.msra.mxu0 0.0
    %7663 = vmatprep.subr.mxu0 0.0
    %7664 = vmatpush1.msra.mxu0 0.0
    %7665 = vmatprep.subr.mxu0 0.0
    %7666 = vmatpush1.msra.mxu0 0.0
    %7667 = vmatprep.subr.mxu0 0.0
    %7668 = vmatpush1.msra.mxu0 0.0
    %7669 = vmatprep.subr.mxu0 0.0
    %7670 = vmatpush1.msra.mxu0 0.0
    %7671 = vmatprep.subr.mxu0 0.0
    %7672 = vmatpush1.msra.mxu0 0.0
    %7673 = vmatprep.subr.mxu0 0.0
    %7674 = vmatpush1.msra.mxu0 0.0
    %7675 = vmatprep.subr.mxu0 0.0
    %7676 = vmatpush1.msra.mxu0 0.0
    %7677 = vmatprep.subr.mxu0 0.0
    %7678 = vmatpush1.msra.mxu0 0.0
    %7679 = vmatprep.subr.mxu0 0.0
    %7680 = vmatpush1.msra.mxu0 0.0
    %7681 = vmatprep.subr.mxu0 0.0
    %7682 = vmatpush1.msra.mxu0 0.0
    %7683 = vmatprep.subr.mxu0 0.0
    %7684 = vmatpush1.msra.mxu0 0.0
    %7685 = vmatprep.subr.mxu0 0.0
    %7686 = vmatpush1.msra.mxu0 0.0
    %7687 = vmatprep.subr.mxu0 0.0
    %7688 = vmatpush1.msra.mxu0 0.0
    %7689 = vmatprep.subr.mxu0 0.0
    %7690 = vmatpush1.msra.mxu0 0.0
    %7691 = vmatprep.mubr.f32.mxu0 0.0
    %7692 = vmatmul.mubr.f32.gmra.mrb[0].mxu0 %v7613
    %v7693 = vpop.f32.mrb[0].mxu0
    %v7694 = vadd.f32 0.0, %v7693
    %v7695 = vpop.f32.mrb[0].mxu0
    %v7696 = vadd.f32 0.0, %v7695
    %7697 = vdwg.mxu0
    %7698 = vmatprep.subr.mxu0 %v7625
    %7699 = vmatpush1.msra.mxu0 %v7622
    %7700 = vmatprep.subr.mxu0 0.0
    %7701 = vmatpush1.msra.mxu0 0.0
    %7702 = vmatprep.subr.mxu0 0.0
    %7703 = vmatpush1.msra.mxu0 0.0
    %7704 = vmatprep.subr.mxu0 0.0
    %7705 = vmatpush1.msra.mxu0 0.0
    %7706 = vmatprep.subr.mxu0 0.0
    %7707 = vmatpush1.msra.mxu0 0.0
    %7708 = vmatprep.subr.mxu0 0.0
    %7709 = vmatpush1.msra.mxu0 0.0
    %7710 = vmatprep.subr.mxu0 0.0
    %7711 = vmatpush1.msra.mxu0 0.0
    %7712 = vmatprep.subr.mxu0 0.0
    %7713 = vmatpush1.msra.mxu0 0.0
    %7714 = vmatprep.subr.mxu0 0.0
    %7715 = vmatpush1.msra.mxu0 0.0
    %7716 = vmatprep.subr.mxu0 0.0
    %7717 = vmatpush1.msra.mxu0 0.0
    %7718 = vmatprep.subr.mxu0 0.0
    %7719 = vmatpush1.msra.mxu0 0.0
    %7720 = vmatprep.subr.mxu0 0.0
    %7721 = vmatpush1.msra.mxu0 0.0
    %7722 = vmatprep.subr.mxu0 0.0
    %7723 = vmatpush1.msra.mxu0 0.0
    %7724 = vmatprep.subr.mxu0 0.0
    %7725 = vmatpush1.msra.mxu0 0.0
    %7726 = vmatprep.subr.mxu0 0.0
    %7727 = vmatpush1.msra.mxu0 0.0
    %7728 = vmatprep.subr.mxu0 0.0
    %7729 = vmatpush1.msra.mxu0 0.0
    %7730 = vmatprep.subr.mxu0 0.0
    %7731 = vmatpush1.msra.mxu0 0.0
    %7732 = vmatprep.subr.mxu0 0.0
    %7733 = vmatpush1.msra.mxu0 0.0
    %7734 = vmatprep.subr.mxu0 0.0
    %7735 = vmatpush1.msra.mxu0 0.0
    %7736 = vmatprep.subr.mxu0 0.0
    %7737 = vmatpush1.msra.mxu0 0.0
    %7738 = vmatprep.subr.mxu0 0.0
    %7739 = vmatpush1.msra.mxu0 0.0
    %7740 = vmatprep.subr.mxu0 0.0
    %7741 = vmatpush1.msra.mxu0 0.0
    %7742 = vmatprep.subr.mxu0 0.0
    %7743 = vmatpush1.msra.mxu0 0.0
    %7744 = vmatprep.subr.mxu0 0.0
    %7745 = vmatpush1.msra.mxu0 0.0
    %7746 = vmatprep.subr.mxu0 0.0
    %7747 = vmatpush1.msra.mxu0 0.0
    %7748 = vmatprep.subr.mxu0 0.0
    %7749 = vmatpush1.msra.mxu0 0.0
    %7750 = vmatprep.subr.mxu0 0.0
    %7751 = vmatpush1.msra.mxu0 0.0
    %7752 = vmatprep.subr.mxu0 0.0
    %7753 = vmatpush1.msra.mxu0 0.0
    %7754 = vmatprep.subr.mxu0 0.0
    %7755 = vmatpush1.msra.mxu0 0.0
    %7756 = vmatprep.subr.mxu0 0.0
    %7757 = vmatpush1.msra.mxu0 0.0
    %7758 = vmatprep.subr.mxu0 0.0
    %7759 = vmatpush1.msra.mxu0 0.0
    %7760 = vmatprep.subr.mxu0 0.0
    %7761 = vmatpush1.msra.mxu0 0.0
    %7762 = vmatprep.mubr.f32.mxu0 0.0
    %7763 = vmatmul.mubr.f32.gmra.mrb[0].mxu0 %v7613
    %v7764 = vpop.f32.mrb[0].mxu0
    %v7765 = vadd.f32 0.0, %v7764
    %v7766 = vpop.f32.mrb[0].mxu0
    %v7767 = vadd.f32 0.0, %v7766
    %7768 = vdwg.mxu0
    %v7769 = vadd.f32 %v4366, %v7694
    %v7770 = vadd.f32 %v4367, %v7696
    %v7771 = vadd.f32 %v4368, %v7765
    %v7772 = vadd.f32 %v4369, %v7767
    %v7773 = vld [vmem:[#allocation13] sm:$0xff]
    %7775 = vset.pattern.permute.xlu0 0
    %7776 = vperm.xlu0 %7775, %v7773
    %v7777 = vpop.permute.xlu0 %7776
    %v7779 = vadd.f32 %v7769, %v7777
    %v7780 = vadd.f32 %v7770, %v7777
    %v7781 = vadd.f32 %v7771, %v7777
    %v7782 = vadd.f32 %v7772, %v7777
    %v7783 = vxor.u32 %v7779, 2147483648
    %v7784 = vxor.u32 %v7780, 2147483648
    %v7785 = vxor.u32 %v7781, 2147483648
    %v7786 = vxor.u32 %v7782, 2147483648
    %v7787 = vmul.f32 %v7783, 1.442695
    %v7788 = vpow.pop %v7787
    %v7789 = vmul.f32 %v7784, 1.442695
    %v7790 = vpow.pop %v7789
    %v7791 = vmul.f32 %v7785, 1.442695
    %v7792 = vpow.pop %v7791
    %v7793 = vmul.f32 %v7786, 1.442695
    %v7794 = vpow.pop %v7793
    %v7795 = vadd.f32 %v7788, 1.0
    %v7796 = vadd.f32 %v7790, 1.0
    %v7797 = vadd.f32 %v7792, 1.0
    %v7798 = vadd.f32 %v7794, 1.0
    %v7799 = vrcp.pop %v7795
    %v7800 = vmul.f32 1.0, %v7799
    %v7801 = vrcp.pop %v7796
    %v7802 = vmul.f32 1.0, %v7801
    %v7803 = vrcp.pop %v7797
    %v7804 = vmul.f32 1.0, %v7803
    %v7805 = vrcp.pop %v7798
    %v7806 = vmul.f32 1.0, %v7805
    %v7807 = vmul.f32 %v7779, %v7800
    %v7808 = vmul.f32 %v7780, %v7802
    %v7809 = vmul.f32 %v7781, %v7804
    %v7810 = vmul.f32 %v7782, %v7806
    %7811 = vst [vmem:[#allocation14] sm:$0xff] %v7807
    %7812 = vst [vmem:[#allocation14 + $0x8] sm:$0xff] %v7808
    %s7813 = scalar_lea.vmem [#allocation14], 16
    %7814 = vst [vmem:[%s7813] sm:$0xff] %v7809
    %7815 = vst [vmem:[%s7813 + $0x8] sm:$0xff] %v7810
    // Predicated region
    $region58: #{tpu_custom_call.1} parent=1 // pred_check
      _
    $region59: #{tpu_custom_call.1} parent=1 // pred_check_branch
      %7817 = sbr.rel (0) target = $region61
    $region60: #{tpu_custom_call.1} parent=1 // pred_region
      %s7819 = ssub.s32 512, 512
      %7820 = vsyncadd [#allocation4], %s7819
      %s7821 = sshll.u32 [#allocation14], 4
      %s7822 = int_to_ptr.vmem [resolvable:$true] %s7821
      %7827 = dma.vmem_to_hbm [thread:$0]  %s7822, 512, %s7, [#allocation4], 256, 256, 16
    $region61: #{tpu_custom_call.1} parent=1 // pred_fallthru
      _
    // Predicated region
    $region62: #{tpu_custom_call.1} parent=1 // pred_check
      _
    $region63: #{tpu_custom_call.1} parent=1 // pred_check_branch
      %7829 = sbr.rel (0) target = $region65
    $region64: #{tpu_custom_call.1} parent=1 // pred_region
      %7830 = dma.done [#allocation4], 512
    $region65: #{tpu_custom_call.1} parent=1 // pred_fallthru
      _
    %7831 = vsyncpa [#allocation3], 1
    %7832 = vsyncpa [#allocation6], 1
    %7833 = vsyncpa [#allocation9], 1
    %7834 = vsyncpa [#allocation12], 1
    %7835 = vsyncpa [#allocation4], 1

</llo_original>
